<compile_context>
chip_gen: v6e
topology: v6e:2x2x1
jax: 0.10.0
libtpu: 0.0.40
codegen_flags: <defaults>
</compile_context>

<pallas_src>
import functools

import jax
import jax.numpy as jnp
from jax.experimental import pallas as pl
from jax.experimental.pallas import tpu as pltpu


def _round_up(v, m):
    return (v + m - 1) // m * m


# ---------------------------------------------------------------------------
# Fused kernel: implicit-GEMM 3x3 conv (x2) + BN / ReLU / residual epilogues
# ---------------------------------------------------------------------------
def _conv3x3(src_ref, w_ref, bias, *, H, W, Wp):
    """3x3 'same' conv over a zero-halo padded VMEM tile (implicit GEMM).

    src_ref: (H+2, Wp, Cin) bf16 scratch, image at [1:H+1, 1:W+1, :]
    w_ref:   (3, 3, Cin, Cout) bf16
    bias:    (1, 1, Cout) f32
    returns: (H, W, Cout) f32
    """
    cin = src_ref.shape[-1]
    cout = w_ref.shape[-1]
    accs = []
    for kj in range(3):
        acc = None
        for ki in range(3):
            # Leading-axis slice only; Wp % 8 == 0 so the (H, Wp) merge below
            # is a layout-preserving view (no per-tap relayout copy).
            a = src_ref[ki:ki + H, :, :].reshape(H * Wp, cin)
            d = jnp.dot(a, w_ref[ki, kj], preferred_element_type=jnp.float32)
            acc = d if acc is None else acc + d
        accs.append(acc.reshape(H, Wp, cout))
    # Realize the kj offsets on the f32 result (2 shifted slices per conv).
    out = accs[0][:, 0:W, :] + accs[1][:, 1:W + 1, :] + accs[2][:, 2:W + 2, :]
    return out + bias


def _resblock_kernel(x_ref, w1_ref, b1_ref, w2_ref, b2_ref, o_ref,
                     xpad_ref, ypad_ref, *, H, W, Wp):
    c = ypad_ref.shape[-1]

    # Zero the padded scratches (cheap; keeps halos correct and is safe even
    # if the batch grid axis is megacore-sharded across TensorCores).
    xpad_ref[...] = jnp.zeros_like(xpad_ref)
    ypad_ref[...] = jnp.zeros_like(ypad_ref)

    # conv1 + BN1 + ReLU  (bf16 operands, f32 accumulation)
    xpad_ref[1:H + 1, 1:W + 1, :] = x_ref[0]
    b1 = b1_ref[...].reshape(1, 1, c)
    y = jnp.maximum(_conv3x3(xpad_ref, w1_ref, b1, H=H, W=W, Wp=Wp), 0.0)

    # conv2 + BN2 + residual-add + ReLU; intermediate y never leaves VMEM.
    ypad_ref[1:H + 1, 1:W + 1, :] = y.astype(jnp.bfloat16)
    b2 = b2_ref[...].reshape(1, 1, c)
    out = _conv3x3(ypad_ref, w2_ref, b2, H=H, W=W, Wp=Wp)
    out = jnp.maximum(out + x_ref[0].astype(jnp.float32), 0.0)
    o_ref[0] = out.astype(o_ref.dtype)


# ---------------------------------------------------------------------------
# Wrapper: NCHW in/out, NHWC internal, channels padded to lane width
# ---------------------------------------------------------------------------
def residual_block_forward(params, x_nchw, *, out_dtype=jnp.float32):
    w1, b1 = params['w1'], params['b1']
    w2, b2 = params['w2'], params['b2']
    n, cin, H, W = x_nchw.shape
    c = w1.shape[-1]
    assert w1.shape[:3] == (3, 3, cin)
    assert cin == c, "ResidualBlock's `x + y` requires in_chan == out_chan"

    LANE = 128
    cp = _round_up(c, LANE)          # lane-dense channel width
    Wp = _round_up(W + 2, 8)         # sublane-aligned padded width

    # NHWC bf16 activations (halves activation DMA; MXU consumes bf16 anyway).
    x = jnp.transpose(x_nchw, (0, 2, 3, 1)).astype(jnp.bfloat16)
    if cp != c:
        x = jnp.pad(x, ((0, 0), (0, 0), (0, 0), (0, cp - c)))
        w1 = jnp.pad(w1, ((0, 0), (0, 0), (0, cp - c), (0, cp - c)))
        w2 = jnp.pad(w2, ((0, 0), (0, 0), (0, cp - c), (0, cp - c)))
        b1 = jnp.pad(b1, (0, cp - c))
        b2 = jnp.pad(b2, (0, cp - c))
    b1 = b1.reshape(1, cp).astype(jnp.float32)
    b2 = b2.reshape(1, cp).astype(jnp.float32)

    kernel = functools.partial(_resblock_kernel, H=H, W=W, Wp=Wp)
    out = pl.pallas_call(
        kernel,
        out_shape=jax.ShapeDtypeStruct((n, H, W, cp), out_dtype),
        grid=(n,),
        in_specs=[
            pl.BlockSpec((1, H, W, cp), lambda i: (i, 0, 0, 0)),
            pl.BlockSpec((3, 3, cp, cp), lambda i: (0, 0, 0, 0)),
            pl.BlockSpec((1, cp), lambda i: (0, 0)),
            pl.BlockSpec((3, 3, cp, cp), lambda i: (0, 0, 0, 0)),
            pl.BlockSpec((1, cp), lambda i: (0, 0)),
        ],
        out_specs=pl.BlockSpec((1, H, W, cp), lambda i: (i, 0, 0, 0)),
        scratch_shapes=[
            pltpu.VMEM((H + 2, Wp, cp), jnp.bfloat16),   # padded x
            pltpu.VMEM((H + 2, Wp, cp), jnp.bfloat16),   # padded y (conv1 out)
        ],
        compiler_params=pltpu.CompilerParams(
            dimension_semantics=("parallel",),
        ),
    )(x, w1.astype(jnp.bfloat16), b1, w2.astype(jnp.bfloat16), b2)

    if cp != c:
        out = out[..., :c]
    return jnp.transpose(out, (0, 3, 1, 2))                       # NCHW


# ---------------------------------------------------------------------------
# Parameter folding (conv bias + BN running stats folded into weight/bias)
# ---------------------------------------------------------------------------
def fold_conv_bn_params(w_hwio, conv_b, gamma, beta, mean, var, eps=1e-5):
    scale = gamma / jnp.sqrt(var + eps)                       # (Cout,)
    w_folded = (w_hwio * scale).astype(jnp.bfloat16)          # (3,3,Cin,Cout)
    bias = ((conv_b - mean) * scale + beta).astype(jnp.float32)
    return w_folded, bias


def init_raw_params(key, chan):
    ks = jax.random.split(key, 12)

    def conv_w(k, cin, cout):
        return jax.random.normal(k, (3, 3, cin, cout), jnp.float32) / jnp.sqrt(9.0 * cin)

    return {
        'w1': conv_w(ks[0], chan, chan),
        'cb1': 0.05 * jax.random.normal(ks[1], (chan,), jnp.float32),
        'g1': 1.0 + 0.1 * jax.random.normal(ks[2], (chan,), jnp.float32),
        'be1': 0.05 * jax.random.normal(ks[3], (chan,), jnp.float32),
        'm1': 0.05 * jax.random.normal(ks[4], (chan,), jnp.float32),
        'v1': 0.9 + 0.2 * jax.random.uniform(ks[5], (chan,), jnp.float32),
        'w2': conv_w(ks[6], chan, chan),
        'cb2': 0.05 * jax.random.normal(ks[7], (chan,), jnp.float32),
        'g2': 1.0 + 0.1 * jax.random.normal(ks[8], (chan,), jnp.float32),
        'be2': 0.05 * jax.random.normal(ks[9], (chan,), jnp.float32),
        'm2': 0.05 * jax.random.normal(ks[10], (chan,), jnp.float32),
        'v2': 0.9 + 0.2 * jax.random.uniform(ks[11], (chan,), jnp.float32),
    }


def fold_params(raw):
    w1, b1 = fold_conv_bn_params(raw['w1'], raw['cb1'], raw['g1'], raw['be1'],
                                 raw['m1'], raw['v1'])
    w2, b2 = fold_conv_bn_params(raw['w2'], raw['cb2'], raw['g2'], raw['be2'],
                                 raw['m2'], raw['v2'])
    return {'w1': w1, 'b1': b1, 'w2': w2, 'b2': b2}


# ---------------------------------------------------------------------------
# Pure-JAX reference (eval-mode BN, f32 everywhere)
# ---------------------------------------------------------------------------
def _ref_conv_bn(x, w, b, gamma, beta, mean, var, eps=1e-5):
    y = jax.lax.conv_general_dilated(
        x, w, window_strides=(1, 1), padding=((1, 1), (1, 1)),
        dimension_numbers=('NCHW', 'HWIO', 'NCHW'))
    y = y + b[None, :, None, None]
    inv = (gamma / jnp.sqrt(var + eps))[None, :, None, None]
    return (y - mean[None, :, None, None]) * inv + beta[None, :, None, None]


def residual_block_ref(raw, x_nchw):
    y = jax.nn.relu(_ref_conv_bn(x_nchw, raw['w1'], raw['cb1'], raw['g1'],
                                 raw['be1'], raw['m1'], raw['v1']))
    y = _ref_conv_bn(y, raw['w2'], raw['cb2'], raw['g2'],
                     raw['be2'], raw['m2'], raw['v2'])
    return jax.nn.relu(x_nchw + y)


if __name__ == "__main__":
    # in_chan == out_chan is required by the module's `x + y` residual add.
    N, C, H, W = 2, 128, 16, 16
    key = jax.random.PRNGKey(0)
    pkey, xkey = jax.random.split(key)
    raw = init_raw_params(pkey, C)
    params = fold_params(raw)
    x = jax.random.normal(xkey, (N, C, H, W), jnp.float32)

    fwd = jax.jit(lambda inp: residual_block_forward(params, inp))
    out = jax.block_until_ready(fwd(x))
    assert out.shape == (N, C, H, W), out.shape
    assert bool(jnp.all(jnp.isfinite(out)))

    ref = residual_block_ref(raw, x)
    max_ref = float(jnp.max(jnp.abs(ref)))
    err = float(jnp.max(jnp.abs(out - ref)))
    assert err <= 5e-2 * max_ref + 5e-2, (err, max_ref)
    print("KERNEL_OK")
</pallas_src>

<mosaic_0001>
module attributes {stable_mosaic.version = 11 : i64} {
  func.func @_resblock_kernel(%arg0: i32, %arg1: memref<1x16x16x128xbf16, #tpu.memory_space<vmem>>, %arg2: memref<3x3x128x128xbf16, #tpu.memory_space<vmem>>, %arg3: memref<1x128xf32, #tpu.memory_space<vmem>>, %arg4: memref<3x3x128x128xbf16, #tpu.memory_space<vmem>>, %arg5: memref<1x128xf32, #tpu.memory_space<vmem>>, %arg6: memref<1x16x16x128xf32, #tpu.memory_space<vmem>>, %arg7: memref<18x24x128xbf16, #tpu.memory_space<vmem>>, %arg8: memref<18x24x128xbf16, #tpu.memory_space<vmem>>) attributes {dimension_semantics = [#tpu.dimension_semantics<parallel>], iteration_bounds = array<i64: 2>, scalar_prefetch = 0 : i64, scratch_operands = 2 : i64, tpu.core_type = #tpu.core_type<tc>, window_params = [{transform_indices = @transform_0, window_bounds = array<i64: 1, 16, 16, 128>}, {pipeline_mode = #tpu.pipeline_mode<synchronous>, transform_indices = @transform_1, window_bounds = array<i64: 3, 3, 128, 128>}, {pipeline_mode = #tpu.pipeline_mode<synchronous>, transform_indices = @transform_2, window_bounds = array<i64: 1, 128>}, {pipeline_mode = #tpu.pipeline_mode<synchronous>, transform_indices = @transform_3, window_bounds = array<i64: 3, 3, 128, 128>}, {pipeline_mode = #tpu.pipeline_mode<synchronous>, transform_indices = @transform_4, window_bounds = array<i64: 1, 128>}, {transform_indices = @transform_5, window_bounds = array<i64: 1, 16, 16, 128>}]} {
    %cst = arith.constant 0.000000e+00 : bf16
    %0 = vector.broadcast %cst : bf16 to vector<18x24x128xbf16>
    %c0 = arith.constant 0 : index
    %c0_0 = arith.constant 0 : index
    %c0_1 = arith.constant 0 : index
    %1 = vector.load %arg7[%c0, %c0_0, %c0_1] : memref<18x24x128xbf16, #tpu.memory_space<vmem>>, vector<18x24x128xbf16>
    tpu.vector_store %arg7[%c0, %c0_0, %c0_1], %0 {strides = array<i32>} : memref<18x24x128xbf16, #tpu.memory_space<vmem>>, vector<18x24x128xbf16>,
    %cst_2 = arith.constant 0.000000e+00 : bf16
    %2 = vector.broadcast %cst_2 : bf16 to vector<18x24x128xbf16>
    %c0_3 = arith.constant 0 : index
    %c0_4 = arith.constant 0 : index
    %c0_5 = arith.constant 0 : index
    %3 = vector.load %arg8[%c0_3, %c0_4, %c0_5] : memref<18x24x128xbf16, #tpu.memory_space<vmem>>, vector<18x24x128xbf16>
    tpu.vector_store %arg8[%c0_3, %c0_4, %c0_5], %2 {strides = array<i32>} : memref<18x24x128xbf16, #tpu.memory_space<vmem>>, vector<18x24x128xbf16>,
    %c0_6 = arith.constant 0 : index
    %c0_7 = arith.constant 0 : index
    %c0_8 = arith.constant 0 : index
    %c0_9 = arith.constant 0 : index
    %4 = vector.load %arg1[%c0_6, %c0_7, %c0_8, %c0_9] : memref<1x16x16x128xbf16, #tpu.memory_space<vmem>>, vector<1x16x16x128xbf16>
    %5 = vector.shape_cast %4 : vector<1x16x16x128xbf16> to vector<16x16x128xbf16>
    %c1 = arith.constant 1 : index
    %c1_10 = arith.constant 1 : index
    %c0_11 = arith.constant 0 : index
    %6 = vector.load %arg7[%c1, %c1_10, %c0_11] : memref<18x24x128xbf16, #tpu.memory_space<vmem>>, vector<16x16x128xbf16>
    tpu.vector_store %arg7[%c1, %c1_10, %c0_11], %5 {strides = array<i32>} : memref<18x24x128xbf16, #tpu.memory_space<vmem>>, vector<16x16x128xbf16>,
    %c0_12 = arith.constant 0 : index
    %c0_13 = arith.constant 0 : index
    %7 = vector.load %arg3[%c0_12, %c0_13] : memref<1x128xf32, #tpu.memory_space<vmem>>, vector<1x128xf32>
    %8 = vector.shape_cast %7 : vector<1x128xf32> to vector<1x1x128xf32>
    %c0_14 = arith.constant 0 : index
    %c0_15 = arith.constant 0 : index
    %c0_16 = arith.constant 0 : index
    %9 = vector.load %arg7[%c0_14, %c0_15, %c0_16] : memref<18x24x128xbf16, #tpu.memory_space<vmem>>, vector<16x24x128xbf16>
    %10 = vector.shape_cast %9 : vector<16x24x128xbf16> to vector<384x128xbf16>
    %c0_17 = arith.constant 0 : index
    %c0_18 = arith.constant 0 : index
    %c0_19 = arith.constant 0 : index
    %c0_20 = arith.constant 0 : index
    %11 = vector.load %arg2[%c0_17, %c0_18, %c0_19, %c0_20] : memref<3x3x128x128xbf16, #tpu.memory_space<vmem>>, vector<1x1x128x128xbf16>
    %12 = vector.shape_cast %11 : vector<1x1x128x128xbf16> to vector<128x128xbf16>
    %cst_21 = arith.constant dense<0.000000e+00> : vector<384x128xf32>
    %13 = tpu.matmul %10, %12, %cst_21 {dimension_numbers = #tpu.dot_dimension_numbers<[1], [0], [0], [1], [0, 0, 1, 1], [], []>} : vector<384x128xbf16>, vector<128x128xbf16>, vector<384x128xf32> -> vector<384x128xf32>
    %c1_22 = arith.constant 1 : index
    %c0_23 = arith.constant 0 : index
    %c0_24 = arith.constant 0 : index
    %14 = vector.load %arg7[%c1_22, %c0_23, %c0_24] : memref<18x24x128xbf16, #tpu.memory_space<vmem>>, vector<16x24x128xbf16>
    %15 = vector.shape_cast %14 : vector<16x24x128xbf16> to vector<384x128xbf16>
    %c1_25 = arith.constant 1 : index
    %c0_26 = arith.constant 0 : index
    %c0_27 = arith.constant 0 : index
    %c0_28 = arith.constant 0 : index
    %16 = vector.load %arg2[%c1_25, %c0_26, %c0_27, %c0_28] : memref<3x3x128x128xbf16, #tpu.memory_space<vmem>>, vector<1x1x128x128xbf16>
    %17 = vector.shape_cast %16 : vector<1x1x128x128xbf16> to vector<128x128xbf16>
    %cst_29 = arith.constant dense<0.000000e+00> : vector<384x128xf32>
    %18 = tpu.matmul %15, %17, %cst_29 {dimension_numbers = #tpu.dot_dimension_numbers<[1], [0], [0], [1], [0, 0, 1, 1], [], []>} : vector<384x128xbf16>, vector<128x128xbf16>, vector<384x128xf32> -> vector<384x128xf32>
    %19 = arith.addf %13, %18 : vector<384x128xf32>
    %c2 = arith.constant 2 : index
    %c0_30 = arith.constant 0 : index
    %c0_31 = arith.constant 0 : index
    %20 = vector.load %arg7[%c2, %c0_30, %c0_31] : memref<18x24x128xbf16, #tpu.memory_space<vmem>>, vector<16x24x128xbf16>
    %21 = vector.shape_cast %20 : vector<16x24x128xbf16> to vector<384x128xbf16>
    %c2_32 = arith.constant 2 : index
    %c0_33 = arith.constant 0 : index
    %c0_34 = arith.constant 0 : index
    %c0_35 = arith.constant 0 : index
    %22 = vector.load %arg2[%c2_32, %c0_33, %c0_34, %c0_35] : memref<3x3x128x128xbf16, #tpu.memory_space<vmem>>, vector<1x1x128x128xbf16>
    %23 = vector.shape_cast %22 : vector<1x1x128x128xbf16> to vector<128x128xbf16>
    %cst_36 = arith.constant dense<0.000000e+00> : vector<384x128xf32>
    %24 = tpu.matmul %21, %23, %cst_36 {dimension_numbers = #tpu.dot_dimension_numbers<[1], [0], [0], [1], [0, 0, 1, 1], [], []>} : vector<384x128xbf16>, vector<128x128xbf16>, vector<384x128xf32> -> vector<384x128xf32>
    %25 = arith.addf %19, %24 : vector<384x128xf32>
    %26 = vector.shape_cast %25 : vector<384x128xf32> to vector<16x24x128xf32>
    %c0_37 = arith.constant 0 : index
    %c0_38 = arith.constant 0 : index
    %c0_39 = arith.constant 0 : index
    %27 = vector.load %arg7[%c0_37, %c0_38, %c0_39] : memref<18x24x128xbf16, #tpu.memory_space<vmem>>, vector<16x24x128xbf16>
    %28 = vector.shape_cast %27 : vector<16x24x128xbf16> to vector<384x128xbf16>
    %c0_40 = arith.constant 0 : index
    %c1_41 = arith.constant 1 : index
    %c0_42 = arith.constant 0 : index
    %c0_43 = arith.constant 0 : index
    %29 = vector.load %arg2[%c0_40, %c1_41, %c0_42, %c0_43] : memref<3x3x128x128xbf16, #tpu.memory_space<vmem>>, vector<1x1x128x128xbf16>
    %30 = vector.shape_cast %29 : vector<1x1x128x128xbf16> to vector<128x128xbf16>
    %cst_44 = arith.constant dense<0.000000e+00> : vector<384x128xf32>
    %31 = tpu.matmul %28, %30, %cst_44 {dimension_numbers = #tpu.dot_dimension_numbers<[1], [0], [0], [1], [0, 0, 1, 1], [], []>} : vector<384x128xbf16>, vector<128x128xbf16>, vector<384x128xf32> -> vector<384x128xf32>
    %c1_45 = arith.constant 1 : index
    %c0_46 = arith.constant 0 : index
    %c0_47 = arith.constant 0 : index
    %32 = vector.load %arg7[%c1_45, %c0_46, %c0_47] : memref<18x24x128xbf16, #tpu.memory_space<vmem>>, vector<16x24x128xbf16>
    %33 = vector.shape_cast %32 : vector<16x24x128xbf16> to vector<384x128xbf16>
    %c1_48 = arith.constant 1 : index
    %c1_49 = arith.constant 1 : index
    %c0_50 = arith.constant 0 : index
    %c0_51 = arith.constant 0 : index
    %34 = vector.load %arg2[%c1_48, %c1_49, %c0_50, %c0_51] : memref<3x3x128x128xbf16, #tpu.memory_space<vmem>>, vector<1x1x128x128xbf16>
    %35 = vector.shape_cast %34 : vector<1x1x128x128xbf16> to vector<128x128xbf16>
    %cst_52 = arith.constant dense<0.000000e+00> : vector<384x128xf32>
    %36 = tpu.matmul %33, %35, %cst_52 {dimension_numbers = #tpu.dot_dimension_numbers<[1], [0], [0], [1], [0, 0, 1, 1], [], []>} : vector<384x128xbf16>, vector<128x128xbf16>, vector<384x128xf32> -> vector<384x128xf32>
    %37 = arith.addf %31, %36 : vector<384x128xf32>
    %c2_53 = arith.constant 2 : index
    %c0_54 = arith.constant 0 : index
    %c0_55 = arith.constant 0 : index
    %38 = vector.load %arg7[%c2_53, %c0_54, %c0_55] : memref<18x24x128xbf16, #tpu.memory_space<vmem>>, vector<16x24x128xbf16>
    %39 = vector.shape_cast %38 : vector<16x24x128xbf16> to vector<384x128xbf16>
    %c2_56 = arith.constant 2 : index
    %c1_57 = arith.constant 1 : index
    %c0_58 = arith.constant 0 : index
    %c0_59 = arith.constant 0 : index
    %40 = vector.load %arg2[%c2_56, %c1_57, %c0_58, %c0_59] : memref<3x3x128x128xbf16, #tpu.memory_space<vmem>>, vector<1x1x128x128xbf16>
    %41 = vector.shape_cast %40 : vector<1x1x128x128xbf16> to vector<128x128xbf16>
    %cst_60 = arith.constant dense<0.000000e+00> : vector<384x128xf32>
    %42 = tpu.matmul %39, %41, %cst_60 {dimension_numbers = #tpu.dot_dimension_numbers<[1], [0], [0], [1], [0, 0, 1, 1], [], []>} : vector<384x128xbf16>, vector<128x128xbf16>, vector<384x128xf32> -> vector<384x128xf32>
    %43 = arith.addf %37, %42 : vector<384x128xf32>
    %44 = vector.shape_cast %43 : vector<384x128xf32> to vector<16x24x128xf32>
    %c0_61 = arith.constant 0 : index
    %c0_62 = arith.constant 0 : index
    %c0_63 = arith.constant 0 : index
    %45 = vector.load %arg7[%c0_61, %c0_62, %c0_63] : memref<18x24x128xbf16, #tpu.memory_space<vmem>>, vector<16x24x128xbf16>
    %46 = vector.shape_cast %45 : vector<16x24x128xbf16> to vector<384x128xbf16>
    %c0_64 = arith.constant 0 : index
    %c2_65 = arith.constant 2 : index
    %c0_66 = arith.constant 0 : index
    %c0_67 = arith.constant 0 : index
    %47 = vector.load %arg2[%c0_64, %c2_65, %c0_66, %c0_67] : memref<3x3x128x128xbf16, #tpu.memory_space<vmem>>, vector<1x1x128x128xbf16>
    %48 = vector.shape_cast %47 : vector<1x1x128x128xbf16> to vector<128x128xbf16>
    %cst_68 = arith.constant dense<0.000000e+00> : vector<384x128xf32>
    %49 = tpu.matmul %46, %48, %cst_68 {dimension_numbers = #tpu.dot_dimension_numbers<[1], [0], [0], [1], [0, 0, 1, 1], [], []>} : vector<384x128xbf16>, vector<128x128xbf16>, vector<384x128xf32> -> vector<384x128xf32>
    %c1_69 = arith.constant 1 : index
    %c0_70 = arith.constant 0 : index
    %c0_71 = arith.constant 0 : index
    %50 = vector.load %arg7[%c1_69, %c0_70, %c0_71] : memref<18x24x128xbf16, #tpu.memory_space<vmem>>, vector<16x24x128xbf16>
    %51 = vector.shape_cast %50 : vector<16x24x128xbf16> to vector<384x128xbf16>
    %c1_72 = arith.constant 1 : index
    %c2_73 = arith.constant 2 : index
    %c0_74 = arith.constant 0 : index
    %c0_75 = arith.constant 0 : index
    %52 = vector.load %arg2[%c1_72, %c2_73, %c0_74, %c0_75] : memref<3x3x128x128xbf16, #tpu.memory_space<vmem>>, vector<1x1x128x128xbf16>
    %53 = vector.shape_cast %52 : vector<1x1x128x128xbf16> to vector<128x128xbf16>
    %cst_76 = arith.constant dense<0.000000e+00> : vector<384x128xf32>
    %54 = tpu.matmul %51, %53, %cst_76 {dimension_numbers = #tpu.dot_dimension_numbers<[1], [0], [0], [1], [0, 0, 1, 1], [], []>} : vector<384x128xbf16>, vector<128x128xbf16>, vector<384x128xf32> -> vector<384x128xf32>
    %55 = arith.addf %49, %54 : vector<384x128xf32>
    %c2_77 = arith.constant 2 : index
    %c0_78 = arith.constant 0 : index
    %c0_79 = arith.constant 0 : index
    %56 = vector.load %arg7[%c2_77, %c0_78, %c0_79] : memref<18x24x128xbf16, #tpu.memory_space<vmem>>, vector<16x24x128xbf16>
    %57 = vector.shape_cast %56 : vector<16x24x128xbf16> to vector<384x128xbf16>
    %c2_80 = arith.constant 2 : index
    %c2_81 = arith.constant 2 : index
    %c0_82 = arith.constant 0 : index
    %c0_83 = arith.constant 0 : index
    %58 = vector.load %arg2[%c2_80, %c2_81, %c0_82, %c0_83] : memref<3x3x128x128xbf16, #tpu.memory_space<vmem>>, vector<1x1x128x128xbf16>
    %59 = vector.shape_cast %58 : vector<1x1x128x128xbf16> to vector<128x128xbf16>
    %cst_84 = arith.constant dense<0.000000e+00> : vector<384x128xf32>
    %60 = tpu.matmul %57, %59, %cst_84 {dimension_numbers = #tpu.dot_dimension_numbers<[1], [0], [0], [1], [0, 0, 1, 1], [], []>} : vector<384x128xbf16>, vector<128x128xbf16>, vector<384x128xf32> -> vector<384x128xf32>
    %61 = arith.addf %55, %60 : vector<384x128xf32>
    %62 = vector.shape_cast %61 : vector<384x128xf32> to vector<16x24x128xf32>
    %63 = vector.extract_strided_slice %26 {offsets = [0, 0, 0], sizes = [16, 16, 128], strides = [1, 1, 1]} : vector<16x24x128xf32> to vector<16x16x128xf32>
    %64 = vector.extract_strided_slice %44 {offsets = [0, 1, 0], sizes = [16, 16, 128], strides = [1, 1, 1]} : vector<16x24x128xf32> to vector<16x16x128xf32>
    %65 = arith.addf %63, %64 : vector<16x16x128xf32>
    %66 = vector.extract_strided_slice %62 {offsets = [0, 2, 0], sizes = [16, 16, 128], strides = [1, 1, 1]} : vector<16x24x128xf32> to vector<16x16x128xf32>
    %67 = arith.addf %65, %66 : vector<16x16x128xf32>
    %68 = vector.broadcast %8 : vector<1x1x128xf32> to vector<16x16x128xf32>
    %69 = arith.addf %67, %68 : vector<16x16x128xf32>
    %cst_85 = arith.constant 0.000000e+00 : f32
    %70 = vector.broadcast %cst_85 : f32 to vector<16x16x128xf32>
    %71 = arith.maximumf %69, %70 : vector<16x16x128xf32>
    %72 = arith.truncf %71 : vector<16x16x128xf32> to vector<16x16x128xbf16>
    %c1_86 = arith.constant 1 : index
    %c1_87 = arith.constant 1 : index
    %c0_88 = arith.constant 0 : index
    %73 = vector.load %arg8[%c1_86, %c1_87, %c0_88] : memref<18x24x128xbf16, #tpu.memory_space<vmem>>, vector<16x16x128xbf16>
    tpu.vector_store %arg8[%c1_86, %c1_87, %c0_88], %72 {strides = array<i32>} : memref<18x24x128xbf16, #tpu.memory_space<vmem>>, vector<16x16x128xbf16>,
    %c0_89 = arith.constant 0 : index
    %c0_90 = arith.constant 0 : index
    %74 = vector.load %arg5[%c0_89, %c0_90] : memref<1x128xf32, #tpu.memory_space<vmem>>, vector<1x128xf32>
    %75 = vector.shape_cast %74 : vector<1x128xf32> to vector<1x1x128xf32>
    %c0_91 = arith.constant 0 : index
    %c0_92 = arith.constant 0 : index
    %c0_93 = arith.constant 0 : index
    %76 = vector.load %arg8[%c0_91, %c0_92, %c0_93] : memref<18x24x128xbf16, #tpu.memory_space<vmem>>, vector<16x24x128xbf16>
    %77 = vector.shape_cast %76 : vector<16x24x128xbf16> to vector<384x128xbf16>
    %c0_94 = arith.constant 0 : index
    %c0_95 = arith.constant 0 : index
    %c0_96 = arith.constant 0 : index
    %c0_97 = arith.constant 0 : index
    %78 = vector.load %arg4[%c0_94, %c0_95, %c0_96, %c0_97] : memref<3x3x128x128xbf16, #tpu.memory_space<vmem>>, vector<1x1x128x128xbf16>
    %79 = vector.shape_cast %78 : vector<1x1x128x128xbf16> to vector<128x128xbf16>
    %cst_98 = arith.constant dense<0.000000e+00> : vector<384x128xf32>
    %80 = tpu.matmul %77, %79, %cst_98 {dimension_numbers = #tpu.dot_dimension_numbers<[1], [0], [0], [1], [0, 0, 1, 1], [], []>} : vector<384x128xbf16>, vector<128x128xbf16>, vector<384x128xf32> -> vector<384x128xf32>
    %c1_99 = arith.constant 1 : index
    %c0_100 = arith.constant 0 : index
    %c0_101 = arith.constant 0 : index
    %81 = vector.load %arg8[%c1_99, %c0_100, %c0_101] : memref<18x24x128xbf16, #tpu.memory_space<vmem>>, vector<16x24x128xbf16>
    %82 = vector.shape_cast %81 : vector<16x24x128xbf16> to vector<384x128xbf16>
    %c1_102 = arith.constant 1 : index
    %c0_103 = arith.constant 0 : index
    %c0_104 = arith.constant 0 : index
    %c0_105 = arith.constant 0 : index
    %83 = vector.load %arg4[%c1_102, %c0_103, %c0_104, %c0_105] : memref<3x3x128x128xbf16, #tpu.memory_space<vmem>>, vector<1x1x128x128xbf16>
    %84 = vector.shape_cast %83 : vector<1x1x128x128xbf16> to vector<128x128xbf16>
    %cst_106 = arith.constant dense<0.000000e+00> : vector<384x128xf32>
    %85 = tpu.matmul %82, %84, %cst_106 {dimension_numbers = #tpu.dot_dimension_numbers<[1], [0], [0], [1], [0, 0, 1, 1], [], []>} : vector<384x128xbf16>, vector<128x128xbf16>, vector<384x128xf32> -> vector<384x128xf32>
    %86 = arith.addf %80, %85 : vector<384x128xf32>
    %c2_107 = arith.constant 2 : index
    %c0_108 = arith.constant 0 : index
    %c0_109 = arith.constant 0 : index
    %87 = vector.load %arg8[%c2_107, %c0_108, %c0_109] : memref<18x24x128xbf16, #tpu.memory_space<vmem>>, vector<16x24x128xbf16>
    %88 = vector.shape_cast %87 : vector<16x24x128xbf16> to vector<384x128xbf16>
    %c2_110 = arith.constant 2 : index
    %c0_111 = arith.constant 0 : index
    %c0_112 = arith.constant 0 : index
    %c0_113 = arith.constant 0 : index
    %89 = vector.load %arg4[%c2_110, %c0_111, %c0_112, %c0_113] : memref<3x3x128x128xbf16, #tpu.memory_space<vmem>>, vector<1x1x128x128xbf16>
    %90 = vector.shape_cast %89 : vector<1x1x128x128xbf16> to vector<128x128xbf16>
    %cst_114 = arith.constant dense<0.000000e+00> : vector<384x128xf32>
    %91 = tpu.matmul %88, %90, %cst_114 {dimension_numbers = #tpu.dot_dimension_numbers<[1], [0], [0], [1], [0, 0, 1, 1], [], []>} : vector<384x128xbf16>, vector<128x128xbf16>, vector<384x128xf32> -> vector<384x128xf32>
    %92 = arith.addf %86, %91 : vector<384x128xf32>
    %93 = vector.shape_cast %92 : vector<384x128xf32> to vector<16x24x128xf32>
    %c0_115 = arith.constant 0 : index
    %c0_116 = arith.constant 0 : index
    %c0_117 = arith.constant 0 : index
    %94 = vector.load %arg8[%c0_115, %c0_116, %c0_117] : memref<18x24x128xbf16, #tpu.memory_space<vmem>>, vector<16x24x128xbf16>
    %95 = vector.shape_cast %94 : vector<16x24x128xbf16> to vector<384x128xbf16>
    %c0_118 = arith.constant 0 : index
    %c1_119 = arith.constant 1 : index
    %c0_120 = arith.constant 0 : index
    %c0_121 = arith.constant 0 : index
    %96 = vector.load %arg4[%c0_118, %c1_119, %c0_120, %c0_121] : memref<3x3x128x128xbf16, #tpu.memory_space<vmem>>, vector<1x1x128x128xbf16>
    %97 = vector.shape_cast %96 : vector<1x1x128x128xbf16> to vector<128x128xbf16>
    %cst_122 = arith.constant dense<0.000000e+00> : vector<384x128xf32>
    %98 = tpu.matmul %95, %97, %cst_122 {dimension_numbers = #tpu.dot_dimension_numbers<[1], [0], [0], [1], [0, 0, 1, 1], [], []>} : vector<384x128xbf16>, vector<128x128xbf16>, vector<384x128xf32> -> vector<384x128xf32>
    %c1_123 = arith.constant 1 : index
    %c0_124 = arith.constant 0 : index
    %c0_125 = arith.constant 0 : index
    %99 = vector.load %arg8[%c1_123, %c0_124, %c0_125] : memref<18x24x128xbf16, #tpu.memory_space<vmem>>, vector<16x24x128xbf16>
    %100 = vector.shape_cast %99 : vector<16x24x128xbf16> to vector<384x128xbf16>
    %c1_126 = arith.constant 1 : index
    %c1_127 = arith.constant 1 : index
    %c0_128 = arith.constant 0 : index
    %c0_129 = arith.constant 0 : index
    %101 = vector.load %arg4[%c1_126, %c1_127, %c0_128, %c0_129] : memref<3x3x128x128xbf16, #tpu.memory_space<vmem>>, vector<1x1x128x128xbf16>
    %102 = vector.shape_cast %101 : vector<1x1x128x128xbf16> to vector<128x128xbf16>
    %cst_130 = arith.constant dense<0.000000e+00> : vector<384x128xf32>
    %103 = tpu.matmul %100, %102, %cst_130 {dimension_numbers = #tpu.dot_dimension_numbers<[1], [0], [0], [1], [0, 0, 1, 1], [], []>} : vector<384x128xbf16>, vector<128x128xbf16>, vector<384x128xf32> -> vector<384x128xf32>
    %104 = arith.addf %98, %103 : vector<384x128xf32>
    %c2_131 = arith.constant 2 : index
    %c0_132 = arith.constant 0 : index
    %c0_133 = arith.constant 0 : index
    %105 = vector.load %arg8[%c2_131, %c0_132, %c0_133] : memref<18x24x128xbf16, #tpu.memory_space<vmem>>, vector<16x24x128xbf16>
    %106 = vector.shape_cast %105 : vector<16x24x128xbf16> to vector<384x128xbf16>
    %c2_134 = arith.constant 2 : index
    %c1_135 = arith.constant 1 : index
    %c0_136 = arith.constant 0 : index
    %c0_137 = arith.constant 0 : index
    %107 = vector.load %arg4[%c2_134, %c1_135, %c0_136, %c0_137] : memref<3x3x128x128xbf16, #tpu.memory_space<vmem>>, vector<1x1x128x128xbf16>
    %108 = vector.shape_cast %107 : vector<1x1x128x128xbf16> to vector<128x128xbf16>
    %cst_138 = arith.constant dense<0.000000e+00> : vector<384x128xf32>
    %109 = tpu.matmul %106, %108, %cst_138 {dimension_numbers = #tpu.dot_dimension_numbers<[1], [0], [0], [1], [0, 0, 1, 1], [], []>} : vector<384x128xbf16>, vector<128x128xbf16>, vector<384x128xf32> -> vector<384x128xf32>
    %110 = arith.addf %104, %109 : vector<384x128xf32>
    %111 = vector.shape_cast %110 : vector<384x128xf32> to vector<16x24x128xf32>
    %c0_139 = arith.constant 0 : index
    %c0_140 = arith.constant 0 : index
    %c0_141 = arith.constant 0 : index
    %112 = vector.load %arg8[%c0_139, %c0_140, %c0_141] : memref<18x24x128xbf16, #tpu.memory_space<vmem>>, vector<16x24x128xbf16>
    %113 = vector.shape_cast %112 : vector<16x24x128xbf16> to vector<384x128xbf16>
    %c0_142 = arith.constant 0 : index
    %c2_143 = arith.constant 2 : index
    %c0_144 = arith.constant 0 : index
    %c0_145 = arith.constant 0 : index
    %114 = vector.load %arg4[%c0_142, %c2_143, %c0_144, %c0_145] : memref<3x3x128x128xbf16, #tpu.memory_space<vmem>>, vector<1x1x128x128xbf16>
    %115 = vector.shape_cast %114 : vector<1x1x128x128xbf16> to vector<128x128xbf16>
    %cst_146 = arith.constant dense<0.000000e+00> : vector<384x128xf32>
    %116 = tpu.matmul %113, %115, %cst_146 {dimension_numbers = #tpu.dot_dimension_numbers<[1], [0], [0], [1], [0, 0, 1, 1], [], []>} : vector<384x128xbf16>, vector<128x128xbf16>, vector<384x128xf32> -> vector<384x128xf32>
    %c1_147 = arith.constant 1 : index
    %c0_148 = arith.constant 0 : index
    %c0_149 = arith.constant 0 : index
    %117 = vector.load %arg8[%c1_147, %c0_148, %c0_149] : memref<18x24x128xbf16, #tpu.memory_space<vmem>>, vector<16x24x128xbf16>
    %118 = vector.shape_cast %117 : vector<16x24x128xbf16> to vector<384x128xbf16>
    %c1_150 = arith.constant 1 : index
    %c2_151 = arith.constant 2 : index
    %c0_152 = arith.constant 0 : index
    %c0_153 = arith.constant 0 : index
    %119 = vector.load %arg4[%c1_150, %c2_151, %c0_152, %c0_153] : memref<3x3x128x128xbf16, #tpu.memory_space<vmem>>, vector<1x1x128x128xbf16>
    %120 = vector.shape_cast %119 : vector<1x1x128x128xbf16> to vector<128x128xbf16>
    %cst_154 = arith.constant dense<0.000000e+00> : vector<384x128xf32>
    %121 = tpu.matmul %118, %120, %cst_154 {dimension_numbers = #tpu.dot_dimension_numbers<[1], [0], [0], [1], [0, 0, 1, 1], [], []>} : vector<384x128xbf16>, vector<128x128xbf16>, vector<384x128xf32> -> vector<384x128xf32>
    %122 = arith.addf %116, %121 : vector<384x128xf32>
    %c2_155 = arith.constant 2 : index
    %c0_156 = arith.constant 0 : index
    %c0_157 = arith.constant 0 : index
    %123 = vector.load %arg8[%c2_155, %c0_156, %c0_157] : memref<18x24x128xbf16, #tpu.memory_space<vmem>>, vector<16x24x128xbf16>
    %124 = vector.shape_cast %123 : vector<16x24x128xbf16> to vector<384x128xbf16>
    %c2_158 = arith.constant 2 : index
    %c2_159 = arith.constant 2 : index
    %c0_160 = arith.constant 0 : index
    %c0_161 = arith.constant 0 : index
    %125 = vector.load %arg4[%c2_158, %c2_159, %c0_160, %c0_161] : memref<3x3x128x128xbf16, #tpu.memory_space<vmem>>, vector<1x1x128x128xbf16>
    %126 = vector.shape_cast %125 : vector<1x1x128x128xbf16> to vector<128x128xbf16>
    %cst_162 = arith.constant dense<0.000000e+00> : vector<384x128xf32>
    %127 = tpu.matmul %124, %126, %cst_162 {dimension_numbers = #tpu.dot_dimension_numbers<[1], [0], [0], [1], [0, 0, 1, 1], [], []>} : vector<384x128xbf16>, vector<128x128xbf16>, vector<384x128xf32> -> vector<384x128xf32>
    %128 = arith.addf %122, %127 : vector<384x128xf32>
    %129 = vector.shape_cast %128 : vector<384x128xf32> to vector<16x24x128xf32>
    %130 = vector.extract_strided_slice %93 {offsets = [0, 0, 0], sizes = [16, 16, 128], strides = [1, 1, 1]} : vector<16x24x128xf32> to vector<16x16x128xf32>
    %131 = vector.extract_strided_slice %111 {offsets = [0, 1, 0], sizes = [16, 16, 128], strides = [1, 1, 1]} : vector<16x24x128xf32> to vector<16x16x128xf32>
    %132 = arith.addf %130, %131 : vector<16x16x128xf32>
    %133 = vector.extract_strided_slice %129 {offsets = [0, 2, 0], sizes = [16, 16, 128], strides = [1, 1, 1]} : vector<16x24x128xf32> to vector<16x16x128xf32>
    %134 = arith.addf %132, %133 : vector<16x16x128xf32>
    %135 = vector.broadcast %75 : vector<1x1x128xf32> to vector<16x16x128xf32>
    %136 = arith.addf %134, %135 : vector<16x16x128xf32>
    %c0_163 = arith.constant 0 : index
    %c0_164 = arith.constant 0 : index
    %c0_165 = arith.constant 0 : index
    %c0_166 = arith.constant 0 : index
    %137 = vector.load %arg1[%c0_163, %c0_164, %c0_165, %c0_166] : memref<1x16x16x128xbf16, #tpu.memory_space<vmem>>, vector<1x16x16x128xbf16>
    %138 = vector.shape_cast %137 : vector<1x16x16x128xbf16> to vector<16x16x128xbf16>
    %139 = arith.extf %138 : vector<16x16x128xbf16> to vector<16x16x128xf32>
    %140 = arith.addf %136, %139 : vector<16x16x128xf32>
    %cst_167 = arith.constant 0.000000e+00 : f32
    %141 = vector.broadcast %cst_167 : f32 to vector<16x16x128xf32>
    %142 = arith.maximumf %140, %141 : vector<16x16x128xf32>
    %c0_168 = arith.constant 0 : index
    %c0_169 = arith.constant 0 : index
    %c0_170 = arith.constant 0 : index
    %c0_171 = arith.constant 0 : index
    %143 = vector.load %arg6[%c0_168, %c0_169, %c0_170, %c0_171] : memref<1x16x16x128xf32, #tpu.memory_space<vmem>>, vector<1x16x16x128xf32>
    %144 = vector.shape_cast %143 : vector<1x16x16x128xf32> to vector<16x16x128xf32>
    %145 = vector.shape_cast %142 : vector<16x16x128xf32> to vector<1x16x16x128xf32>
    tpu.vector_store %arg6[%c0_168, %c0_169, %c0_170, %c0_171], %145 {strides = array<i32>} : memref<1x16x16x128xf32, #tpu.memory_space<vmem>>, vector<1x16x16x128xf32>,
    return
  }
  func.func @transform_0(%arg0: i32) -> (i32, i32, i32, i32) {
    %c0_i32 = arith.constant 0 : i32
    %c0_i32_0 = arith.constant 0 : i32
    %c0_i32_1 = arith.constant 0 : i32
    %c0_i32_2 = arith.constant 0 : i32
    return %arg0, %c0_i32, %c0_i32_0, %c0_i32_1 : i32, i32, i32, i32
  }
  func.func @transform_1(%arg0: i32) -> (i32, i32, i32, i32) {
    %c0_i32 = arith.constant 0 : i32
    %c0_i32_0 = arith.constant 0 : i32
    %c0_i32_1 = arith.constant 0 : i32
    %c0_i32_2 = arith.constant 0 : i32
    %c0_i32_3 = arith.constant 0 : i32
    return %c0_i32, %c0_i32_0, %c0_i32_1, %c0_i32_2 : i32, i32, i32, i32
  }
  func.func @transform_2(%arg0: i32) -> (i32, i32) {
    %c0_i32 = arith.constant 0 : i32
    %c0_i32_0 = arith.constant 0 : i32
    %c0_i32_1 = arith.constant 0 : i32
    return %c0_i32, %c0_i32_0 : i32, i32
  }
  func.func @transform_3(%arg0: i32) -> (i32, i32, i32, i32) {
    %c0_i32 = arith.constant 0 : i32
    %c0_i32_0 = arith.constant 0 : i32
    %c0_i32_1 = arith.constant 0 : i32
    %c0_i32_2 = arith.constant 0 : i32
    %c0_i32_3 = arith.constant 0 : i32
    return %c0_i32, %c0_i32_0, %c0_i32_1, %c0_i32_2 : i32, i32, i32, i32
  }
  func.func @transform_4(%arg0: i32) -> (i32, i32) {
    %c0_i32 = arith.constant 0 : i32
    %c0_i32_0 = arith.constant 0 : i32
    %c0_i32_1 = arith.constant 0 : i32
    return %c0_i32, %c0_i32_0 : i32, i32
  }
  func.func @transform_5(%arg0: i32) -> (i32, i32, i32, i32) {
    %c0_i32 = arith.constant 0 : i32
    %c0_i32_0 = arith.constant 0 : i32
    %c0_i32_1 = arith.constant 0 : i32
    %c0_i32_2 = arith.constant 0 : i32
    return %arg0, %c0_i32, %c0_i32_0, %c0_i32_1 : i32, i32, i32, i32
  }
}

</mosaic_0001>

<llo_original>
// kernel: _lambda_.1
$region0: #{_lambda_.1}
  #allocation0 [shape = 'u32[]', space=smem, size = 0x4, offset = 0x4, fixed_abs, tag = 'smem constant byte address 0x4 - core index']
  #allocation1 [shape = 'u32[144,128]{1,0:T(1,128)}', space=vmem, size = 0x12000, scoped, tag = 'internal scratch']
  #allocation2 [shape = 'bf16[18,24,128]{2,1,0:T(8,128)(2,1)}', space=vmem, size = 0x1b000, scoped, tag = 'scratch operand']
  #allocation3 [shape = 'bf16[18,24,128]{2,1,0:T(8,128)(2,1)}', space=vmem, size = 0x1b000, scoped, tag = 'scratch operand']
  %s0 = inlined_call_operand.vmem [shape: bf16[2,16,16,128], index: 0, kind: input, shape index: {}]
  %s1 = inlined_call_operand.hbm [shape: bf16[3,3,128,128], index: 1, kind: input, shape index: {}]
  %s2 = inlined_call_operand.vmem [shape: f32[1,128], index: 2, kind: input, shape index: {}]
  %s3 = inlined_call_operand.vmem [shape: bf16[3,3,128,128], index: 3, kind: input, shape index: {}]
  %s4 = inlined_call_operand.vmem [shape: f32[1,128], index: 4, kind: input, shape index: {}]
  %s5 = inlined_call_operand.hbm [shape: f32[2,16,16,128], index: 5, kind: output, shape index: {}]
  %s6 = sld [smem:[#allocation0]]
  $region57: #{_lambda_.1} parent=0
    _
  %s8 = ssub.s32 1, %s6
  %s9 = scalar_select 0, %s8, %s6
  $region1: #{_lambda_.1} parent=0
    #allocation4 [shape = 'u8[294912]{0}', space=vmem, size = 0x48000, scoped, tag = 'input window, operand 1, single buffered']
    #allocation5 [shape = 's32[2]{0}', space=sflag, size = 0x8, scoped, tag = 'scoped memory for _lambda_.1']
    #allocation6 [shape = 's32[2]{0}', space=sflag, size = 0x8, scoped, tag = 'scoped memory for _lambda_.1']
    #allocation7 [shape = 'u8[262144]{0}', space=vmem, size = 0x40000, scoped, tag = 'output window, operand 0']
    %10 = vsyncpa [#allocation5], 0
    %11 = vsyncpa [#allocation6], 0
    %s12 = scalar_lea.sflag [#allocation6], 1
    %13 = vsyncpa %s12, 0
    loop: start=0, step=1, limit=4
    $region2: #{_lambda_.1} parent=1 // loop_pre_header
      _
    $region3: #{_lambda_.1} parent=1 // loop_header
      %s15 = sphi 0, %s19
      %p16 = scmp.ge.s32.totalorder %s15, 4
      %s25 = sphi 0, %s27
      %s28 = sphi 0, %s25
      %s29 = sphi 0, %s28
      %s45 = sphi 0, %s29
      %s49 = sphi 0, %s49
      %s51 = sphi 0, %s49
      %s52 = sphi 0, %s51
      %s66 = sphi 0, %s52
      %s70 = sphi 0, %s70
      %s72 = sphi 0, %s70
      %s73 = sphi 0, %s72
      %s87 = sphi 0, %s73
      %s91 = sphi 0, %s91
      %s93 = sphi 0, %s91
      %s94 = sphi 0, %s93
      %s108 = sphi 0, %s94
      %s112 = sphi 0, %s112
      %s114 = sphi 0, %s112
      %s115 = sphi 0, %s114
      %s129 = sphi 0, %s115
      %s135 = sphi 0, %s137
      %s138 = sphi 0, %s135
      %s139 = sphi 0, %s138
      %s155 = sphi 0, %s139
    $region4: #{_lambda_.1} parent=1 // loop_header_branch
      %18 = sbr.rel (%p16) target = $region8
    $region5: #{_lambda_.1} parent=1 // loop_body
      %s20 = ssub.s32 %s15, 1
      %s21 = ssub.s32 %s15, 2
      %s22 = sadd.s32 %s15, 1
      %s23 = ssub.s32 %s15, %s22
      %p24 = scmp.eq.s32.totalorder %s23, 0
      %s26 = sadd.s32 %s25, 1
      %s27 = scalar_select %p24, %s25, %s26
      %p30 = pneg %p24
      %p31 = scmp.eq.s32.totalorder %s15, 1
      %p32 = por %p30, %p31
      %p33 = scmp.ne.s32.totalorder %s25, %s28
      %p34 = scmp.eq.s32.totalorder %s15, 0
      %p35 = por %p33, %p34
      %p36 = scmp.ne.s32.totalorder %s25, %s28
      %p37 = scmp.eq.s32.totalorder %s20, 1
      %p38 = por %p36, %p37
      %p39 = scmp.ne.s32.totalorder %s28, %s29
      %p40 = scmp.eq.s32.totalorder %s20, 0
      %p41 = por %p39, %p40
      %p42 = scmp.ne.s32.totalorder %s28, %s29
      %p43 = scmp.eq.s32.totalorder %s21, 1
      %p44 = por %p42, %p43
      %p46 = scmp.ne.s32.totalorder %s29, %s45
      %p47 = scmp.eq.s32.totalorder %s21, 0
      %p48 = por %p46, %p47
      %s50 = sadd.s32 %s49, 1
      %p53 = scmp.eq.s32.totalorder %s15, 1
      %p54 = scmp.ne.s32.totalorder %s49, %s51
      %p55 = scmp.eq.s32.totalorder %s15, 0
      %p56 = por %p54, %p55
      %p57 = scmp.ne.s32.totalorder %s49, %s51
      %p58 = scmp.eq.s32.totalorder %s20, 1
      %p59 = por %p57, %p58
      %p60 = scmp.ne.s32.totalorder %s51, %s52
      %p61 = scmp.eq.s32.totalorder %s20, 0
      %p62 = por %p60, %p61
      %p63 = scmp.ne.s32.totalorder %s51, %s52
      %p64 = scmp.eq.s32.totalorder %s21, 1
      %p65 = por %p63, %p64
      %p67 = scmp.ne.s32.totalorder %s52, %s66
      %p68 = scmp.eq.s32.totalorder %s21, 0
      %p69 = por %p67, %p68
      %s71 = sadd.s32 %s70, 1
      %p74 = scmp.eq.s32.totalorder %s15, 1
      %p75 = scmp.ne.s32.totalorder %s70, %s72
      %p76 = scmp.eq.s32.totalorder %s15, 0
      %p77 = por %p75, %p76
      %p78 = scmp.ne.s32.totalorder %s70, %s72
      %p79 = scmp.eq.s32.totalorder %s20, 1
      %p80 = por %p78, %p79
      %p81 = scmp.ne.s32.totalorder %s72, %s73
      %p82 = scmp.eq.s32.totalorder %s20, 0
      %p83 = por %p81, %p82
      %p84 = scmp.ne.s32.totalorder %s72, %s73
      %p85 = scmp.eq.s32.totalorder %s21, 1
      %p86 = por %p84, %p85
      %p88 = scmp.ne.s32.totalorder %s73, %s87
      %p89 = scmp.eq.s32.totalorder %s21, 0
      %p90 = por %p88, %p89
      %s92 = sadd.s32 %s91, 1
      %p95 = scmp.eq.s32.totalorder %s15, 1
      %p96 = scmp.ne.s32.totalorder %s91, %s93
      %p97 = scmp.eq.s32.totalorder %s15, 0
      %p98 = por %p96, %p97
      %p99 = scmp.ne.s32.totalorder %s91, %s93
      %p100 = scmp.eq.s32.totalorder %s20, 1
      %p101 = por %p99, %p100
      %p102 = scmp.ne.s32.totalorder %s93, %s94
      %p103 = scmp.eq.s32.totalorder %s20, 0
      %p104 = por %p102, %p103
      %p105 = scmp.ne.s32.totalorder %s93, %s94
      %p106 = scmp.eq.s32.totalorder %s21, 1
      %p107 = por %p105, %p106
      %p109 = scmp.ne.s32.totalorder %s94, %s108
      %p110 = scmp.eq.s32.totalorder %s21, 0
      %p111 = por %p109, %p110
      %s113 = sadd.s32 %s112, 1
      %p116 = scmp.eq.s32.totalorder %s15, 1
      %p117 = scmp.ne.s32.totalorder %s112, %s114
      %p118 = scmp.eq.s32.totalorder %s15, 0
      %p119 = por %p117, %p118
      %p120 = scmp.ne.s32.totalorder %s112, %s114
      %p121 = scmp.eq.s32.totalorder %s20, 1
      %p122 = por %p120, %p121
      %p123 = scmp.ne.s32.totalorder %s114, %s115
      %p124 = scmp.eq.s32.totalorder %s20, 0
      %p125 = por %p123, %p124
      %p126 = scmp.ne.s32.totalorder %s114, %s115
      %p127 = scmp.eq.s32.totalorder %s21, 1
      %p128 = por %p126, %p127
      %p130 = scmp.ne.s32.totalorder %s115, %s129
      %p131 = scmp.eq.s32.totalorder %s21, 0
      %p132 = por %p130, %p131
      %s133 = ssub.s32 %s15, %s22
      %p134 = scmp.eq.s32.totalorder %s133, 0
      %s136 = sadd.s32 %s135, 1
      %s137 = scalar_select %p134, %s135, %s136
      %p140 = pneg %p134
      %p141 = scmp.eq.s32.totalorder %s15, 1
      %p142 = por %p140, %p141
      %p143 = scmp.ne.s32.totalorder %s135, %s138
      %p144 = scmp.eq.s32.totalorder %s15, 0
      %p145 = por %p143, %p144
      %p146 = scmp.ne.s32.totalorder %s135, %s138
      %p147 = scmp.eq.s32.totalorder %s20, 1
      %p148 = por %p146, %p147
      %p149 = scmp.ne.s32.totalorder %s138, %s139
      %p150 = scmp.eq.s32.totalorder %s20, 0
      %p151 = por %p149, %p150
      %p152 = scmp.ne.s32.totalorder %s138, %s139
      %p153 = scmp.eq.s32.totalorder %s21, 1
      %p154 = por %p152, %p153
      %p156 = scmp.ne.s32.totalorder %s139, %s155
      %p157 = scmp.eq.s32.totalorder %s21, 0
      %p158 = por %p156, %p157
      %p159 = scmp.le.s32.totalorder 1, %s15
      %p160 = scmp.lt.s32.totalorder %s15, 3
      %p161 = pnand %p159, %p160
      %p162 = pneg %p161
      // Predicated region
      $region9: #{_lambda_.1} parent=5 // pred_check
        _
      $region10: #{_lambda_.1} parent=5 // pred_check_branch
        %164 = sbr.rel (%p161) target = $region12
      $region11: #{_lambda_.1} parent=5 // pred_region
        %s165 = ssub.s32 %s15, 1
        // Predicated region
        $region13: #{_lambda_.1} parent=11 // pred_check
          %p166 = pneg %p62
        $region14: #{_lambda_.1} parent=11 // pred_check_branch
          %168 = sbr.rel (%p166) target = $region16
        $region15: #{_lambda_.1} parent=11 // pred_region
          %s170 = ssub.s32 9216, 9216
          %171 = vsyncadd [#allocation5], %s170
          %s172 = sshll.u32 [#allocation4], 4
          %s173 = int_to_ptr.vmem [resolvable:$true] %s172
          %178 = dma.hbm_to_vmem [thread:$0]  %s1, 9216, %s173, [#allocation5], 64, 64, 4
        $region16: #{_lambda_.1} parent=11 // pred_fallthru
          _
        // Predicated region
        $region17: #{_lambda_.1} parent=11 // pred_check
          %p179 = pneg %p83
        $region18: #{_lambda_.1} parent=11 // pred_check_branch
          %181 = sbr.rel (%p179) target = $region20
        $region19: #{_lambda_.1} parent=11 // pred_region
          _
        $region20: #{_lambda_.1} parent=11 // pred_fallthru
          _
        // Predicated region
        $region21: #{_lambda_.1} parent=11 // pred_check
          %p182 = pneg %p104
        $region22: #{_lambda_.1} parent=11 // pred_check_branch
          %184 = sbr.rel (%p182) target = $region24
        $region23: #{_lambda_.1} parent=11 // pred_region
          _
        $region24: #{_lambda_.1} parent=11 // pred_fallthru
          _
        // Predicated region
        $region25: #{_lambda_.1} parent=11 // pred_check
          %p185 = pneg %p125
        $region26: #{_lambda_.1} parent=11 // pred_check_branch
          %187 = sbr.rel (%p185) target = $region28
        $region27: #{_lambda_.1} parent=11 // pred_region
          _
        $region28: #{_lambda_.1} parent=11 // pred_fallthru
          _
      $region12: #{_lambda_.1} parent=5 // pred_fallthru
        _
      %p188 = scmp.lt.s32.totalorder %s15, 2
      // Predicated region
      $region29: #{_lambda_.1} parent=5 // pred_check
        %p189 = pneg %p188
      $region30: #{_lambda_.1} parent=5 // pred_check_branch
        %191 = sbr.rel (%p189) target = $region32
      $region31: #{_lambda_.1} parent=5 // pred_region
        // Predicated region
        $region33: #{_lambda_.1} parent=31 // pred_check
          %p192 = pneg %p35
        $region34: #{_lambda_.1} parent=31 // pred_check_branch
          %194 = sbr.rel (%p192) target = $region36
        $region35: #{_lambda_.1} parent=31 // pred_region
          %p195 = scmp.lt.s32.totalorder %s15, 1
          %s196 = scalar_select %p195, %s15, 1
          %s197 = smul.addr %s196, 32
          %s198 = smul.addr %s197, 4
          %s199 = scalar_lea.vmem %s0, %s198
        $region36: #{_lambda_.1} parent=31 // pred_fallthru
          _
      $region32: #{_lambda_.1} parent=5 // pred_fallthru
        _
      %p200 = scmp.le.s32.totalorder 1, %s15
      %p201 = scmp.lt.s32.totalorder %s15, 3
      %p202 = pnand %p200, %p201
      %p203 = pneg %p202
      // Predicated region
      $region37: #{_lambda_.1} parent=5 // pred_check
        _
      $region38: #{_lambda_.1} parent=5 // pred_check_branch
        %205 = sbr.rel (%p202) target = $region40
      $region39: #{_lambda_.1} parent=5 // pred_region
        %s206 = ssub.s32 %s15, 1
        // Predicated region
        $region41: #{_lambda_.1} parent=39 // pred_check
          %p207 = pneg %p62
        $region42: #{_lambda_.1} parent=39 // pred_check_branch
          %209 = sbr.rel (%p207) target = $region44
        $region43: #{_lambda_.1} parent=39 // pred_region
          %210 = dma.done [#allocation5], 9216
        $region44: #{_lambda_.1} parent=39 // pred_fallthru
          _
        %p211 = scmp.lt.s32.totalorder %s20, 1
        %s212 = scalar_select %p211, %s20, 1
        %s213 = smul.addr %s212, 32
        %s214 = smul.addr %s213, 4
        %s215 = scalar_lea.vmem %s0, %s214
        %p216 = pneg %p41
        %p217 = pneg %p38
        %p218 = pneg %p62
        %p219 = pneg %p59
        %p220 = pneg %p83
        %p221 = pneg %p80
        %p222 = pneg %p104
        %p223 = pneg %p101
        %p224 = pneg %p125
        %p225 = pneg %p122
        %p226 = pneg %p151
        %p227 = pneg %p148
        %s228 = sand.u32 %s138, 1
        %s229 = scalar_lea.sflag [#allocation6], %s228
        %s230 = sand.u32 %s138, 1
        %s231 = smul.addr %s230, 256
        %s232 = scalar_lea.vmem [#allocation7], %s231
        %p233 = scmp.lt.s32.totalorder %s20, 1
        %s234 = scalar_select %p233, %s20, 1
        %s235 = smul.addr %s234, 32
        %s236 = smul.addr %s235, 4
        %s237 = scalar_lea.vmem %s0, %s236
        %239 = vst [vmem:[#allocation2] sm:$0xf] 0
        %240 = vst [vmem:[#allocation2 + $0x4] sm:$0xf] 0
        %241 = vst [vmem:[#allocation2 + $0x8] sm:$0xf] 0
        %242 = vst [vmem:[#allocation2 + $0xc] sm:$0xf] 0
        %243 = vst [vmem:[#allocation2 + $0x10] sm:$0xf] 0
        %244 = vst [vmem:[#allocation2 + $0x14] sm:$0xf] 0
        %245 = vst [vmem:[#allocation2 + $0x18] sm:$0xf] 0
        %246 = vst [vmem:[#allocation2 + $0x1c] sm:$0xf] 0
        %247 = vst [vmem:[#allocation2 + $0x20] sm:$0xf] 0
        %248 = vst [vmem:[#allocation2 + $0x24] sm:$0xf] 0
        %249 = vst [vmem:[#allocation2 + $0x28] sm:$0xf] 0
        %250 = vst [vmem:[#allocation2 + $0x2c] sm:$0xf] 0
        %251 = vst [vmem:[#allocation2 + $0x30] sm:$0xf] 0
        %252 = vst [vmem:[#allocation2 + $0x34] sm:$0xf] 0
        %253 = vst [vmem:[#allocation2 + $0x38] sm:$0xf] 0
        %254 = vst [vmem:[#allocation2 + $0x3c] sm:$0xf] 0
        %255 = vst [vmem:[#allocation2 + $0x40] sm:$0xf] 0
        %256 = vst [vmem:[#allocation2 + $0x44] sm:$0xf] 0
        %257 = vst [vmem:[#allocation2 + $0x48] sm:$0xf] 0
        %258 = vst [vmem:[#allocation2 + $0x4c] sm:$0xf] 0
        %259 = vst [vmem:[#allocation2 + $0x50] sm:$0xf] 0
        %260 = vst [vmem:[#allocation2 + $0x54] sm:$0xf] 0
        %261 = vst [vmem:[#allocation2 + $0x58] sm:$0xf] 0
        %262 = vst [vmem:[#allocation2 + $0x5c] sm:$0xf] 0
        %263 = vst [vmem:[#allocation2 + $0x60] sm:$0xf] 0
        %264 = vst [vmem:[#allocation2 + $0x64] sm:$0xf] 0
        %265 = vst [vmem:[#allocation2 + $0x68] sm:$0xf] 0
        %266 = vst [vmem:[#allocation2 + $0x6c] sm:$0xf] 0
        %267 = vst [vmem:[#allocation2 + $0x70] sm:$0xf] 0
        %268 = vst [vmem:[#allocation2 + $0x74] sm:$0xf] 0
        %269 = vst [vmem:[#allocation2 + $0x78] sm:$0xf] 0
        %270 = vst [vmem:[#allocation2 + $0x7c] sm:$0xf] 0
        %271 = vst [vmem:[#allocation2 + $0x80] sm:$0xf] 0
        %272 = vst [vmem:[#allocation2 + $0x84] sm:$0xf] 0
        %273 = vst [vmem:[#allocation2 + $0x88] sm:$0xf] 0
        %274 = vst [vmem:[#allocation2 + $0x8c] sm:$0xf] 0
        %275 = vst [vmem:[#allocation2 + $0x90] sm:$0xf] 0
        %276 = vst [vmem:[#allocation2 + $0x94] sm:$0xf] 0
        %277 = vst [vmem:[#allocation2 + $0x98] sm:$0xf] 0
        %278 = vst [vmem:[#allocation2 + $0x9c] sm:$0xf] 0
        %279 = vst [vmem:[#allocation2 + $0xa0] sm:$0xf] 0
        %280 = vst [vmem:[#allocation2 + $0xa4] sm:$0xf] 0
        %281 = vst [vmem:[#allocation2 + $0xa8] sm:$0xf] 0
        %282 = vst [vmem:[#allocation2 + $0xac] sm:$0xf] 0
        %283 = vst [vmem:[#allocation2 + $0xb0] sm:$0xf] 0
        %284 = vst [vmem:[#allocation2 + $0xb4] sm:$0xf] 0
        %285 = vst [vmem:[#allocation2 + $0xb8] sm:$0xf] 0
        %286 = vst [vmem:[#allocation2 + $0xbc] sm:$0xf] 0
        %287 = vst [vmem:[#allocation2 + $0xc0] sm:$0xf] 0
        %288 = vst [vmem:[#allocation2 + $0xc4] sm:$0xf] 0
        %289 = vst [vmem:[#allocation2 + $0xc8] sm:$0xf] 0
        %290 = vst [vmem:[#allocation2 + $0xcc] sm:$0xf] 0
        %291 = vst [vmem:[#allocation2 + $0xd0] sm:$0xf] 0
        %292 = vst [vmem:[#allocation2 + $0xd4] sm:$0xf] 0
        %293 = vst [vmem:[#allocation3] sm:$0xf] 0
        %294 = vst [vmem:[#allocation3 + $0x4] sm:$0xf] 0
        %295 = vst [vmem:[#allocation3 + $0x8] sm:$0xf] 0
        %296 = vst [vmem:[#allocation3 + $0xc] sm:$0xf] 0
        %297 = vst [vmem:[#allocation3 + $0x10] sm:$0xf] 0
        %298 = vst [vmem:[#allocation3 + $0x14] sm:$0xf] 0
        %299 = vst [vmem:[#allocation3 + $0x18] sm:$0xf] 0
        %300 = vst [vmem:[#allocation3 + $0x1c] sm:$0xf] 0
        %301 = vst [vmem:[#allocation3 + $0x20] sm:$0xf] 0
        %302 = vst [vmem:[#allocation3 + $0x24] sm:$0xf] 0
        %303 = vst [vmem:[#allocation3 + $0x28] sm:$0xf] 0
        %304 = vst [vmem:[#allocation3 + $0x2c] sm:$0xf] 0
        %305 = vst [vmem:[#allocation3 + $0x30] sm:$0xf] 0
        %306 = vst [vmem:[#allocation3 + $0x34] sm:$0xf] 0
        %307 = vst [vmem:[#allocation3 + $0x38] sm:$0xf] 0
        %308 = vst [vmem:[#allocation3 + $0x3c] sm:$0xf] 0
        %309 = vst [vmem:[#allocation3 + $0x40] sm:$0xf] 0
        %310 = vst [vmem:[#allocation3 + $0x44] sm:$0xf] 0
        %311 = vst [vmem:[#allocation3 + $0x48] sm:$0xf] 0
        %312 = vst [vmem:[#allocation3 + $0x4c] sm:$0xf] 0
        %313 = vst [vmem:[#allocation3 + $0x50] sm:$0xf] 0
        %314 = vst [vmem:[#allocation3 + $0x54] sm:$0xf] 0
        %315 = vst [vmem:[#allocation3 + $0x58] sm:$0xf] 0
        %316 = vst [vmem:[#allocation3 + $0x5c] sm:$0xf] 0
        %317 = vst [vmem:[#allocation3 + $0x60] sm:$0xf] 0
        %318 = vst [vmem:[#allocation3 + $0x64] sm:$0xf] 0
        %319 = vst [vmem:[#allocation3 + $0x68] sm:$0xf] 0
        %320 = vst [vmem:[#allocation3 + $0x6c] sm:$0xf] 0
        %321 = vst [vmem:[#allocation3 + $0x70] sm:$0xf] 0
        %322 = vst [vmem:[#allocation3 + $0x74] sm:$0xf] 0
        %323 = vst [vmem:[#allocation3 + $0x78] sm:$0xf] 0
        %324 = vst [vmem:[#allocation3 + $0x7c] sm:$0xf] 0
        %325 = vst [vmem:[#allocation3 + $0x80] sm:$0xf] 0
        %326 = vst [vmem:[#allocation3 + $0x84] sm:$0xf] 0
        %327 = vst [vmem:[#allocation3 + $0x88] sm:$0xf] 0
        %328 = vst [vmem:[#allocation3 + $0x8c] sm:$0xf] 0
        %329 = vst [vmem:[#allocation3 + $0x90] sm:$0xf] 0
        %330 = vst [vmem:[#allocation3 + $0x94] sm:$0xf] 0
        %331 = vst [vmem:[#allocation3 + $0x98] sm:$0xf] 0
        %332 = vst [vmem:[#allocation3 + $0x9c] sm:$0xf] 0
        %333 = vst [vmem:[#allocation3 + $0xa0] sm:$0xf] 0
        %334 = vst [vmem:[#allocation3 + $0xa4] sm:$0xf] 0
        %335 = vst [vmem:[#allocation3 + $0xa8] sm:$0xf] 0
        %336 = vst [vmem:[#allocation3 + $0xac] sm:$0xf] 0
        %337 = vst [vmem:[#allocation3 + $0xb0] sm:$0xf] 0
        %338 = vst [vmem:[#allocation3 + $0xb4] sm:$0xf] 0
        %339 = vst [vmem:[#allocation3 + $0xb8] sm:$0xf] 0
        %340 = vst [vmem:[#allocation3 + $0xbc] sm:$0xf] 0
        %341 = vst [vmem:[#allocation3 + $0xc0] sm:$0xf] 0
        %342 = vst [vmem:[#allocation3 + $0xc4] sm:$0xf] 0
        %343 = vst [vmem:[#allocation3 + $0xc8] sm:$0xf] 0
        %344 = vst [vmem:[#allocation3 + $0xcc] sm:$0xf] 0
        %345 = vst [vmem:[#allocation3 + $0xd0] sm:$0xf] 0
        %346 = vst [vmem:[#allocation3 + $0xd4] sm:$0xf] 0
        %v347 = vld [vmem:[%s237] sm:$0xf]
        %v348 = vld [vmem:[%s237 + $0x4] sm:$0xf]
        %v349 = vld [vmem:[%s237 + $0x8] sm:$0xf]
        %v350 = vld [vmem:[%s237 + $0xc] sm:$0xf]
        %v351 = vld [vmem:[%s237 + $0x10] sm:$0xf]
        %v352 = vld [vmem:[%s237 + $0x14] sm:$0xf]
        %v353 = vld [vmem:[%s237 + $0x18] sm:$0xf]
        %v354 = vld [vmem:[%s237 + $0x1c] sm:$0xf]
        %v355 = vld [vmem:[%s237 + $0x20] sm:$0xf]
        %v356 = vld [vmem:[%s237 + $0x24] sm:$0xf]
        %v357 = vld [vmem:[%s237 + $0x28] sm:$0xf]
        %v358 = vld [vmem:[%s237 + $0x2c] sm:$0xf]
        %v359 = vld [vmem:[%s237 + $0x30] sm:$0xf]
        %v360 = vld [vmem:[%s237 + $0x34] sm:$0xf]
        %v361 = vld [vmem:[%s237 + $0x38] sm:$0xf]
        %v362 = vld [vmem:[%s237 + $0x3c] sm:$0xf]
        %v363 = vld [vmem:[%s237 + $0x40] sm:$0xf]
        %v364 = vld [vmem:[%s237 + $0x44] sm:$0xf]
        %v365 = vld [vmem:[%s237 + $0x48] sm:$0xf]
        %v366 = vld [vmem:[%s237 + $0x4c] sm:$0xf]
        %v367 = vld [vmem:[%s237 + $0x50] sm:$0xf]
        %v368 = vld [vmem:[%s237 + $0x54] sm:$0xf]
        %v369 = vld [vmem:[%s237 + $0x58] sm:$0xf]
        %v370 = vld [vmem:[%s237 + $0x5c] sm:$0xf]
        %v371 = vld [vmem:[%s237 + $0x60] sm:$0xf]
        %v372 = vld [vmem:[%s237 + $0x64] sm:$0xf]
        %v373 = vld [vmem:[%s237 + $0x68] sm:$0xf]
        %v374 = vld [vmem:[%s237 + $0x6c] sm:$0xf]
        %v375 = vld [vmem:[%s237 + $0x70] sm:$0xf]
        %v376 = vld [vmem:[%s237 + $0x74] sm:$0xf]
        %v377 = vld [vmem:[%s237 + $0x78] sm:$0xf]
        %v378 = vld [vmem:[%s237 + $0x7c] sm:$0xf]
        %vm379 = vsmask.f32 256
        %vm380 = vsmask.f32 4368
        %vm381 = vmor %vm379, %vm380
        %v383 = vshrl.u32 %v347, 16
        %v385 = vrot.slane %v383, 7
        %v386 = vshll.u32 %v347, 16
        %v388 = vor.u32 %v385, %v386
        %v389 = vrot.slane %v385, 4
        %v391 = vshrl.u32 %v348, 16
        %v393 = vrot.slane %v391, 7
        %v394 = vshll.u32 %v348, 16
        %v396 = vor.u32 %v393, %v394
        %v397 = vsel %vm381, %v389, %v396
        %v398 = vrot.slane %v393, 4
        %v400 = vshrl.u32 %v349, 16
        %v402 = vrot.slane %v400, 7
        %v403 = vshll.u32 %v349, 16
        %v405 = vor.u32 %v402, %v403
        %v406 = vrot.slane %v402, 4
        %v408 = vshrl.u32 %v350, 16
        %v410 = vrot.slane %v408, 7
        %v411 = vshll.u32 %v350, 16
        %v413 = vor.u32 %v410, %v411
        %v414 = vsel %vm381, %v406, %v413
        %v415 = vrot.slane %v410, 4
        %v417 = vshrl.u32 %v351, 16
        %v419 = vrot.slane %v417, 7
        %v420 = vshll.u32 %v351, 16
        %v422 = vor.u32 %v419, %v420
        %v423 = vrot.slane %v419, 4
        %v425 = vshrl.u32 %v352, 16
        %v427 = vrot.slane %v425, 7
        %v428 = vshll.u32 %v352, 16
        %v430 = vor.u32 %v427, %v428
        %v431 = vsel %vm381, %v423, %v430
        %v432 = vrot.slane %v427, 4
        %v434 = vshrl.u32 %v353, 16
        %v436 = vrot.slane %v434, 7
        %v437 = vshll.u32 %v353, 16
        %v439 = vor.u32 %v436, %v437
        %v440 = vrot.slane %v436, 4
        %v442 = vshrl.u32 %v354, 16
        %v444 = vrot.slane %v442, 7
        %v445 = vshll.u32 %v354, 16
        %v447 = vor.u32 %v444, %v445
        %v448 = vsel %vm381, %v440, %v447
        %v449 = vrot.slane %v444, 4
        %v451 = vshrl.u32 %v355, 16
        %v453 = vrot.slane %v451, 7
        %v454 = vshll.u32 %v355, 16
        %v456 = vor.u32 %v453, %v454
        %v457 = vrot.slane %v453, 4
        %v459 = vshrl.u32 %v356, 16
        %v461 = vrot.slane %v459, 7
        %v462 = vshll.u32 %v356, 16
        %v464 = vor.u32 %v461, %v462
        %v465 = vsel %vm381, %v457, %v464
        %v466 = vrot.slane %v461, 4
        %v468 = vshrl.u32 %v357, 16
        %v470 = vrot.slane %v468, 7
        %v471 = vshll.u32 %v357, 16
        %v473 = vor.u32 %v470, %v471
        %v474 = vrot.slane %v470, 4
        %v476 = vshrl.u32 %v358, 16
        %v478 = vrot.slane %v476, 7
        %v479 = vshll.u32 %v358, 16
        %v481 = vor.u32 %v478, %v479
        %v482 = vsel %vm381, %v474, %v481
        %v483 = vrot.slane %v478, 4
        %v485 = vshrl.u32 %v359, 16
        %v487 = vrot.slane %v485, 7
        %v488 = vshll.u32 %v359, 16
        %v490 = vor.u32 %v487, %v488
        %v491 = vrot.slane %v487, 4
        %v493 = vshrl.u32 %v360, 16
        %v495 = vrot.slane %v493, 7
        %v496 = vshll.u32 %v360, 16
        %v498 = vor.u32 %v495, %v496
        %v499 = vsel %vm381, %v491, %v498
        %v500 = vrot.slane %v495, 4
        %v502 = vshrl.u32 %v361, 16
        %v504 = vrot.slane %v502, 7
        %v505 = vshll.u32 %v361, 16
        %v507 = vor.u32 %v504, %v505
        %v508 = vrot.slane %v504, 4
        %v510 = vshrl.u32 %v362, 16
        %v512 = vrot.slane %v510, 7
        %v513 = vshll.u32 %v362, 16
        %v515 = vor.u32 %v512, %v513
        %v516 = vsel %vm381, %v508, %v515
        %v517 = vrot.slane %v512, 4
        %v519 = vshrl.u32 %v363, 16
        %v521 = vrot.slane %v519, 7
        %v522 = vshll.u32 %v363, 16
        %v524 = vor.u32 %v521, %v522
        %v525 = vrot.slane %v521, 4
        %v527 = vshrl.u32 %v364, 16
        %v529 = vrot.slane %v527, 7
        %v530 = vshll.u32 %v364, 16
        %v532 = vor.u32 %v529, %v530
        %v533 = vsel %vm381, %v525, %v532
        %v534 = vrot.slane %v529, 4
        %v536 = vshrl.u32 %v365, 16
        %v538 = vrot.slane %v536, 7
        %v539 = vshll.u32 %v365, 16
        %v541 = vor.u32 %v538, %v539
        %v542 = vrot.slane %v538, 4
        %v544 = vshrl.u32 %v366, 16
        %v546 = vrot.slane %v544, 7
        %v547 = vshll.u32 %v366, 16
        %v549 = vor.u32 %v546, %v547
        %v550 = vsel %vm381, %v542, %v549
        %v551 = vrot.slane %v546, 4
        %v553 = vshrl.u32 %v367, 16
        %v555 = vrot.slane %v553, 7
        %v556 = vshll.u32 %v367, 16
        %v558 = vor.u32 %v555, %v556
        %v559 = vrot.slane %v555, 4
        %v561 = vshrl.u32 %v368, 16
        %v563 = vrot.slane %v561, 7
        %v564 = vshll.u32 %v368, 16
        %v566 = vor.u32 %v563, %v564
        %v567 = vsel %vm381, %v559, %v566
        %v568 = vrot.slane %v563, 4
        %v570 = vshrl.u32 %v369, 16
        %v572 = vrot.slane %v570, 7
        %v573 = vshll.u32 %v369, 16
        %v575 = vor.u32 %v572, %v573
        %v576 = vrot.slane %v572, 4
        %v578 = vshrl.u32 %v370, 16
        %v580 = vrot.slane %v578, 7
        %v581 = vshll.u32 %v370, 16
        %v583 = vor.u32 %v580, %v581
        %v584 = vsel %vm381, %v576, %v583
        %v585 = vrot.slane %v580, 4
        %v587 = vshrl.u32 %v371, 16
        %v589 = vrot.slane %v587, 7
        %v590 = vshll.u32 %v371, 16
        %v592 = vor.u32 %v589, %v590
        %v593 = vrot.slane %v589, 4
        %v595 = vshrl.u32 %v372, 16
        %v597 = vrot.slane %v595, 7
        %v598 = vshll.u32 %v372, 16
        %v600 = vor.u32 %v597, %v598
        %v601 = vsel %vm381, %v593, %v600
        %v602 = vrot.slane %v597, 4
        %v604 = vshrl.u32 %v373, 16
        %v606 = vrot.slane %v604, 7
        %v607 = vshll.u32 %v373, 16
        %v609 = vor.u32 %v606, %v607
        %v610 = vrot.slane %v606, 4
        %v612 = vshrl.u32 %v374, 16
        %v614 = vrot.slane %v612, 7
        %v615 = vshll.u32 %v374, 16
        %v617 = vor.u32 %v614, %v615
        %v618 = vsel %vm381, %v610, %v617
        %v619 = vrot.slane %v614, 4
        %v621 = vshrl.u32 %v375, 16
        %v623 = vrot.slane %v621, 7
        %v624 = vshll.u32 %v375, 16
        %v626 = vor.u32 %v623, %v624
        %v627 = vrot.slane %v623, 4
        %v629 = vshrl.u32 %v376, 16
        %v631 = vrot.slane %v629, 7
        %v632 = vshll.u32 %v376, 16
        %v634 = vor.u32 %v631, %v632
        %v635 = vsel %vm381, %v627, %v634
        %v636 = vrot.slane %v631, 4
        %v638 = vshrl.u32 %v377, 16
        %v640 = vrot.slane %v638, 7
        %v641 = vshll.u32 %v377, 16
        %v643 = vor.u32 %v640, %v641
        %v644 = vrot.slane %v640, 4
        %v646 = vshrl.u32 %v378, 16
        %v648 = vrot.slane %v646, 7
        %v649 = vshll.u32 %v378, 16
        %v651 = vor.u32 %v648, %v649
        %v652 = vsel %vm381, %v644, %v651
        %v653 = vrot.slane %v648, 4
        %s702 = scalar_lea.vmem [#allocation2], 12
        %vm703 = vcmask 1043456
        %vm704 = vsmask.f32 7938
        %vm705 = vmand %vm703, %vm704
        %v706 = vld [vmem:[%s702] sm:$0xf]
        %v707 = vsel %vm705, %v388, %v706
        %708 = vst [vmem:[%s702] sm:$0xf] %v707
        %709 = vst [vmem:[%s702 + $0x4] sm:$0xf] %v397
        %vm710 = vcmask 1040384
        %vm711 = vmand %vm710, %vm379
        %v712 = vld [vmem:[%s702 + $0x8] sm:$0x1]
        %v713 = vsel %vm711, %v398, %v712
        %714 = vst [vmem:[%s702 + $0x8] sm:$0x1] %v713
        %v715 = vld [vmem:[%s702 + $0xc] sm:$0xf]
        %v716 = vsel %vm705, %v405, %v715
        %717 = vst [vmem:[%s702 + $0xc] sm:$0xf] %v716
        %718 = vst [vmem:[%s702 + $0x10] sm:$0xf] %v414
        %v719 = vld [vmem:[%s702 + $0x14] sm:$0x1]
        %v720 = vsel %vm711, %v415, %v719
        %721 = vst [vmem:[%s702 + $0x14] sm:$0x1] %v720
        %v722 = vld [vmem:[%s702 + $0x18] sm:$0xf]
        %v723 = vsel %vm705, %v422, %v722
        %724 = vst [vmem:[%s702 + $0x18] sm:$0xf] %v723
        %725 = vst [vmem:[%s702 + $0x1c] sm:$0xf] %v431
        %v726 = vld [vmem:[%s702 + $0x20] sm:$0x1]
        %v727 = vsel %vm711, %v432, %v726
        %728 = vst [vmem:[%s702 + $0x20] sm:$0x1] %v727
        %v729 = vld [vmem:[%s702 + $0x24] sm:$0xf]
        %v730 = vsel %vm705, %v439, %v729
        %731 = vst [vmem:[%s702 + $0x24] sm:$0xf] %v730
        %732 = vst [vmem:[%s702 + $0x28] sm:$0xf] %v448
        %v733 = vld [vmem:[%s702 + $0x2c] sm:$0x1]
        %v734 = vsel %vm711, %v449, %v733
        %735 = vst [vmem:[%s702 + $0x2c] sm:$0x1] %v734
        %v736 = vld [vmem:[%s702 + $0x30] sm:$0xf]
        %v737 = vsel %vm705, %v456, %v736
        %738 = vst [vmem:[%s702 + $0x30] sm:$0xf] %v737
        %739 = vst [vmem:[%s702 + $0x34] sm:$0xf] %v465
        %v740 = vld [vmem:[%s702 + $0x38] sm:$0x1]
        %v741 = vsel %vm711, %v466, %v740
        %742 = vst [vmem:[%s702 + $0x38] sm:$0x1] %v741
        %v743 = vld [vmem:[%s702 + $0x3c] sm:$0xf]
        %v744 = vsel %vm705, %v473, %v743
        %745 = vst [vmem:[%s702 + $0x3c] sm:$0xf] %v744
        %746 = vst [vmem:[%s702 + $0x40] sm:$0xf] %v482
        %v747 = vld [vmem:[%s702 + $0x44] sm:$0x1]
        %v748 = vsel %vm711, %v483, %v747
        %749 = vst [vmem:[%s702 + $0x44] sm:$0x1] %v748
        %v750 = vld [vmem:[%s702 + $0x48] sm:$0xf]
        %v751 = vsel %vm705, %v490, %v750
        %752 = vst [vmem:[%s702 + $0x48] sm:$0xf] %v751
        %753 = vst [vmem:[%s702 + $0x4c] sm:$0xf] %v499
        %v754 = vld [vmem:[%s702 + $0x50] sm:$0x1]
        %v755 = vsel %vm711, %v500, %v754
        %756 = vst [vmem:[%s702 + $0x50] sm:$0x1] %v755
        %v757 = vld [vmem:[%s702 + $0x54] sm:$0xf]
        %v758 = vsel %vm705, %v507, %v757
        %759 = vst [vmem:[%s702 + $0x54] sm:$0xf] %v758
        %760 = vst [vmem:[%s702 + $0x58] sm:$0xf] %v516
        %v761 = vld [vmem:[%s702 + $0x5c] sm:$0x1]
        %v762 = vsel %vm711, %v517, %v761
        %763 = vst [vmem:[%s702 + $0x5c] sm:$0x1] %v762
        %v764 = vld [vmem:[%s702 + $0x60] sm:$0xf]
        %v765 = vsel %vm705, %v524, %v764
        %766 = vst [vmem:[%s702 + $0x60] sm:$0xf] %v765
        %767 = vst [vmem:[%s702 + $0x64] sm:$0xf] %v533
        %v768 = vld [vmem:[%s702 + $0x68] sm:$0x1]
        %v769 = vsel %vm711, %v534, %v768
        %770 = vst [vmem:[%s702 + $0x68] sm:$0x1] %v769
        %v771 = vld [vmem:[%s702 + $0x6c] sm:$0xf]
        %v772 = vsel %vm705, %v541, %v771
        %773 = vst [vmem:[%s702 + $0x6c] sm:$0xf] %v772
        %774 = vst [vmem:[%s702 + $0x70] sm:$0xf] %v550
        %v775 = vld [vmem:[%s702 + $0x74] sm:$0x1]
        %v776 = vsel %vm711, %v551, %v775
        %777 = vst [vmem:[%s702 + $0x74] sm:$0x1] %v776
        %v778 = vld [vmem:[%s702 + $0x78] sm:$0xf]
        %v779 = vsel %vm705, %v558, %v778
        %780 = vst [vmem:[%s702 + $0x78] sm:$0xf] %v779
        %781 = vst [vmem:[%s702 + $0x7c] sm:$0xf] %v567
        %v782 = vld [vmem:[%s702 + $0x80] sm:$0x1]
        %v783 = vsel %vm711, %v568, %v782
        %784 = vst [vmem:[%s702 + $0x80] sm:$0x1] %v783
        %v785 = vld [vmem:[%s702 + $0x84] sm:$0xf]
        %v786 = vsel %vm705, %v575, %v785
        %787 = vst [vmem:[%s702 + $0x84] sm:$0xf] %v786
        %788 = vst [vmem:[%s702 + $0x88] sm:$0xf] %v584
        %v789 = vld [vmem:[%s702 + $0x8c] sm:$0x1]
        %v790 = vsel %vm711, %v585, %v789
        %791 = vst [vmem:[%s702 + $0x8c] sm:$0x1] %v790
        %v792 = vld [vmem:[%s702 + $0x90] sm:$0xf]
        %v793 = vsel %vm705, %v592, %v792
        %794 = vst [vmem:[%s702 + $0x90] sm:$0xf] %v793
        %795 = vst [vmem:[%s702 + $0x94] sm:$0xf] %v601
        %v796 = vld [vmem:[%s702 + $0x98] sm:$0x1]
        %v797 = vsel %vm711, %v602, %v796
        %798 = vst [vmem:[%s702 + $0x98] sm:$0x1] %v797
        %v799 = vld [vmem:[%s702 + $0x9c] sm:$0xf]
        %v800 = vsel %vm705, %v609, %v799
        %801 = vst [vmem:[%s702 + $0x9c] sm:$0xf] %v800
        %802 = vst [vmem:[%s702 + $0xa0] sm:$0xf] %v618
        %v803 = vld [vmem:[%s702 + $0xa4] sm:$0x1]
        %v804 = vsel %vm711, %v619, %v803
        %805 = vst [vmem:[%s702 + $0xa4] sm:$0x1] %v804
        %v806 = vld [vmem:[%s702 + $0xa8] sm:$0xf]
        %v807 = vsel %vm705, %v626, %v806
        %808 = vst [vmem:[%s702 + $0xa8] sm:$0xf] %v807
        %809 = vst [vmem:[%s702 + $0xac] sm:$0xf] %v635
        %v810 = vld [vmem:[%s702 + $0xb0] sm:$0x1]
        %v811 = vsel %vm711, %v636, %v810
        %812 = vst [vmem:[%s702 + $0xb0] sm:$0x1] %v811
        %v813 = vld [vmem:[%s702 + $0xb4] sm:$0xf]
        %v814 = vsel %vm705, %v643, %v813
        %815 = vst [vmem:[%s702 + $0xb4] sm:$0xf] %v814
        %816 = vst [vmem:[%s702 + $0xb8] sm:$0xf] %v652
        %v817 = vld [vmem:[%s702 + $0xbc] sm:$0x1]
        %v818 = vsel %vm711, %v653, %v817
        %819 = vst [vmem:[%s702 + $0xbc] sm:$0x1] %v818
        %v820 = vld [vmem:[%s2] sm:$0x1]
        %v821 = vld [vmem:[#allocation2] sm:$0xf]
        %v822 = vld [vmem:[#allocation2 + $0x4] sm:$0xf]
        %v823 = vld [vmem:[#allocation2 + $0x8] sm:$0xf]
        %v824 = vld [vmem:[#allocation2 + $0xc] sm:$0xf]
        %v825 = vld [vmem:[#allocation2 + $0x10] sm:$0xf]
        %v826 = vld [vmem:[#allocation2 + $0x14] sm:$0xf]
        %v827 = vld [vmem:[#allocation2 + $0x18] sm:$0xf]
        %v828 = vld [vmem:[#allocation2 + $0x1c] sm:$0xf]
        %v829 = vld [vmem:[#allocation2 + $0x20] sm:$0xf]
        %v830 = vld [vmem:[#allocation2 + $0x24] sm:$0xf]
        %v831 = vld [vmem:[#allocation2 + $0x28] sm:$0xf]
        %v832 = vld [vmem:[#allocation2 + $0x2c] sm:$0xf]
        %v833 = vld [vmem:[#allocation2 + $0x30] sm:$0xf]
        %v834 = vld [vmem:[#allocation2 + $0x34] sm:$0xf]
        %v835 = vld [vmem:[#allocation2 + $0x38] sm:$0xf]
        %v836 = vld [vmem:[#allocation2 + $0x3c] sm:$0xf]
        %v837 = vld [vmem:[#allocation2 + $0x40] sm:$0xf]
        %v838 = vld [vmem:[#allocation2 + $0x44] sm:$0xf]
        %v839 = vld [vmem:[#allocation2 + $0x48] sm:$0xf]
        %v840 = vld [vmem:[#allocation2 + $0x4c] sm:$0xf]
        %v841 = vld [vmem:[#allocation2 + $0x50] sm:$0xf]
        %v842 = vld [vmem:[#allocation2 + $0x54] sm:$0xf]
        %v843 = vld [vmem:[#allocation2 + $0x58] sm:$0xf]
        %v844 = vld [vmem:[#allocation2 + $0x5c] sm:$0xf]
        %v845 = vld [vmem:[#allocation2 + $0x60] sm:$0xf]
        %v846 = vld [vmem:[#allocation2 + $0x64] sm:$0xf]
        %v847 = vld [vmem:[#allocation2 + $0x68] sm:$0xf]
        %v848 = vld [vmem:[#allocation2 + $0x6c] sm:$0xf]
        %v849 = vld [vmem:[#allocation2 + $0x70] sm:$0xf]
        %v850 = vld [vmem:[#allocation2 + $0x74] sm:$0xf]
        %v851 = vld [vmem:[#allocation2 + $0x78] sm:$0xf]
        %v852 = vld [vmem:[#allocation2 + $0x7c] sm:$0xf]
        %v853 = vld [vmem:[#allocation2 + $0x80] sm:$0xf]
        %v854 = vld [vmem:[#allocation2 + $0x84] sm:$0xf]
        %v855 = vld [vmem:[#allocation2 + $0x88] sm:$0xf]
        %v856 = vld [vmem:[#allocation2 + $0x8c] sm:$0xf]
        %v857 = vld [vmem:[#allocation2 + $0x90] sm:$0xf]
        %v858 = vld [vmem:[#allocation2 + $0x94] sm:$0xf]
        %v859 = vld [vmem:[#allocation2 + $0x98] sm:$0xf]
        %v860 = vld [vmem:[#allocation2 + $0x9c] sm:$0xf]
        %v861 = vld [vmem:[#allocation2 + $0xa0] sm:$0xf]
        %v862 = vld [vmem:[#allocation2 + $0xa4] sm:$0xf]
        %v863 = vld [vmem:[#allocation2 + $0xa8] sm:$0xf]
        %v864 = vld [vmem:[#allocation2 + $0xac] sm:$0xf]
        %v865 = vld [vmem:[#allocation2 + $0xb0] sm:$0xf]
        %v866 = vld [vmem:[#allocation2 + $0xb4] sm:$0xf]
        %v867 = vld [vmem:[#allocation2 + $0xb8] sm:$0xf]
        %v868 = vld [vmem:[#allocation2 + $0xbc] sm:$0xf]
        %v869 = vld [vmem:[#allocation4] sm:$0xf]
        %v870 = vld [vmem:[#allocation4 + $0x4] sm:$0xf]
        %v871 = vld [vmem:[#allocation4 + $0x8] sm:$0xf]
        %v872 = vld [vmem:[#allocation4 + $0xc] sm:$0xf]
        %v873 = vld [vmem:[#allocation4 + $0x10] sm:$0xf]
        %v874 = vld [vmem:[#allocation4 + $0x14] sm:$0xf]
        %v875 = vld [vmem:[#allocation4 + $0x18] sm:$0xf]
        %v876 = vld [vmem:[#allocation4 + $0x1c] sm:$0xf]
        %v877 = vld [vmem:[#allocation4 + $0x20] sm:$0xf]
        %v878 = vld [vmem:[#allocation4 + $0x24] sm:$0xf]
        %v879 = vld [vmem:[#allocation4 + $0x28] sm:$0xf]
        %v880 = vld [vmem:[#allocation4 + $0x2c] sm:$0xf]
        %v881 = vld [vmem:[#allocation4 + $0x30] sm:$0xf]
        %v882 = vld [vmem:[#allocation4 + $0x34] sm:$0xf]
        %v883 = vld [vmem:[#allocation4 + $0x38] sm:$0xf]
        %v884 = vld [vmem:[#allocation4 + $0x3c] sm:$0xf]
        %v885 = vld [vmem:[%s702] sm:$0xf]
        %v886 = vld [vmem:[%s702 + $0x4] sm:$0xf]
        %v887 = vld [vmem:[%s702 + $0x8] sm:$0xf]
        %v888 = vld [vmem:[%s702 + $0xc] sm:$0xf]
        %v889 = vld [vmem:[%s702 + $0x10] sm:$0xf]
        %v890 = vld [vmem:[%s702 + $0x14] sm:$0xf]
        %v891 = vld [vmem:[%s702 + $0x18] sm:$0xf]
        %v892 = vld [vmem:[%s702 + $0x1c] sm:$0xf]
        %v893 = vld [vmem:[%s702 + $0x20] sm:$0xf]
        %v894 = vld [vmem:[%s702 + $0x24] sm:$0xf]
        %v895 = vld [vmem:[%s702 + $0x28] sm:$0xf]
        %v896 = vld [vmem:[%s702 + $0x2c] sm:$0xf]
        %v897 = vld [vmem:[%s702 + $0x30] sm:$0xf]
        %v898 = vld [vmem:[%s702 + $0x34] sm:$0xf]
        %v899 = vld [vmem:[%s702 + $0x38] sm:$0xf]
        %v900 = vld [vmem:[%s702 + $0x3c] sm:$0xf]
        %v901 = vld [vmem:[%s702 + $0x40] sm:$0xf]
        %v902 = vld [vmem:[%s702 + $0x44] sm:$0xf]
        %v903 = vld [vmem:[%s702 + $0x48] sm:$0xf]
        %v904 = vld [vmem:[%s702 + $0x4c] sm:$0xf]
        %v905 = vld [vmem:[%s702 + $0x50] sm:$0xf]
        %v906 = vld [vmem:[%s702 + $0x54] sm:$0xf]
        %v907 = vld [vmem:[%s702 + $0x58] sm:$0xf]
        %v908 = vld [vmem:[%s702 + $0x5c] sm:$0xf]
        %v909 = vld [vmem:[%s702 + $0x60] sm:$0xf]
        %v910 = vld [vmem:[%s702 + $0x64] sm:$0xf]
        %v911 = vld [vmem:[%s702 + $0x68] sm:$0xf]
        %v912 = vld [vmem:[%s702 + $0x6c] sm:$0xf]
        %v913 = vld [vmem:[%s702 + $0x70] sm:$0xf]
        %v914 = vld [vmem:[%s702 + $0x74] sm:$0xf]
        %v915 = vld [vmem:[%s702 + $0x78] sm:$0xf]
        %v916 = vld [vmem:[%s702 + $0x7c] sm:$0xf]
        %v917 = vld [vmem:[%s702 + $0x80] sm:$0xf]
        %v918 = vld [vmem:[%s702 + $0x84] sm:$0xf]
        %v919 = vld [vmem:[%s702 + $0x88] sm:$0xf]
        %v920 = vld [vmem:[%s702 + $0x8c] sm:$0xf]
        %v921 = vld [vmem:[%s702 + $0x90] sm:$0xf]
        %v922 = vld [vmem:[%s702 + $0x94] sm:$0xf]
        %v923 = vld [vmem:[%s702 + $0x98] sm:$0xf]
        %v924 = vld [vmem:[%s702 + $0x9c] sm:$0xf]
        %v925 = vld [vmem:[%s702 + $0xa0] sm:$0xf]
        %v926 = vld [vmem:[%s702 + $0xa4] sm:$0xf]
        %v927 = vld [vmem:[%s702 + $0xa8] sm:$0xf]
        %v928 = vld [vmem:[%s702 + $0xac] sm:$0xf]
        %v929 = vld [vmem:[%s702 + $0xb0] sm:$0xf]
        %v930 = vld [vmem:[%s702 + $0xb4] sm:$0xf]
        %v931 = vld [vmem:[%s702 + $0xb8] sm:$0xf]
        %v932 = vld [vmem:[%s702 + $0xbc] sm:$0xf]
        %s933 = scalar_lea.vmem [#allocation4], 192
        %v934 = vld [vmem:[%s933] sm:$0xf]
        %v935 = vld [vmem:[%s933 + $0x4] sm:$0xf]
        %v936 = vld [vmem:[%s933 + $0x8] sm:$0xf]
        %v937 = vld [vmem:[%s933 + $0xc] sm:$0xf]
        %v938 = vld [vmem:[%s933 + $0x10] sm:$0xf]
        %v939 = vld [vmem:[%s933 + $0x14] sm:$0xf]
        %v940 = vld [vmem:[%s933 + $0x18] sm:$0xf]
        %v941 = vld [vmem:[%s933 + $0x1c] sm:$0xf]
        %v942 = vld [vmem:[%s933 + $0x20] sm:$0xf]
        %v943 = vld [vmem:[%s933 + $0x24] sm:$0xf]
        %v944 = vld [vmem:[%s933 + $0x28] sm:$0xf]
        %v945 = vld [vmem:[%s933 + $0x2c] sm:$0xf]
        %v946 = vld [vmem:[%s933 + $0x30] sm:$0xf]
        %v947 = vld [vmem:[%s933 + $0x34] sm:$0xf]
        %v948 = vld [vmem:[%s933 + $0x38] sm:$0xf]
        %v949 = vld [vmem:[%s933 + $0x3c] sm:$0xf]
        %v998 = vunpack.c.l.b16 %v885
        %v999 = vunpack.c.l.b16 %v886
        %v1000 = vunpack.c.l.b16 %v887
        %v1001 = vunpack.c.l.b16 %v888
        %v1002 = vunpack.c.l.b16 %v889
        %v1003 = vunpack.c.l.b16 %v890
        %v1004 = vunpack.c.l.b16 %v891
        %v1005 = vunpack.c.l.b16 %v892
        %v1006 = vunpack.c.l.b16 %v893
        %v1007 = vunpack.c.l.b16 %v894
        %v1008 = vunpack.c.l.b16 %v895
        %v1009 = vunpack.c.l.b16 %v896
        %v1010 = vunpack.c.l.b16 %v897
        %v1011 = vunpack.c.l.b16 %v898
        %v1012 = vunpack.c.l.b16 %v899
        %v1013 = vunpack.c.l.b16 %v900
        %v1014 = vunpack.c.l.b16 %v901
        %v1015 = vunpack.c.l.b16 %v902
        %v1016 = vunpack.c.l.b16 %v903
        %v1017 = vunpack.c.l.b16 %v904
        %v1018 = vunpack.c.l.b16 %v905
        %v1019 = vunpack.c.l.b16 %v906
        %v1020 = vunpack.c.l.b16 %v907
        %v1021 = vunpack.c.l.b16 %v908
        %v1022 = vunpack.c.l.b16 %v909
        %v1023 = vunpack.c.l.b16 %v910
        %v1024 = vunpack.c.l.b16 %v911
        %v1025 = vunpack.c.l.b16 %v912
        %v1026 = vunpack.c.l.b16 %v913
        %v1027 = vunpack.c.l.b16 %v914
        %v1028 = vunpack.c.l.b16 %v915
        %v1029 = vunpack.c.l.b16 %v916
        %v1030 = vunpack.c.l.b16 %v917
        %v1031 = vunpack.c.l.b16 %v918
        %v1032 = vunpack.c.l.b16 %v919
        %v1033 = vunpack.c.l.b16 %v920
        %v1034 = vunpack.c.l.b16 %v921
        %v1035 = vunpack.c.l.b16 %v922
        %v1036 = vunpack.c.l.b16 %v923
        %v1037 = vunpack.c.l.b16 %v924
        %v1038 = vunpack.c.l.b16 %v925
        %v1039 = vunpack.c.l.b16 %v926
        %v1040 = vunpack.c.l.b16 %v927
        %v1041 = vunpack.c.l.b16 %v928
        %v1042 = vunpack.c.l.b16 %v929
        %v1043 = vunpack.c.l.b16 %v930
        %v1044 = vunpack.c.l.b16 %v931
        %v1045 = vunpack.c.l.b16 %v932
        %v1046 = vpack.c.b16 %v999, %v998
        %v1047 = vpack.c.b16 %v1001, %v1000
        %v1048 = vpack.c.b16 %v1003, %v1002
        %v1049 = vpack.c.b16 %v1005, %v1004
        %v1050 = vpack.c.b16 %v1007, %v1006
        %v1051 = vpack.c.b16 %v1009, %v1008
        %v1052 = vpack.c.b16 %v1011, %v1010
        %v1053 = vpack.c.b16 %v1013, %v1012
        %v1054 = vpack.c.b16 %v1015, %v1014
        %v1055 = vpack.c.b16 %v1017, %v1016
        %v1056 = vpack.c.b16 %v1019, %v1018
        %v1057 = vpack.c.b16 %v1021, %v1020
        %v1058 = vpack.c.b16 %v1023, %v1022
        %v1059 = vpack.c.b16 %v1025, %v1024
        %v1060 = vpack.c.b16 %v1027, %v1026
        %v1061 = vpack.c.b16 %v1029, %v1028
        %v1062 = vpack.c.b16 %v1031, %v1030
        %v1063 = vpack.c.b16 %v1033, %v1032
        %v1064 = vpack.c.b16 %v1035, %v1034
        %v1065 = vpack.c.b16 %v1037, %v1036
        %v1066 = vpack.c.b16 %v1039, %v1038
        %v1067 = vpack.c.b16 %v1041, %v1040
        %v1068 = vpack.c.b16 %v1043, %v1042
        %v1069 = vpack.c.b16 %v1045, %v1044
        %v1110 = vunpack.c.l.b16 %v934
        %v1111 = vunpack.c.l.b16 %v935
        %v1112 = vunpack.c.l.b16 %v936
        %v1113 = vunpack.c.l.b16 %v937
        %v1114 = vunpack.c.l.b16 %v938
        %v1115 = vunpack.c.l.b16 %v939
        %v1116 = vunpack.c.l.b16 %v940
        %v1117 = vunpack.c.l.b16 %v941
        %v1118 = vunpack.c.l.b16 %v942
        %v1119 = vunpack.c.l.b16 %v943
        %v1120 = vunpack.c.l.b16 %v944
        %v1121 = vunpack.c.l.b16 %v945
        %v1122 = vunpack.c.l.b16 %v946
        %v1123 = vunpack.c.l.b16 %v947
        %v1124 = vunpack.c.l.b16 %v948
        %v1125 = vunpack.c.l.b16 %v949
        %v1126 = vpack.c.b16 %v1111, %v1110
        %v1127 = vpack.c.b16 %v1113, %v1112
        %v1128 = vpack.c.b16 %v1115, %v1114
        %v1129 = vpack.c.b16 %v1117, %v1116
        %v1130 = vpack.c.b16 %v1119, %v1118
        %v1131 = vpack.c.b16 %v1121, %v1120
        %v1132 = vpack.c.b16 %v1123, %v1122
        %v1133 = vpack.c.b16 %v1125, %v1124
        %1142 = vmatprep.subr.bf16.mxu0 0
        %1143 = vmatpush1.bf16.msra.mxu0 %v1133
        %1144 = vmatprep.subr.bf16.mxu0 0
        %1145 = vmatpush1.bf16.msra.mxu0 %v1132
        %1146 = vmatprep.subr.bf16.mxu0 0
        %1147 = vmatpush1.bf16.msra.mxu0 %v1131
        %1148 = vmatprep.subr.bf16.mxu0 0
        %1149 = vmatpush1.bf16.msra.mxu0 %v1130
        %1150 = vmatprep.subr.bf16.mxu0 0
        %1151 = vmatpush1.bf16.msra.mxu0 %v1129
        %1152 = vmatprep.subr.bf16.mxu0 0
        %1153 = vmatpush1.bf16.msra.mxu0 %v1128
        %1154 = vmatprep.subr.bf16.mxu0 0
        %1155 = vmatpush1.bf16.msra.mxu0 %v1127
        %1156 = vmatprep.subr.bf16.mxu0 0
        %1157 = vmatpush1.bf16.msra.mxu0 %v1126
        %1158 = vmatprep.subr.bf16.mxu0 0
        %1159 = vmatpush2.bf16.msra.mxu0 0
        %1160 = vmatprep.subr.bf16.mxu0 0
        %1161 = vmatpush2.bf16.msra.mxu0 0
        %1162 = vmatprep.subr.bf16.mxu0 0
        %1163 = vmatpush2.bf16.msra.mxu0 0
        %1164 = vmatprep.subr.bf16.mxu0 0
        %1165 = vmatpush2.bf16.msra.mxu0 0
        %1166 = vmatprep.subr.bf16.mxu0 0
        %1167 = vmatpush2.bf16.msra.mxu0 0
        %1168 = vmatprep.subr.bf16.mxu0 0
        %1169 = vmatpush2.bf16.msra.mxu0 0
        %1170 = vmatprep.subr.bf16.mxu0 0
        %1171 = vmatpush2.bf16.msra.mxu0 0
        %1172 = vmatprep.subr.bf16.mxu0 0
        %1173 = vmatpush2.bf16.msra.mxu0 0
        %1174 = vmatprep.mubr.bf16.mxu0 0
        %1175 = vmatmul.mubr.bf16.gmra.mxu0 %v1046
        %v1176 = vpop.f32.mrf.mxu0
        %v1177 = vadd.f32 0.0, %v1176
        %v1178 = vpop.f32.mrf.mxu0
        %v1179 = vpop.f32.mrf.mxu0
        %v1180 = vadd.f32 0.0, %v1179
        %v1181 = vpop.f32.mrf.mxu0
        %1182 = vmatprep.mubr.bf16.mxu0 0
        %1183 = vmatmul.mubr.bf16.gmra.mxu0 %v1047
        %v1184 = vpop.f32.mrf.mxu0
        %v1185 = vpop.f32.mrf.mxu0
        %v1186 = vpop.f32.mrf.mxu0
        %v1187 = vadd.f32 0.0, %v1186
        %v1188 = vpop.f32.mrf.mxu0
        %1189 = vmatprep.mubr.bf16.mxu0 0
        %1190 = vmatmul.mubr.bf16.gmra.mxu0 %v1048
        %v1191 = vpop.f32.mrf.mxu0
        %v1192 = vadd.f32 0.0, %v1191
        %v1193 = vpop.f32.mrf.mxu0
        %v1194 = vpop.f32.mrf.mxu0
        %v1195 = vpop.f32.mrf.mxu0
        %1196 = vmatprep.mubr.bf16.mxu0 0
        %1197 = vmatmul.mubr.bf16.gmra.mxu0 %v1049
        %v1198 = vpop.f32.mrf.mxu0
        %v1199 = vadd.f32 0.0, %v1198
        %v1200 = vpop.f32.mrf.mxu0
        %v1201 = vpop.f32.mrf.mxu0
        %v1202 = vadd.f32 0.0, %v1201
        %v1203 = vpop.f32.mrf.mxu0
        %1204 = vmatprep.mubr.bf16.mxu0 0
        %1205 = vmatmul.mubr.bf16.gmra.mxu0 %v1050
        %v1206 = vpop.f32.mrf.mxu0
        %v1207 = vpop.f32.mrf.mxu0
        %v1208 = vpop.f32.mrf.mxu0
        %v1209 = vadd.f32 0.0, %v1208
        %v1210 = vpop.f32.mrf.mxu0
        %1211 = vmatprep.mubr.bf16.mxu0 0
        %1212 = vmatmul.mubr.bf16.gmra.mxu0 %v1051
        %v1213 = vpop.f32.mrf.mxu0
        %v1214 = vadd.f32 0.0, %v1213
        %v1215 = vpop.f32.mrf.mxu0
        %v1216 = vpop.f32.mrf.mxu0
        %v1217 = vpop.f32.mrf.mxu0
        %1218 = vmatprep.mubr.bf16.mxu0 0
        %1219 = vmatmul.mubr.bf16.gmra.mxu0 %v1052
        %v1220 = vpop.f32.mrf.mxu0
        %v1221 = vadd.f32 0.0, %v1220
        %v1222 = vpop.f32.mrf.mxu0
        %v1223 = vpop.f32.mrf.mxu0
        %v1224 = vadd.f32 0.0, %v1223
        %v1225 = vpop.f32.mrf.mxu0
        %1226 = vmatprep.mubr.bf16.mxu0 0
        %1227 = vmatmul.mubr.bf16.gmra.mxu0 %v1053
        %v1228 = vpop.f32.mrf.mxu0
        %v1229 = vpop.f32.mrf.mxu0
        %v1230 = vpop.f32.mrf.mxu0
        %v1231 = vadd.f32 0.0, %v1230
        %v1232 = vpop.f32.mrf.mxu0
        %1233 = vmatprep.mubr.bf16.mxu0 0
        %1234 = vmatmul.mubr.bf16.gmra.mxu0 %v1054
        %v1235 = vpop.f32.mrf.mxu0
        %v1236 = vadd.f32 0.0, %v1235
        %v1237 = vpop.f32.mrf.mxu0
        %v1238 = vpop.f32.mrf.mxu0
        %v1239 = vpop.f32.mrf.mxu0
        %1240 = vmatprep.mubr.bf16.mxu0 0
        %1241 = vmatmul.mubr.bf16.gmra.mxu0 %v1055
        %v1242 = vpop.f32.mrf.mxu0
        %v1243 = vadd.f32 0.0, %v1242
        %v1244 = vpop.f32.mrf.mxu0
        %v1245 = vpop.f32.mrf.mxu0
        %v1246 = vadd.f32 0.0, %v1245
        %v1247 = vpop.f32.mrf.mxu0
        %1248 = vmatprep.mubr.bf16.mxu0 0
        %1249 = vmatmul.mubr.bf16.gmra.mxu0 %v1056
        %v1250 = vpop.f32.mrf.mxu0
        %v1251 = vpop.f32.mrf.mxu0
        %v1252 = vpop.f32.mrf.mxu0
        %v1253 = vadd.f32 0.0, %v1252
        %v1254 = vpop.f32.mrf.mxu0
        %1255 = vmatprep.mubr.bf16.mxu0 0
        %1256 = vmatmul.mubr.bf16.gmra.mxu0 %v1057
        %v1257 = vpop.f32.mrf.mxu0
        %v1258 = vadd.f32 0.0, %v1257
        %v1259 = vpop.f32.mrf.mxu0
        %v1260 = vpop.f32.mrf.mxu0
        %v1261 = vpop.f32.mrf.mxu0
        %1262 = vmatprep.mubr.bf16.mxu0 0
        %1263 = vmatmul.mubr.bf16.gmra.mxu0 %v1058
        %v1264 = vpop.f32.mrf.mxu0
        %v1265 = vadd.f32 0.0, %v1264
        %v1266 = vpop.f32.mrf.mxu0
        %v1267 = vpop.f32.mrf.mxu0
        %v1268 = vadd.f32 0.0, %v1267
        %v1269 = vpop.f32.mrf.mxu0
        %1270 = vmatprep.mubr.bf16.mxu0 0
        %1271 = vmatmul.mubr.bf16.gmra.mxu0 %v1059
        %v1272 = vpop.f32.mrf.mxu0
        %v1273 = vpop.f32.mrf.mxu0
        %v1274 = vpop.f32.mrf.mxu0
        %v1275 = vadd.f32 0.0, %v1274
        %v1276 = vpop.f32.mrf.mxu0
        %1277 = vmatprep.mubr.bf16.mxu0 0
        %1278 = vmatmul.mubr.bf16.gmra.mxu0 %v1060
        %v1279 = vpop.f32.mrf.mxu0
        %v1280 = vadd.f32 0.0, %v1279
        %v1281 = vpop.f32.mrf.mxu0
        %v1282 = vpop.f32.mrf.mxu0
        %v1283 = vpop.f32.mrf.mxu0
        %1284 = vmatprep.mubr.bf16.mxu0 0
        %1285 = vmatmul.mubr.bf16.gmra.mxu0 %v1061
        %v1286 = vpop.f32.mrf.mxu0
        %v1287 = vadd.f32 0.0, %v1286
        %v1288 = vpop.f32.mrf.mxu0
        %v1289 = vpop.f32.mrf.mxu0
        %v1290 = vadd.f32 0.0, %v1289
        %v1291 = vpop.f32.mrf.mxu0
        %1292 = vmatprep.mubr.bf16.mxu0 0
        %1293 = vmatmul.mubr.bf16.gmra.mxu0 %v1062
        %v1294 = vpop.f32.mrf.mxu0
        %v1295 = vpop.f32.mrf.mxu0
        %v1296 = vpop.f32.mrf.mxu0
        %v1297 = vadd.f32 0.0, %v1296
        %v1298 = vpop.f32.mrf.mxu0
        %1299 = vmatprep.mubr.bf16.mxu0 0
        %1300 = vmatmul.mubr.bf16.gmra.mxu0 %v1063
        %v1301 = vpop.f32.mrf.mxu0
        %v1302 = vadd.f32 0.0, %v1301
        %v1303 = vpop.f32.mrf.mxu0
        %v1304 = vpop.f32.mrf.mxu0
        %v1305 = vpop.f32.mrf.mxu0
        %1306 = vmatprep.mubr.bf16.mxu0 0
        %1307 = vmatmul.mubr.bf16.gmra.mxu0 %v1064
        %v1308 = vpop.f32.mrf.mxu0
        %v1309 = vadd.f32 0.0, %v1308
        %v1310 = vpop.f32.mrf.mxu0
        %v1311 = vpop.f32.mrf.mxu0
        %v1312 = vadd.f32 0.0, %v1311
        %v1313 = vpop.f32.mrf.mxu0
        %1314 = vmatprep.mubr.bf16.mxu0 0
        %1315 = vmatmul.mubr.bf16.gmra.mxu0 %v1065
        %v1316 = vpop.f32.mrf.mxu0
        %v1317 = vpop.f32.mrf.mxu0
        %v1318 = vpop.f32.mrf.mxu0
        %v1319 = vadd.f32 0.0, %v1318
        %v1320 = vpop.f32.mrf.mxu0
        %1321 = vmatprep.mubr.bf16.mxu0 0
        %1322 = vmatmul.mubr.bf16.gmra.mxu0 %v1066
        %v1323 = vpop.f32.mrf.mxu0
        %v1324 = vadd.f32 0.0, %v1323
        %v1325 = vpop.f32.mrf.mxu0
        %v1326 = vpop.f32.mrf.mxu0
        %v1327 = vpop.f32.mrf.mxu0
        %1328 = vmatprep.mubr.bf16.mxu0 0
        %1329 = vmatmul.mubr.bf16.gmra.mxu0 %v1067
        %v1330 = vpop.f32.mrf.mxu0
        %v1331 = vadd.f32 0.0, %v1330
        %v1332 = vpop.f32.mrf.mxu0
        %v1333 = vpop.f32.mrf.mxu0
        %v1334 = vadd.f32 0.0, %v1333
        %v1335 = vpop.f32.mrf.mxu0
        %1336 = vmatprep.mubr.bf16.mxu0 0
        %1337 = vmatmul.mubr.bf16.gmra.mxu0 %v1068
        %v1338 = vpop.f32.mrf.mxu0
        %v1339 = vpop.f32.mrf.mxu0
        %v1340 = vpop.f32.mrf.mxu0
        %v1341 = vadd.f32 0.0, %v1340
        %v1342 = vpop.f32.mrf.mxu0
        %1343 = vmatprep.mubr.bf16.mxu0 0
        %1344 = vmatmul.mubr.bf16.gmra.mxu0 %v1069
        %v1345 = vpop.f32.mrf.mxu0
        %v1346 = vadd.f32 0.0, %v1345
        %v1347 = vpop.f32.mrf.mxu0
        %v1348 = vpop.f32.mrf.mxu0
        %v1349 = vpop.f32.mrf.mxu0
        %1350 = vdwg.mxu0
        %v1399 = vunpack.c.l.b16 %v821
        %v1400 = vunpack.c.l.b16 %v822
        %v1401 = vunpack.c.l.b16 %v823
        %v1402 = vunpack.c.l.b16 %v824
        %v1403 = vunpack.c.l.b16 %v825
        %v1404 = vunpack.c.l.b16 %v826
        %v1405 = vunpack.c.l.b16 %v827
        %v1406 = vunpack.c.l.b16 %v828
        %v1407 = vunpack.c.l.b16 %v829
        %v1408 = vunpack.c.l.b16 %v830
        %v1409 = vunpack.c.l.b16 %v831
        %v1410 = vunpack.c.l.b16 %v832
        %v1411 = vunpack.c.l.b16 %v833
        %v1412 = vunpack.c.l.b16 %v834
        %v1413 = vunpack.c.l.b16 %v835
        %v1414 = vunpack.c.l.b16 %v836
        %v1415 = vunpack.c.l.b16 %v837
        %v1416 = vunpack.c.l.b16 %v838
        %v1417 = vunpack.c.l.b16 %v839
        %v1418 = vunpack.c.l.b16 %v840
        %v1419 = vunpack.c.l.b16 %v841
        %v1420 = vunpack.c.l.b16 %v842
        %v1421 = vunpack.c.l.b16 %v843
        %v1422 = vunpack.c.l.b16 %v844
        %v1423 = vunpack.c.l.b16 %v845
        %v1424 = vunpack.c.l.b16 %v846
        %v1425 = vunpack.c.l.b16 %v847
        %v1426 = vunpack.c.l.b16 %v848
        %v1427 = vunpack.c.l.b16 %v849
        %v1428 = vunpack.c.l.b16 %v850
        %v1429 = vunpack.c.l.b16 %v851
        %v1430 = vunpack.c.l.b16 %v852
        %v1431 = vunpack.c.l.b16 %v853
        %v1432 = vunpack.c.l.b16 %v854
        %v1433 = vunpack.c.l.b16 %v855
        %v1434 = vunpack.c.l.b16 %v856
        %v1435 = vunpack.c.l.b16 %v857
        %v1436 = vunpack.c.l.b16 %v858
        %v1437 = vunpack.c.l.b16 %v859
        %v1438 = vunpack.c.l.b16 %v860
        %v1439 = vunpack.c.l.b16 %v861
        %v1440 = vunpack.c.l.b16 %v862
        %v1441 = vunpack.c.l.b16 %v863
        %v1442 = vunpack.c.l.b16 %v864
        %v1443 = vunpack.c.l.b16 %v865
        %v1444 = vunpack.c.l.b16 %v866
        %v1445 = vunpack.c.l.b16 %v867
        %v1446 = vunpack.c.l.b16 %v868
        %v1447 = vpack.c.b16 %v1400, %v1399
        %v1448 = vpack.c.b16 %v1402, %v1401
        %v1449 = vpack.c.b16 %v1404, %v1403
        %v1450 = vpack.c.b16 %v1406, %v1405
        %v1451 = vpack.c.b16 %v1408, %v1407
        %v1452 = vpack.c.b16 %v1410, %v1409
        %v1453 = vpack.c.b16 %v1412, %v1411
        %v1454 = vpack.c.b16 %v1414, %v1413
        %v1455 = vpack.c.b16 %v1416, %v1415
        %v1456 = vpack.c.b16 %v1418, %v1417
        %v1457 = vpack.c.b16 %v1420, %v1419
        %v1458 = vpack.c.b16 %v1422, %v1421
        %v1459 = vpack.c.b16 %v1424, %v1423
        %v1460 = vpack.c.b16 %v1426, %v1425
        %v1461 = vpack.c.b16 %v1428, %v1427
        %v1462 = vpack.c.b16 %v1430, %v1429
        %v1463 = vpack.c.b16 %v1432, %v1431
        %v1464 = vpack.c.b16 %v1434, %v1433
        %v1465 = vpack.c.b16 %v1436, %v1435
        %v1466 = vpack.c.b16 %v1438, %v1437
        %v1467 = vpack.c.b16 %v1440, %v1439
        %v1468 = vpack.c.b16 %v1442, %v1441
        %v1469 = vpack.c.b16 %v1444, %v1443
        %v1470 = vpack.c.b16 %v1446, %v1445
        %v1511 = vunpack.c.l.b16 %v869
        %v1512 = vunpack.c.l.b16 %v870
        %v1513 = vunpack.c.l.b16 %v871
        %v1514 = vunpack.c.l.b16 %v872
        %v1515 = vunpack.c.l.b16 %v873
        %v1516 = vunpack.c.l.b16 %v874
        %v1517 = vunpack.c.l.b16 %v875
        %v1518 = vunpack.c.l.b16 %v876
        %v1519 = vunpack.c.l.b16 %v877
        %v1520 = vunpack.c.l.b16 %v878
        %v1521 = vunpack.c.l.b16 %v879
        %v1522 = vunpack.c.l.b16 %v880
        %v1523 = vunpack.c.l.b16 %v881
        %v1524 = vunpack.c.l.b16 %v882
        %v1525 = vunpack.c.l.b16 %v883
        %v1526 = vunpack.c.l.b16 %v884
        %v1527 = vpack.c.b16 %v1512, %v1511
        %v1528 = vpack.c.b16 %v1514, %v1513
        %v1529 = vpack.c.b16 %v1516, %v1515
        %v1530 = vpack.c.b16 %v1518, %v1517
        %v1531 = vpack.c.b16 %v1520, %v1519
        %v1532 = vpack.c.b16 %v1522, %v1521
        %v1533 = vpack.c.b16 %v1524, %v1523
        %v1534 = vpack.c.b16 %v1526, %v1525
        %1543 = vmatprep.subr.bf16.mxu0 0
        %1544 = vmatpush1.bf16.msra.mxu0 %v1534
        %1545 = vmatprep.subr.bf16.mxu0 0
        %1546 = vmatpush1.bf16.msra.mxu0 %v1533
        %1547 = vmatprep.subr.bf16.mxu0 0
        %1548 = vmatpush1.bf16.msra.mxu0 %v1532
        %1549 = vmatprep.subr.bf16.mxu0 0
        %1550 = vmatpush1.bf16.msra.mxu0 %v1531
        %1551 = vmatprep.subr.bf16.mxu0 0
        %1552 = vmatpush1.bf16.msra.mxu0 %v1530
        %1553 = vmatprep.subr.bf16.mxu0 0
        %1554 = vmatpush1.bf16.msra.mxu0 %v1529
        %1555 = vmatprep.subr.bf16.mxu0 0
        %1556 = vmatpush1.bf16.msra.mxu0 %v1528
        %1557 = vmatprep.subr.bf16.mxu0 0
        %1558 = vmatpush1.bf16.msra.mxu0 %v1527
        %1559 = vmatprep.subr.bf16.mxu0 0
        %1560 = vmatpush2.bf16.msra.mxu0 0
        %1561 = vmatprep.subr.bf16.mxu0 0
        %1562 = vmatpush2.bf16.msra.mxu0 0
        %1563 = vmatprep.subr.bf16.mxu0 0
        %1564 = vmatpush2.bf16.msra.mxu0 0
        %1565 = vmatprep.subr.bf16.mxu0 0
        %1566 = vmatpush2.bf16.msra.mxu0 0
        %1567 = vmatprep.subr.bf16.mxu0 0
        %1568 = vmatpush2.bf16.msra.mxu0 0
        %1569 = vmatprep.subr.bf16.mxu0 0
        %1570 = vmatpush2.bf16.msra.mxu0 0
        %1571 = vmatprep.subr.bf16.mxu0 0
        %1572 = vmatpush2.bf16.msra.mxu0 0
        %1573 = vmatprep.subr.bf16.mxu0 0
        %1574 = vmatpush2.bf16.msra.mxu0 0
        %1575 = vmatprep.mubr.bf16.mxu0 0
        %1576 = vmatmul.mubr.bf16.gmra.mxu0 %v1447
        %v1577 = vpop.f32.mrf.mxu0
        %v1578 = vadd.f32 %v1177, %v1577
        %v1579 = vpop.f32.mrf.mxu0
        %v1580 = vpop.f32.mrf.mxu0
        %v1581 = vadd.f32 %v1180, %v1580
        %v1582 = vpop.f32.mrf.mxu0
        %1583 = vmatprep.mubr.bf16.mxu0 0
        %1584 = vmatmul.mubr.bf16.gmra.mxu0 %v1448
        %v1585 = vpop.f32.mrf.mxu0
        %v1586 = vpop.f32.mrf.mxu0
        %v1587 = vpop.f32.mrf.mxu0
        %v1588 = vadd.f32 %v1187, %v1587
        %v1589 = vpop.f32.mrf.mxu0
        %1590 = vmatprep.mubr.bf16.mxu0 0
        %1591 = vmatmul.mubr.bf16.gmra.mxu0 %v1449
        %v1592 = vpop.f32.mrf.mxu0
        %v1593 = vadd.f32 %v1192, %v1592
        %v1594 = vpop.f32.mrf.mxu0
        %v1595 = vpop.f32.mrf.mxu0
        %v1596 = vpop.f32.mrf.mxu0
        %1597 = vmatprep.mubr.bf16.mxu0 0
        %1598 = vmatmul.mubr.bf16.gmra.mxu0 %v1450
        %v1599 = vpop.f32.mrf.mxu0
        %v1600 = vadd.f32 %v1199, %v1599
        %v1601 = vpop.f32.mrf.mxu0
        %v1602 = vpop.f32.mrf.mxu0
        %v1603 = vadd.f32 %v1202, %v1602
        %v1604 = vpop.f32.mrf.mxu0
        %1605 = vmatprep.mubr.bf16.mxu0 0
        %1606 = vmatmul.mubr.bf16.gmra.mxu0 %v1451
        %v1607 = vpop.f32.mrf.mxu0
        %v1608 = vpop.f32.mrf.mxu0
        %v1609 = vpop.f32.mrf.mxu0
        %v1610 = vadd.f32 %v1209, %v1609
        %v1611 = vpop.f32.mrf.mxu0
        %1612 = vmatprep.mubr.bf16.mxu0 0
        %1613 = vmatmul.mubr.bf16.gmra.mxu0 %v1452
        %v1614 = vpop.f32.mrf.mxu0
        %v1615 = vadd.f32 %v1214, %v1614
        %v1616 = vpop.f32.mrf.mxu0
        %v1617 = vpop.f32.mrf.mxu0
        %v1618 = vpop.f32.mrf.mxu0
        %1619 = vmatprep.mubr.bf16.mxu0 0
        %1620 = vmatmul.mubr.bf16.gmra.mxu0 %v1453
        %v1621 = vpop.f32.mrf.mxu0
        %v1622 = vadd.f32 %v1221, %v1621
        %v1623 = vpop.f32.mrf.mxu0
        %v1624 = vpop.f32.mrf.mxu0
        %v1625 = vadd.f32 %v1224, %v1624
        %v1626 = vpop.f32.mrf.mxu0
        %1627 = vmatprep.mubr.bf16.mxu0 0
        %1628 = vmatmul.mubr.bf16.gmra.mxu0 %v1454
        %v1629 = vpop.f32.mrf.mxu0
        %v1630 = vpop.f32.mrf.mxu0
        %v1631 = vpop.f32.mrf.mxu0
        %v1632 = vadd.f32 %v1231, %v1631
        %v1633 = vpop.f32.mrf.mxu0
        %1634 = vmatprep.mubr.bf16.mxu0 0
        %1635 = vmatmul.mubr.bf16.gmra.mxu0 %v1455
        %v1636 = vpop.f32.mrf.mxu0
        %v1637 = vadd.f32 %v1236, %v1636
        %v1638 = vpop.f32.mrf.mxu0
        %v1639 = vpop.f32.mrf.mxu0
        %v1640 = vpop.f32.mrf.mxu0
        %1641 = vmatprep.mubr.bf16.mxu0 0
        %1642 = vmatmul.mubr.bf16.gmra.mxu0 %v1456
        %v1643 = vpop.f32.mrf.mxu0
        %v1644 = vadd.f32 %v1243, %v1643
        %v1645 = vpop.f32.mrf.mxu0
        %v1646 = vpop.f32.mrf.mxu0
        %v1647 = vadd.f32 %v1246, %v1646
        %v1648 = vpop.f32.mrf.mxu0
        %1649 = vmatprep.mubr.bf16.mxu0 0
        %1650 = vmatmul.mubr.bf16.gmra.mxu0 %v1457
        %v1651 = vpop.f32.mrf.mxu0
        %v1652 = vpop.f32.mrf.mxu0
        %v1653 = vpop.f32.mrf.mxu0
        %v1654 = vadd.f32 %v1253, %v1653
        %v1655 = vpop.f32.mrf.mxu0
        %1656 = vmatprep.mubr.bf16.mxu0 0
        %1657 = vmatmul.mubr.bf16.gmra.mxu0 %v1458
        %v1658 = vpop.f32.mrf.mxu0
        %v1659 = vadd.f32 %v1258, %v1658
        %v1660 = vpop.f32.mrf.mxu0
        %v1661 = vpop.f32.mrf.mxu0
        %v1662 = vpop.f32.mrf.mxu0
        %1663 = vmatprep.mubr.bf16.mxu0 0
        %1664 = vmatmul.mubr.bf16.gmra.mxu0 %v1459
        %v1665 = vpop.f32.mrf.mxu0
        %v1666 = vadd.f32 %v1265, %v1665
        %v1667 = vpop.f32.mrf.mxu0
        %v1668 = vpop.f32.mrf.mxu0
        %v1669 = vadd.f32 %v1268, %v1668
        %v1670 = vpop.f32.mrf.mxu0
        %1671 = vmatprep.mubr.bf16.mxu0 0
        %1672 = vmatmul.mubr.bf16.gmra.mxu0 %v1460
        %v1673 = vpop.f32.mrf.mxu0
        %v1674 = vpop.f32.mrf.mxu0
        %v1675 = vpop.f32.mrf.mxu0
        %v1676 = vadd.f32 %v1275, %v1675
        %v1677 = vpop.f32.mrf.mxu0
        %1678 = vmatprep.mubr.bf16.mxu0 0
        %1679 = vmatmul.mubr.bf16.gmra.mxu0 %v1461
        %v1680 = vpop.f32.mrf.mxu0
        %v1681 = vadd.f32 %v1280, %v1680
        %v1682 = vpop.f32.mrf.mxu0
        %v1683 = vpop.f32.mrf.mxu0
        %v1684 = vpop.f32.mrf.mxu0
        %1685 = vmatprep.mubr.bf16.mxu0 0
        %1686 = vmatmul.mubr.bf16.gmra.mxu0 %v1462
        %v1687 = vpop.f32.mrf.mxu0
        %v1688 = vadd.f32 %v1287, %v1687
        %v1689 = vpop.f32.mrf.mxu0
        %v1690 = vpop.f32.mrf.mxu0
        %v1691 = vadd.f32 %v1290, %v1690
        %v1692 = vpop.f32.mrf.mxu0
        %1693 = vmatprep.mubr.bf16.mxu0 0
        %1694 = vmatmul.mubr.bf16.gmra.mxu0 %v1463
        %v1695 = vpop.f32.mrf.mxu0
        %v1696 = vpop.f32.mrf.mxu0
        %v1697 = vpop.f32.mrf.mxu0
        %v1698 = vadd.f32 %v1297, %v1697
        %v1699 = vpop.f32.mrf.mxu0
        %1700 = vmatprep.mubr.bf16.mxu0 0
        %1701 = vmatmul.mubr.bf16.gmra.mxu0 %v1464
        %v1702 = vpop.f32.mrf.mxu0
        %v1703 = vadd.f32 %v1302, %v1702
        %v1704 = vpop.f32.mrf.mxu0
        %v1705 = vpop.f32.mrf.mxu0
        %v1706 = vpop.f32.mrf.mxu0
        %1707 = vmatprep.mubr.bf16.mxu0 0
        %1708 = vmatmul.mubr.bf16.gmra.mxu0 %v1465
        %v1709 = vpop.f32.mrf.mxu0
        %v1710 = vadd.f32 %v1309, %v1709
        %v1711 = vpop.f32.mrf.mxu0
        %v1712 = vpop.f32.mrf.mxu0
        %v1713 = vadd.f32 %v1312, %v1712
        %v1714 = vpop.f32.mrf.mxu0
        %1715 = vmatprep.mubr.bf16.mxu0 0
        %1716 = vmatmul.mubr.bf16.gmra.mxu0 %v1466
        %v1717 = vpop.f32.mrf.mxu0
        %v1718 = vpop.f32.mrf.mxu0
        %v1719 = vpop.f32.mrf.mxu0
        %v1720 = vadd.f32 %v1319, %v1719
        %v1721 = vpop.f32.mrf.mxu0
        %1722 = vmatprep.mubr.bf16.mxu0 0
        %1723 = vmatmul.mubr.bf16.gmra.mxu0 %v1467
        %v1724 = vpop.f32.mrf.mxu0
        %v1725 = vadd.f32 %v1324, %v1724
        %v1726 = vpop.f32.mrf.mxu0
        %v1727 = vpop.f32.mrf.mxu0
        %v1728 = vpop.f32.mrf.mxu0
        %1729 = vmatprep.mubr.bf16.mxu0 0
        %1730 = vmatmul.mubr.bf16.gmra.mxu0 %v1468
        %v1731 = vpop.f32.mrf.mxu0
        %v1732 = vadd.f32 %v1331, %v1731
        %v1733 = vpop.f32.mrf.mxu0
        %v1734 = vpop.f32.mrf.mxu0
        %v1735 = vadd.f32 %v1334, %v1734
        %v1736 = vpop.f32.mrf.mxu0
        %1737 = vmatprep.mubr.bf16.mxu0 0
        %1738 = vmatmul.mubr.bf16.gmra.mxu0 %v1469
        %v1739 = vpop.f32.mrf.mxu0
        %v1740 = vpop.f32.mrf.mxu0
        %v1741 = vpop.f32.mrf.mxu0
        %v1742 = vadd.f32 %v1341, %v1741
        %v1743 = vpop.f32.mrf.mxu0
        %1744 = vmatprep.mubr.bf16.mxu0 0
        %1745 = vmatmul.mubr.bf16.gmra.mxu0 %v1470
        %v1746 = vpop.f32.mrf.mxu0
        %v1747 = vadd.f32 %v1346, %v1746
        %v1748 = vpop.f32.mrf.mxu0
        %v1749 = vpop.f32.mrf.mxu0
        %v1750 = vpop.f32.mrf.mxu0
        %1751 = vdwg.mxu0
        %s1752 = scalar_lea.vmem [#allocation2], 24
        %v1753 = vld [vmem:[%s1752] sm:$0xf]
        %v1754 = vld [vmem:[%s1752 + $0x4] sm:$0xf]
        %v1755 = vld [vmem:[%s1752 + $0x8] sm:$0xf]
        %v1756 = vld [vmem:[%s1752 + $0xc] sm:$0xf]
        %v1757 = vld [vmem:[%s1752 + $0x10] sm:$0xf]
        %v1758 = vld [vmem:[%s1752 + $0x14] sm:$0xf]
        %v1759 = vld [vmem:[%s1752 + $0x18] sm:$0xf]
        %v1760 = vld [vmem:[%s1752 + $0x1c] sm:$0xf]
        %v1761 = vld [vmem:[%s1752 + $0x20] sm:$0xf]
        %v1762 = vld [vmem:[%s1752 + $0x24] sm:$0xf]
        %v1763 = vld [vmem:[%s1752 + $0x28] sm:$0xf]
        %v1764 = vld [vmem:[%s1752 + $0x2c] sm:$0xf]
        %v1765 = vld [vmem:[%s1752 + $0x30] sm:$0xf]
        %v1766 = vld [vmem:[%s1752 + $0x34] sm:$0xf]
        %v1767 = vld [vmem:[%s1752 + $0x38] sm:$0xf]
        %v1768 = vld [vmem:[%s1752 + $0x3c] sm:$0xf]
        %v1769 = vld [vmem:[%s1752 + $0x40] sm:$0xf]
        %v1770 = vld [vmem:[%s1752 + $0x44] sm:$0xf]
        %v1771 = vld [vmem:[%s1752 + $0x48] sm:$0xf]
        %v1772 = vld [vmem:[%s1752 + $0x4c] sm:$0xf]
        %v1773 = vld [vmem:[%s1752 + $0x50] sm:$0xf]
        %v1774 = vld [vmem:[%s1752 + $0x54] sm:$0xf]
        %v1775 = vld [vmem:[%s1752 + $0x58] sm:$0xf]
        %v1776 = vld [vmem:[%s1752 + $0x5c] sm:$0xf]
        %v1777 = vld [vmem:[%s1752 + $0x60] sm:$0xf]
        %v1778 = vld [vmem:[%s1752 + $0x64] sm:$0xf]
        %v1779 = vld [vmem:[%s1752 + $0x68] sm:$0xf]
        %v1780 = vld [vmem:[%s1752 + $0x6c] sm:$0xf]
        %v1781 = vld [vmem:[%s1752 + $0x70] sm:$0xf]
        %v1782 = vld [vmem:[%s1752 + $0x74] sm:$0xf]
        %v1783 = vld [vmem:[%s1752 + $0x78] sm:$0xf]
        %v1784 = vld [vmem:[%s1752 + $0x7c] sm:$0xf]
        %v1785 = vld [vmem:[%s1752 + $0x80] sm:$0xf]
        %v1786 = vld [vmem:[%s1752 + $0x84] sm:$0xf]
        %v1787 = vld [vmem:[%s1752 + $0x88] sm:$0xf]
        %v1788 = vld [vmem:[%s1752 + $0x8c] sm:$0xf]
        %v1789 = vld [vmem:[%s1752 + $0x90] sm:$0xf]
        %v1790 = vld [vmem:[%s1752 + $0x94] sm:$0xf]
        %v1791 = vld [vmem:[%s1752 + $0x98] sm:$0xf]
        %v1792 = vld [vmem:[%s1752 + $0x9c] sm:$0xf]
        %v1793 = vld [vmem:[%s1752 + $0xa0] sm:$0xf]
        %v1794 = vld [vmem:[%s1752 + $0xa4] sm:$0xf]
        %v1795 = vld [vmem:[%s1752 + $0xa8] sm:$0xf]
        %v1796 = vld [vmem:[%s1752 + $0xac] sm:$0xf]
        %v1797 = vld [vmem:[%s1752 + $0xb0] sm:$0xf]
        %v1798 = vld [vmem:[%s1752 + $0xb4] sm:$0xf]
        %v1799 = vld [vmem:[%s1752 + $0xb8] sm:$0xf]
        %v1800 = vld [vmem:[%s1752 + $0xbc] sm:$0xf]
        %s1801 = scalar_lea.vmem [#allocation4], 384
        %v1802 = vld [vmem:[%s1801] sm:$0xf]
        %v1803 = vld [vmem:[%s1801 + $0x4] sm:$0xf]
        %v1804 = vld [vmem:[%s1801 + $0x8] sm:$0xf]
        %v1805 = vld [vmem:[%s1801 + $0xc] sm:$0xf]
        %v1806 = vld [vmem:[%s1801 + $0x10] sm:$0xf]
        %v1807 = vld [vmem:[%s1801 + $0x14] sm:$0xf]
        %v1808 = vld [vmem:[%s1801 + $0x18] sm:$0xf]
        %v1809 = vld [vmem:[%s1801 + $0x1c] sm:$0xf]
        %v1810 = vld [vmem:[%s1801 + $0x20] sm:$0xf]
        %v1811 = vld [vmem:[%s1801 + $0x24] sm:$0xf]
        %v1812 = vld [vmem:[%s1801 + $0x28] sm:$0xf]
        %v1813 = vld [vmem:[%s1801 + $0x2c] sm:$0xf]
        %v1814 = vld [vmem:[%s1801 + $0x30] sm:$0xf]
        %v1815 = vld [vmem:[%s1801 + $0x34] sm:$0xf]
        %v1816 = vld [vmem:[%s1801 + $0x38] sm:$0xf]
        %v1817 = vld [vmem:[%s1801 + $0x3c] sm:$0xf]
        %v1866 = vunpack.c.l.b16 %v1753
        %v1867 = vunpack.c.l.b16 %v1754
        %v1868 = vunpack.c.l.b16 %v1755
        %v1869 = vunpack.c.l.b16 %v1756
        %v1870 = vunpack.c.l.b16 %v1757
        %v1871 = vunpack.c.l.b16 %v1758
        %v1872 = vunpack.c.l.b16 %v1759
        %v1873 = vunpack.c.l.b16 %v1760
        %v1874 = vunpack.c.l.b16 %v1761
        %v1875 = vunpack.c.l.b16 %v1762
        %v1876 = vunpack.c.l.b16 %v1763
        %v1877 = vunpack.c.l.b16 %v1764
        %v1878 = vunpack.c.l.b16 %v1765
        %v1879 = vunpack.c.l.b16 %v1766
        %v1880 = vunpack.c.l.b16 %v1767
        %v1881 = vunpack.c.l.b16 %v1768
        %v1882 = vunpack.c.l.b16 %v1769
        %v1883 = vunpack.c.l.b16 %v1770
        %v1884 = vunpack.c.l.b16 %v1771
        %v1885 = vunpack.c.l.b16 %v1772
        %v1886 = vunpack.c.l.b16 %v1773
        %v1887 = vunpack.c.l.b16 %v1774
        %v1888 = vunpack.c.l.b16 %v1775
        %v1889 = vunpack.c.l.b16 %v1776
        %v1890 = vunpack.c.l.b16 %v1777
        %v1891 = vunpack.c.l.b16 %v1778
        %v1892 = vunpack.c.l.b16 %v1779
        %v1893 = vunpack.c.l.b16 %v1780
        %v1894 = vunpack.c.l.b16 %v1781
        %v1895 = vunpack.c.l.b16 %v1782
        %v1896 = vunpack.c.l.b16 %v1783
        %v1897 = vunpack.c.l.b16 %v1784
        %v1898 = vunpack.c.l.b16 %v1785
        %v1899 = vunpack.c.l.b16 %v1786
        %v1900 = vunpack.c.l.b16 %v1787
        %v1901 = vunpack.c.l.b16 %v1788
        %v1902 = vunpack.c.l.b16 %v1789
        %v1903 = vunpack.c.l.b16 %v1790
        %v1904 = vunpack.c.l.b16 %v1791
        %v1905 = vunpack.c.l.b16 %v1792
        %v1906 = vunpack.c.l.b16 %v1793
        %v1907 = vunpack.c.l.b16 %v1794
        %v1908 = vunpack.c.l.b16 %v1795
        %v1909 = vunpack.c.l.b16 %v1796
        %v1910 = vunpack.c.l.b16 %v1797
        %v1911 = vunpack.c.l.b16 %v1798
        %v1912 = vunpack.c.l.b16 %v1799
        %v1913 = vunpack.c.l.b16 %v1800
        %v1914 = vpack.c.b16 %v1867, %v1866
        %v1915 = vpack.c.b16 %v1869, %v1868
        %v1916 = vpack.c.b16 %v1871, %v1870
        %v1917 = vpack.c.b16 %v1873, %v1872
        %v1918 = vpack.c.b16 %v1875, %v1874
        %v1919 = vpack.c.b16 %v1877, %v1876
        %v1920 = vpack.c.b16 %v1879, %v1878
        %v1921 = vpack.c.b16 %v1881, %v1880
        %v1922 = vpack.c.b16 %v1883, %v1882
        %v1923 = vpack.c.b16 %v1885, %v1884
        %v1924 = vpack.c.b16 %v1887, %v1886
        %v1925 = vpack.c.b16 %v1889, %v1888
        %v1926 = vpack.c.b16 %v1891, %v1890
        %v1927 = vpack.c.b16 %v1893, %v1892
        %v1928 = vpack.c.b16 %v1895, %v1894
        %v1929 = vpack.c.b16 %v1897, %v1896
        %v1930 = vpack.c.b16 %v1899, %v1898
        %v1931 = vpack.c.b16 %v1901, %v1900
        %v1932 = vpack.c.b16 %v1903, %v1902
        %v1933 = vpack.c.b16 %v1905, %v1904
        %v1934 = vpack.c.b16 %v1907, %v1906
        %v1935 = vpack.c.b16 %v1909, %v1908
        %v1936 = vpack.c.b16 %v1911, %v1910
        %v1937 = vpack.c.b16 %v1913, %v1912
        %v1978 = vunpack.c.l.b16 %v1802
        %v1979 = vunpack.c.l.b16 %v1803
        %v1980 = vunpack.c.l.b16 %v1804
        %v1981 = vunpack.c.l.b16 %v1805
        %v1982 = vunpack.c.l.b16 %v1806
        %v1983 = vunpack.c.l.b16 %v1807
        %v1984 = vunpack.c.l.b16 %v1808
        %v1985 = vunpack.c.l.b16 %v1809
        %v1986 = vunpack.c.l.b16 %v1810
        %v1987 = vunpack.c.l.b16 %v1811
        %v1988 = vunpack.c.l.b16 %v1812
        %v1989 = vunpack.c.l.b16 %v1813
        %v1990 = vunpack.c.l.b16 %v1814
        %v1991 = vunpack.c.l.b16 %v1815
        %v1992 = vunpack.c.l.b16 %v1816
        %v1993 = vunpack.c.l.b16 %v1817
        %v1994 = vpack.c.b16 %v1979, %v1978
        %v1995 = vpack.c.b16 %v1981, %v1980
        %v1996 = vpack.c.b16 %v1983, %v1982
        %v1997 = vpack.c.b16 %v1985, %v1984
        %v1998 = vpack.c.b16 %v1987, %v1986
        %v1999 = vpack.c.b16 %v1989, %v1988
        %v2000 = vpack.c.b16 %v1991, %v1990
        %v2001 = vpack.c.b16 %v1993, %v1992
        %2010 = vmatprep.subr.bf16.mxu0 0
        %2011 = vmatpush1.bf16.msra.mxu0 %v2001
        %2012 = vmatprep.subr.bf16.mxu0 0
        %2013 = vmatpush1.bf16.msra.mxu0 %v2000
        %2014 = vmatprep.subr.bf16.mxu0 0
        %2015 = vmatpush1.bf16.msra.mxu0 %v1999
        %2016 = vmatprep.subr.bf16.mxu0 0
        %2017 = vmatpush1.bf16.msra.mxu0 %v1998
        %2018 = vmatprep.subr.bf16.mxu0 0
        %2019 = vmatpush1.bf16.msra.mxu0 %v1997
        %2020 = vmatprep.subr.bf16.mxu0 0
        %2021 = vmatpush1.bf16.msra.mxu0 %v1996
        %2022 = vmatprep.subr.bf16.mxu0 0
        %2023 = vmatpush1.bf16.msra.mxu0 %v1995
        %2024 = vmatprep.subr.bf16.mxu0 0
        %2025 = vmatpush1.bf16.msra.mxu0 %v1994
        %2026 = vmatprep.subr.bf16.mxu0 0
        %2027 = vmatpush2.bf16.msra.mxu0 0
        %2028 = vmatprep.subr.bf16.mxu0 0
        %2029 = vmatpush2.bf16.msra.mxu0 0
        %2030 = vmatprep.subr.bf16.mxu0 0
        %2031 = vmatpush2.bf16.msra.mxu0 0
        %2032 = vmatprep.subr.bf16.mxu0 0
        %2033 = vmatpush2.bf16.msra.mxu0 0
        %2034 = vmatprep.subr.bf16.mxu0 0
        %2035 = vmatpush2.bf16.msra.mxu0 0
        %2036 = vmatprep.subr.bf16.mxu0 0
        %2037 = vmatpush2.bf16.msra.mxu0 0
        %2038 = vmatprep.subr.bf16.mxu0 0
        %2039 = vmatpush2.bf16.msra.mxu0 0
        %2040 = vmatprep.subr.bf16.mxu0 0
        %2041 = vmatpush2.bf16.msra.mxu0 0
        %2042 = vmatprep.mubr.bf16.mxu0 0
        %2043 = vmatmul.mubr.bf16.gmra.mxu0 %v1914
        %v2044 = vpop.f32.mrf.mxu0
        %v2045 = vadd.f32 0.0, %v2044
        %v2046 = vpop.f32.mrf.mxu0
        %v2047 = vpop.f32.mrf.mxu0
        %v2048 = vadd.f32 0.0, %v2047
        %v2049 = vpop.f32.mrf.mxu0
        %2050 = vmatprep.mubr.bf16.mxu0 0
        %2051 = vmatmul.mubr.bf16.gmra.mxu0 %v1915
        %v2052 = vpop.f32.mrf.mxu0
        %v2053 = vpop.f32.mrf.mxu0
        %v2054 = vpop.f32.mrf.mxu0
        %v2055 = vadd.f32 0.0, %v2054
        %v2056 = vpop.f32.mrf.mxu0
        %2057 = vmatprep.mubr.bf16.mxu0 0
        %2058 = vmatmul.mubr.bf16.gmra.mxu0 %v1916
        %v2059 = vpop.f32.mrf.mxu0
        %v2060 = vadd.f32 0.0, %v2059
        %v2061 = vpop.f32.mrf.mxu0
        %v2062 = vpop.f32.mrf.mxu0
        %v2063 = vpop.f32.mrf.mxu0
        %2064 = vmatprep.mubr.bf16.mxu0 0
        %2065 = vmatmul.mubr.bf16.gmra.mxu0 %v1917
        %v2066 = vpop.f32.mrf.mxu0
        %v2067 = vadd.f32 0.0, %v2066
        %v2068 = vpop.f32.mrf.mxu0
        %v2069 = vpop.f32.mrf.mxu0
        %v2070 = vadd.f32 0.0, %v2069
        %v2071 = vpop.f32.mrf.mxu0
        %2072 = vmatprep.mubr.bf16.mxu0 0
        %2073 = vmatmul.mubr.bf16.gmra.mxu0 %v1918
        %v2074 = vpop.f32.mrf.mxu0
        %v2075 = vpop.f32.mrf.mxu0
        %v2076 = vpop.f32.mrf.mxu0
        %v2077 = vadd.f32 0.0, %v2076
        %v2078 = vpop.f32.mrf.mxu0
        %2079 = vmatprep.mubr.bf16.mxu0 0
        %2080 = vmatmul.mubr.bf16.gmra.mxu0 %v1919
        %v2081 = vpop.f32.mrf.mxu0
        %v2082 = vadd.f32 0.0, %v2081
        %v2083 = vpop.f32.mrf.mxu0
        %v2084 = vpop.f32.mrf.mxu0
        %v2085 = vpop.f32.mrf.mxu0
        %2086 = vmatprep.mubr.bf16.mxu0 0
        %2087 = vmatmul.mubr.bf16.gmra.mxu0 %v1920
        %v2088 = vpop.f32.mrf.mxu0
        %v2089 = vadd.f32 0.0, %v2088
        %v2090 = vpop.f32.mrf.mxu0
        %v2091 = vpop.f32.mrf.mxu0
        %v2092 = vadd.f32 0.0, %v2091
        %v2093 = vpop.f32.mrf.mxu0
        %2094 = vmatprep.mubr.bf16.mxu0 0
        %2095 = vmatmul.mubr.bf16.gmra.mxu0 %v1921
        %v2096 = vpop.f32.mrf.mxu0
        %v2097 = vpop.f32.mrf.mxu0
        %v2098 = vpop.f32.mrf.mxu0
        %v2099 = vadd.f32 0.0, %v2098
        %v2100 = vpop.f32.mrf.mxu0
        %2101 = vmatprep.mubr.bf16.mxu0 0
        %2102 = vmatmul.mubr.bf16.gmra.mxu0 %v1922
        %v2103 = vpop.f32.mrf.mxu0
        %v2104 = vadd.f32 0.0, %v2103
        %v2105 = vpop.f32.mrf.mxu0
        %v2106 = vpop.f32.mrf.mxu0
        %v2107 = vpop.f32.mrf.mxu0
        %2108 = vmatprep.mubr.bf16.mxu0 0
        %2109 = vmatmul.mubr.bf16.gmra.mxu0 %v1923
        %v2110 = vpop.f32.mrf.mxu0
        %v2111 = vadd.f32 0.0, %v2110
        %v2112 = vpop.f32.mrf.mxu0
        %v2113 = vpop.f32.mrf.mxu0
        %v2114 = vadd.f32 0.0, %v2113
        %v2115 = vpop.f32.mrf.mxu0
        %2116 = vmatprep.mubr.bf16.mxu0 0
        %2117 = vmatmul.mubr.bf16.gmra.mxu0 %v1924
        %v2118 = vpop.f32.mrf.mxu0
        %v2119 = vpop.f32.mrf.mxu0
        %v2120 = vpop.f32.mrf.mxu0
        %v2121 = vadd.f32 0.0, %v2120
        %v2122 = vpop.f32.mrf.mxu0
        %2123 = vmatprep.mubr.bf16.mxu0 0
        %2124 = vmatmul.mubr.bf16.gmra.mxu0 %v1925
        %v2125 = vpop.f32.mrf.mxu0
        %v2126 = vadd.f32 0.0, %v2125
        %v2127 = vpop.f32.mrf.mxu0
        %v2128 = vpop.f32.mrf.mxu0
        %v2129 = vpop.f32.mrf.mxu0
        %2130 = vmatprep.mubr.bf16.mxu0 0
        %2131 = vmatmul.mubr.bf16.gmra.mxu0 %v1926
        %v2132 = vpop.f32.mrf.mxu0
        %v2133 = vadd.f32 0.0, %v2132
        %v2134 = vpop.f32.mrf.mxu0
        %v2135 = vpop.f32.mrf.mxu0
        %v2136 = vadd.f32 0.0, %v2135
        %v2137 = vpop.f32.mrf.mxu0
        %2138 = vmatprep.mubr.bf16.mxu0 0
        %2139 = vmatmul.mubr.bf16.gmra.mxu0 %v1927
        %v2140 = vpop.f32.mrf.mxu0
        %v2141 = vpop.f32.mrf.mxu0
        %v2142 = vpop.f32.mrf.mxu0
        %v2143 = vadd.f32 0.0, %v2142
        %v2144 = vpop.f32.mrf.mxu0
        %2145 = vmatprep.mubr.bf16.mxu0 0
        %2146 = vmatmul.mubr.bf16.gmra.mxu0 %v1928
        %v2147 = vpop.f32.mrf.mxu0
        %v2148 = vadd.f32 0.0, %v2147
        %v2149 = vpop.f32.mrf.mxu0
        %v2150 = vpop.f32.mrf.mxu0
        %v2151 = vpop.f32.mrf.mxu0
        %2152 = vmatprep.mubr.bf16.mxu0 0
        %2153 = vmatmul.mubr.bf16.gmra.mxu0 %v1929
        %v2154 = vpop.f32.mrf.mxu0
        %v2155 = vadd.f32 0.0, %v2154
        %v2156 = vpop.f32.mrf.mxu0
        %v2157 = vpop.f32.mrf.mxu0
        %v2158 = vadd.f32 0.0, %v2157
        %v2159 = vpop.f32.mrf.mxu0
        %2160 = vmatprep.mubr.bf16.mxu0 0
        %2161 = vmatmul.mubr.bf16.gmra.mxu0 %v1930
        %v2162 = vpop.f32.mrf.mxu0
        %v2163 = vpop.f32.mrf.mxu0
        %v2164 = vpop.f32.mrf.mxu0
        %v2165 = vadd.f32 0.0, %v2164
        %v2166 = vpop.f32.mrf.mxu0
        %2167 = vmatprep.mubr.bf16.mxu0 0
        %2168 = vmatmul.mubr.bf16.gmra.mxu0 %v1931
        %v2169 = vpop.f32.mrf.mxu0
        %v2170 = vadd.f32 0.0, %v2169
        %v2171 = vpop.f32.mrf.mxu0
        %v2172 = vpop.f32.mrf.mxu0
        %v2173 = vpop.f32.mrf.mxu0
        %2174 = vmatprep.mubr.bf16.mxu0 0
        %2175 = vmatmul.mubr.bf16.gmra.mxu0 %v1932
        %v2176 = vpop.f32.mrf.mxu0
        %v2177 = vadd.f32 0.0, %v2176
        %v2178 = vpop.f32.mrf.mxu0
        %v2179 = vpop.f32.mrf.mxu0
        %v2180 = vadd.f32 0.0, %v2179
        %v2181 = vpop.f32.mrf.mxu0
        %2182 = vmatprep.mubr.bf16.mxu0 0
        %2183 = vmatmul.mubr.bf16.gmra.mxu0 %v1933
        %v2184 = vpop.f32.mrf.mxu0
        %v2185 = vpop.f32.mrf.mxu0
        %v2186 = vpop.f32.mrf.mxu0
        %v2187 = vadd.f32 0.0, %v2186
        %v2188 = vpop.f32.mrf.mxu0
        %2189 = vmatprep.mubr.bf16.mxu0 0
        %2190 = vmatmul.mubr.bf16.gmra.mxu0 %v1934
        %v2191 = vpop.f32.mrf.mxu0
        %v2192 = vadd.f32 0.0, %v2191
        %v2193 = vpop.f32.mrf.mxu0
        %v2194 = vpop.f32.mrf.mxu0
        %v2195 = vpop.f32.mrf.mxu0
        %2196 = vmatprep.mubr.bf16.mxu0 0
        %2197 = vmatmul.mubr.bf16.gmra.mxu0 %v1935
        %v2198 = vpop.f32.mrf.mxu0
        %v2199 = vadd.f32 0.0, %v2198
        %v2200 = vpop.f32.mrf.mxu0
        %v2201 = vpop.f32.mrf.mxu0
        %v2202 = vadd.f32 0.0, %v2201
        %v2203 = vpop.f32.mrf.mxu0
        %2204 = vmatprep.mubr.bf16.mxu0 0
        %2205 = vmatmul.mubr.bf16.gmra.mxu0 %v1936
        %v2206 = vpop.f32.mrf.mxu0
        %v2207 = vpop.f32.mrf.mxu0
        %v2208 = vpop.f32.mrf.mxu0
        %v2209 = vadd.f32 0.0, %v2208
        %v2210 = vpop.f32.mrf.mxu0
        %2211 = vmatprep.mubr.bf16.mxu0 0
        %2212 = vmatmul.mubr.bf16.gmra.mxu0 %v1937
        %v2213 = vpop.f32.mrf.mxu0
        %v2214 = vadd.f32 0.0, %v2213
        %v2215 = vpop.f32.mrf.mxu0
        %v2216 = vpop.f32.mrf.mxu0
        %v2217 = vpop.f32.mrf.mxu0
        %2218 = vdwg.mxu0
        %v2219 = vadd.f32 %v1578, %v2045
        %v2220 = vadd.f32 %v1581, %v2048
        %v2221 = vadd.f32 %v1588, %v2055
        %v2222 = vadd.f32 %v1593, %v2060
        %v2223 = vadd.f32 %v1600, %v2067
        %v2224 = vadd.f32 %v1603, %v2070
        %v2225 = vadd.f32 %v1610, %v2077
        %v2226 = vadd.f32 %v1615, %v2082
        %v2227 = vadd.f32 %v1622, %v2089
        %v2228 = vadd.f32 %v1625, %v2092
        %v2229 = vadd.f32 %v1632, %v2099
        %v2230 = vadd.f32 %v1637, %v2104
        %v2231 = vadd.f32 %v1644, %v2111
        %v2232 = vadd.f32 %v1647, %v2114
        %v2233 = vadd.f32 %v1654, %v2121
        %v2234 = vadd.f32 %v1659, %v2126
        %v2235 = vadd.f32 %v1666, %v2133
        %v2236 = vadd.f32 %v1669, %v2136
        %v2237 = vadd.f32 %v1676, %v2143
        %v2238 = vadd.f32 %v1681, %v2148
        %v2239 = vadd.f32 %v1688, %v2155
        %v2240 = vadd.f32 %v1691, %v2158
        %v2241 = vadd.f32 %v1698, %v2165
        %v2242 = vadd.f32 %v1703, %v2170
        %v2243 = vadd.f32 %v1710, %v2177
        %v2244 = vadd.f32 %v1713, %v2180
        %v2245 = vadd.f32 %v1720, %v2187
        %v2246 = vadd.f32 %v1725, %v2192
        %v2247 = vadd.f32 %v1732, %v2199
        %v2248 = vadd.f32 %v1735, %v2202
        %v2249 = vadd.f32 %v1742, %v2209
        %v2250 = vadd.f32 %v1747, %v2214
        %s2251 = scalar_lea.vmem [#allocation4], 64
        %v2252 = vld [vmem:[%s2251] sm:$0xf]
        %v2253 = vld [vmem:[%s2251 + $0x4] sm:$0xf]
        %v2254 = vld [vmem:[%s2251 + $0x8] sm:$0xf]
        %v2255 = vld [vmem:[%s2251 + $0xc] sm:$0xf]
        %v2256 = vld [vmem:[%s2251 + $0x10] sm:$0xf]
        %v2257 = vld [vmem:[%s2251 + $0x14] sm:$0xf]
        %v2258 = vld [vmem:[%s2251 + $0x18] sm:$0xf]
        %v2259 = vld [vmem:[%s2251 + $0x1c] sm:$0xf]
        %v2260 = vld [vmem:[%s2251 + $0x20] sm:$0xf]
        %v2261 = vld [vmem:[%s2251 + $0x24] sm:$0xf]
        %v2262 = vld [vmem:[%s2251 + $0x28] sm:$0xf]
        %v2263 = vld [vmem:[%s2251 + $0x2c] sm:$0xf]
        %v2264 = vld [vmem:[%s2251 + $0x30] sm:$0xf]
        %v2265 = vld [vmem:[%s2251 + $0x34] sm:$0xf]
        %v2266 = vld [vmem:[%s2251 + $0x38] sm:$0xf]
        %v2267 = vld [vmem:[%s2251 + $0x3c] sm:$0xf]
        %s2268 = scalar_lea.vmem [#allocation4], 256
        %v2269 = vld [vmem:[%s2268] sm:$0xf]
        %v2270 = vld [vmem:[%s2268 + $0x4] sm:$0xf]
        %v2271 = vld [vmem:[%s2268 + $0x8] sm:$0xf]
        %v2272 = vld [vmem:[%s2268 + $0xc] sm:$0xf]
        %v2273 = vld [vmem:[%s2268 + $0x10] sm:$0xf]
        %v2274 = vld [vmem:[%s2268 + $0x14] sm:$0xf]
        %v2275 = vld [vmem:[%s2268 + $0x18] sm:$0xf]
        %v2276 = vld [vmem:[%s2268 + $0x1c] sm:$0xf]
        %v2277 = vld [vmem:[%s2268 + $0x20] sm:$0xf]
        %v2278 = vld [vmem:[%s2268 + $0x24] sm:$0xf]
        %v2279 = vld [vmem:[%s2268 + $0x28] sm:$0xf]
        %v2280 = vld [vmem:[%s2268 + $0x2c] sm:$0xf]
        %v2281 = vld [vmem:[%s2268 + $0x30] sm:$0xf]
        %v2282 = vld [vmem:[%s2268 + $0x34] sm:$0xf]
        %v2283 = vld [vmem:[%s2268 + $0x38] sm:$0xf]
        %v2284 = vld [vmem:[%s2268 + $0x3c] sm:$0xf]
        %v2301 = vunpack.c.l.b16 %v2269
        %v2302 = vunpack.c.l.b16 %v2270
        %v2303 = vunpack.c.l.b16 %v2271
        %v2304 = vunpack.c.l.b16 %v2272
        %v2305 = vunpack.c.l.b16 %v2273
        %v2306 = vunpack.c.l.b16 %v2274
        %v2307 = vunpack.c.l.b16 %v2275
        %v2308 = vunpack.c.l.b16 %v2276
        %v2309 = vunpack.c.l.b16 %v2277
        %v2310 = vunpack.c.l.b16 %v2278
        %v2311 = vunpack.c.l.b16 %v2279
        %v2312 = vunpack.c.l.b16 %v2280
        %v2313 = vunpack.c.l.b16 %v2281
        %v2314 = vunpack.c.l.b16 %v2282
        %v2315 = vunpack.c.l.b16 %v2283
        %v2316 = vunpack.c.l.b16 %v2284
        %v2317 = vpack.c.b16 %v2302, %v2301
        %v2318 = vpack.c.b16 %v2304, %v2303
        %v2319 = vpack.c.b16 %v2306, %v2305
        %v2320 = vpack.c.b16 %v2308, %v2307
        %v2321 = vpack.c.b16 %v2310, %v2309
        %v2322 = vpack.c.b16 %v2312, %v2311
        %v2323 = vpack.c.b16 %v2314, %v2313
        %v2324 = vpack.c.b16 %v2316, %v2315
        %2333 = vmatprep.subr.bf16.mxu0 0
        %2334 = vmatpush1.bf16.msra.mxu0 %v2324
        %2335 = vmatprep.subr.bf16.mxu0 0
        %2336 = vmatpush1.bf16.msra.mxu0 %v2323
        %2337 = vmatprep.subr.bf16.mxu0 0
        %2338 = vmatpush1.bf16.msra.mxu0 %v2322
        %2339 = vmatprep.subr.bf16.mxu0 0
        %2340 = vmatpush1.bf16.msra.mxu0 %v2321
        %2341 = vmatprep.subr.bf16.mxu0 0
        %2342 = vmatpush1.bf16.msra.mxu0 %v2320
        %2343 = vmatprep.subr.bf16.mxu0 0
        %2344 = vmatpush1.bf16.msra.mxu0 %v2319
        %2345 = vmatprep.subr.bf16.mxu0 0
        %2346 = vmatpush1.bf16.msra.mxu0 %v2318
        %2347 = vmatprep.subr.bf16.mxu0 0
        %2348 = vmatpush1.bf16.msra.mxu0 %v2317
        %2349 = vmatprep.subr.bf16.mxu0 0
        %2350 = vmatpush2.bf16.msra.mxu0 0
        %2351 = vmatprep.subr.bf16.mxu0 0
        %2352 = vmatpush2.bf16.msra.mxu0 0
        %2353 = vmatprep.subr.bf16.mxu0 0
        %2354 = vmatpush2.bf16.msra.mxu0 0
        %2355 = vmatprep.subr.bf16.mxu0 0
        %2356 = vmatpush2.bf16.msra.mxu0 0
        %2357 = vmatprep.subr.bf16.mxu0 0
        %2358 = vmatpush2.bf16.msra.mxu0 0
        %2359 = vmatprep.subr.bf16.mxu0 0
        %2360 = vmatpush2.bf16.msra.mxu0 0
        %2361 = vmatprep.subr.bf16.mxu0 0
        %2362 = vmatpush2.bf16.msra.mxu0 0
        %2363 = vmatprep.subr.bf16.mxu0 0
        %2364 = vmatpush2.bf16.msra.mxu0 0
        %2365 = vmatprep.mubr.bf16.mxu0 0
        %2366 = vmatmul.mubr.bf16.gmra.mxu0 %v1046
        %v2367 = vpop.f32.mrf.mxu0
        %v2368 = vadd.f32 0.0, %v2367
        %v2369 = vpop.f32.mrf.mxu0
        %v2370 = vpop.f32.mrf.mxu0
        %v2371 = vadd.f32 0.0, %v2370
        %v2372 = vpop.f32.mrf.mxu0
        %2373 = vmatprep.mubr.bf16.mxu0 0
        %2374 = vmatmul.mubr.bf16.gmra.mxu0 %v1047
        %v2375 = vpop.f32.mrf.mxu0
        %v2376 = vadd.f32 0.0, %v2375
        %v2377 = vpop.f32.mrf.mxu0
        %v2378 = vpop.f32.mrf.mxu0
        %v2379 = vadd.f32 0.0, %v2378
        %v2380 = vpop.f32.mrf.mxu0
        %2381 = vmatprep.mubr.bf16.mxu0 0
        %2382 = vmatmul.mubr.bf16.gmra.mxu0 %v1048
        %v2383 = vpop.f32.mrf.mxu0
        %v2384 = vadd.f32 0.0, %v2383
        %v2385 = vpop.f32.mrf.mxu0
        %v2386 = vpop.f32.mrf.mxu0
        %v2387 = vadd.f32 0.0, %v2386
        %v2388 = vpop.f32.mrf.mxu0
        %2389 = vmatprep.mubr.bf16.mxu0 0
        %2390 = vmatmul.mubr.bf16.gmra.mxu0 %v1049
        %v2391 = vpop.f32.mrf.mxu0
        %v2392 = vadd.f32 0.0, %v2391
        %v2393 = vpop.f32.mrf.mxu0
        %v2394 = vpop.f32.mrf.mxu0
        %v2395 = vadd.f32 0.0, %v2394
        %v2396 = vpop.f32.mrf.mxu0
        %2397 = vmatprep.mubr.bf16.mxu0 0
        %2398 = vmatmul.mubr.bf16.gmra.mxu0 %v1050
        %v2399 = vpop.f32.mrf.mxu0
        %v2400 = vadd.f32 0.0, %v2399
        %v2401 = vpop.f32.mrf.mxu0
        %v2402 = vpop.f32.mrf.mxu0
        %v2403 = vadd.f32 0.0, %v2402
        %v2404 = vpop.f32.mrf.mxu0
        %2405 = vmatprep.mubr.bf16.mxu0 0
        %2406 = vmatmul.mubr.bf16.gmra.mxu0 %v1051
        %v2407 = vpop.f32.mrf.mxu0
        %v2408 = vadd.f32 0.0, %v2407
        %v2409 = vpop.f32.mrf.mxu0
        %v2410 = vpop.f32.mrf.mxu0
        %v2411 = vadd.f32 0.0, %v2410
        %v2412 = vpop.f32.mrf.mxu0
        %2413 = vmatprep.mubr.bf16.mxu0 0
        %2414 = vmatmul.mubr.bf16.gmra.mxu0 %v1052
        %v2415 = vpop.f32.mrf.mxu0
        %v2416 = vadd.f32 0.0, %v2415
        %v2417 = vpop.f32.mrf.mxu0
        %v2418 = vpop.f32.mrf.mxu0
        %v2419 = vadd.f32 0.0, %v2418
        %v2420 = vpop.f32.mrf.mxu0
        %2421 = vmatprep.mubr.bf16.mxu0 0
        %2422 = vmatmul.mubr.bf16.gmra.mxu0 %v1053
        %v2423 = vpop.f32.mrf.mxu0
        %v2424 = vadd.f32 0.0, %v2423
        %v2425 = vpop.f32.mrf.mxu0
        %v2426 = vpop.f32.mrf.mxu0
        %v2427 = vadd.f32 0.0, %v2426
        %v2428 = vpop.f32.mrf.mxu0
        %2429 = vmatprep.mubr.bf16.mxu0 0
        %2430 = vmatmul.mubr.bf16.gmra.mxu0 %v1054
        %v2431 = vpop.f32.mrf.mxu0
        %v2432 = vadd.f32 0.0, %v2431
        %v2433 = vpop.f32.mrf.mxu0
        %v2434 = vpop.f32.mrf.mxu0
        %v2435 = vadd.f32 0.0, %v2434
        %v2436 = vpop.f32.mrf.mxu0
        %2437 = vmatprep.mubr.bf16.mxu0 0
        %2438 = vmatmul.mubr.bf16.gmra.mxu0 %v1055
        %v2439 = vpop.f32.mrf.mxu0
        %v2440 = vadd.f32 0.0, %v2439
        %v2441 = vpop.f32.mrf.mxu0
        %v2442 = vpop.f32.mrf.mxu0
        %v2443 = vadd.f32 0.0, %v2442
        %v2444 = vpop.f32.mrf.mxu0
        %2445 = vmatprep.mubr.bf16.mxu0 0
        %2446 = vmatmul.mubr.bf16.gmra.mxu0 %v1056
        %v2447 = vpop.f32.mrf.mxu0
        %v2448 = vadd.f32 0.0, %v2447
        %v2449 = vpop.f32.mrf.mxu0
        %v2450 = vpop.f32.mrf.mxu0
        %v2451 = vadd.f32 0.0, %v2450
        %v2452 = vpop.f32.mrf.mxu0
        %2453 = vmatprep.mubr.bf16.mxu0 0
        %2454 = vmatmul.mubr.bf16.gmra.mxu0 %v1057
        %v2455 = vpop.f32.mrf.mxu0
        %v2456 = vadd.f32 0.0, %v2455
        %v2457 = vpop.f32.mrf.mxu0
        %v2458 = vpop.f32.mrf.mxu0
        %v2459 = vadd.f32 0.0, %v2458
        %v2460 = vpop.f32.mrf.mxu0
        %2461 = vmatprep.mubr.bf16.mxu0 0
        %2462 = vmatmul.mubr.bf16.gmra.mxu0 %v1058
        %v2463 = vpop.f32.mrf.mxu0
        %v2464 = vadd.f32 0.0, %v2463
        %v2465 = vpop.f32.mrf.mxu0
        %v2466 = vpop.f32.mrf.mxu0
        %v2467 = vadd.f32 0.0, %v2466
        %v2468 = vpop.f32.mrf.mxu0
        %2469 = vmatprep.mubr.bf16.mxu0 0
        %2470 = vmatmul.mubr.bf16.gmra.mxu0 %v1059
        %v2471 = vpop.f32.mrf.mxu0
        %v2472 = vadd.f32 0.0, %v2471
        %v2473 = vpop.f32.mrf.mxu0
        %v2474 = vpop.f32.mrf.mxu0
        %v2475 = vadd.f32 0.0, %v2474
        %v2476 = vpop.f32.mrf.mxu0
        %2477 = vmatprep.mubr.bf16.mxu0 0
        %2478 = vmatmul.mubr.bf16.gmra.mxu0 %v1060
        %v2479 = vpop.f32.mrf.mxu0
        %v2480 = vadd.f32 0.0, %v2479
        %v2481 = vpop.f32.mrf.mxu0
        %v2482 = vpop.f32.mrf.mxu0
        %v2483 = vadd.f32 0.0, %v2482
        %v2484 = vpop.f32.mrf.mxu0
        %2485 = vmatprep.mubr.bf16.mxu0 0
        %2486 = vmatmul.mubr.bf16.gmra.mxu0 %v1061
        %v2487 = vpop.f32.mrf.mxu0
        %v2488 = vadd.f32 0.0, %v2487
        %v2489 = vpop.f32.mrf.mxu0
        %v2490 = vpop.f32.mrf.mxu0
        %v2491 = vadd.f32 0.0, %v2490
        %v2492 = vpop.f32.mrf.mxu0
        %2493 = vmatprep.mubr.bf16.mxu0 0
        %2494 = vmatmul.mubr.bf16.gmra.mxu0 %v1062
        %v2495 = vpop.f32.mrf.mxu0
        %v2496 = vadd.f32 0.0, %v2495
        %v2497 = vpop.f32.mrf.mxu0
        %v2498 = vpop.f32.mrf.mxu0
        %v2499 = vadd.f32 0.0, %v2498
        %v2500 = vpop.f32.mrf.mxu0
        %2501 = vmatprep.mubr.bf16.mxu0 0
        %2502 = vmatmul.mubr.bf16.gmra.mxu0 %v1063
        %v2503 = vpop.f32.mrf.mxu0
        %v2504 = vadd.f32 0.0, %v2503
        %v2505 = vpop.f32.mrf.mxu0
        %v2506 = vpop.f32.mrf.mxu0
        %v2507 = vadd.f32 0.0, %v2506
        %v2508 = vpop.f32.mrf.mxu0
        %2509 = vmatprep.mubr.bf16.mxu0 0
        %2510 = vmatmul.mubr.bf16.gmra.mxu0 %v1064
        %v2511 = vpop.f32.mrf.mxu0
        %v2512 = vadd.f32 0.0, %v2511
        %v2513 = vpop.f32.mrf.mxu0
        %v2514 = vpop.f32.mrf.mxu0
        %v2515 = vadd.f32 0.0, %v2514
        %v2516 = vpop.f32.mrf.mxu0
        %2517 = vmatprep.mubr.bf16.mxu0 0
        %2518 = vmatmul.mubr.bf16.gmra.mxu0 %v1065
        %v2519 = vpop.f32.mrf.mxu0
        %v2520 = vadd.f32 0.0, %v2519
        %v2521 = vpop.f32.mrf.mxu0
        %v2522 = vpop.f32.mrf.mxu0
        %v2523 = vadd.f32 0.0, %v2522
        %v2524 = vpop.f32.mrf.mxu0
        %2525 = vmatprep.mubr.bf16.mxu0 0
        %2526 = vmatmul.mubr.bf16.gmra.mxu0 %v1066
        %v2527 = vpop.f32.mrf.mxu0
        %v2528 = vadd.f32 0.0, %v2527
        %v2529 = vpop.f32.mrf.mxu0
        %v2530 = vpop.f32.mrf.mxu0
        %v2531 = vadd.f32 0.0, %v2530
        %v2532 = vpop.f32.mrf.mxu0
        %2533 = vmatprep.mubr.bf16.mxu0 0
        %2534 = vmatmul.mubr.bf16.gmra.mxu0 %v1067
        %v2535 = vpop.f32.mrf.mxu0
        %v2536 = vadd.f32 0.0, %v2535
        %v2537 = vpop.f32.mrf.mxu0
        %v2538 = vpop.f32.mrf.mxu0
        %v2539 = vadd.f32 0.0, %v2538
        %v2540 = vpop.f32.mrf.mxu0
        %2541 = vmatprep.mubr.bf16.mxu0 0
        %2542 = vmatmul.mubr.bf16.gmra.mxu0 %v1068
        %v2543 = vpop.f32.mrf.mxu0
        %v2544 = vadd.f32 0.0, %v2543
        %v2545 = vpop.f32.mrf.mxu0
        %v2546 = vpop.f32.mrf.mxu0
        %v2547 = vadd.f32 0.0, %v2546
        %v2548 = vpop.f32.mrf.mxu0
        %2549 = vmatprep.mubr.bf16.mxu0 0
        %2550 = vmatmul.mubr.bf16.gmra.mxu0 %v1069
        %v2551 = vpop.f32.mrf.mxu0
        %v2552 = vadd.f32 0.0, %v2551
        %v2553 = vpop.f32.mrf.mxu0
        %v2554 = vpop.f32.mrf.mxu0
        %v2555 = vadd.f32 0.0, %v2554
        %v2556 = vpop.f32.mrf.mxu0
        %2557 = vdwg.mxu0
        %v2574 = vunpack.c.l.b16 %v2252
        %v2575 = vunpack.c.l.b16 %v2253
        %v2576 = vunpack.c.l.b16 %v2254
        %v2577 = vunpack.c.l.b16 %v2255
        %v2578 = vunpack.c.l.b16 %v2256
        %v2579 = vunpack.c.l.b16 %v2257
        %v2580 = vunpack.c.l.b16 %v2258
        %v2581 = vunpack.c.l.b16 %v2259
        %v2582 = vunpack.c.l.b16 %v2260
        %v2583 = vunpack.c.l.b16 %v2261
        %v2584 = vunpack.c.l.b16 %v2262
        %v2585 = vunpack.c.l.b16 %v2263
        %v2586 = vunpack.c.l.b16 %v2264
        %v2587 = vunpack.c.l.b16 %v2265
        %v2588 = vunpack.c.l.b16 %v2266
        %v2589 = vunpack.c.l.b16 %v2267
        %v2590 = vpack.c.b16 %v2575, %v2574
        %v2591 = vpack.c.b16 %v2577, %v2576
        %v2592 = vpack.c.b16 %v2579, %v2578
        %v2593 = vpack.c.b16 %v2581, %v2580
        %v2594 = vpack.c.b16 %v2583, %v2582
        %v2595 = vpack.c.b16 %v2585, %v2584
        %v2596 = vpack.c.b16 %v2587, %v2586
        %v2597 = vpack.c.b16 %v2589, %v2588
        %2606 = vmatprep.subr.bf16.mxu0 0
        %2607 = vmatpush1.bf16.msra.mxu0 %v2597
        %2608 = vmatprep.subr.bf16.mxu0 0
        %2609 = vmatpush1.bf16.msra.mxu0 %v2596
        %2610 = vmatprep.subr.bf16.mxu0 0
        %2611 = vmatpush1.bf16.msra.mxu0 %v2595
        %2612 = vmatprep.subr.bf16.mxu0 0
        %2613 = vmatpush1.bf16.msra.mxu0 %v2594
        %2614 = vmatprep.subr.bf16.mxu0 0
        %2615 = vmatpush1.bf16.msra.mxu0 %v2593
        %2616 = vmatprep.subr.bf16.mxu0 0
        %2617 = vmatpush1.bf16.msra.mxu0 %v2592
        %2618 = vmatprep.subr.bf16.mxu0 0
        %2619 = vmatpush1.bf16.msra.mxu0 %v2591
        %2620 = vmatprep.subr.bf16.mxu0 0
        %2621 = vmatpush1.bf16.msra.mxu0 %v2590
        %2622 = vmatprep.subr.bf16.mxu0 0
        %2623 = vmatpush2.bf16.msra.mxu0 0
        %2624 = vmatprep.subr.bf16.mxu0 0
        %2625 = vmatpush2.bf16.msra.mxu0 0
        %2626 = vmatprep.subr.bf16.mxu0 0
        %2627 = vmatpush2.bf16.msra.mxu0 0
        %2628 = vmatprep.subr.bf16.mxu0 0
        %2629 = vmatpush2.bf16.msra.mxu0 0
        %2630 = vmatprep.subr.bf16.mxu0 0
        %2631 = vmatpush2.bf16.msra.mxu0 0
        %2632 = vmatprep.subr.bf16.mxu0 0
        %2633 = vmatpush2.bf16.msra.mxu0 0
        %2634 = vmatprep.subr.bf16.mxu0 0
        %2635 = vmatpush2.bf16.msra.mxu0 0
        %2636 = vmatprep.subr.bf16.mxu0 0
        %2637 = vmatpush2.bf16.msra.mxu0 0
        %2638 = vmatprep.mubr.bf16.mxu0 0
        %2639 = vmatmul.mubr.bf16.gmra.mxu0 %v1447
        %v2640 = vpop.f32.mrf.mxu0
        %v2641 = vadd.f32 %v2368, %v2640
        %v2642 = vpop.f32.mrf.mxu0
        %v2643 = vpop.f32.mrf.mxu0
        %v2644 = vadd.f32 %v2371, %v2643
        %v2645 = vpop.f32.mrf.mxu0
        %2646 = vmatprep.mubr.bf16.mxu0 0
        %2647 = vmatmul.mubr.bf16.gmra.mxu0 %v1448
        %v2648 = vpop.f32.mrf.mxu0
        %v2649 = vadd.f32 %v2376, %v2648
        %v2650 = vpop.f32.mrf.mxu0
        %v2651 = vpop.f32.mrf.mxu0
        %v2652 = vadd.f32 %v2379, %v2651
        %v2653 = vpop.f32.mrf.mxu0
        %2654 = vmatprep.mubr.bf16.mxu0 0
        %2655 = vmatmul.mubr.bf16.gmra.mxu0 %v1449
        %v2656 = vpop.f32.mrf.mxu0
        %v2657 = vadd.f32 %v2384, %v2656
        %v2658 = vpop.f32.mrf.mxu0
        %v2659 = vpop.f32.mrf.mxu0
        %v2660 = vadd.f32 %v2387, %v2659
        %v2661 = vpop.f32.mrf.mxu0
        %2662 = vmatprep.mubr.bf16.mxu0 0
        %2663 = vmatmul.mubr.bf16.gmra.mxu0 %v1450
        %v2664 = vpop.f32.mrf.mxu0
        %v2665 = vadd.f32 %v2392, %v2664
        %v2666 = vpop.f32.mrf.mxu0
        %v2667 = vpop.f32.mrf.mxu0
        %v2668 = vadd.f32 %v2395, %v2667
        %v2669 = vpop.f32.mrf.mxu0
        %2670 = vmatprep.mubr.bf16.mxu0 0
        %2671 = vmatmul.mubr.bf16.gmra.mxu0 %v1451
        %v2672 = vpop.f32.mrf.mxu0
        %v2673 = vadd.f32 %v2400, %v2672
        %v2674 = vpop.f32.mrf.mxu0
        %v2675 = vpop.f32.mrf.mxu0
        %v2676 = vadd.f32 %v2403, %v2675
        %v2677 = vpop.f32.mrf.mxu0
        %2678 = vmatprep.mubr.bf16.mxu0 0
        %2679 = vmatmul.mubr.bf16.gmra.mxu0 %v1452
        %v2680 = vpop.f32.mrf.mxu0
        %v2681 = vadd.f32 %v2408, %v2680
        %v2682 = vpop.f32.mrf.mxu0
        %v2683 = vpop.f32.mrf.mxu0
        %v2684 = vadd.f32 %v2411, %v2683
        %v2685 = vpop.f32.mrf.mxu0
        %2686 = vmatprep.mubr.bf16.mxu0 0
        %2687 = vmatmul.mubr.bf16.gmra.mxu0 %v1453
        %v2688 = vpop.f32.mrf.mxu0
        %v2689 = vadd.f32 %v2416, %v2688
        %v2690 = vpop.f32.mrf.mxu0
        %v2691 = vpop.f32.mrf.mxu0
        %v2692 = vadd.f32 %v2419, %v2691
        %v2693 = vpop.f32.mrf.mxu0
        %2694 = vmatprep.mubr.bf16.mxu0 0
        %2695 = vmatmul.mubr.bf16.gmra.mxu0 %v1454
        %v2696 = vpop.f32.mrf.mxu0
        %v2697 = vadd.f32 %v2424, %v2696
        %v2698 = vpop.f32.mrf.mxu0
        %v2699 = vpop.f32.mrf.mxu0
        %v2700 = vadd.f32 %v2427, %v2699
        %v2701 = vpop.f32.mrf.mxu0
        %2702 = vmatprep.mubr.bf16.mxu0 0
        %2703 = vmatmul.mubr.bf16.gmra.mxu0 %v1455
        %v2704 = vpop.f32.mrf.mxu0
        %v2705 = vadd.f32 %v2432, %v2704
        %v2706 = vpop.f32.mrf.mxu0
        %v2707 = vpop.f32.mrf.mxu0
        %v2708 = vadd.f32 %v2435, %v2707
        %v2709 = vpop.f32.mrf.mxu0
        %2710 = vmatprep.mubr.bf16.mxu0 0
        %2711 = vmatmul.mubr.bf16.gmra.mxu0 %v1456
        %v2712 = vpop.f32.mrf.mxu0
        %v2713 = vadd.f32 %v2440, %v2712
        %v2714 = vpop.f32.mrf.mxu0
        %v2715 = vpop.f32.mrf.mxu0
        %v2716 = vadd.f32 %v2443, %v2715
        %v2717 = vpop.f32.mrf.mxu0
        %2718 = vmatprep.mubr.bf16.mxu0 0
        %2719 = vmatmul.mubr.bf16.gmra.mxu0 %v1457
        %v2720 = vpop.f32.mrf.mxu0
        %v2721 = vadd.f32 %v2448, %v2720
        %v2722 = vpop.f32.mrf.mxu0
        %v2723 = vpop.f32.mrf.mxu0
        %v2724 = vadd.f32 %v2451, %v2723
        %v2725 = vpop.f32.mrf.mxu0
        %2726 = vmatprep.mubr.bf16.mxu0 0
        %2727 = vmatmul.mubr.bf16.gmra.mxu0 %v1458
        %v2728 = vpop.f32.mrf.mxu0
        %v2729 = vadd.f32 %v2456, %v2728
        %v2730 = vpop.f32.mrf.mxu0
        %v2731 = vpop.f32.mrf.mxu0
        %v2732 = vadd.f32 %v2459, %v2731
        %v2733 = vpop.f32.mrf.mxu0
        %2734 = vmatprep.mubr.bf16.mxu0 0
        %2735 = vmatmul.mubr.bf16.gmra.mxu0 %v1459
        %v2736 = vpop.f32.mrf.mxu0
        %v2737 = vadd.f32 %v2464, %v2736
        %v2738 = vpop.f32.mrf.mxu0
        %v2739 = vpop.f32.mrf.mxu0
        %v2740 = vadd.f32 %v2467, %v2739
        %v2741 = vpop.f32.mrf.mxu0
        %2742 = vmatprep.mubr.bf16.mxu0 0
        %2743 = vmatmul.mubr.bf16.gmra.mxu0 %v1460
        %v2744 = vpop.f32.mrf.mxu0
        %v2745 = vadd.f32 %v2472, %v2744
        %v2746 = vpop.f32.mrf.mxu0
        %v2747 = vpop.f32.mrf.mxu0
        %v2748 = vadd.f32 %v2475, %v2747
        %v2749 = vpop.f32.mrf.mxu0
        %2750 = vmatprep.mubr.bf16.mxu0 0
        %2751 = vmatmul.mubr.bf16.gmra.mxu0 %v1461
        %v2752 = vpop.f32.mrf.mxu0
        %v2753 = vadd.f32 %v2480, %v2752
        %v2754 = vpop.f32.mrf.mxu0
        %v2755 = vpop.f32.mrf.mxu0
        %v2756 = vadd.f32 %v2483, %v2755
        %v2757 = vpop.f32.mrf.mxu0
        %2758 = vmatprep.mubr.bf16.mxu0 0
        %2759 = vmatmul.mubr.bf16.gmra.mxu0 %v1462
        %v2760 = vpop.f32.mrf.mxu0
        %v2761 = vadd.f32 %v2488, %v2760
        %v2762 = vpop.f32.mrf.mxu0
        %v2763 = vpop.f32.mrf.mxu0
        %v2764 = vadd.f32 %v2491, %v2763
        %v2765 = vpop.f32.mrf.mxu0
        %2766 = vmatprep.mubr.bf16.mxu0 0
        %2767 = vmatmul.mubr.bf16.gmra.mxu0 %v1463
        %v2768 = vpop.f32.mrf.mxu0
        %v2769 = vadd.f32 %v2496, %v2768
        %v2770 = vpop.f32.mrf.mxu0
        %v2771 = vpop.f32.mrf.mxu0
        %v2772 = vadd.f32 %v2499, %v2771
        %v2773 = vpop.f32.mrf.mxu0
        %2774 = vmatprep.mubr.bf16.mxu0 0
        %2775 = vmatmul.mubr.bf16.gmra.mxu0 %v1464
        %v2776 = vpop.f32.mrf.mxu0
        %v2777 = vadd.f32 %v2504, %v2776
        %v2778 = vpop.f32.mrf.mxu0
        %v2779 = vpop.f32.mrf.mxu0
        %v2780 = vadd.f32 %v2507, %v2779
        %v2781 = vpop.f32.mrf.mxu0
        %2782 = vmatprep.mubr.bf16.mxu0 0
        %2783 = vmatmul.mubr.bf16.gmra.mxu0 %v1465
        %v2784 = vpop.f32.mrf.mxu0
        %v2785 = vadd.f32 %v2512, %v2784
        %v2786 = vpop.f32.mrf.mxu0
        %v2787 = vpop.f32.mrf.mxu0
        %v2788 = vadd.f32 %v2515, %v2787
        %v2789 = vpop.f32.mrf.mxu0
        %2790 = vmatprep.mubr.bf16.mxu0 0
        %2791 = vmatmul.mubr.bf16.gmra.mxu0 %v1466
        %v2792 = vpop.f32.mrf.mxu0
        %v2793 = vadd.f32 %v2520, %v2792
        %v2794 = vpop.f32.mrf.mxu0
        %v2795 = vpop.f32.mrf.mxu0
        %v2796 = vadd.f32 %v2523, %v2795
        %v2797 = vpop.f32.mrf.mxu0
        %2798 = vmatprep.mubr.bf16.mxu0 0
        %2799 = vmatmul.mubr.bf16.gmra.mxu0 %v1467
        %v2800 = vpop.f32.mrf.mxu0
        %v2801 = vadd.f32 %v2528, %v2800
        %v2802 = vpop.f32.mrf.mxu0
        %v2803 = vpop.f32.mrf.mxu0
        %v2804 = vadd.f32 %v2531, %v2803
        %v2805 = vpop.f32.mrf.mxu0
        %2806 = vmatprep.mubr.bf16.mxu0 0
        %2807 = vmatmul.mubr.bf16.gmra.mxu0 %v1468
        %v2808 = vpop.f32.mrf.mxu0
        %v2809 = vadd.f32 %v2536, %v2808
        %v2810 = vpop.f32.mrf.mxu0
        %v2811 = vpop.f32.mrf.mxu0
        %v2812 = vadd.f32 %v2539, %v2811
        %v2813 = vpop.f32.mrf.mxu0
        %2814 = vmatprep.mubr.bf16.mxu0 0
        %2815 = vmatmul.mubr.bf16.gmra.mxu0 %v1469
        %v2816 = vpop.f32.mrf.mxu0
        %v2817 = vadd.f32 %v2544, %v2816
        %v2818 = vpop.f32.mrf.mxu0
        %v2819 = vpop.f32.mrf.mxu0
        %v2820 = vadd.f32 %v2547, %v2819
        %v2821 = vpop.f32.mrf.mxu0
        %2822 = vmatprep.mubr.bf16.mxu0 0
        %2823 = vmatmul.mubr.bf16.gmra.mxu0 %v1470
        %v2824 = vpop.f32.mrf.mxu0
        %v2825 = vadd.f32 %v2552, %v2824
        %v2826 = vpop.f32.mrf.mxu0
        %v2827 = vpop.f32.mrf.mxu0
        %v2828 = vadd.f32 %v2555, %v2827
        %v2829 = vpop.f32.mrf.mxu0
        %2830 = vdwg.mxu0
        %s2831 = scalar_lea.vmem [#allocation4], 448
        %v2832 = vld [vmem:[%s2831] sm:$0xf]
        %v2833 = vld [vmem:[%s2831 + $0x4] sm:$0xf]
        %v2834 = vld [vmem:[%s2831 + $0x8] sm:$0xf]
        %v2835 = vld [vmem:[%s2831 + $0xc] sm:$0xf]
        %v2836 = vld [vmem:[%s2831 + $0x10] sm:$0xf]
        %v2837 = vld [vmem:[%s2831 + $0x14] sm:$0xf]
        %v2838 = vld [vmem:[%s2831 + $0x18] sm:$0xf]
        %v2839 = vld [vmem:[%s2831 + $0x1c] sm:$0xf]
        %v2840 = vld [vmem:[%s2831 + $0x20] sm:$0xf]
        %v2841 = vld [vmem:[%s2831 + $0x24] sm:$0xf]
        %v2842 = vld [vmem:[%s2831 + $0x28] sm:$0xf]
        %v2843 = vld [vmem:[%s2831 + $0x2c] sm:$0xf]
        %v2844 = vld [vmem:[%s2831 + $0x30] sm:$0xf]
        %v2845 = vld [vmem:[%s2831 + $0x34] sm:$0xf]
        %v2846 = vld [vmem:[%s2831 + $0x38] sm:$0xf]
        %v2847 = vld [vmem:[%s2831 + $0x3c] sm:$0xf]
        %v2864 = vunpack.c.l.b16 %v2832
        %v2865 = vunpack.c.l.b16 %v2833
        %v2866 = vunpack.c.l.b16 %v2834
        %v2867 = vunpack.c.l.b16 %v2835
        %v2868 = vunpack.c.l.b16 %v2836
        %v2869 = vunpack.c.l.b16 %v2837
        %v2870 = vunpack.c.l.b16 %v2838
        %v2871 = vunpack.c.l.b16 %v2839
        %v2872 = vunpack.c.l.b16 %v2840
        %v2873 = vunpack.c.l.b16 %v2841
        %v2874 = vunpack.c.l.b16 %v2842
        %v2875 = vunpack.c.l.b16 %v2843
        %v2876 = vunpack.c.l.b16 %v2844
        %v2877 = vunpack.c.l.b16 %v2845
        %v2878 = vunpack.c.l.b16 %v2846
        %v2879 = vunpack.c.l.b16 %v2847
        %v2880 = vpack.c.b16 %v2865, %v2864
        %v2881 = vpack.c.b16 %v2867, %v2866
        %v2882 = vpack.c.b16 %v2869, %v2868
        %v2883 = vpack.c.b16 %v2871, %v2870
        %v2884 = vpack.c.b16 %v2873, %v2872
        %v2885 = vpack.c.b16 %v2875, %v2874
        %v2886 = vpack.c.b16 %v2877, %v2876
        %v2887 = vpack.c.b16 %v2879, %v2878
        %2896 = vmatprep.subr.bf16.mxu0 0
        %2897 = vmatpush1.bf16.msra.mxu0 %v2887
        %2898 = vmatprep.subr.bf16.mxu0 0
        %2899 = vmatpush1.bf16.msra.mxu0 %v2886
        %2900 = vmatprep.subr.bf16.mxu0 0
        %2901 = vmatpush1.bf16.msra.mxu0 %v2885
        %2902 = vmatprep.subr.bf16.mxu0 0
        %2903 = vmatpush1.bf16.msra.mxu0 %v2884
        %2904 = vmatprep.subr.bf16.mxu0 0
        %2905 = vmatpush1.bf16.msra.mxu0 %v2883
        %2906 = vmatprep.subr.bf16.mxu0 0
        %2907 = vmatpush1.bf16.msra.mxu0 %v2882
        %2908 = vmatprep.subr.bf16.mxu0 0
        %2909 = vmatpush1.bf16.msra.mxu0 %v2881
        %2910 = vmatprep.subr.bf16.mxu0 0
        %2911 = vmatpush1.bf16.msra.mxu0 %v2880
        %2912 = vmatprep.subr.bf16.mxu0 0
        %2913 = vmatpush2.bf16.msra.mxu0 0
        %2914 = vmatprep.subr.bf16.mxu0 0
        %2915 = vmatpush2.bf16.msra.mxu0 0
        %2916 = vmatprep.subr.bf16.mxu0 0
        %2917 = vmatpush2.bf16.msra.mxu0 0
        %2918 = vmatprep.subr.bf16.mxu0 0
        %2919 = vmatpush2.bf16.msra.mxu0 0
        %2920 = vmatprep.subr.bf16.mxu0 0
        %2921 = vmatpush2.bf16.msra.mxu0 0
        %2922 = vmatprep.subr.bf16.mxu0 0
        %2923 = vmatpush2.bf16.msra.mxu0 0
        %2924 = vmatprep.subr.bf16.mxu0 0
        %2925 = vmatpush2.bf16.msra.mxu0 0
        %2926 = vmatprep.subr.bf16.mxu0 0
        %2927 = vmatpush2.bf16.msra.mxu0 0
        %2928 = vmatprep.mubr.bf16.mxu0 0
        %2929 = vmatmul.mubr.bf16.gmra.mxu0 %v1914
        %v2930 = vpop.f32.mrf.mxu0
        %v2931 = vadd.f32 0.0, %v2930
        %v2932 = vpop.f32.mrf.mxu0
        %v2933 = vpop.f32.mrf.mxu0
        %v2934 = vadd.f32 0.0, %v2933
        %v2935 = vpop.f32.mrf.mxu0
        %2936 = vmatprep.mubr.bf16.mxu0 0
        %2937 = vmatmul.mubr.bf16.gmra.mxu0 %v1915
        %v2938 = vpop.f32.mrf.mxu0
        %v2939 = vadd.f32 0.0, %v2938
        %v2940 = vpop.f32.mrf.mxu0
        %v2941 = vpop.f32.mrf.mxu0
        %v2942 = vadd.f32 0.0, %v2941
        %v2943 = vpop.f32.mrf.mxu0
        %2944 = vmatprep.mubr.bf16.mxu0 0
        %2945 = vmatmul.mubr.bf16.gmra.mxu0 %v1916
        %v2946 = vpop.f32.mrf.mxu0
        %v2947 = vadd.f32 0.0, %v2946
        %v2948 = vpop.f32.mrf.mxu0
        %v2949 = vpop.f32.mrf.mxu0
        %v2950 = vadd.f32 0.0, %v2949
        %v2951 = vpop.f32.mrf.mxu0
        %2952 = vmatprep.mubr.bf16.mxu0 0
        %2953 = vmatmul.mubr.bf16.gmra.mxu0 %v1917
        %v2954 = vpop.f32.mrf.mxu0
        %v2955 = vadd.f32 0.0, %v2954
        %v2956 = vpop.f32.mrf.mxu0
        %v2957 = vpop.f32.mrf.mxu0
        %v2958 = vadd.f32 0.0, %v2957
        %v2959 = vpop.f32.mrf.mxu0
        %2960 = vmatprep.mubr.bf16.mxu0 0
        %2961 = vmatmul.mubr.bf16.gmra.mxu0 %v1918
        %v2962 = vpop.f32.mrf.mxu0
        %v2963 = vadd.f32 0.0, %v2962
        %v2964 = vpop.f32.mrf.mxu0
        %v2965 = vpop.f32.mrf.mxu0
        %v2966 = vadd.f32 0.0, %v2965
        %v2967 = vpop.f32.mrf.mxu0
        %2968 = vmatprep.mubr.bf16.mxu0 0
        %2969 = vmatmul.mubr.bf16.gmra.mxu0 %v1919
        %v2970 = vpop.f32.mrf.mxu0
        %v2971 = vadd.f32 0.0, %v2970
        %v2972 = vpop.f32.mrf.mxu0
        %v2973 = vpop.f32.mrf.mxu0
        %v2974 = vadd.f32 0.0, %v2973
        %v2975 = vpop.f32.mrf.mxu0
        %2976 = vmatprep.mubr.bf16.mxu0 0
        %2977 = vmatmul.mubr.bf16.gmra.mxu0 %v1920
        %v2978 = vpop.f32.mrf.mxu0
        %v2979 = vadd.f32 0.0, %v2978
        %v2980 = vpop.f32.mrf.mxu0
        %v2981 = vpop.f32.mrf.mxu0
        %v2982 = vadd.f32 0.0, %v2981
        %v2983 = vpop.f32.mrf.mxu0
        %2984 = vmatprep.mubr.bf16.mxu0 0
        %2985 = vmatmul.mubr.bf16.gmra.mxu0 %v1921
        %v2986 = vpop.f32.mrf.mxu0
        %v2987 = vadd.f32 0.0, %v2986
        %v2988 = vpop.f32.mrf.mxu0
        %v2989 = vpop.f32.mrf.mxu0
        %v2990 = vadd.f32 0.0, %v2989
        %v2991 = vpop.f32.mrf.mxu0
        %2992 = vmatprep.mubr.bf16.mxu0 0
        %2993 = vmatmul.mubr.bf16.gmra.mxu0 %v1922
        %v2994 = vpop.f32.mrf.mxu0
        %v2995 = vadd.f32 0.0, %v2994
        %v2996 = vpop.f32.mrf.mxu0
        %v2997 = vpop.f32.mrf.mxu0
        %v2998 = vadd.f32 0.0, %v2997
        %v2999 = vpop.f32.mrf.mxu0
        %3000 = vmatprep.mubr.bf16.mxu0 0
        %3001 = vmatmul.mubr.bf16.gmra.mxu0 %v1923
        %v3002 = vpop.f32.mrf.mxu0
        %v3003 = vadd.f32 0.0, %v3002
        %v3004 = vpop.f32.mrf.mxu0
        %v3005 = vpop.f32.mrf.mxu0
        %v3006 = vadd.f32 0.0, %v3005
        %v3007 = vpop.f32.mrf.mxu0
        %3008 = vmatprep.mubr.bf16.mxu0 0
        %3009 = vmatmul.mubr.bf16.gmra.mxu0 %v1924
        %v3010 = vpop.f32.mrf.mxu0
        %v3011 = vadd.f32 0.0, %v3010
        %v3012 = vpop.f32.mrf.mxu0
        %v3013 = vpop.f32.mrf.mxu0
        %v3014 = vadd.f32 0.0, %v3013
        %v3015 = vpop.f32.mrf.mxu0
        %3016 = vmatprep.mubr.bf16.mxu0 0
        %3017 = vmatmul.mubr.bf16.gmra.mxu0 %v1925
        %v3018 = vpop.f32.mrf.mxu0
        %v3019 = vadd.f32 0.0, %v3018
        %v3020 = vpop.f32.mrf.mxu0
        %v3021 = vpop.f32.mrf.mxu0
        %v3022 = vadd.f32 0.0, %v3021
        %v3023 = vpop.f32.mrf.mxu0
        %3024 = vmatprep.mubr.bf16.mxu0 0
        %3025 = vmatmul.mubr.bf16.gmra.mxu0 %v1926
        %v3026 = vpop.f32.mrf.mxu0
        %v3027 = vadd.f32 0.0, %v3026
        %v3028 = vpop.f32.mrf.mxu0
        %v3029 = vpop.f32.mrf.mxu0
        %v3030 = vadd.f32 0.0, %v3029
        %v3031 = vpop.f32.mrf.mxu0
        %3032 = vmatprep.mubr.bf16.mxu0 0
        %3033 = vmatmul.mubr.bf16.gmra.mxu0 %v1927
        %v3034 = vpop.f32.mrf.mxu0
        %v3035 = vadd.f32 0.0, %v3034
        %v3036 = vpop.f32.mrf.mxu0
        %v3037 = vpop.f32.mrf.mxu0
        %v3038 = vadd.f32 0.0, %v3037
        %v3039 = vpop.f32.mrf.mxu0
        %3040 = vmatprep.mubr.bf16.mxu0 0
        %3041 = vmatmul.mubr.bf16.gmra.mxu0 %v1928
        %v3042 = vpop.f32.mrf.mxu0
        %v3043 = vadd.f32 0.0, %v3042
        %v3044 = vpop.f32.mrf.mxu0
        %v3045 = vpop.f32.mrf.mxu0
        %v3046 = vadd.f32 0.0, %v3045
        %v3047 = vpop.f32.mrf.mxu0
        %3048 = vmatprep.mubr.bf16.mxu0 0
        %3049 = vmatmul.mubr.bf16.gmra.mxu0 %v1929
        %v3050 = vpop.f32.mrf.mxu0
        %v3051 = vadd.f32 0.0, %v3050
        %v3052 = vpop.f32.mrf.mxu0
        %v3053 = vpop.f32.mrf.mxu0
        %v3054 = vadd.f32 0.0, %v3053
        %v3055 = vpop.f32.mrf.mxu0
        %3056 = vmatprep.mubr.bf16.mxu0 0
        %3057 = vmatmul.mubr.bf16.gmra.mxu0 %v1930
        %v3058 = vpop.f32.mrf.mxu0
        %v3059 = vadd.f32 0.0, %v3058
        %v3060 = vpop.f32.mrf.mxu0
        %v3061 = vpop.f32.mrf.mxu0
        %v3062 = vadd.f32 0.0, %v3061
        %v3063 = vpop.f32.mrf.mxu0
        %3064 = vmatprep.mubr.bf16.mxu0 0
        %3065 = vmatmul.mubr.bf16.gmra.mxu0 %v1931
        %v3066 = vpop.f32.mrf.mxu0
        %v3067 = vadd.f32 0.0, %v3066
        %v3068 = vpop.f32.mrf.mxu0
        %v3069 = vpop.f32.mrf.mxu0
        %v3070 = vadd.f32 0.0, %v3069
        %v3071 = vpop.f32.mrf.mxu0
        %3072 = vmatprep.mubr.bf16.mxu0 0
        %3073 = vmatmul.mubr.bf16.gmra.mxu0 %v1932
        %v3074 = vpop.f32.mrf.mxu0
        %v3075 = vadd.f32 0.0, %v3074
        %v3076 = vpop.f32.mrf.mxu0
        %v3077 = vpop.f32.mrf.mxu0
        %v3078 = vadd.f32 0.0, %v3077
        %v3079 = vpop.f32.mrf.mxu0
        %3080 = vmatprep.mubr.bf16.mxu0 0
        %3081 = vmatmul.mubr.bf16.gmra.mxu0 %v1933
        %v3082 = vpop.f32.mrf.mxu0
        %v3083 = vadd.f32 0.0, %v3082
        %v3084 = vpop.f32.mrf.mxu0
        %v3085 = vpop.f32.mrf.mxu0
        %v3086 = vadd.f32 0.0, %v3085
        %v3087 = vpop.f32.mrf.mxu0
        %3088 = vmatprep.mubr.bf16.mxu0 0
        %3089 = vmatmul.mubr.bf16.gmra.mxu0 %v1934
        %v3090 = vpop.f32.mrf.mxu0
        %v3091 = vadd.f32 0.0, %v3090
        %v3092 = vpop.f32.mrf.mxu0
        %v3093 = vpop.f32.mrf.mxu0
        %v3094 = vadd.f32 0.0, %v3093
        %v3095 = vpop.f32.mrf.mxu0
        %3096 = vmatprep.mubr.bf16.mxu0 0
        %3097 = vmatmul.mubr.bf16.gmra.mxu0 %v1935
        %v3098 = vpop.f32.mrf.mxu0
        %v3099 = vadd.f32 0.0, %v3098
        %v3100 = vpop.f32.mrf.mxu0
        %v3101 = vpop.f32.mrf.mxu0
        %v3102 = vadd.f32 0.0, %v3101
        %v3103 = vpop.f32.mrf.mxu0
        %3104 = vmatprep.mubr.bf16.mxu0 0
        %3105 = vmatmul.mubr.bf16.gmra.mxu0 %v1936
        %v3106 = vpop.f32.mrf.mxu0
        %v3107 = vadd.f32 0.0, %v3106
        %v3108 = vpop.f32.mrf.mxu0
        %v3109 = vpop.f32.mrf.mxu0
        %v3110 = vadd.f32 0.0, %v3109
        %v3111 = vpop.f32.mrf.mxu0
        %3112 = vmatprep.mubr.bf16.mxu0 0
        %3113 = vmatmul.mubr.bf16.gmra.mxu0 %v1937
        %v3114 = vpop.f32.mrf.mxu0
        %v3115 = vadd.f32 0.0, %v3114
        %v3116 = vpop.f32.mrf.mxu0
        %v3117 = vpop.f32.mrf.mxu0
        %v3118 = vadd.f32 0.0, %v3117
        %v3119 = vpop.f32.mrf.mxu0
        %3120 = vdwg.mxu0
        %v3121 = vadd.f32 %v2641, %v2931
        %v3122 = vadd.f32 %v2644, %v2934
        %v3123 = vadd.f32 %v2649, %v2939
        %v3124 = vadd.f32 %v2652, %v2942
        %v3125 = vadd.f32 %v2657, %v2947
        %v3126 = vadd.f32 %v2660, %v2950
        %v3127 = vadd.f32 %v2665, %v2955
        %v3128 = vadd.f32 %v2668, %v2958
        %v3129 = vadd.f32 %v2673, %v2963
        %v3130 = vadd.f32 %v2676, %v2966
        %v3131 = vadd.f32 %v2681, %v2971
        %v3132 = vadd.f32 %v2684, %v2974
        %v3133 = vadd.f32 %v2689, %v2979
        %v3134 = vadd.f32 %v2692, %v2982
        %v3135 = vadd.f32 %v2697, %v2987
        %v3136 = vadd.f32 %v2700, %v2990
        %v3137 = vadd.f32 %v2705, %v2995
        %v3138 = vadd.f32 %v2708, %v2998
        %v3139 = vadd.f32 %v2713, %v3003
        %v3140 = vadd.f32 %v2716, %v3006
        %v3141 = vadd.f32 %v2721, %v3011
        %v3142 = vadd.f32 %v2724, %v3014
        %v3143 = vadd.f32 %v2729, %v3019
        %v3144 = vadd.f32 %v2732, %v3022
        %v3145 = vadd.f32 %v2737, %v3027
        %v3146 = vadd.f32 %v2740, %v3030
        %v3147 = vadd.f32 %v2745, %v3035
        %v3148 = vadd.f32 %v2748, %v3038
        %v3149 = vadd.f32 %v2753, %v3043
        %v3150 = vadd.f32 %v2756, %v3046
        %v3151 = vadd.f32 %v2761, %v3051
        %v3152 = vadd.f32 %v2764, %v3054
        %v3153 = vadd.f32 %v2769, %v3059
        %v3154 = vadd.f32 %v2772, %v3062
        %v3155 = vadd.f32 %v2777, %v3067
        %v3156 = vadd.f32 %v2780, %v3070
        %v3157 = vadd.f32 %v2785, %v3075
        %v3158 = vadd.f32 %v2788, %v3078
        %v3159 = vadd.f32 %v2793, %v3083
        %v3160 = vadd.f32 %v2796, %v3086
        %v3161 = vadd.f32 %v2801, %v3091
        %v3162 = vadd.f32 %v2804, %v3094
        %v3163 = vadd.f32 %v2809, %v3099
        %v3164 = vadd.f32 %v2812, %v3102
        %v3165 = vadd.f32 %v2817, %v3107
        %v3166 = vadd.f32 %v2820, %v3110
        %v3167 = vadd.f32 %v2825, %v3115
        %v3168 = vadd.f32 %v2828, %v3118
        %s3169 = scalar_lea.vmem [#allocation4], 128
        %v3170 = vld [vmem:[%s3169] sm:$0xf]
        %v3171 = vld [vmem:[%s3169 + $0x4] sm:$0xf]
        %v3172 = vld [vmem:[%s3169 + $0x8] sm:$0xf]
        %v3173 = vld [vmem:[%s3169 + $0xc] sm:$0xf]
        %v3174 = vld [vmem:[%s3169 + $0x10] sm:$0xf]
        %v3175 = vld [vmem:[%s3169 + $0x14] sm:$0xf]
        %v3176 = vld [vmem:[%s3169 + $0x18] sm:$0xf]
        %v3177 = vld [vmem:[%s3169 + $0x1c] sm:$0xf]
        %v3178 = vld [vmem:[%s3169 + $0x20] sm:$0xf]
        %v3179 = vld [vmem:[%s3169 + $0x24] sm:$0xf]
        %v3180 = vld [vmem:[%s3169 + $0x28] sm:$0xf]
        %v3181 = vld [vmem:[%s3169 + $0x2c] sm:$0xf]
        %v3182 = vld [vmem:[%s3169 + $0x30] sm:$0xf]
        %v3183 = vld [vmem:[%s3169 + $0x34] sm:$0xf]
        %v3184 = vld [vmem:[%s3169 + $0x38] sm:$0xf]
        %v3185 = vld [vmem:[%s3169 + $0x3c] sm:$0xf]
        %s3186 = scalar_lea.vmem [#allocation4], 320
        %v3187 = vld [vmem:[%s3186] sm:$0xf]
        %v3188 = vld [vmem:[%s3186 + $0x4] sm:$0xf]
        %v3189 = vld [vmem:[%s3186 + $0x8] sm:$0xf]
        %v3190 = vld [vmem:[%s3186 + $0xc] sm:$0xf]
        %v3191 = vld [vmem:[%s3186 + $0x10] sm:$0xf]
        %v3192 = vld [vmem:[%s3186 + $0x14] sm:$0xf]
        %v3193 = vld [vmem:[%s3186 + $0x18] sm:$0xf]
        %v3194 = vld [vmem:[%s3186 + $0x1c] sm:$0xf]
        %v3195 = vld [vmem:[%s3186 + $0x20] sm:$0xf]
        %v3196 = vld [vmem:[%s3186 + $0x24] sm:$0xf]
        %v3197 = vld [vmem:[%s3186 + $0x28] sm:$0xf]
        %v3198 = vld [vmem:[%s3186 + $0x2c] sm:$0xf]
        %v3199 = vld [vmem:[%s3186 + $0x30] sm:$0xf]
        %v3200 = vld [vmem:[%s3186 + $0x34] sm:$0xf]
        %v3201 = vld [vmem:[%s3186 + $0x38] sm:$0xf]
        %v3202 = vld [vmem:[%s3186 + $0x3c] sm:$0xf]
        %v3219 = vunpack.c.l.b16 %v3187
        %v3220 = vunpack.c.l.b16 %v3188
        %v3221 = vunpack.c.l.b16 %v3189
        %v3222 = vunpack.c.l.b16 %v3190
        %v3223 = vunpack.c.l.b16 %v3191
        %v3224 = vunpack.c.l.b16 %v3192
        %v3225 = vunpack.c.l.b16 %v3193
        %v3226 = vunpack.c.l.b16 %v3194
        %v3227 = vunpack.c.l.b16 %v3195
        %v3228 = vunpack.c.l.b16 %v3196
        %v3229 = vunpack.c.l.b16 %v3197
        %v3230 = vunpack.c.l.b16 %v3198
        %v3231 = vunpack.c.l.b16 %v3199
        %v3232 = vunpack.c.l.b16 %v3200
        %v3233 = vunpack.c.l.b16 %v3201
        %v3234 = vunpack.c.l.b16 %v3202
        %v3235 = vpack.c.b16 %v3220, %v3219
        %v3236 = vpack.c.b16 %v3222, %v3221
        %v3237 = vpack.c.b16 %v3224, %v3223
        %v3238 = vpack.c.b16 %v3226, %v3225
        %v3239 = vpack.c.b16 %v3228, %v3227
        %v3240 = vpack.c.b16 %v3230, %v3229
        %v3241 = vpack.c.b16 %v3232, %v3231
        %v3242 = vpack.c.b16 %v3234, %v3233
        %3251 = vmatprep.subr.bf16.mxu0 0
        %3252 = vmatpush1.bf16.msra.mxu0 %v3242
        %3253 = vmatprep.subr.bf16.mxu0 0
        %3254 = vmatpush1.bf16.msra.mxu0 %v3241
        %3255 = vmatprep.subr.bf16.mxu0 0
        %3256 = vmatpush1.bf16.msra.mxu0 %v3240
        %3257 = vmatprep.subr.bf16.mxu0 0
        %3258 = vmatpush1.bf16.msra.mxu0 %v3239
        %3259 = vmatprep.subr.bf16.mxu0 0
        %3260 = vmatpush1.bf16.msra.mxu0 %v3238
        %3261 = vmatprep.subr.bf16.mxu0 0
        %3262 = vmatpush1.bf16.msra.mxu0 %v3237
        %3263 = vmatprep.subr.bf16.mxu0 0
        %3264 = vmatpush1.bf16.msra.mxu0 %v3236
        %3265 = vmatprep.subr.bf16.mxu0 0
        %3266 = vmatpush1.bf16.msra.mxu0 %v3235
        %3267 = vmatprep.subr.bf16.mxu0 0
        %3268 = vmatpush2.bf16.msra.mxu0 0
        %3269 = vmatprep.subr.bf16.mxu0 0
        %3270 = vmatpush2.bf16.msra.mxu0 0
        %3271 = vmatprep.subr.bf16.mxu0 0
        %3272 = vmatpush2.bf16.msra.mxu0 0
        %3273 = vmatprep.subr.bf16.mxu0 0
        %3274 = vmatpush2.bf16.msra.mxu0 0
        %3275 = vmatprep.subr.bf16.mxu0 0
        %3276 = vmatpush2.bf16.msra.mxu0 0
        %3277 = vmatprep.subr.bf16.mxu0 0
        %3278 = vmatpush2.bf16.msra.mxu0 0
        %3279 = vmatprep.subr.bf16.mxu0 0
        %3280 = vmatpush2.bf16.msra.mxu0 0
        %3281 = vmatprep.subr.bf16.mxu0 0
        %3282 = vmatpush2.bf16.msra.mxu0 0
        %3283 = vmatprep.mubr.bf16.mxu0 0
        %3284 = vmatmul.mubr.bf16.gmra.mxu0 %v1046
        %v3285 = vpop.f32.mrf.mxu0
        %v3286 = vadd.f32 0.0, %v3285
        %v3287 = vpop.f32.mrf.mxu0
        %v3288 = vpop.f32.mrf.mxu0
        %v3289 = vadd.f32 0.0, %v3288
        %v3290 = vpop.f32.mrf.mxu0
        %3291 = vmatprep.mubr.bf16.mxu0 0
        %3292 = vmatmul.mubr.bf16.gmra.mxu0 %v1047
        %v3293 = vpop.f32.mrf.mxu0
        %v3294 = vadd.f32 0.0, %v3293
        %v3295 = vpop.f32.mrf.mxu0
        %v3296 = vpop.f32.mrf.mxu0
        %v3297 = vadd.f32 0.0, %v3296
        %v3298 = vpop.f32.mrf.mxu0
        %3299 = vmatprep.mubr.bf16.mxu0 0
        %3300 = vmatmul.mubr.bf16.gmra.mxu0 %v1048
        %v3301 = vpop.f32.mrf.mxu0
        %v3302 = vadd.f32 0.0, %v3301
        %v3303 = vpop.f32.mrf.mxu0
        %v3304 = vpop.f32.mrf.mxu0
        %v3305 = vadd.f32 0.0, %v3304
        %v3306 = vpop.f32.mrf.mxu0
        %3307 = vmatprep.mubr.bf16.mxu0 0
        %3308 = vmatmul.mubr.bf16.gmra.mxu0 %v1049
        %v3309 = vpop.f32.mrf.mxu0
        %v3310 = vadd.f32 0.0, %v3309
        %v3311 = vpop.f32.mrf.mxu0
        %v3312 = vpop.f32.mrf.mxu0
        %v3313 = vadd.f32 0.0, %v3312
        %v3314 = vpop.f32.mrf.mxu0
        %3315 = vmatprep.mubr.bf16.mxu0 0
        %3316 = vmatmul.mubr.bf16.gmra.mxu0 %v1050
        %v3317 = vpop.f32.mrf.mxu0
        %v3318 = vadd.f32 0.0, %v3317
        %v3319 = vpop.f32.mrf.mxu0
        %v3320 = vpop.f32.mrf.mxu0
        %v3321 = vadd.f32 0.0, %v3320
        %v3322 = vpop.f32.mrf.mxu0
        %3323 = vmatprep.mubr.bf16.mxu0 0
        %3324 = vmatmul.mubr.bf16.gmra.mxu0 %v1051
        %v3325 = vpop.f32.mrf.mxu0
        %v3326 = vadd.f32 0.0, %v3325
        %v3327 = vpop.f32.mrf.mxu0
        %v3328 = vpop.f32.mrf.mxu0
        %v3329 = vadd.f32 0.0, %v3328
        %v3330 = vpop.f32.mrf.mxu0
        %3331 = vmatprep.mubr.bf16.mxu0 0
        %3332 = vmatmul.mubr.bf16.gmra.mxu0 %v1052
        %v3333 = vpop.f32.mrf.mxu0
        %v3334 = vadd.f32 0.0, %v3333
        %v3335 = vpop.f32.mrf.mxu0
        %v3336 = vpop.f32.mrf.mxu0
        %v3337 = vadd.f32 0.0, %v3336
        %v3338 = vpop.f32.mrf.mxu0
        %3339 = vmatprep.mubr.bf16.mxu0 0
        %3340 = vmatmul.mubr.bf16.gmra.mxu0 %v1053
        %v3341 = vpop.f32.mrf.mxu0
        %v3342 = vadd.f32 0.0, %v3341
        %v3343 = vpop.f32.mrf.mxu0
        %v3344 = vpop.f32.mrf.mxu0
        %v3345 = vadd.f32 0.0, %v3344
        %v3346 = vpop.f32.mrf.mxu0
        %3347 = vmatprep.mubr.bf16.mxu0 0
        %3348 = vmatmul.mubr.bf16.gmra.mxu0 %v1054
        %v3349 = vpop.f32.mrf.mxu0
        %v3350 = vadd.f32 0.0, %v3349
        %v3351 = vpop.f32.mrf.mxu0
        %v3352 = vpop.f32.mrf.mxu0
        %v3353 = vadd.f32 0.0, %v3352
        %v3354 = vpop.f32.mrf.mxu0
        %3355 = vmatprep.mubr.bf16.mxu0 0
        %3356 = vmatmul.mubr.bf16.gmra.mxu0 %v1055
        %v3357 = vpop.f32.mrf.mxu0
        %v3358 = vadd.f32 0.0, %v3357
        %v3359 = vpop.f32.mrf.mxu0
        %v3360 = vpop.f32.mrf.mxu0
        %v3361 = vadd.f32 0.0, %v3360
        %v3362 = vpop.f32.mrf.mxu0
        %3363 = vmatprep.mubr.bf16.mxu0 0
        %3364 = vmatmul.mubr.bf16.gmra.mxu0 %v1056
        %v3365 = vpop.f32.mrf.mxu0
        %v3366 = vadd.f32 0.0, %v3365
        %v3367 = vpop.f32.mrf.mxu0
        %v3368 = vpop.f32.mrf.mxu0
        %v3369 = vadd.f32 0.0, %v3368
        %v3370 = vpop.f32.mrf.mxu0
        %3371 = vmatprep.mubr.bf16.mxu0 0
        %3372 = vmatmul.mubr.bf16.gmra.mxu0 %v1057
        %v3373 = vpop.f32.mrf.mxu0
        %v3374 = vadd.f32 0.0, %v3373
        %v3375 = vpop.f32.mrf.mxu0
        %v3376 = vpop.f32.mrf.mxu0
        %v3377 = vadd.f32 0.0, %v3376
        %v3378 = vpop.f32.mrf.mxu0
        %3379 = vmatprep.mubr.bf16.mxu0 0
        %3380 = vmatmul.mubr.bf16.gmra.mxu0 %v1058
        %v3381 = vpop.f32.mrf.mxu0
        %v3382 = vadd.f32 0.0, %v3381
        %v3383 = vpop.f32.mrf.mxu0
        %v3384 = vpop.f32.mrf.mxu0
        %v3385 = vadd.f32 0.0, %v3384
        %v3386 = vpop.f32.mrf.mxu0
        %3387 = vmatprep.mubr.bf16.mxu0 0
        %3388 = vmatmul.mubr.bf16.gmra.mxu0 %v1059
        %v3389 = vpop.f32.mrf.mxu0
        %v3390 = vadd.f32 0.0, %v3389
        %v3391 = vpop.f32.mrf.mxu0
        %v3392 = vpop.f32.mrf.mxu0
        %v3393 = vadd.f32 0.0, %v3392
        %v3394 = vpop.f32.mrf.mxu0
        %3395 = vmatprep.mubr.bf16.mxu0 0
        %3396 = vmatmul.mubr.bf16.gmra.mxu0 %v1060
        %v3397 = vpop.f32.mrf.mxu0
        %v3398 = vadd.f32 0.0, %v3397
        %v3399 = vpop.f32.mrf.mxu0
        %v3400 = vpop.f32.mrf.mxu0
        %v3401 = vadd.f32 0.0, %v3400
        %v3402 = vpop.f32.mrf.mxu0
        %3403 = vmatprep.mubr.bf16.mxu0 0
        %3404 = vmatmul.mubr.bf16.gmra.mxu0 %v1061
        %v3405 = vpop.f32.mrf.mxu0
        %v3406 = vadd.f32 0.0, %v3405
        %v3407 = vpop.f32.mrf.mxu0
        %v3408 = vpop.f32.mrf.mxu0
        %v3409 = vadd.f32 0.0, %v3408
        %v3410 = vpop.f32.mrf.mxu0
        %3411 = vmatprep.mubr.bf16.mxu0 0
        %3412 = vmatmul.mubr.bf16.gmra.mxu0 %v1062
        %v3413 = vpop.f32.mrf.mxu0
        %v3414 = vadd.f32 0.0, %v3413
        %v3415 = vpop.f32.mrf.mxu0
        %v3416 = vpop.f32.mrf.mxu0
        %v3417 = vadd.f32 0.0, %v3416
        %v3418 = vpop.f32.mrf.mxu0
        %3419 = vmatprep.mubr.bf16.mxu0 0
        %3420 = vmatmul.mubr.bf16.gmra.mxu0 %v1063
        %v3421 = vpop.f32.mrf.mxu0
        %v3422 = vadd.f32 0.0, %v3421
        %v3423 = vpop.f32.mrf.mxu0
        %v3424 = vpop.f32.mrf.mxu0
        %v3425 = vadd.f32 0.0, %v3424
        %v3426 = vpop.f32.mrf.mxu0
        %3427 = vmatprep.mubr.bf16.mxu0 0
        %3428 = vmatmul.mubr.bf16.gmra.mxu0 %v1064
        %v3429 = vpop.f32.mrf.mxu0
        %v3430 = vadd.f32 0.0, %v3429
        %v3431 = vpop.f32.mrf.mxu0
        %v3432 = vpop.f32.mrf.mxu0
        %v3433 = vadd.f32 0.0, %v3432
        %v3434 = vpop.f32.mrf.mxu0
        %3435 = vmatprep.mubr.bf16.mxu0 0
        %3436 = vmatmul.mubr.bf16.gmra.mxu0 %v1065
        %v3437 = vpop.f32.mrf.mxu0
        %v3438 = vadd.f32 0.0, %v3437
        %v3439 = vpop.f32.mrf.mxu0
        %v3440 = vpop.f32.mrf.mxu0
        %v3441 = vadd.f32 0.0, %v3440
        %v3442 = vpop.f32.mrf.mxu0
        %3443 = vmatprep.mubr.bf16.mxu0 0
        %3444 = vmatmul.mubr.bf16.gmra.mxu0 %v1066
        %v3445 = vpop.f32.mrf.mxu0
        %v3446 = vadd.f32 0.0, %v3445
        %v3447 = vpop.f32.mrf.mxu0
        %v3448 = vpop.f32.mrf.mxu0
        %v3449 = vadd.f32 0.0, %v3448
        %v3450 = vpop.f32.mrf.mxu0
        %3451 = vmatprep.mubr.bf16.mxu0 0
        %3452 = vmatmul.mubr.bf16.gmra.mxu0 %v1067
        %v3453 = vpop.f32.mrf.mxu0
        %v3454 = vadd.f32 0.0, %v3453
        %v3455 = vpop.f32.mrf.mxu0
        %v3456 = vpop.f32.mrf.mxu0
        %v3457 = vadd.f32 0.0, %v3456
        %v3458 = vpop.f32.mrf.mxu0
        %3459 = vmatprep.mubr.bf16.mxu0 0
        %3460 = vmatmul.mubr.bf16.gmra.mxu0 %v1068
        %v3461 = vpop.f32.mrf.mxu0
        %v3462 = vadd.f32 0.0, %v3461
        %v3463 = vpop.f32.mrf.mxu0
        %v3464 = vpop.f32.mrf.mxu0
        %v3465 = vadd.f32 0.0, %v3464
        %v3466 = vpop.f32.mrf.mxu0
        %3467 = vmatprep.mubr.bf16.mxu0 0
        %3468 = vmatmul.mubr.bf16.gmra.mxu0 %v1069
        %v3469 = vpop.f32.mrf.mxu0
        %v3470 = vadd.f32 0.0, %v3469
        %v3471 = vpop.f32.mrf.mxu0
        %v3472 = vpop.f32.mrf.mxu0
        %v3473 = vadd.f32 0.0, %v3472
        %v3474 = vpop.f32.mrf.mxu0
        %3475 = vdwg.mxu0
        %v3492 = vunpack.c.l.b16 %v3170
        %v3493 = vunpack.c.l.b16 %v3171
        %v3494 = vunpack.c.l.b16 %v3172
        %v3495 = vunpack.c.l.b16 %v3173
        %v3496 = vunpack.c.l.b16 %v3174
        %v3497 = vunpack.c.l.b16 %v3175
        %v3498 = vunpack.c.l.b16 %v3176
        %v3499 = vunpack.c.l.b16 %v3177
        %v3500 = vunpack.c.l.b16 %v3178
        %v3501 = vunpack.c.l.b16 %v3179
        %v3502 = vunpack.c.l.b16 %v3180
        %v3503 = vunpack.c.l.b16 %v3181
        %v3504 = vunpack.c.l.b16 %v3182
        %v3505 = vunpack.c.l.b16 %v3183
        %v3506 = vunpack.c.l.b16 %v3184
        %v3507 = vunpack.c.l.b16 %v3185
        %v3508 = vpack.c.b16 %v3493, %v3492
        %v3509 = vpack.c.b16 %v3495, %v3494
        %v3510 = vpack.c.b16 %v3497, %v3496
        %v3511 = vpack.c.b16 %v3499, %v3498
        %v3512 = vpack.c.b16 %v3501, %v3500
        %v3513 = vpack.c.b16 %v3503, %v3502
        %v3514 = vpack.c.b16 %v3505, %v3504
        %v3515 = vpack.c.b16 %v3507, %v3506
        %3524 = vmatprep.subr.bf16.mxu0 0
        %3525 = vmatpush1.bf16.msra.mxu0 %v3515
        %3526 = vmatprep.subr.bf16.mxu0 0
        %3527 = vmatpush1.bf16.msra.mxu0 %v3514
        %3528 = vmatprep.subr.bf16.mxu0 0
        %3529 = vmatpush1.bf16.msra.mxu0 %v3513
        %3530 = vmatprep.subr.bf16.mxu0 0
        %3531 = vmatpush1.bf16.msra.mxu0 %v3512
        %3532 = vmatprep.subr.bf16.mxu0 0
        %3533 = vmatpush1.bf16.msra.mxu0 %v3511
        %3534 = vmatprep.subr.bf16.mxu0 0
        %3535 = vmatpush1.bf16.msra.mxu0 %v3510
        %3536 = vmatprep.subr.bf16.mxu0 0
        %3537 = vmatpush1.bf16.msra.mxu0 %v3509
        %3538 = vmatprep.subr.bf16.mxu0 0
        %3539 = vmatpush1.bf16.msra.mxu0 %v3508
        %3540 = vmatprep.subr.bf16.mxu0 0
        %3541 = vmatpush2.bf16.msra.mxu0 0
        %3542 = vmatprep.subr.bf16.mxu0 0
        %3543 = vmatpush2.bf16.msra.mxu0 0
        %3544 = vmatprep.subr.bf16.mxu0 0
        %3545 = vmatpush2.bf16.msra.mxu0 0
        %3546 = vmatprep.subr.bf16.mxu0 0
        %3547 = vmatpush2.bf16.msra.mxu0 0
        %3548 = vmatprep.subr.bf16.mxu0 0
        %3549 = vmatpush2.bf16.msra.mxu0 0
        %3550 = vmatprep.subr.bf16.mxu0 0
        %3551 = vmatpush2.bf16.msra.mxu0 0
        %3552 = vmatprep.subr.bf16.mxu0 0
        %3553 = vmatpush2.bf16.msra.mxu0 0
        %3554 = vmatprep.subr.bf16.mxu0 0
        %3555 = vmatpush2.bf16.msra.mxu0 0
        %3556 = vmatprep.mubr.bf16.mxu0 0
        %3557 = vmatmul.mubr.bf16.gmra.mxu0 %v1447
        %v3558 = vpop.f32.mrf.mxu0
        %v3559 = vadd.f32 %v3286, %v3558
        %v3560 = vpop.f32.mrf.mxu0
        %v3561 = vpop.f32.mrf.mxu0
        %v3562 = vadd.f32 %v3289, %v3561
        %v3563 = vpop.f32.mrf.mxu0
        %3564 = vmatprep.mubr.bf16.mxu0 0
        %3565 = vmatmul.mubr.bf16.gmra.mxu0 %v1448
        %v3566 = vpop.f32.mrf.mxu0
        %v3567 = vadd.f32 %v3294, %v3566
        %v3568 = vpop.f32.mrf.mxu0
        %v3569 = vpop.f32.mrf.mxu0
        %v3570 = vadd.f32 %v3297, %v3569
        %v3571 = vpop.f32.mrf.mxu0
        %3572 = vmatprep.mubr.bf16.mxu0 0
        %3573 = vmatmul.mubr.bf16.gmra.mxu0 %v1449
        %v3574 = vpop.f32.mrf.mxu0
        %v3575 = vadd.f32 %v3302, %v3574
        %v3576 = vpop.f32.mrf.mxu0
        %v3577 = vpop.f32.mrf.mxu0
        %v3578 = vadd.f32 %v3305, %v3577
        %v3579 = vpop.f32.mrf.mxu0
        %3580 = vmatprep.mubr.bf16.mxu0 0
        %3581 = vmatmul.mubr.bf16.gmra.mxu0 %v1450
        %v3582 = vpop.f32.mrf.mxu0
        %v3583 = vadd.f32 %v3310, %v3582
        %v3584 = vpop.f32.mrf.mxu0
        %v3585 = vpop.f32.mrf.mxu0
        %v3586 = vadd.f32 %v3313, %v3585
        %v3587 = vpop.f32.mrf.mxu0
        %3588 = vmatprep.mubr.bf16.mxu0 0
        %3589 = vmatmul.mubr.bf16.gmra.mxu0 %v1451
        %v3590 = vpop.f32.mrf.mxu0
        %v3591 = vadd.f32 %v3318, %v3590
        %v3592 = vpop.f32.mrf.mxu0
        %v3593 = vpop.f32.mrf.mxu0
        %v3594 = vadd.f32 %v3321, %v3593
        %v3595 = vpop.f32.mrf.mxu0
        %3596 = vmatprep.mubr.bf16.mxu0 0
        %3597 = vmatmul.mubr.bf16.gmra.mxu0 %v1452
        %v3598 = vpop.f32.mrf.mxu0
        %v3599 = vadd.f32 %v3326, %v3598
        %v3600 = vpop.f32.mrf.mxu0
        %v3601 = vpop.f32.mrf.mxu0
        %v3602 = vadd.f32 %v3329, %v3601
        %v3603 = vpop.f32.mrf.mxu0
        %3604 = vmatprep.mubr.bf16.mxu0 0
        %3605 = vmatmul.mubr.bf16.gmra.mxu0 %v1453
        %v3606 = vpop.f32.mrf.mxu0
        %v3607 = vadd.f32 %v3334, %v3606
        %v3608 = vpop.f32.mrf.mxu0
        %v3609 = vpop.f32.mrf.mxu0
        %v3610 = vadd.f32 %v3337, %v3609
        %v3611 = vpop.f32.mrf.mxu0
        %3612 = vmatprep.mubr.bf16.mxu0 0
        %3613 = vmatmul.mubr.bf16.gmra.mxu0 %v1454
        %v3614 = vpop.f32.mrf.mxu0
        %v3615 = vadd.f32 %v3342, %v3614
        %v3616 = vpop.f32.mrf.mxu0
        %v3617 = vpop.f32.mrf.mxu0
        %v3618 = vadd.f32 %v3345, %v3617
        %v3619 = vpop.f32.mrf.mxu0
        %3620 = vmatprep.mubr.bf16.mxu0 0
        %3621 = vmatmul.mubr.bf16.gmra.mxu0 %v1455
        %v3622 = vpop.f32.mrf.mxu0
        %v3623 = vadd.f32 %v3350, %v3622
        %v3624 = vpop.f32.mrf.mxu0
        %v3625 = vpop.f32.mrf.mxu0
        %v3626 = vadd.f32 %v3353, %v3625
        %v3627 = vpop.f32.mrf.mxu0
        %3628 = vmatprep.mubr.bf16.mxu0 0
        %3629 = vmatmul.mubr.bf16.gmra.mxu0 %v1456
        %v3630 = vpop.f32.mrf.mxu0
        %v3631 = vadd.f32 %v3358, %v3630
        %v3632 = vpop.f32.mrf.mxu0
        %v3633 = vpop.f32.mrf.mxu0
        %v3634 = vadd.f32 %v3361, %v3633
        %v3635 = vpop.f32.mrf.mxu0
        %3636 = vmatprep.mubr.bf16.mxu0 0
        %3637 = vmatmul.mubr.bf16.gmra.mxu0 %v1457
        %v3638 = vpop.f32.mrf.mxu0
        %v3639 = vadd.f32 %v3366, %v3638
        %v3640 = vpop.f32.mrf.mxu0
        %v3641 = vpop.f32.mrf.mxu0
        %v3642 = vadd.f32 %v3369, %v3641
        %v3643 = vpop.f32.mrf.mxu0
        %3644 = vmatprep.mubr.bf16.mxu0 0
        %3645 = vmatmul.mubr.bf16.gmra.mxu0 %v1458
        %v3646 = vpop.f32.mrf.mxu0
        %v3647 = vadd.f32 %v3374, %v3646
        %v3648 = vpop.f32.mrf.mxu0
        %v3649 = vpop.f32.mrf.mxu0
        %v3650 = vadd.f32 %v3377, %v3649
        %v3651 = vpop.f32.mrf.mxu0
        %3652 = vmatprep.mubr.bf16.mxu0 0
        %3653 = vmatmul.mubr.bf16.gmra.mxu0 %v1459
        %v3654 = vpop.f32.mrf.mxu0
        %v3655 = vadd.f32 %v3382, %v3654
        %v3656 = vpop.f32.mrf.mxu0
        %v3657 = vpop.f32.mrf.mxu0
        %v3658 = vadd.f32 %v3385, %v3657
        %v3659 = vpop.f32.mrf.mxu0
        %3660 = vmatprep.mubr.bf16.mxu0 0
        %3661 = vmatmul.mubr.bf16.gmra.mxu0 %v1460
        %v3662 = vpop.f32.mrf.mxu0
        %v3663 = vadd.f32 %v3390, %v3662
        %v3664 = vpop.f32.mrf.mxu0
        %v3665 = vpop.f32.mrf.mxu0
        %v3666 = vadd.f32 %v3393, %v3665
        %v3667 = vpop.f32.mrf.mxu0
        %3668 = vmatprep.mubr.bf16.mxu0 0
        %3669 = vmatmul.mubr.bf16.gmra.mxu0 %v1461
        %v3670 = vpop.f32.mrf.mxu0
        %v3671 = vadd.f32 %v3398, %v3670
        %v3672 = vpop.f32.mrf.mxu0
        %v3673 = vpop.f32.mrf.mxu0
        %v3674 = vadd.f32 %v3401, %v3673
        %v3675 = vpop.f32.mrf.mxu0
        %3676 = vmatprep.mubr.bf16.mxu0 0
        %3677 = vmatmul.mubr.bf16.gmra.mxu0 %v1462
        %v3678 = vpop.f32.mrf.mxu0
        %v3679 = vadd.f32 %v3406, %v3678
        %v3680 = vpop.f32.mrf.mxu0
        %v3681 = vpop.f32.mrf.mxu0
        %v3682 = vadd.f32 %v3409, %v3681
        %v3683 = vpop.f32.mrf.mxu0
        %3684 = vmatprep.mubr.bf16.mxu0 0
        %3685 = vmatmul.mubr.bf16.gmra.mxu0 %v1463
        %v3686 = vpop.f32.mrf.mxu0
        %v3687 = vadd.f32 %v3414, %v3686
        %v3688 = vpop.f32.mrf.mxu0
        %v3689 = vpop.f32.mrf.mxu0
        %v3690 = vadd.f32 %v3417, %v3689
        %v3691 = vpop.f32.mrf.mxu0
        %3692 = vmatprep.mubr.bf16.mxu0 0
        %3693 = vmatmul.mubr.bf16.gmra.mxu0 %v1464
        %v3694 = vpop.f32.mrf.mxu0
        %v3695 = vadd.f32 %v3422, %v3694
        %v3696 = vpop.f32.mrf.mxu0
        %v3697 = vpop.f32.mrf.mxu0
        %v3698 = vadd.f32 %v3425, %v3697
        %v3699 = vpop.f32.mrf.mxu0
        %3700 = vmatprep.mubr.bf16.mxu0 0
        %3701 = vmatmul.mubr.bf16.gmra.mxu0 %v1465
        %v3702 = vpop.f32.mrf.mxu0
        %v3703 = vadd.f32 %v3430, %v3702
        %v3704 = vpop.f32.mrf.mxu0
        %v3705 = vpop.f32.mrf.mxu0
        %v3706 = vadd.f32 %v3433, %v3705
        %v3707 = vpop.f32.mrf.mxu0
        %3708 = vmatprep.mubr.bf16.mxu0 0
        %3709 = vmatmul.mubr.bf16.gmra.mxu0 %v1466
        %v3710 = vpop.f32.mrf.mxu0
        %v3711 = vadd.f32 %v3438, %v3710
        %v3712 = vpop.f32.mrf.mxu0
        %v3713 = vpop.f32.mrf.mxu0
        %v3714 = vadd.f32 %v3441, %v3713
        %v3715 = vpop.f32.mrf.mxu0
        %3716 = vmatprep.mubr.bf16.mxu0 0
        %3717 = vmatmul.mubr.bf16.gmra.mxu0 %v1467
        %v3718 = vpop.f32.mrf.mxu0
        %v3719 = vadd.f32 %v3446, %v3718
        %v3720 = vpop.f32.mrf.mxu0
        %v3721 = vpop.f32.mrf.mxu0
        %v3722 = vadd.f32 %v3449, %v3721
        %v3723 = vpop.f32.mrf.mxu0
        %3724 = vmatprep.mubr.bf16.mxu0 0
        %3725 = vmatmul.mubr.bf16.gmra.mxu0 %v1468
        %v3726 = vpop.f32.mrf.mxu0
        %v3727 = vadd.f32 %v3454, %v3726
        %v3728 = vpop.f32.mrf.mxu0
        %v3729 = vpop.f32.mrf.mxu0
        %v3730 = vadd.f32 %v3457, %v3729
        %v3731 = vpop.f32.mrf.mxu0
        %3732 = vmatprep.mubr.bf16.mxu0 0
        %3733 = vmatmul.mubr.bf16.gmra.mxu0 %v1469
        %v3734 = vpop.f32.mrf.mxu0
        %v3735 = vadd.f32 %v3462, %v3734
        %v3736 = vpop.f32.mrf.mxu0
        %v3737 = vpop.f32.mrf.mxu0
        %v3738 = vadd.f32 %v3465, %v3737
        %v3739 = vpop.f32.mrf.mxu0
        %3740 = vmatprep.mubr.bf16.mxu0 0
        %3741 = vmatmul.mubr.bf16.gmra.mxu0 %v1470
        %v3742 = vpop.f32.mrf.mxu0
        %v3743 = vadd.f32 %v3470, %v3742
        %v3744 = vpop.f32.mrf.mxu0
        %v3745 = vpop.f32.mrf.mxu0
        %v3746 = vadd.f32 %v3473, %v3745
        %v3747 = vpop.f32.mrf.mxu0
        %3748 = vdwg.mxu0
        %s3749 = scalar_lea.vmem [#allocation4], 512
        %v3750 = vld [vmem:[%s3749] sm:$0xf]
        %v3751 = vld [vmem:[%s3749 + $0x4] sm:$0xf]
        %v3752 = vld [vmem:[%s3749 + $0x8] sm:$0xf]
        %v3753 = vld [vmem:[%s3749 + $0xc] sm:$0xf]
        %v3754 = vld [vmem:[%s3749 + $0x10] sm:$0xf]
        %v3755 = vld [vmem:[%s3749 + $0x14] sm:$0xf]
        %v3756 = vld [vmem:[%s3749 + $0x18] sm:$0xf]
        %v3757 = vld [vmem:[%s3749 + $0x1c] sm:$0xf]
        %v3758 = vld [vmem:[%s3749 + $0x20] sm:$0xf]
        %v3759 = vld [vmem:[%s3749 + $0x24] sm:$0xf]
        %v3760 = vld [vmem:[%s3749 + $0x28] sm:$0xf]
        %v3761 = vld [vmem:[%s3749 + $0x2c] sm:$0xf]
        %v3762 = vld [vmem:[%s3749 + $0x30] sm:$0xf]
        %v3763 = vld [vmem:[%s3749 + $0x34] sm:$0xf]
        %v3764 = vld [vmem:[%s3749 + $0x38] sm:$0xf]
        %v3765 = vld [vmem:[%s3749 + $0x3c] sm:$0xf]
        %v3782 = vunpack.c.l.b16 %v3750
        %v3783 = vunpack.c.l.b16 %v3751
        %v3784 = vunpack.c.l.b16 %v3752
        %v3785 = vunpack.c.l.b16 %v3753
        %v3786 = vunpack.c.l.b16 %v3754
        %v3787 = vunpack.c.l.b16 %v3755
        %v3788 = vunpack.c.l.b16 %v3756
        %v3789 = vunpack.c.l.b16 %v3757
        %v3790 = vunpack.c.l.b16 %v3758
        %v3791 = vunpack.c.l.b16 %v3759
        %v3792 = vunpack.c.l.b16 %v3760
        %v3793 = vunpack.c.l.b16 %v3761
        %v3794 = vunpack.c.l.b16 %v3762
        %v3795 = vunpack.c.l.b16 %v3763
        %v3796 = vunpack.c.l.b16 %v3764
        %v3797 = vunpack.c.l.b16 %v3765
        %v3798 = vpack.c.b16 %v3783, %v3782
        %v3799 = vpack.c.b16 %v3785, %v3784
        %v3800 = vpack.c.b16 %v3787, %v3786
        %v3801 = vpack.c.b16 %v3789, %v3788
        %v3802 = vpack.c.b16 %v3791, %v3790
        %v3803 = vpack.c.b16 %v3793, %v3792
        %v3804 = vpack.c.b16 %v3795, %v3794
        %v3805 = vpack.c.b16 %v3797, %v3796
        %3814 = vmatprep.subr.bf16.mxu0 0
        %3815 = vmatpush1.bf16.msra.mxu0 %v3805
        %3816 = vmatprep.subr.bf16.mxu0 0
        %3817 = vmatpush1.bf16.msra.mxu0 %v3804
        %3818 = vmatprep.subr.bf16.mxu0 0
        %3819 = vmatpush1.bf16.msra.mxu0 %v3803
        %3820 = vmatprep.subr.bf16.mxu0 0
        %3821 = vmatpush1.bf16.msra.mxu0 %v3802
        %3822 = vmatprep.subr.bf16.mxu0 0
        %3823 = vmatpush1.bf16.msra.mxu0 %v3801
        %3824 = vmatprep.subr.bf16.mxu0 0
        %3825 = vmatpush1.bf16.msra.mxu0 %v3800
        %3826 = vmatprep.subr.bf16.mxu0 0
        %3827 = vmatpush1.bf16.msra.mxu0 %v3799
        %3828 = vmatprep.subr.bf16.mxu0 0
        %3829 = vmatpush1.bf16.msra.mxu0 %v3798
        %3830 = vmatprep.subr.bf16.mxu0 0
        %3831 = vmatpush2.bf16.msra.mxu0 0
        %3832 = vmatprep.subr.bf16.mxu0 0
        %3833 = vmatpush2.bf16.msra.mxu0 0
        %3834 = vmatprep.subr.bf16.mxu0 0
        %3835 = vmatpush2.bf16.msra.mxu0 0
        %3836 = vmatprep.subr.bf16.mxu0 0
        %3837 = vmatpush2.bf16.msra.mxu0 0
        %3838 = vmatprep.subr.bf16.mxu0 0
        %3839 = vmatpush2.bf16.msra.mxu0 0
        %3840 = vmatprep.subr.bf16.mxu0 0
        %3841 = vmatpush2.bf16.msra.mxu0 0
        %3842 = vmatprep.subr.bf16.mxu0 0
        %3843 = vmatpush2.bf16.msra.mxu0 0
        %3844 = vmatprep.subr.bf16.mxu0 0
        %3845 = vmatpush2.bf16.msra.mxu0 0
        %3846 = vmatprep.mubr.bf16.mxu0 0
        %3847 = vmatmul.mubr.bf16.gmra.mxu0 %v1914
        %v3848 = vpop.f32.mrf.mxu0
        %v3849 = vadd.f32 0.0, %v3848
        %v3850 = vpop.f32.mrf.mxu0
        %v3851 = vpop.f32.mrf.mxu0
        %v3852 = vadd.f32 0.0, %v3851
        %v3853 = vpop.f32.mrf.mxu0
        %3854 = vmatprep.mubr.bf16.mxu0 0
        %3855 = vmatmul.mubr.bf16.gmra.mxu0 %v1915
        %v3856 = vpop.f32.mrf.mxu0
        %v3857 = vadd.f32 0.0, %v3856
        %v3858 = vpop.f32.mrf.mxu0
        %v3859 = vpop.f32.mrf.mxu0
        %v3860 = vadd.f32 0.0, %v3859
        %v3861 = vpop.f32.mrf.mxu0
        %3862 = vmatprep.mubr.bf16.mxu0 0
        %3863 = vmatmul.mubr.bf16.gmra.mxu0 %v1916
        %v3864 = vpop.f32.mrf.mxu0
        %v3865 = vadd.f32 0.0, %v3864
        %v3866 = vpop.f32.mrf.mxu0
        %v3867 = vpop.f32.mrf.mxu0
        %v3868 = vadd.f32 0.0, %v3867
        %v3869 = vpop.f32.mrf.mxu0
        %3870 = vmatprep.mubr.bf16.mxu0 0
        %3871 = vmatmul.mubr.bf16.gmra.mxu0 %v1917
        %v3872 = vpop.f32.mrf.mxu0
        %v3873 = vadd.f32 0.0, %v3872
        %v3874 = vpop.f32.mrf.mxu0
        %v3875 = vpop.f32.mrf.mxu0
        %v3876 = vadd.f32 0.0, %v3875
        %v3877 = vpop.f32.mrf.mxu0
        %3878 = vmatprep.mubr.bf16.mxu0 0
        %3879 = vmatmul.mubr.bf16.gmra.mxu0 %v1918
        %v3880 = vpop.f32.mrf.mxu0
        %v3881 = vadd.f32 0.0, %v3880
        %v3882 = vpop.f32.mrf.mxu0
        %v3883 = vpop.f32.mrf.mxu0
        %v3884 = vadd.f32 0.0, %v3883
        %v3885 = vpop.f32.mrf.mxu0
        %3886 = vmatprep.mubr.bf16.mxu0 0
        %3887 = vmatmul.mubr.bf16.gmra.mxu0 %v1919
        %v3888 = vpop.f32.mrf.mxu0
        %v3889 = vadd.f32 0.0, %v3888
        %v3890 = vpop.f32.mrf.mxu0
        %v3891 = vpop.f32.mrf.mxu0
        %v3892 = vadd.f32 0.0, %v3891
        %v3893 = vpop.f32.mrf.mxu0
        %3894 = vmatprep.mubr.bf16.mxu0 0
        %3895 = vmatmul.mubr.bf16.gmra.mxu0 %v1920
        %v3896 = vpop.f32.mrf.mxu0
        %v3897 = vadd.f32 0.0, %v3896
        %v3898 = vpop.f32.mrf.mxu0
        %v3899 = vpop.f32.mrf.mxu0
        %v3900 = vadd.f32 0.0, %v3899
        %v3901 = vpop.f32.mrf.mxu0
        %3902 = vmatprep.mubr.bf16.mxu0 0
        %3903 = vmatmul.mubr.bf16.gmra.mxu0 %v1921
        %v3904 = vpop.f32.mrf.mxu0
        %v3905 = vadd.f32 0.0, %v3904
        %v3906 = vpop.f32.mrf.mxu0
        %v3907 = vpop.f32.mrf.mxu0
        %v3908 = vadd.f32 0.0, %v3907
        %v3909 = vpop.f32.mrf.mxu0
        %3910 = vmatprep.mubr.bf16.mxu0 0
        %3911 = vmatmul.mubr.bf16.gmra.mxu0 %v1922
        %v3912 = vpop.f32.mrf.mxu0
        %v3913 = vadd.f32 0.0, %v3912
        %v3914 = vpop.f32.mrf.mxu0
        %v3915 = vpop.f32.mrf.mxu0
        %v3916 = vadd.f32 0.0, %v3915
        %v3917 = vpop.f32.mrf.mxu0
        %3918 = vmatprep.mubr.bf16.mxu0 0
        %3919 = vmatmul.mubr.bf16.gmra.mxu0 %v1923
        %v3920 = vpop.f32.mrf.mxu0
        %v3921 = vadd.f32 0.0, %v3920
        %v3922 = vpop.f32.mrf.mxu0
        %v3923 = vpop.f32.mrf.mxu0
        %v3924 = vadd.f32 0.0, %v3923
        %v3925 = vpop.f32.mrf.mxu0
        %3926 = vmatprep.mubr.bf16.mxu0 0
        %3927 = vmatmul.mubr.bf16.gmra.mxu0 %v1924
        %v3928 = vpop.f32.mrf.mxu0
        %v3929 = vadd.f32 0.0, %v3928
        %v3930 = vpop.f32.mrf.mxu0
        %v3931 = vpop.f32.mrf.mxu0
        %v3932 = vadd.f32 0.0, %v3931
        %v3933 = vpop.f32.mrf.mxu0
        %3934 = vmatprep.mubr.bf16.mxu0 0
        %3935 = vmatmul.mubr.bf16.gmra.mxu0 %v1925
        %v3936 = vpop.f32.mrf.mxu0
        %v3937 = vadd.f32 0.0, %v3936
        %v3938 = vpop.f32.mrf.mxu0
        %v3939 = vpop.f32.mrf.mxu0
        %v3940 = vadd.f32 0.0, %v3939
        %v3941 = vpop.f32.mrf.mxu0
        %3942 = vmatprep.mubr.bf16.mxu0 0
        %3943 = vmatmul.mubr.bf16.gmra.mxu0 %v1926
        %v3944 = vpop.f32.mrf.mxu0
        %v3945 = vadd.f32 0.0, %v3944
        %v3946 = vpop.f32.mrf.mxu0
        %v3947 = vpop.f32.mrf.mxu0
        %v3948 = vadd.f32 0.0, %v3947
        %v3949 = vpop.f32.mrf.mxu0
        %3950 = vmatprep.mubr.bf16.mxu0 0
        %3951 = vmatmul.mubr.bf16.gmra.mxu0 %v1927
        %v3952 = vpop.f32.mrf.mxu0
        %v3953 = vadd.f32 0.0, %v3952
        %v3954 = vpop.f32.mrf.mxu0
        %v3955 = vpop.f32.mrf.mxu0
        %v3956 = vadd.f32 0.0, %v3955
        %v3957 = vpop.f32.mrf.mxu0
        %3958 = vmatprep.mubr.bf16.mxu0 0
        %3959 = vmatmul.mubr.bf16.gmra.mxu0 %v1928
        %v3960 = vpop.f32.mrf.mxu0
        %v3961 = vadd.f32 0.0, %v3960
        %v3962 = vpop.f32.mrf.mxu0
        %v3963 = vpop.f32.mrf.mxu0
        %v3964 = vadd.f32 0.0, %v3963
        %v3965 = vpop.f32.mrf.mxu0
        %3966 = vmatprep.mubr.bf16.mxu0 0
        %3967 = vmatmul.mubr.bf16.gmra.mxu0 %v1929
        %v3968 = vpop.f32.mrf.mxu0
        %v3969 = vadd.f32 0.0, %v3968
        %v3970 = vpop.f32.mrf.mxu0
        %v3971 = vpop.f32.mrf.mxu0
        %v3972 = vadd.f32 0.0, %v3971
        %v3973 = vpop.f32.mrf.mxu0
        %3974 = vmatprep.mubr.bf16.mxu0 0
        %3975 = vmatmul.mubr.bf16.gmra.mxu0 %v1930
        %v3976 = vpop.f32.mrf.mxu0
        %v3977 = vadd.f32 0.0, %v3976
        %v3978 = vpop.f32.mrf.mxu0
        %v3979 = vpop.f32.mrf.mxu0
        %v3980 = vadd.f32 0.0, %v3979
        %v3981 = vpop.f32.mrf.mxu0
        %3982 = vmatprep.mubr.bf16.mxu0 0
        %3983 = vmatmul.mubr.bf16.gmra.mxu0 %v1931
        %v3984 = vpop.f32.mrf.mxu0
        %v3985 = vadd.f32 0.0, %v3984
        %v3986 = vpop.f32.mrf.mxu0
        %v3987 = vpop.f32.mrf.mxu0
        %v3988 = vadd.f32 0.0, %v3987
        %v3989 = vpop.f32.mrf.mxu0
        %3990 = vmatprep.mubr.bf16.mxu0 0
        %3991 = vmatmul.mubr.bf16.gmra.mxu0 %v1932
        %v3992 = vpop.f32.mrf.mxu0
        %v3993 = vadd.f32 0.0, %v3992
        %v3994 = vpop.f32.mrf.mxu0
        %v3995 = vpop.f32.mrf.mxu0
        %v3996 = vadd.f32 0.0, %v3995
        %v3997 = vpop.f32.mrf.mxu0
        %3998 = vmatprep.mubr.bf16.mxu0 0
        %3999 = vmatmul.mubr.bf16.gmra.mxu0 %v1933
        %v4000 = vpop.f32.mrf.mxu0
        %v4001 = vadd.f32 0.0, %v4000
        %v4002 = vpop.f32.mrf.mxu0
        %v4003 = vpop.f32.mrf.mxu0
        %v4004 = vadd.f32 0.0, %v4003
        %v4005 = vpop.f32.mrf.mxu0
        %4006 = vmatprep.mubr.bf16.mxu0 0
        %4007 = vmatmul.mubr.bf16.gmra.mxu0 %v1934
        %v4008 = vpop.f32.mrf.mxu0
        %v4009 = vadd.f32 0.0, %v4008
        %v4010 = vpop.f32.mrf.mxu0
        %v4011 = vpop.f32.mrf.mxu0
        %v4012 = vadd.f32 0.0, %v4011
        %v4013 = vpop.f32.mrf.mxu0
        %4014 = vmatprep.mubr.bf16.mxu0 0
        %4015 = vmatmul.mubr.bf16.gmra.mxu0 %v1935
        %v4016 = vpop.f32.mrf.mxu0
        %v4017 = vadd.f32 0.0, %v4016
        %v4018 = vpop.f32.mrf.mxu0
        %v4019 = vpop.f32.mrf.mxu0
        %v4020 = vadd.f32 0.0, %v4019
        %v4021 = vpop.f32.mrf.mxu0
        %4022 = vmatprep.mubr.bf16.mxu0 0
        %4023 = vmatmul.mubr.bf16.gmra.mxu0 %v1936
        %v4024 = vpop.f32.mrf.mxu0
        %v4025 = vadd.f32 0.0, %v4024
        %v4026 = vpop.f32.mrf.mxu0
        %v4027 = vpop.f32.mrf.mxu0
        %v4028 = vadd.f32 0.0, %v4027
        %v4029 = vpop.f32.mrf.mxu0
        %4030 = vmatprep.mubr.bf16.mxu0 0
        %4031 = vmatmul.mubr.bf16.gmra.mxu0 %v1937
        %v4032 = vpop.f32.mrf.mxu0
        %v4033 = vadd.f32 0.0, %v4032
        %v4034 = vpop.f32.mrf.mxu0
        %v4035 = vpop.f32.mrf.mxu0
        %v4036 = vadd.f32 0.0, %v4035
        %v4037 = vpop.f32.mrf.mxu0
        %4038 = vdwg.mxu0
        %v4039 = vadd.f32 %v3559, %v3849
        %v4040 = vadd.f32 %v3562, %v3852
        %v4041 = vadd.f32 %v3567, %v3857
        %v4042 = vadd.f32 %v3570, %v3860
        %v4043 = vadd.f32 %v3575, %v3865
        %v4044 = vadd.f32 %v3578, %v3868
        %v4045 = vadd.f32 %v3583, %v3873
        %v4046 = vadd.f32 %v3586, %v3876
        %v4047 = vadd.f32 %v3591, %v3881
        %v4048 = vadd.f32 %v3594, %v3884
        %v4049 = vadd.f32 %v3599, %v3889
        %v4050 = vadd.f32 %v3602, %v3892
        %v4051 = vadd.f32 %v3607, %v3897
        %v4052 = vadd.f32 %v3610, %v3900
        %v4053 = vadd.f32 %v3615, %v3905
        %v4054 = vadd.f32 %v3618, %v3908
        %v4055 = vadd.f32 %v3623, %v3913
        %v4056 = vadd.f32 %v3626, %v3916
        %v4057 = vadd.f32 %v3631, %v3921
        %v4058 = vadd.f32 %v3634, %v3924
        %v4059 = vadd.f32 %v3639, %v3929
        %v4060 = vadd.f32 %v3642, %v3932
        %v4061 = vadd.f32 %v3647, %v3937
        %v4062 = vadd.f32 %v3650, %v3940
        %v4063 = vadd.f32 %v3655, %v3945
        %v4064 = vadd.f32 %v3658, %v3948
        %v4065 = vadd.f32 %v3663, %v3953
        %v4066 = vadd.f32 %v3666, %v3956
        %v4067 = vadd.f32 %v3671, %v3961
        %v4068 = vadd.f32 %v3674, %v3964
        %v4069 = vadd.f32 %v3679, %v3969
        %v4070 = vadd.f32 %v3682, %v3972
        %v4071 = vadd.f32 %v3687, %v3977
        %v4072 = vadd.f32 %v3690, %v3980
        %v4073 = vadd.f32 %v3695, %v3985
        %v4074 = vadd.f32 %v3698, %v3988
        %v4075 = vadd.f32 %v3703, %v3993
        %v4076 = vadd.f32 %v3706, %v3996
        %v4077 = vadd.f32 %v3711, %v4001
        %v4078 = vadd.f32 %v3714, %v4004
        %v4079 = vadd.f32 %v3719, %v4009
        %v4080 = vadd.f32 %v3722, %v4012
        %v4081 = vadd.f32 %v3727, %v4017
        %v4082 = vadd.f32 %v3730, %v4020
        %v4083 = vadd.f32 %v3735, %v4025
        %v4084 = vadd.f32 %v3738, %v4028
        %v4085 = vadd.f32 %v3743, %v4033
        %v4086 = vadd.f32 %v3746, %v4036
        %vm4135 = vcmask 1046528
        %v4136 = vrot.slane %v3121, 1
        %v4137 = vrot.slane %v3122, 1
        %v4138 = vsel %vm4135, %v4136, %v4137
        %v4139 = vrot.slane %v3123, 1
        %v4140 = vsel %vm4135, %v4137, %v4139
        %v4141 = vrot.slane %v3124, 1
        %v4142 = vrot.slane %v3125, 1
        %v4143 = vsel %vm4135, %v4141, %v4142
        %v4144 = vrot.slane %v3126, 1
        %v4145 = vsel %vm4135, %v4142, %v4144
        %v4146 = vrot.slane %v3127, 1
        %v4147 = vrot.slane %v3128, 1
        %v4148 = vsel %vm4135, %v4146, %v4147
        %v4149 = vrot.slane %v3129, 1
        %v4150 = vsel %vm4135, %v4147, %v4149
        %v4151 = vrot.slane %v3130, 1
        %v4152 = vrot.slane %v3131, 1
        %v4153 = vsel %vm4135, %v4151, %v4152
        %v4154 = vrot.slane %v3132, 1
        %v4155 = vsel %vm4135, %v4152, %v4154
        %v4156 = vrot.slane %v3133, 1
        %v4157 = vrot.slane %v3134, 1
        %v4158 = vsel %vm4135, %v4156, %v4157
        %v4159 = vrot.slane %v3135, 1
        %v4160 = vsel %vm4135, %v4157, %v4159
        %v4161 = vrot.slane %v3136, 1
        %v4162 = vrot.slane %v3137, 1
        %v4163 = vsel %vm4135, %v4161, %v4162
        %v4164 = vrot.slane %v3138, 1
        %v4165 = vsel %vm4135, %v4162, %v4164
        %v4166 = vrot.slane %v3139, 1
        %v4167 = vrot.slane %v3140, 1
        %v4168 = vsel %vm4135, %v4166, %v4167
        %v4169 = vrot.slane %v3141, 1
        %v4170 = vsel %vm4135, %v4167, %v4169
        %v4171 = vrot.slane %v3142, 1
        %v4172 = vrot.slane %v3143, 1
        %v4173 = vsel %vm4135, %v4171, %v4172
        %v4174 = vrot.slane %v3144, 1
        %v4175 = vsel %vm4135, %v4172, %v4174
        %v4176 = vrot.slane %v3145, 1
        %v4177 = vrot.slane %v3146, 1
        %v4178 = vsel %vm4135, %v4176, %v4177
        %v4179 = vrot.slane %v3147, 1
        %v4180 = vsel %vm4135, %v4177, %v4179
        %v4181 = vrot.slane %v3148, 1
        %v4182 = vrot.slane %v3149, 1
        %v4183 = vsel %vm4135, %v4181, %v4182
        %v4184 = vrot.slane %v3150, 1
        %v4185 = vsel %vm4135, %v4182, %v4184
        %v4186 = vrot.slane %v3151, 1
        %v4187 = vrot.slane %v3152, 1
        %v4188 = vsel %vm4135, %v4186, %v4187
        %v4189 = vrot.slane %v3153, 1
        %v4190 = vsel %vm4135, %v4187, %v4189
        %v4191 = vrot.slane %v3154, 1
        %v4192 = vrot.slane %v3155, 1
        %v4193 = vsel %vm4135, %v4191, %v4192
        %v4194 = vrot.slane %v3156, 1
        %v4195 = vsel %vm4135, %v4192, %v4194
        %v4196 = vrot.slane %v3157, 1
        %v4197 = vrot.slane %v3158, 1
        %v4198 = vsel %vm4135, %v4196, %v4197
        %v4199 = vrot.slane %v3159, 1
        %v4200 = vsel %vm4135, %v4197, %v4199
        %v4201 = vrot.slane %v3160, 1
        %v4202 = vrot.slane %v3161, 1
        %v4203 = vsel %vm4135, %v4201, %v4202
        %v4204 = vrot.slane %v3162, 1
        %v4205 = vsel %vm4135, %v4202, %v4204
        %v4206 = vrot.slane %v3163, 1
        %v4207 = vrot.slane %v3164, 1
        %v4208 = vsel %vm4135, %v4206, %v4207
        %v4209 = vrot.slane %v3165, 1
        %v4210 = vsel %vm4135, %v4207, %v4209
        %v4211 = vrot.slane %v3166, 1
        %v4212 = vrot.slane %v3167, 1
        %v4213 = vsel %vm4135, %v4211, %v4212
        %v4214 = vrot.slane %v3168, 1
        %v4215 = vsel %vm4135, %v4212, %v4214
        %v4248 = vadd.f32 %v2219, %v4138
        %v4249 = vadd.f32 %v2220, %v4140
        %v4250 = vadd.f32 %v2221, %v4143
        %v4251 = vadd.f32 %v2222, %v4145
        %v4252 = vadd.f32 %v2223, %v4148
        %v4253 = vadd.f32 %v2224, %v4150
        %v4254 = vadd.f32 %v2225, %v4153
        %v4255 = vadd.f32 %v2226, %v4155
        %v4256 = vadd.f32 %v2227, %v4158
        %v4257 = vadd.f32 %v2228, %v4160
        %v4258 = vadd.f32 %v2229, %v4163
        %v4259 = vadd.f32 %v2230, %v4165
        %v4260 = vadd.f32 %v2231, %v4168
        %v4261 = vadd.f32 %v2232, %v4170
        %v4262 = vadd.f32 %v2233, %v4173
        %v4263 = vadd.f32 %v2234, %v4175
        %v4264 = vadd.f32 %v2235, %v4178
        %v4265 = vadd.f32 %v2236, %v4180
        %v4266 = vadd.f32 %v2237, %v4183
        %v4267 = vadd.f32 %v2238, %v4185
        %v4268 = vadd.f32 %v2239, %v4188
        %v4269 = vadd.f32 %v2240, %v4190
        %v4270 = vadd.f32 %v2241, %v4193
        %v4271 = vadd.f32 %v2242, %v4195
        %v4272 = vadd.f32 %v2243, %v4198
        %v4273 = vadd.f32 %v2244, %v4200
        %v4274 = vadd.f32 %v2245, %v4203
        %v4275 = vadd.f32 %v2246, %v4205
        %v4276 = vadd.f32 %v2247, %v4208
        %v4277 = vadd.f32 %v2248, %v4210
        %v4278 = vadd.f32 %v2249, %v4213
        %v4279 = vadd.f32 %v2250, %v4215
        %vm4328 = vcmask 1045504
        %v4329 = vrot.slane %v4039, 2
        %v4330 = vrot.slane %v4040, 2
        %v4331 = vsel %vm4328, %v4329, %v4330
        %v4332 = vrot.slane %v4041, 2
        %v4333 = vsel %vm4328, %v4330, %v4332
        %v4334 = vrot.slane %v4042, 2
        %v4335 = vrot.slane %v4043, 2
        %v4336 = vsel %vm4328, %v4334, %v4335
        %v4337 = vrot.slane %v4044, 2
        %v4338 = vsel %vm4328, %v4335, %v4337
        %v4339 = vrot.slane %v4045, 2
        %v4340 = vrot.slane %v4046, 2
        %v4341 = vsel %vm4328, %v4339, %v4340
        %v4342 = vrot.slane %v4047, 2
        %v4343 = vsel %vm4328, %v4340, %v4342
        %v4344 = vrot.slane %v4048, 2
        %v4345 = vrot.slane %v4049, 2
        %v4346 = vsel %vm4328, %v4344, %v4345
        %v4347 = vrot.slane %v4050, 2
        %v4348 = vsel %vm4328, %v4345, %v4347
        %v4349 = vrot.slane %v4051, 2
        %v4350 = vrot.slane %v4052, 2
        %v4351 = vsel %vm4328, %v4349, %v4350
        %v4352 = vrot.slane %v4053, 2
        %v4353 = vsel %vm4328, %v4350, %v4352
        %v4354 = vrot.slane %v4054, 2
        %v4355 = vrot.slane %v4055, 2
        %v4356 = vsel %vm4328, %v4354, %v4355
        %v4357 = vrot.slane %v4056, 2
        %v4358 = vsel %vm4328, %v4355, %v4357
        %v4359 = vrot.slane %v4057, 2
        %v4360 = vrot.slane %v4058, 2
        %v4361 = vsel %vm4328, %v4359, %v4360
        %v4362 = vrot.slane %v4059, 2
        %v4363 = vsel %vm4328, %v4360, %v4362
        %v4364 = vrot.slane %v4060, 2
        %v4365 = vrot.slane %v4061, 2
        %v4366 = vsel %vm4328, %v4364, %v4365
        %v4367 = vrot.slane %v4062, 2
        %v4368 = vsel %vm4328, %v4365, %v4367
        %v4369 = vrot.slane %v4063, 2
        %v4370 = vrot.slane %v4064, 2
        %v4371 = vsel %vm4328, %v4369, %v4370
        %v4372 = vrot.slane %v4065, 2
        %v4373 = vsel %vm4328, %v4370, %v4372
        %v4374 = vrot.slane %v4066, 2
        %v4375 = vrot.slane %v4067, 2
        %v4376 = vsel %vm4328, %v4374, %v4375
        %v4377 = vrot.slane %v4068, 2
        %v4378 = vsel %vm4328, %v4375, %v4377
        %v4379 = vrot.slane %v4069, 2
        %v4380 = vrot.slane %v4070, 2
        %v4381 = vsel %vm4328, %v4379, %v4380
        %v4382 = vrot.slane %v4071, 2
        %v4383 = vsel %vm4328, %v4380, %v4382
        %v4384 = vrot.slane %v4072, 2
        %v4385 = vrot.slane %v4073, 2
        %v4386 = vsel %vm4328, %v4384, %v4385
        %v4387 = vrot.slane %v4074, 2
        %v4388 = vsel %vm4328, %v4385, %v4387
        %v4389 = vrot.slane %v4075, 2
        %v4390 = vrot.slane %v4076, 2
        %v4391 = vsel %vm4328, %v4389, %v4390
        %v4392 = vrot.slane %v4077, 2
        %v4393 = vsel %vm4328, %v4390, %v4392
        %v4394 = vrot.slane %v4078, 2
        %v4395 = vrot.slane %v4079, 2
        %v4396 = vsel %vm4328, %v4394, %v4395
        %v4397 = vrot.slane %v4080, 2
        %v4398 = vsel %vm4328, %v4395, %v4397
        %v4399 = vrot.slane %v4081, 2
        %v4400 = vrot.slane %v4082, 2
        %v4401 = vsel %vm4328, %v4399, %v4400
        %v4402 = vrot.slane %v4083, 2
        %v4403 = vsel %vm4328, %v4400, %v4402
        %v4404 = vrot.slane %v4084, 2
        %v4405 = vrot.slane %v4085, 2
        %v4406 = vsel %vm4328, %v4404, %v4405
        %v4407 = vrot.slane %v4086, 2
        %v4408 = vsel %vm4328, %v4405, %v4407
        %v4441 = vadd.f32 %v4248, %v4331
        %v4442 = vadd.f32 %v4249, %v4333
        %v4443 = vadd.f32 %v4250, %v4336
        %v4444 = vadd.f32 %v4251, %v4338
        %v4445 = vadd.f32 %v4252, %v4341
        %v4446 = vadd.f32 %v4253, %v4343
        %v4447 = vadd.f32 %v4254, %v4346
        %v4448 = vadd.f32 %v4255, %v4348
        %v4449 = vadd.f32 %v4256, %v4351
        %v4450 = vadd.f32 %v4257, %v4353
        %v4451 = vadd.f32 %v4258, %v4356
        %v4452 = vadd.f32 %v4259, %v4358
        %v4453 = vadd.f32 %v4260, %v4361
        %v4454 = vadd.f32 %v4261, %v4363
        %v4455 = vadd.f32 %v4262, %v4366
        %v4456 = vadd.f32 %v4263, %v4368
        %v4457 = vadd.f32 %v4264, %v4371
        %v4458 = vadd.f32 %v4265, %v4373
        %v4459 = vadd.f32 %v4266, %v4376
        %v4460 = vadd.f32 %v4267, %v4378
        %v4461 = vadd.f32 %v4268, %v4381
        %v4462 = vadd.f32 %v4269, %v4383
        %v4463 = vadd.f32 %v4270, %v4386
        %v4464 = vadd.f32 %v4271, %v4388
        %v4465 = vadd.f32 %v4272, %v4391
        %v4466 = vadd.f32 %v4273, %v4393
        %v4467 = vadd.f32 %v4274, %v4396
        %v4468 = vadd.f32 %v4275, %v4398
        %v4469 = vadd.f32 %v4276, %v4401
        %v4470 = vadd.f32 %v4277, %v4403
        %v4471 = vadd.f32 %v4278, %v4406
        %v4472 = vadd.f32 %v4279, %v4408
        %v4474 = vlaneseq
        %v4475 = vshrl.u32 %v4474, 7
        %v4476 = vsub.s32 0, %v4475
        %v4477 = vrot.slane %v820, %v4476
        %v4479 = vadd.f32 %v4441, %v4477
        %v4480 = vadd.f32 %v4442, %v4477
        %v4481 = vadd.f32 %v4443, %v4477
        %v4482 = vadd.f32 %v4444, %v4477
        %v4483 = vadd.f32 %v4445, %v4477
        %v4484 = vadd.f32 %v4446, %v4477
        %v4485 = vadd.f32 %v4447, %v4477
        %v4486 = vadd.f32 %v4448, %v4477
        %v4487 = vadd.f32 %v4449, %v4477
        %v4488 = vadd.f32 %v4450, %v4477
        %v4489 = vadd.f32 %v4451, %v4477
        %v4490 = vadd.f32 %v4452, %v4477
        %v4491 = vadd.f32 %v4453, %v4477
        %v4492 = vadd.f32 %v4454, %v4477
        %v4493 = vadd.f32 %v4455, %v4477
        %v4494 = vadd.f32 %v4456, %v4477
        %v4495 = vadd.f32 %v4457, %v4477
        %v4496 = vadd.f32 %v4458, %v4477
        %v4497 = vadd.f32 %v4459, %v4477
        %v4498 = vadd.f32 %v4460, %v4477
        %v4499 = vadd.f32 %v4461, %v4477
        %v4500 = vadd.f32 %v4462, %v4477
        %v4501 = vadd.f32 %v4463, %v4477
        %v4502 = vadd.f32 %v4464, %v4477
        %v4503 = vadd.f32 %v4465, %v4477
        %v4504 = vadd.f32 %v4466, %v4477
        %v4505 = vadd.f32 %v4467, %v4477
        %v4506 = vadd.f32 %v4468, %v4477
        %v4507 = vadd.f32 %v4469, %v4477
        %v4508 = vadd.f32 %v4470, %v4477
        %v4509 = vadd.f32 %v4471, %v4477
        %v4510 = vadd.f32 %v4472, %v4477
        %v4511 = vmax.f32 %v4479, 0.0
        %v4512 = vmax.f32 %v4480, 0.0
        %v4513 = vmax.f32 %v4481, 0.0
        %v4514 = vmax.f32 %v4482, 0.0
        %v4515 = vmax.f32 %v4483, 0.0
        %v4516 = vmax.f32 %v4484, 0.0
        %v4517 = vmax.f32 %v4485, 0.0
        %v4518 = vmax.f32 %v4486, 0.0
        %v4519 = vmax.f32 %v4487, 0.0
        %v4520 = vmax.f32 %v4488, 0.0
        %v4521 = vmax.f32 %v4489, 0.0
        %v4522 = vmax.f32 %v4490, 0.0
        %v4523 = vmax.f32 %v4491, 0.0
        %v4524 = vmax.f32 %v4492, 0.0
        %v4525 = vmax.f32 %v4493, 0.0
        %v4526 = vmax.f32 %v4494, 0.0
        %v4527 = vmax.f32 %v4495, 0.0
        %v4528 = vmax.f32 %v4496, 0.0
        %v4529 = vmax.f32 %v4497, 0.0
        %v4530 = vmax.f32 %v4498, 0.0
        %v4531 = vmax.f32 %v4499, 0.0
        %v4532 = vmax.f32 %v4500, 0.0
        %v4533 = vmax.f32 %v4501, 0.0
        %v4534 = vmax.f32 %v4502, 0.0
        %v4535 = vmax.f32 %v4503, 0.0
        %v4536 = vmax.f32 %v4504, 0.0
        %v4537 = vmax.f32 %v4505, 0.0
        %v4538 = vmax.f32 %v4506, 0.0
        %v4539 = vmax.f32 %v4507, 0.0
        %v4540 = vmax.f32 %v4508, 0.0
        %v4541 = vmax.f32 %v4509, 0.0
        %v4542 = vmax.f32 %v4510, 0.0
        %v4543 = vpack.c.bf16 %v4512, %v4511
        %v4544 = vpack.c.bf16 %v4514, %v4513
        %v4545 = vpack.c.bf16 %v4516, %v4515
        %v4546 = vpack.c.bf16 %v4518, %v4517
        %v4547 = vpack.c.bf16 %v4520, %v4519
        %v4548 = vpack.c.bf16 %v4522, %v4521
        %v4549 = vpack.c.bf16 %v4524, %v4523
        %v4550 = vpack.c.bf16 %v4526, %v4525
        %v4551 = vpack.c.bf16 %v4528, %v4527
        %v4552 = vpack.c.bf16 %v4530, %v4529
        %v4553 = vpack.c.bf16 %v4532, %v4531
        %v4554 = vpack.c.bf16 %v4534, %v4533
        %v4555 = vpack.c.bf16 %v4536, %v4535
        %v4556 = vpack.c.bf16 %v4538, %v4537
        %v4557 = vpack.c.bf16 %v4540, %v4539
        %v4558 = vpack.c.bf16 %v4542, %v4541
        %v4575 = vunpack.c.l.b16 %v4543
        %v4576 = vunpack.c.h.b16 %v4543
        %v4577 = vunpack.c.l.b16 %v4544
        %v4578 = vunpack.c.h.b16 %v4544
        %v4579 = vunpack.c.l.b16 %v4545
        %v4580 = vunpack.c.h.b16 %v4545
        %v4581 = vunpack.c.l.b16 %v4546
        %v4582 = vunpack.c.h.b16 %v4546
        %v4583 = vunpack.c.l.b16 %v4547
        %v4584 = vunpack.c.h.b16 %v4547
        %v4585 = vunpack.c.l.b16 %v4548
        %v4586 = vunpack.c.h.b16 %v4548
        %v4587 = vunpack.c.l.b16 %v4549
        %v4588 = vunpack.c.h.b16 %v4549
        %v4589 = vunpack.c.l.b16 %v4550
        %v4590 = vunpack.c.h.b16 %v4550
        %v4591 = vunpack.c.l.b16 %v4551
        %v4592 = vunpack.c.h.b16 %v4551
        %v4593 = vunpack.c.l.b16 %v4552
        %v4594 = vunpack.c.h.b16 %v4552
        %v4595 = vunpack.c.l.b16 %v4553
        %v4596 = vunpack.c.h.b16 %v4553
        %v4597 = vunpack.c.l.b16 %v4554
        %v4598 = vunpack.c.h.b16 %v4554
        %v4599 = vunpack.c.l.b16 %v4555
        %v4600 = vunpack.c.h.b16 %v4555
        %v4601 = vunpack.c.l.b16 %v4556
        %v4602 = vunpack.c.h.b16 %v4556
        %v4603 = vunpack.c.l.b16 %v4557
        %v4604 = vunpack.c.h.b16 %v4557
        %v4605 = vunpack.c.l.b16 %v4558
        %v4606 = vunpack.c.h.b16 %v4558
        %v4607 = vpack.c.b16 %v4575, %v4575
        %v4608 = vpack.c.b16 %v4576, %v4576
        %v4609 = vpack.c.b16 %v4577, %v4577
        %v4610 = vpack.c.b16 %v4578, %v4578
        %v4611 = vpack.c.b16 %v4579, %v4579
        %v4612 = vpack.c.b16 %v4580, %v4580
        %v4613 = vpack.c.b16 %v4581, %v4581
        %v4614 = vpack.c.b16 %v4582, %v4582
        %v4615 = vpack.c.b16 %v4583, %v4583
        %v4616 = vpack.c.b16 %v4584, %v4584
        %v4617 = vpack.c.b16 %v4585, %v4585
        %v4618 = vpack.c.b16 %v4586, %v4586
        %v4619 = vpack.c.b16 %v4587, %v4587
        %v4620 = vpack.c.b16 %v4588, %v4588
        %v4621 = vpack.c.b16 %v4589, %v4589
        %v4622 = vpack.c.b16 %v4590, %v4590
        %v4623 = vpack.c.b16 %v4591, %v4591
        %v4624 = vpack.c.b16 %v4592, %v4592
        %v4625 = vpack.c.b16 %v4593, %v4593
        %v4626 = vpack.c.b16 %v4594, %v4594
        %v4627 = vpack.c.b16 %v4595, %v4595
        %v4628 = vpack.c.b16 %v4596, %v4596
        %v4629 = vpack.c.b16 %v4597, %v4597
        %v4630 = vpack.c.b16 %v4598, %v4598
        %v4631 = vpack.c.b16 %v4599, %v4599
        %v4632 = vpack.c.b16 %v4600, %v4600
        %v4633 = vpack.c.b16 %v4601, %v4601
        %v4634 = vpack.c.b16 %v4602, %v4602
        %v4635 = vpack.c.b16 %v4603, %v4603
        %v4636 = vpack.c.b16 %v4604, %v4604
        %v4637 = vpack.c.b16 %v4605, %v4605
        %v4638 = vpack.c.b16 %v4606, %v4606
        %v4640 = vshrl.u32 %v4607, 16
        %v4642 = vrot.slane %v4640, 7
        %v4643 = vshll.u32 %v4607, 16
        %v4645 = vor.u32 %v4642, %v4643
        %v4646 = vrot.slane %v4642, 4
        %v4648 = vshrl.u32 %v4608, 16
        %v4650 = vrot.slane %v4648, 7
        %v4651 = vshll.u32 %v4608, 16
        %v4653 = vor.u32 %v4650, %v4651
        %v4654 = vsel %vm381, %v4646, %v4653
        %v4655 = vrot.slane %v4650, 4
        %v4657 = vshrl.u32 %v4609, 16
        %v4659 = vrot.slane %v4657, 7
        %v4660 = vshll.u32 %v4609, 16
        %v4662 = vor.u32 %v4659, %v4660
        %v4663 = vrot.slane %v4659, 4
        %v4665 = vshrl.u32 %v4610, 16
        %v4667 = vrot.slane %v4665, 7
        %v4668 = vshll.u32 %v4610, 16
        %v4670 = vor.u32 %v4667, %v4668
        %v4671 = vsel %vm381, %v4663, %v4670
        %v4672 = vrot.slane %v4667, 4
        %v4674 = vshrl.u32 %v4611, 16
        %v4676 = vrot.slane %v4674, 7
        %v4677 = vshll.u32 %v4611, 16
        %v4679 = vor.u32 %v4676, %v4677
        %v4680 = vrot.slane %v4676, 4
        %v4682 = vshrl.u32 %v4612, 16
        %v4684 = vrot.slane %v4682, 7
        %v4685 = vshll.u32 %v4612, 16
        %v4687 = vor.u32 %v4684, %v4685
        %v4688 = vsel %vm381, %v4680, %v4687
        %v4689 = vrot.slane %v4684, 4
        %v4691 = vshrl.u32 %v4613, 16
        %v4693 = vrot.slane %v4691, 7
        %v4694 = vshll.u32 %v4613, 16
        %v4696 = vor.u32 %v4693, %v4694
        %v4697 = vrot.slane %v4693, 4
        %v4699 = vshrl.u32 %v4614, 16
        %v4701 = vrot.slane %v4699, 7
        %v4702 = vshll.u32 %v4614, 16
        %v4704 = vor.u32 %v4701, %v4702
        %v4705 = vsel %vm381, %v4697, %v4704
        %v4706 = vrot.slane %v4701, 4
        %v4708 = vshrl.u32 %v4615, 16
        %v4710 = vrot.slane %v4708, 7
        %v4711 = vshll.u32 %v4615, 16
        %v4713 = vor.u32 %v4710, %v4711
        %v4714 = vrot.slane %v4710, 4
        %v4716 = vshrl.u32 %v4616, 16
        %v4718 = vrot.slane %v4716, 7
        %v4719 = vshll.u32 %v4616, 16
        %v4721 = vor.u32 %v4718, %v4719
        %v4722 = vsel %vm381, %v4714, %v4721
        %v4723 = vrot.slane %v4718, 4
        %v4725 = vshrl.u32 %v4617, 16
        %v4727 = vrot.slane %v4725, 7
        %v4728 = vshll.u32 %v4617, 16
        %v4730 = vor.u32 %v4727, %v4728
        %v4731 = vrot.slane %v4727, 4
        %v4733 = vshrl.u32 %v4618, 16
        %v4735 = vrot.slane %v4733, 7
        %v4736 = vshll.u32 %v4618, 16
        %v4738 = vor.u32 %v4735, %v4736
        %v4739 = vsel %vm381, %v4731, %v4738
        %v4740 = vrot.slane %v4735, 4
        %v4742 = vshrl.u32 %v4619, 16
        %v4744 = vrot.slane %v4742, 7
        %v4745 = vshll.u32 %v4619, 16
        %v4747 = vor.u32 %v4744, %v4745
        %v4748 = vrot.slane %v4744, 4
        %v4750 = vshrl.u32 %v4620, 16
        %v4752 = vrot.slane %v4750, 7
        %v4753 = vshll.u32 %v4620, 16
        %v4755 = vor.u32 %v4752, %v4753
        %v4756 = vsel %vm381, %v4748, %v4755
        %v4757 = vrot.slane %v4752, 4
        %v4759 = vshrl.u32 %v4621, 16
        %v4761 = vrot.slane %v4759, 7
        %v4762 = vshll.u32 %v4621, 16
        %v4764 = vor.u32 %v4761, %v4762
        %v4765 = vrot.slane %v4761, 4
        %v4767 = vshrl.u32 %v4622, 16
        %v4769 = vrot.slane %v4767, 7
        %v4770 = vshll.u32 %v4622, 16
        %v4772 = vor.u32 %v4769, %v4770
        %v4773 = vsel %vm381, %v4765, %v4772
        %v4774 = vrot.slane %v4769, 4
        %v4776 = vshrl.u32 %v4623, 16
        %v4778 = vrot.slane %v4776, 7
        %v4779 = vshll.u32 %v4623, 16
        %v4781 = vor.u32 %v4778, %v4779
        %v4782 = vrot.slane %v4778, 4
        %v4784 = vshrl.u32 %v4624, 16
        %v4786 = vrot.slane %v4784, 7
        %v4787 = vshll.u32 %v4624, 16
        %v4789 = vor.u32 %v4786, %v4787
        %v4790 = vsel %vm381, %v4782, %v4789
        %v4791 = vrot.slane %v4786, 4
        %v4793 = vshrl.u32 %v4625, 16
        %v4795 = vrot.slane %v4793, 7
        %v4796 = vshll.u32 %v4625, 16
        %v4798 = vor.u32 %v4795, %v4796
        %v4799 = vrot.slane %v4795, 4
        %v4801 = vshrl.u32 %v4626, 16
        %v4803 = vrot.slane %v4801, 7
        %v4804 = vshll.u32 %v4626, 16
        %v4806 = vor.u32 %v4803, %v4804
        %v4807 = vsel %vm381, %v4799, %v4806
        %v4808 = vrot.slane %v4803, 4
        %v4810 = vshrl.u32 %v4627, 16
        %v4812 = vrot.slane %v4810, 7
        %v4813 = vshll.u32 %v4627, 16
        %v4815 = vor.u32 %v4812, %v4813
        %v4816 = vrot.slane %v4812, 4
        %v4818 = vshrl.u32 %v4628, 16
        %v4820 = vrot.slane %v4818, 7
        %v4821 = vshll.u32 %v4628, 16
        %v4823 = vor.u32 %v4820, %v4821
        %v4824 = vsel %vm381, %v4816, %v4823
        %v4825 = vrot.slane %v4820, 4
        %v4827 = vshrl.u32 %v4629, 16
        %v4829 = vrot.slane %v4827, 7
        %v4830 = vshll.u32 %v4629, 16
        %v4832 = vor.u32 %v4829, %v4830
        %v4833 = vrot.slane %v4829, 4
        %v4835 = vshrl.u32 %v4630, 16
        %v4837 = vrot.slane %v4835, 7
        %v4838 = vshll.u32 %v4630, 16
        %v4840 = vor.u32 %v4837, %v4838
        %v4841 = vsel %vm381, %v4833, %v4840
        %v4842 = vrot.slane %v4837, 4
        %v4844 = vshrl.u32 %v4631, 16
        %v4846 = vrot.slane %v4844, 7
        %v4847 = vshll.u32 %v4631, 16
        %v4849 = vor.u32 %v4846, %v4847
        %v4850 = vrot.slane %v4846, 4
        %v4852 = vshrl.u32 %v4632, 16
        %v4854 = vrot.slane %v4852, 7
        %v4855 = vshll.u32 %v4632, 16
        %v4857 = vor.u32 %v4854, %v4855
        %v4858 = vsel %vm381, %v4850, %v4857
        %v4859 = vrot.slane %v4854, 4
        %v4861 = vshrl.u32 %v4633, 16
        %v4863 = vrot.slane %v4861, 7
        %v4864 = vshll.u32 %v4633, 16
        %v4866 = vor.u32 %v4863, %v4864
        %v4867 = vrot.slane %v4863, 4
        %v4869 = vshrl.u32 %v4634, 16
        %v4871 = vrot.slane %v4869, 7
        %v4872 = vshll.u32 %v4634, 16
        %v4874 = vor.u32 %v4871, %v4872
        %v4875 = vsel %vm381, %v4867, %v4874
        %v4876 = vrot.slane %v4871, 4
        %v4878 = vshrl.u32 %v4635, 16
        %v4880 = vrot.slane %v4878, 7
        %v4881 = vshll.u32 %v4635, 16
        %v4883 = vor.u32 %v4880, %v4881
        %v4884 = vrot.slane %v4880, 4
        %v4886 = vshrl.u32 %v4636, 16
        %v4888 = vrot.slane %v4886, 7
        %v4889 = vshll.u32 %v4636, 16
        %v4891 = vor.u32 %v4888, %v4889
        %v4892 = vsel %vm381, %v4884, %v4891
        %v4893 = vrot.slane %v4888, 4
        %v4895 = vshrl.u32 %v4637, 16
        %v4897 = vrot.slane %v4895, 7
        %v4898 = vshll.u32 %v4637, 16
        %v4900 = vor.u32 %v4897, %v4898
        %v4901 = vrot.slane %v4897, 4
        %v4903 = vshrl.u32 %v4638, 16
        %v4905 = vrot.slane %v4903, 7
        %v4906 = vshll.u32 %v4638, 16
        %v4908 = vor.u32 %v4905, %v4906
        %v4909 = vsel %vm381, %v4901, %v4908
        %v4910 = vrot.slane %v4905, 4
        %s4959 = scalar_lea.vmem [#allocation3], 12
        %v4960 = vld [vmem:[%s4959] sm:$0xf]
        %v4961 = vsel %vm705, %v4645, %v4960
        %4962 = vst [vmem:[%s4959] sm:$0xf] %v4961
        %4963 = vst [vmem:[%s4959 + $0x4] sm:$0xf] %v4654
        %v4964 = vld [vmem:[%s4959 + $0x8] sm:$0x1]
        %v4965 = vsel %vm711, %v4655, %v4964
        %4966 = vst [vmem:[%s4959 + $0x8] sm:$0x1] %v4965
        %v4967 = vld [vmem:[%s4959 + $0xc] sm:$0xf]
        %v4968 = vsel %vm705, %v4662, %v4967
        %4969 = vst [vmem:[%s4959 + $0xc] sm:$0xf] %v4968
        %4970 = vst [vmem:[%s4959 + $0x10] sm:$0xf] %v4671
        %v4971 = vld [vmem:[%s4959 + $0x14] sm:$0x1]
        %v4972 = vsel %vm711, %v4672, %v4971
        %4973 = vst [vmem:[%s4959 + $0x14] sm:$0x1] %v4972
        %v4974 = vld [vmem:[%s4959 + $0x18] sm:$0xf]
        %v4975 = vsel %vm705, %v4679, %v4974
        %4976 = vst [vmem:[%s4959 + $0x18] sm:$0xf] %v4975
        %4977 = vst [vmem:[%s4959 + $0x1c] sm:$0xf] %v4688
        %v4978 = vld [vmem:[%s4959 + $0x20] sm:$0x1]
        %v4979 = vsel %vm711, %v4689, %v4978
        %4980 = vst [vmem:[%s4959 + $0x20] sm:$0x1] %v4979
        %v4981 = vld [vmem:[%s4959 + $0x24] sm:$0xf]
        %v4982 = vsel %vm705, %v4696, %v4981
        %4983 = vst [vmem:[%s4959 + $0x24] sm:$0xf] %v4982
        %4984 = vst [vmem:[%s4959 + $0x28] sm:$0xf] %v4705
        %v4985 = vld [vmem:[%s4959 + $0x2c] sm:$0x1]
        %v4986 = vsel %vm711, %v4706, %v4985
        %4987 = vst [vmem:[%s4959 + $0x2c] sm:$0x1] %v4986
        %v4988 = vld [vmem:[%s4959 + $0x30] sm:$0xf]
        %v4989 = vsel %vm705, %v4713, %v4988
        %4990 = vst [vmem:[%s4959 + $0x30] sm:$0xf] %v4989
        %4991 = vst [vmem:[%s4959 + $0x34] sm:$0xf] %v4722
        %v4992 = vld [vmem:[%s4959 + $0x38] sm:$0x1]
        %v4993 = vsel %vm711, %v4723, %v4992
        %4994 = vst [vmem:[%s4959 + $0x38] sm:$0x1] %v4993
        %v4995 = vld [vmem:[%s4959 + $0x3c] sm:$0xf]
        %v4996 = vsel %vm705, %v4730, %v4995
        %4997 = vst [vmem:[%s4959 + $0x3c] sm:$0xf] %v4996
        %4998 = vst [vmem:[%s4959 + $0x40] sm:$0xf] %v4739
        %v4999 = vld [vmem:[%s4959 + $0x44] sm:$0x1]
        %v5000 = vsel %vm711, %v4740, %v4999
        %5001 = vst [vmem:[%s4959 + $0x44] sm:$0x1] %v5000
        %v5002 = vld [vmem:[%s4959 + $0x48] sm:$0xf]
        %v5003 = vsel %vm705, %v4747, %v5002
        %5004 = vst [vmem:[%s4959 + $0x48] sm:$0xf] %v5003
        %5005 = vst [vmem:[%s4959 + $0x4c] sm:$0xf] %v4756
        %v5006 = vld [vmem:[%s4959 + $0x50] sm:$0x1]
        %v5007 = vsel %vm711, %v4757, %v5006
        %5008 = vst [vmem:[%s4959 + $0x50] sm:$0x1] %v5007
        %v5009 = vld [vmem:[%s4959 + $0x54] sm:$0xf]
        %v5010 = vsel %vm705, %v4764, %v5009
        %5011 = vst [vmem:[%s4959 + $0x54] sm:$0xf] %v5010
        %5012 = vst [vmem:[%s4959 + $0x58] sm:$0xf] %v4773
        %v5013 = vld [vmem:[%s4959 + $0x5c] sm:$0x1]
        %v5014 = vsel %vm711, %v4774, %v5013
        %5015 = vst [vmem:[%s4959 + $0x5c] sm:$0x1] %v5014
        %v5016 = vld [vmem:[%s4959 + $0x60] sm:$0xf]
        %v5017 = vsel %vm705, %v4781, %v5016
        %5018 = vst [vmem:[%s4959 + $0x60] sm:$0xf] %v5017
        %5019 = vst [vmem:[%s4959 + $0x64] sm:$0xf] %v4790
        %v5020 = vld [vmem:[%s4959 + $0x68] sm:$0x1]
        %v5021 = vsel %vm711, %v4791, %v5020
        %5022 = vst [vmem:[%s4959 + $0x68] sm:$0x1] %v5021
        %v5023 = vld [vmem:[%s4959 + $0x6c] sm:$0xf]
        %v5024 = vsel %vm705, %v4798, %v5023
        %5025 = vst [vmem:[%s4959 + $0x6c] sm:$0xf] %v5024
        %5026 = vst [vmem:[%s4959 + $0x70] sm:$0xf] %v4807
        %v5027 = vld [vmem:[%s4959 + $0x74] sm:$0x1]
        %v5028 = vsel %vm711, %v4808, %v5027
        %5029 = vst [vmem:[%s4959 + $0x74] sm:$0x1] %v5028
        %v5030 = vld [vmem:[%s4959 + $0x78] sm:$0xf]
        %v5031 = vsel %vm705, %v4815, %v5030
        %5032 = vst [vmem:[%s4959 + $0x78] sm:$0xf] %v5031
        %5033 = vst [vmem:[%s4959 + $0x7c] sm:$0xf] %v4824
        %v5034 = vld [vmem:[%s4959 + $0x80] sm:$0x1]
        %v5035 = vsel %vm711, %v4825, %v5034
        %5036 = vst [vmem:[%s4959 + $0x80] sm:$0x1] %v5035
        %v5037 = vld [vmem:[%s4959 + $0x84] sm:$0xf]
        %v5038 = vsel %vm705, %v4832, %v5037
        %5039 = vst [vmem:[%s4959 + $0x84] sm:$0xf] %v5038
        %5040 = vst [vmem:[%s4959 + $0x88] sm:$0xf] %v4841
        %v5041 = vld [vmem:[%s4959 + $0x8c] sm:$0x1]
        %v5042 = vsel %vm711, %v4842, %v5041
        %5043 = vst [vmem:[%s4959 + $0x8c] sm:$0x1] %v5042
        %v5044 = vld [vmem:[%s4959 + $0x90] sm:$0xf]
        %v5045 = vsel %vm705, %v4849, %v5044
        %5046 = vst [vmem:[%s4959 + $0x90] sm:$0xf] %v5045
        %5047 = vst [vmem:[%s4959 + $0x94] sm:$0xf] %v4858
        %v5048 = vld [vmem:[%s4959 + $0x98] sm:$0x1]
        %v5049 = vsel %vm711, %v4859, %v5048
        %5050 = vst [vmem:[%s4959 + $0x98] sm:$0x1] %v5049
        %v5051 = vld [vmem:[%s4959 + $0x9c] sm:$0xf]
        %v5052 = vsel %vm705, %v4866, %v5051
        %5053 = vst [vmem:[%s4959 + $0x9c] sm:$0xf] %v5052
        %5054 = vst [vmem:[%s4959 + $0xa0] sm:$0xf] %v4875
        %v5055 = vld [vmem:[%s4959 + $0xa4] sm:$0x1]
        %v5056 = vsel %vm711, %v4876, %v5055
        %5057 = vst [vmem:[%s4959 + $0xa4] sm:$0x1] %v5056
        %v5058 = vld [vmem:[%s4959 + $0xa8] sm:$0xf]
        %v5059 = vsel %vm705, %v4883, %v5058
        %5060 = vst [vmem:[%s4959 + $0xa8] sm:$0xf] %v5059
        %5061 = vst [vmem:[%s4959 + $0xac] sm:$0xf] %v4892
        %v5062 = vld [vmem:[%s4959 + $0xb0] sm:$0x1]
        %v5063 = vsel %vm711, %v4893, %v5062
        %5064 = vst [vmem:[%s4959 + $0xb0] sm:$0x1] %v5063
        %v5065 = vld [vmem:[%s4959 + $0xb4] sm:$0xf]
        %v5066 = vsel %vm705, %v4900, %v5065
        %5067 = vst [vmem:[%s4959 + $0xb4] sm:$0xf] %v5066
        %5068 = vst [vmem:[%s4959 + $0xb8] sm:$0xf] %v4909
        %v5069 = vld [vmem:[%s4959 + $0xbc] sm:$0x1]
        %v5070 = vsel %vm711, %v4910, %v5069
        %5071 = vst [vmem:[%s4959 + $0xbc] sm:$0x1] %v5070
        %v5072 = vld [vmem:[%s4] sm:$0x1]
        %v5073 = vld [vmem:[#allocation3] sm:$0xf]
        %v5074 = vld [vmem:[#allocation3 + $0x4] sm:$0xf]
        %v5075 = vld [vmem:[#allocation3 + $0x8] sm:$0xf]
        %v5076 = vld [vmem:[#allocation3 + $0xc] sm:$0xf]
        %v5077 = vld [vmem:[#allocation3 + $0x10] sm:$0xf]
        %v5078 = vld [vmem:[#allocation3 + $0x14] sm:$0xf]
        %v5079 = vld [vmem:[#allocation3 + $0x18] sm:$0xf]
        %v5080 = vld [vmem:[#allocation3 + $0x1c] sm:$0xf]
        %v5081 = vld [vmem:[#allocation3 + $0x20] sm:$0xf]
        %v5082 = vld [vmem:[#allocation3 + $0x24] sm:$0xf]
        %v5083 = vld [vmem:[#allocation3 + $0x28] sm:$0xf]
        %v5084 = vld [vmem:[#allocation3 + $0x2c] sm:$0xf]
        %v5085 = vld [vmem:[#allocation3 + $0x30] sm:$0xf]
        %v5086 = vld [vmem:[#allocation3 + $0x34] sm:$0xf]
        %v5087 = vld [vmem:[#allocation3 + $0x38] sm:$0xf]
        %v5088 = vld [vmem:[#allocation3 + $0x3c] sm:$0xf]
        %v5089 = vld [vmem:[#allocation3 + $0x40] sm:$0xf]
        %v5090 = vld [vmem:[#allocation3 + $0x44] sm:$0xf]
        %v5091 = vld [vmem:[#allocation3 + $0x48] sm:$0xf]
        %v5092 = vld [vmem:[#allocation3 + $0x4c] sm:$0xf]
        %v5093 = vld [vmem:[#allocation3 + $0x50] sm:$0xf]
        %v5094 = vld [vmem:[#allocation3 + $0x54] sm:$0xf]
        %v5095 = vld [vmem:[#allocation3 + $0x58] sm:$0xf]
        %v5096 = vld [vmem:[#allocation3 + $0x5c] sm:$0xf]
        %v5097 = vld [vmem:[#allocation3 + $0x60] sm:$0xf]
        %v5098 = vld [vmem:[#allocation3 + $0x64] sm:$0xf]
        %v5099 = vld [vmem:[#allocation3 + $0x68] sm:$0xf]
        %v5100 = vld [vmem:[#allocation3 + $0x6c] sm:$0xf]
        %v5101 = vld [vmem:[#allocation3 + $0x70] sm:$0xf]
        %v5102 = vld [vmem:[#allocation3 + $0x74] sm:$0xf]
        %v5103 = vld [vmem:[#allocation3 + $0x78] sm:$0xf]
        %v5104 = vld [vmem:[#allocation3 + $0x7c] sm:$0xf]
        %v5105 = vld [vmem:[#allocation3 + $0x80] sm:$0xf]
        %v5106 = vld [vmem:[#allocation3 + $0x84] sm:$0xf]
        %v5107 = vld [vmem:[#allocation3 + $0x88] sm:$0xf]
        %v5108 = vld [vmem:[#allocation3 + $0x8c] sm:$0xf]
        %v5109 = vld [vmem:[#allocation3 + $0x90] sm:$0xf]
        %v5110 = vld [vmem:[#allocation3 + $0x94] sm:$0xf]
        %v5111 = vld [vmem:[#allocation3 + $0x98] sm:$0xf]
        %v5112 = vld [vmem:[#allocation3 + $0x9c] sm:$0xf]
        %v5113 = vld [vmem:[#allocation3 + $0xa0] sm:$0xf]
        %v5114 = vld [vmem:[#allocation3 + $0xa4] sm:$0xf]
        %v5115 = vld [vmem:[#allocation3 + $0xa8] sm:$0xf]
        %v5116 = vld [vmem:[#allocation3 + $0xac] sm:$0xf]
        %v5117 = vld [vmem:[#allocation3 + $0xb0] sm:$0xf]
        %v5118 = vld [vmem:[#allocation3 + $0xb4] sm:$0xf]
        %v5119 = vld [vmem:[#allocation3 + $0xb8] sm:$0xf]
        %v5120 = vld [vmem:[#allocation3 + $0xbc] sm:$0xf]
        %v5121 = vld [vmem:[%s3] sm:$0xf]
        %v5122 = vld [vmem:[%s3 + $0x4] sm:$0xf]
        %v5123 = vld [vmem:[%s3 + $0x8] sm:$0xf]
        %v5124 = vld [vmem:[%s3 + $0xc] sm:$0xf]
        %v5125 = vld [vmem:[%s3 + $0x10] sm:$0xf]
        %v5126 = vld [vmem:[%s3 + $0x14] sm:$0xf]
        %v5127 = vld [vmem:[%s3 + $0x18] sm:$0xf]
        %v5128 = vld [vmem:[%s3 + $0x1c] sm:$0xf]
        %v5129 = vld [vmem:[%s3 + $0x20] sm:$0xf]
        %v5130 = vld [vmem:[%s3 + $0x24] sm:$0xf]
        %v5131 = vld [vmem:[%s3 + $0x28] sm:$0xf]
        %v5132 = vld [vmem:[%s3 + $0x2c] sm:$0xf]
        %v5133 = vld [vmem:[%s3 + $0x30] sm:$0xf]
        %v5134 = vld [vmem:[%s3 + $0x34] sm:$0xf]
        %v5135 = vld [vmem:[%s3 + $0x38] sm:$0xf]
        %v5136 = vld [vmem:[%s3 + $0x3c] sm:$0xf]
        %v5137 = vld [vmem:[%s4959] sm:$0xf]
        %v5138 = vld [vmem:[%s4959 + $0x4] sm:$0xf]
        %v5139 = vld [vmem:[%s4959 + $0x8] sm:$0xf]
        %v5140 = vld [vmem:[%s4959 + $0xc] sm:$0xf]
        %v5141 = vld [vmem:[%s4959 + $0x10] sm:$0xf]
        %v5142 = vld [vmem:[%s4959 + $0x14] sm:$0xf]
        %v5143 = vld [vmem:[%s4959 + $0x18] sm:$0xf]
        %v5144 = vld [vmem:[%s4959 + $0x1c] sm:$0xf]
        %v5145 = vld [vmem:[%s4959 + $0x20] sm:$0xf]
        %v5146 = vld [vmem:[%s4959 + $0x24] sm:$0xf]
        %v5147 = vld [vmem:[%s4959 + $0x28] sm:$0xf]
        %v5148 = vld [vmem:[%s4959 + $0x2c] sm:$0xf]
        %v5149 = vld [vmem:[%s4959 + $0x30] sm:$0xf]
        %v5150 = vld [vmem:[%s4959 + $0x34] sm:$0xf]
        %v5151 = vld [vmem:[%s4959 + $0x38] sm:$0xf]
        %v5152 = vld [vmem:[%s4959 + $0x3c] sm:$0xf]
        %v5153 = vld [vmem:[%s4959 + $0x40] sm:$0xf]
        %v5154 = vld [vmem:[%s4959 + $0x44] sm:$0xf]
        %v5155 = vld [vmem:[%s4959 + $0x48] sm:$0xf]
        %v5156 = vld [vmem:[%s4959 + $0x4c] sm:$0xf]
        %v5157 = vld [vmem:[%s4959 + $0x50] sm:$0xf]
        %v5158 = vld [vmem:[%s4959 + $0x54] sm:$0xf]
        %v5159 = vld [vmem:[%s4959 + $0x58] sm:$0xf]
        %v5160 = vld [vmem:[%s4959 + $0x5c] sm:$0xf]
        %v5161 = vld [vmem:[%s4959 + $0x60] sm:$0xf]
        %v5162 = vld [vmem:[%s4959 + $0x64] sm:$0xf]
        %v5163 = vld [vmem:[%s4959 + $0x68] sm:$0xf]
        %v5164 = vld [vmem:[%s4959 + $0x6c] sm:$0xf]
        %v5165 = vld [vmem:[%s4959 + $0x70] sm:$0xf]
        %v5166 = vld [vmem:[%s4959 + $0x74] sm:$0xf]
        %v5167 = vld [vmem:[%s4959 + $0x78] sm:$0xf]
        %v5168 = vld [vmem:[%s4959 + $0x7c] sm:$0xf]
        %v5169 = vld [vmem:[%s4959 + $0x80] sm:$0xf]
        %v5170 = vld [vmem:[%s4959 + $0x84] sm:$0xf]
        %v5171 = vld [vmem:[%s4959 + $0x88] sm:$0xf]
        %v5172 = vld [vmem:[%s4959 + $0x8c] sm:$0xf]
        %v5173 = vld [vmem:[%s4959 + $0x90] sm:$0xf]
        %v5174 = vld [vmem:[%s4959 + $0x94] sm:$0xf]
        %v5175 = vld [vmem:[%s4959 + $0x98] sm:$0xf]
        %v5176 = vld [vmem:[%s4959 + $0x9c] sm:$0xf]
        %v5177 = vld [vmem:[%s4959 + $0xa0] sm:$0xf]
        %v5178 = vld [vmem:[%s4959 + $0xa4] sm:$0xf]
        %v5179 = vld [vmem:[%s4959 + $0xa8] sm:$0xf]
        %v5180 = vld [vmem:[%s4959 + $0xac] sm:$0xf]
        %v5181 = vld [vmem:[%s4959 + $0xb0] sm:$0xf]
        %v5182 = vld [vmem:[%s4959 + $0xb4] sm:$0xf]
        %v5183 = vld [vmem:[%s4959 + $0xb8] sm:$0xf]
        %v5184 = vld [vmem:[%s4959 + $0xbc] sm:$0xf]
        %s5185 = scalar_lea.vmem %s3, 192
        %v5186 = vld [vmem:[%s5185] sm:$0xf]
        %v5187 = vld [vmem:[%s5185 + $0x4] sm:$0xf]
        %v5188 = vld [vmem:[%s5185 + $0x8] sm:$0xf]
        %v5189 = vld [vmem:[%s5185 + $0xc] sm:$0xf]
        %v5190 = vld [vmem:[%s5185 + $0x10] sm:$0xf]
        %v5191 = vld [vmem:[%s5185 + $0x14] sm:$0xf]
        %v5192 = vld [vmem:[%s5185 + $0x18] sm:$0xf]
        %v5193 = vld [vmem:[%s5185 + $0x1c] sm:$0xf]
        %v5194 = vld [vmem:[%s5185 + $0x20] sm:$0xf]
        %v5195 = vld [vmem:[%s5185 + $0x24] sm:$0xf]
        %v5196 = vld [vmem:[%s5185 + $0x28] sm:$0xf]
        %v5197 = vld [vmem:[%s5185 + $0x2c] sm:$0xf]
        %v5198 = vld [vmem:[%s5185 + $0x30] sm:$0xf]
        %v5199 = vld [vmem:[%s5185 + $0x34] sm:$0xf]
        %v5200 = vld [vmem:[%s5185 + $0x38] sm:$0xf]
        %v5201 = vld [vmem:[%s5185 + $0x3c] sm:$0xf]
        %v5250 = vunpack.c.l.b16 %v5137
        %v5251 = vunpack.c.l.b16 %v5138
        %v5252 = vunpack.c.l.b16 %v5139
        %v5253 = vunpack.c.l.b16 %v5140
        %v5254 = vunpack.c.l.b16 %v5141
        %v5255 = vunpack.c.l.b16 %v5142
        %v5256 = vunpack.c.l.b16 %v5143
        %v5257 = vunpack.c.l.b16 %v5144
        %v5258 = vunpack.c.l.b16 %v5145
        %v5259 = vunpack.c.l.b16 %v5146
        %v5260 = vunpack.c.l.b16 %v5147
        %v5261 = vunpack.c.l.b16 %v5148
        %v5262 = vunpack.c.l.b16 %v5149
        %v5263 = vunpack.c.l.b16 %v5150
        %v5264 = vunpack.c.l.b16 %v5151
        %v5265 = vunpack.c.l.b16 %v5152
        %v5266 = vunpack.c.l.b16 %v5153
        %v5267 = vunpack.c.l.b16 %v5154
        %v5268 = vunpack.c.l.b16 %v5155
        %v5269 = vunpack.c.l.b16 %v5156
        %v5270 = vunpack.c.l.b16 %v5157
        %v5271 = vunpack.c.l.b16 %v5158
        %v5272 = vunpack.c.l.b16 %v5159
        %v5273 = vunpack.c.l.b16 %v5160
        %v5274 = vunpack.c.l.b16 %v5161
        %v5275 = vunpack.c.l.b16 %v5162
        %v5276 = vunpack.c.l.b16 %v5163
        %v5277 = vunpack.c.l.b16 %v5164
        %v5278 = vunpack.c.l.b16 %v5165
        %v5279 = vunpack.c.l.b16 %v5166
        %v5280 = vunpack.c.l.b16 %v5167
        %v5281 = vunpack.c.l.b16 %v5168
        %v5282 = vunpack.c.l.b16 %v5169
        %v5283 = vunpack.c.l.b16 %v5170
        %v5284 = vunpack.c.l.b16 %v5171
        %v5285 = vunpack.c.l.b16 %v5172
        %v5286 = vunpack.c.l.b16 %v5173
        %v5287 = vunpack.c.l.b16 %v5174
        %v5288 = vunpack.c.l.b16 %v5175
        %v5289 = vunpack.c.l.b16 %v5176
        %v5290 = vunpack.c.l.b16 %v5177
        %v5291 = vunpack.c.l.b16 %v5178
        %v5292 = vunpack.c.l.b16 %v5179
        %v5293 = vunpack.c.l.b16 %v5180
        %v5294 = vunpack.c.l.b16 %v5181
        %v5295 = vunpack.c.l.b16 %v5182
        %v5296 = vunpack.c.l.b16 %v5183
        %v5297 = vunpack.c.l.b16 %v5184
        %v5298 = vpack.c.b16 %v5251, %v5250
        %v5299 = vpack.c.b16 %v5253, %v5252
        %v5300 = vpack.c.b16 %v5255, %v5254
        %v5301 = vpack.c.b16 %v5257, %v5256
        %v5302 = vpack.c.b16 %v5259, %v5258
        %v5303 = vpack.c.b16 %v5261, %v5260
        %v5304 = vpack.c.b16 %v5263, %v5262
        %v5305 = vpack.c.b16 %v5265, %v5264
        %v5306 = vpack.c.b16 %v5267, %v5266
        %v5307 = vpack.c.b16 %v5269, %v5268
        %v5308 = vpack.c.b16 %v5271, %v5270
        %v5309 = vpack.c.b16 %v5273, %v5272
        %v5310 = vpack.c.b16 %v5275, %v5274
        %v5311 = vpack.c.b16 %v5277, %v5276
        %v5312 = vpack.c.b16 %v5279, %v5278
        %v5313 = vpack.c.b16 %v5281, %v5280
        %v5314 = vpack.c.b16 %v5283, %v5282
        %v5315 = vpack.c.b16 %v5285, %v5284
        %v5316 = vpack.c.b16 %v5287, %v5286
        %v5317 = vpack.c.b16 %v5289, %v5288
        %v5318 = vpack.c.b16 %v5291, %v5290
        %v5319 = vpack.c.b16 %v5293, %v5292
        %v5320 = vpack.c.b16 %v5295, %v5294
        %v5321 = vpack.c.b16 %v5297, %v5296
        %v5362 = vunpack.c.l.b16 %v5186
        %v5363 = vunpack.c.l.b16 %v5187
        %v5364 = vunpack.c.l.b16 %v5188
        %v5365 = vunpack.c.l.b16 %v5189
        %v5366 = vunpack.c.l.b16 %v5190
        %v5367 = vunpack.c.l.b16 %v5191
        %v5368 = vunpack.c.l.b16 %v5192
        %v5369 = vunpack.c.l.b16 %v5193
        %v5370 = vunpack.c.l.b16 %v5194
        %v5371 = vunpack.c.l.b16 %v5195
        %v5372 = vunpack.c.l.b16 %v5196
        %v5373 = vunpack.c.l.b16 %v5197
        %v5374 = vunpack.c.l.b16 %v5198
        %v5375 = vunpack.c.l.b16 %v5199
        %v5376 = vunpack.c.l.b16 %v5200
        %v5377 = vunpack.c.l.b16 %v5201
        %v5378 = vpack.c.b16 %v5363, %v5362
        %v5379 = vpack.c.b16 %v5365, %v5364
        %v5380 = vpack.c.b16 %v5367, %v5366
        %v5381 = vpack.c.b16 %v5369, %v5368
        %v5382 = vpack.c.b16 %v5371, %v5370
        %v5383 = vpack.c.b16 %v5373, %v5372
        %v5384 = vpack.c.b16 %v5375, %v5374
        %v5385 = vpack.c.b16 %v5377, %v5376
        %5394 = vmatprep.subr.bf16.mxu0 0
        %5395 = vmatpush1.bf16.msra.mxu0 %v5385
        %5396 = vmatprep.subr.bf16.mxu0 0
        %5397 = vmatpush1.bf16.msra.mxu0 %v5384
        %5398 = vmatprep.subr.bf16.mxu0 0
        %5399 = vmatpush1.bf16.msra.mxu0 %v5383
        %5400 = vmatprep.subr.bf16.mxu0 0
        %5401 = vmatpush1.bf16.msra.mxu0 %v5382
        %5402 = vmatprep.subr.bf16.mxu0 0
        %5403 = vmatpush1.bf16.msra.mxu0 %v5381
        %5404 = vmatprep.subr.bf16.mxu0 0
        %5405 = vmatpush1.bf16.msra.mxu0 %v5380
        %5406 = vmatprep.subr.bf16.mxu0 0
        %5407 = vmatpush1.bf16.msra.mxu0 %v5379
        %5408 = vmatprep.subr.bf16.mxu0 0
        %5409 = vmatpush1.bf16.msra.mxu0 %v5378
        %5410 = vmatprep.subr.bf16.mxu0 0
        %5411 = vmatpush2.bf16.msra.mxu0 0
        %5412 = vmatprep.subr.bf16.mxu0 0
        %5413 = vmatpush2.bf16.msra.mxu0 0
        %5414 = vmatprep.subr.bf16.mxu0 0
        %5415 = vmatpush2.bf16.msra.mxu0 0
        %5416 = vmatprep.subr.bf16.mxu0 0
        %5417 = vmatpush2.bf16.msra.mxu0 0
        %5418 = vmatprep.subr.bf16.mxu0 0
        %5419 = vmatpush2.bf16.msra.mxu0 0
        %5420 = vmatprep.subr.bf16.mxu0 0
        %5421 = vmatpush2.bf16.msra.mxu0 0
        %5422 = vmatprep.subr.bf16.mxu0 0
        %5423 = vmatpush2.bf16.msra.mxu0 0
        %5424 = vmatprep.subr.bf16.mxu0 0
        %5425 = vmatpush2.bf16.msra.mxu0 0
        %5426 = vmatprep.mubr.bf16.mxu0 0
        %5427 = vmatmul.mubr.bf16.gmra.mxu0 %v5298
        %v5428 = vpop.f32.mrf.mxu0
        %v5429 = vadd.f32 0.0, %v5428
        %v5430 = vpop.f32.mrf.mxu0
        %v5431 = vpop.f32.mrf.mxu0
        %v5432 = vadd.f32 0.0, %v5431
        %v5433 = vpop.f32.mrf.mxu0
        %5434 = vmatprep.mubr.bf16.mxu0 0
        %5435 = vmatmul.mubr.bf16.gmra.mxu0 %v5299
        %v5436 = vpop.f32.mrf.mxu0
        %v5437 = vpop.f32.mrf.mxu0
        %v5438 = vpop.f32.mrf.mxu0
        %v5439 = vadd.f32 0.0, %v5438
        %v5440 = vpop.f32.mrf.mxu0
        %5441 = vmatprep.mubr.bf16.mxu0 0
        %5442 = vmatmul.mubr.bf16.gmra.mxu0 %v5300
        %v5443 = vpop.f32.mrf.mxu0
        %v5444 = vadd.f32 0.0, %v5443
        %v5445 = vpop.f32.mrf.mxu0
        %v5446 = vpop.f32.mrf.mxu0
        %v5447 = vpop.f32.mrf.mxu0
        %5448 = vmatprep.mubr.bf16.mxu0 0
        %5449 = vmatmul.mubr.bf16.gmra.mxu0 %v5301
        %v5450 = vpop.f32.mrf.mxu0
        %v5451 = vadd.f32 0.0, %v5450
        %v5452 = vpop.f32.mrf.mxu0
        %v5453 = vpop.f32.mrf.mxu0
        %v5454 = vadd.f32 0.0, %v5453
        %v5455 = vpop.f32.mrf.mxu0
        %5456 = vmatprep.mubr.bf16.mxu0 0
        %5457 = vmatmul.mubr.bf16.gmra.mxu0 %v5302
        %v5458 = vpop.f32.mrf.mxu0
        %v5459 = vpop.f32.mrf.mxu0
        %v5460 = vpop.f32.mrf.mxu0
        %v5461 = vadd.f32 0.0, %v5460
        %v5462 = vpop.f32.mrf.mxu0
        %5463 = vmatprep.mubr.bf16.mxu0 0
        %5464 = vmatmul.mubr.bf16.gmra.mxu0 %v5303
        %v5465 = vpop.f32.mrf.mxu0
        %v5466 = vadd.f32 0.0, %v5465
        %v5467 = vpop.f32.mrf.mxu0
        %v5468 = vpop.f32.mrf.mxu0
        %v5469 = vpop.f32.mrf.mxu0
        %5470 = vmatprep.mubr.bf16.mxu0 0
        %5471 = vmatmul.mubr.bf16.gmra.mxu0 %v5304
        %v5472 = vpop.f32.mrf.mxu0
        %v5473 = vadd.f32 0.0, %v5472
        %v5474 = vpop.f32.mrf.mxu0
        %v5475 = vpop.f32.mrf.mxu0
        %v5476 = vadd.f32 0.0, %v5475
        %v5477 = vpop.f32.mrf.mxu0
        %5478 = vmatprep.mubr.bf16.mxu0 0
        %5479 = vmatmul.mubr.bf16.gmra.mxu0 %v5305
        %v5480 = vpop.f32.mrf.mxu0
        %v5481 = vpop.f32.mrf.mxu0
        %v5482 = vpop.f32.mrf.mxu0
        %v5483 = vadd.f32 0.0, %v5482
        %v5484 = vpop.f32.mrf.mxu0
        %5485 = vmatprep.mubr.bf16.mxu0 0
        %5486 = vmatmul.mubr.bf16.gmra.mxu0 %v5306
        %v5487 = vpop.f32.mrf.mxu0
        %v5488 = vadd.f32 0.0, %v5487
        %v5489 = vpop.f32.mrf.mxu0
        %v5490 = vpop.f32.mrf.mxu0
        %v5491 = vpop.f32.mrf.mxu0
        %5492 = vmatprep.mubr.bf16.mxu0 0
        %5493 = vmatmul.mubr.bf16.gmra.mxu0 %v5307
        %v5494 = vpop.f32.mrf.mxu0
        %v5495 = vadd.f32 0.0, %v5494
        %v5496 = vpop.f32.mrf.mxu0
        %v5497 = vpop.f32.mrf.mxu0
        %v5498 = vadd.f32 0.0, %v5497
        %v5499 = vpop.f32.mrf.mxu0
        %5500 = vmatprep.mubr.bf16.mxu0 0
        %5501 = vmatmul.mubr.bf16.gmra.mxu0 %v5308
        %v5502 = vpop.f32.mrf.mxu0
        %v5503 = vpop.f32.mrf.mxu0
        %v5504 = vpop.f32.mrf.mxu0
        %v5505 = vadd.f32 0.0, %v5504
        %v5506 = vpop.f32.mrf.mxu0
        %5507 = vmatprep.mubr.bf16.mxu0 0
        %5508 = vmatmul.mubr.bf16.gmra.mxu0 %v5309
        %v5509 = vpop.f32.mrf.mxu0
        %v5510 = vadd.f32 0.0, %v5509
        %v5511 = vpop.f32.mrf.mxu0
        %v5512 = vpop.f32.mrf.mxu0
        %v5513 = vpop.f32.mrf.mxu0
        %5514 = vmatprep.mubr.bf16.mxu0 0
        %5515 = vmatmul.mubr.bf16.gmra.mxu0 %v5310
        %v5516 = vpop.f32.mrf.mxu0
        %v5517 = vadd.f32 0.0, %v5516
        %v5518 = vpop.f32.mrf.mxu0
        %v5519 = vpop.f32.mrf.mxu0
        %v5520 = vadd.f32 0.0, %v5519
        %v5521 = vpop.f32.mrf.mxu0
        %5522 = vmatprep.mubr.bf16.mxu0 0
        %5523 = vmatmul.mubr.bf16.gmra.mxu0 %v5311
        %v5524 = vpop.f32.mrf.mxu0
        %v5525 = vpop.f32.mrf.mxu0
        %v5526 = vpop.f32.mrf.mxu0
        %v5527 = vadd.f32 0.0, %v5526
        %v5528 = vpop.f32.mrf.mxu0
        %5529 = vmatprep.mubr.bf16.mxu0 0
        %5530 = vmatmul.mubr.bf16.gmra.mxu0 %v5312
        %v5531 = vpop.f32.mrf.mxu0
        %v5532 = vadd.f32 0.0, %v5531
        %v5533 = vpop.f32.mrf.mxu0
        %v5534 = vpop.f32.mrf.mxu0
        %v5535 = vpop.f32.mrf.mxu0
        %5536 = vmatprep.mubr.bf16.mxu0 0
        %5537 = vmatmul.mubr.bf16.gmra.mxu0 %v5313
        %v5538 = vpop.f32.mrf.mxu0
        %v5539 = vadd.f32 0.0, %v5538
        %v5540 = vpop.f32.mrf.mxu0
        %v5541 = vpop.f32.mrf.mxu0
        %v5542 = vadd.f32 0.0, %v5541
        %v5543 = vpop.f32.mrf.mxu0
        %5544 = vmatprep.mubr.bf16.mxu0 0
        %5545 = vmatmul.mubr.bf16.gmra.mxu0 %v5314
        %v5546 = vpop.f32.mrf.mxu0
        %v5547 = vpop.f32.mrf.mxu0
        %v5548 = vpop.f32.mrf.mxu0
        %v5549 = vadd.f32 0.0, %v5548
        %v5550 = vpop.f32.mrf.mxu0
        %5551 = vmatprep.mubr.bf16.mxu0 0
        %5552 = vmatmul.mubr.bf16.gmra.mxu0 %v5315
        %v5553 = vpop.f32.mrf.mxu0
        %v5554 = vadd.f32 0.0, %v5553
        %v5555 = vpop.f32.mrf.mxu0
        %v5556 = vpop.f32.mrf.mxu0
        %v5557 = vpop.f32.mrf.mxu0
        %5558 = vmatprep.mubr.bf16.mxu0 0
        %5559 = vmatmul.mubr.bf16.gmra.mxu0 %v5316
        %v5560 = vpop.f32.mrf.mxu0
        %v5561 = vadd.f32 0.0, %v5560
        %v5562 = vpop.f32.mrf.mxu0
        %v5563 = vpop.f32.mrf.mxu0
        %v5564 = vadd.f32 0.0, %v5563
        %v5565 = vpop.f32.mrf.mxu0
        %5566 = vmatprep.mubr.bf16.mxu0 0
        %5567 = vmatmul.mubr.bf16.gmra.mxu0 %v5317
        %v5568 = vpop.f32.mrf.mxu0
        %v5569 = vpop.f32.mrf.mxu0
        %v5570 = vpop.f32.mrf.mxu0
        %v5571 = vadd.f32 0.0, %v5570
        %v5572 = vpop.f32.mrf.mxu0
        %5573 = vmatprep.mubr.bf16.mxu0 0
        %5574 = vmatmul.mubr.bf16.gmra.mxu0 %v5318
        %v5575 = vpop.f32.mrf.mxu0
        %v5576 = vadd.f32 0.0, %v5575
        %v5577 = vpop.f32.mrf.mxu0
        %v5578 = vpop.f32.mrf.mxu0
        %v5579 = vpop.f32.mrf.mxu0
        %5580 = vmatprep.mubr.bf16.mxu0 0
        %5581 = vmatmul.mubr.bf16.gmra.mxu0 %v5319
        %v5582 = vpop.f32.mrf.mxu0
        %v5583 = vadd.f32 0.0, %v5582
        %v5584 = vpop.f32.mrf.mxu0
        %v5585 = vpop.f32.mrf.mxu0
        %v5586 = vadd.f32 0.0, %v5585
        %v5587 = vpop.f32.mrf.mxu0
        %5588 = vmatprep.mubr.bf16.mxu0 0
        %5589 = vmatmul.mubr.bf16.gmra.mxu0 %v5320
        %v5590 = vpop.f32.mrf.mxu0
        %v5591 = vpop.f32.mrf.mxu0
        %v5592 = vpop.f32.mrf.mxu0
        %v5593 = vadd.f32 0.0, %v5592
        %v5594 = vpop.f32.mrf.mxu0
        %5595 = vmatprep.mubr.bf16.mxu0 0
        %5596 = vmatmul.mubr.bf16.gmra.mxu0 %v5321
        %v5597 = vpop.f32.mrf.mxu0
        %v5598 = vadd.f32 0.0, %v5597
        %v5599 = vpop.f32.mrf.mxu0
        %v5600 = vpop.f32.mrf.mxu0
        %v5601 = vpop.f32.mrf.mxu0
        %5602 = vdwg.mxu0
        %v5651 = vunpack.c.l.b16 %v5073
        %v5652 = vunpack.c.l.b16 %v5074
        %v5653 = vunpack.c.l.b16 %v5075
        %v5654 = vunpack.c.l.b16 %v5076
        %v5655 = vunpack.c.l.b16 %v5077
        %v5656 = vunpack.c.l.b16 %v5078
        %v5657 = vunpack.c.l.b16 %v5079
        %v5658 = vunpack.c.l.b16 %v5080
        %v5659 = vunpack.c.l.b16 %v5081
        %v5660 = vunpack.c.l.b16 %v5082
        %v5661 = vunpack.c.l.b16 %v5083
        %v5662 = vunpack.c.l.b16 %v5084
        %v5663 = vunpack.c.l.b16 %v5085
        %v5664 = vunpack.c.l.b16 %v5086
        %v5665 = vunpack.c.l.b16 %v5087
        %v5666 = vunpack.c.l.b16 %v5088
        %v5667 = vunpack.c.l.b16 %v5089
        %v5668 = vunpack.c.l.b16 %v5090
        %v5669 = vunpack.c.l.b16 %v5091
        %v5670 = vunpack.c.l.b16 %v5092
        %v5671 = vunpack.c.l.b16 %v5093
        %v5672 = vunpack.c.l.b16 %v5094
        %v5673 = vunpack.c.l.b16 %v5095
        %v5674 = vunpack.c.l.b16 %v5096
        %v5675 = vunpack.c.l.b16 %v5097
        %v5676 = vunpack.c.l.b16 %v5098
        %v5677 = vunpack.c.l.b16 %v5099
        %v5678 = vunpack.c.l.b16 %v5100
        %v5679 = vunpack.c.l.b16 %v5101
        %v5680 = vunpack.c.l.b16 %v5102
        %v5681 = vunpack.c.l.b16 %v5103
        %v5682 = vunpack.c.l.b16 %v5104
        %v5683 = vunpack.c.l.b16 %v5105
        %v5684 = vunpack.c.l.b16 %v5106
        %v5685 = vunpack.c.l.b16 %v5107
        %v5686 = vunpack.c.l.b16 %v5108
        %v5687 = vunpack.c.l.b16 %v5109
        %v5688 = vunpack.c.l.b16 %v5110
        %v5689 = vunpack.c.l.b16 %v5111
        %v5690 = vunpack.c.l.b16 %v5112
        %v5691 = vunpack.c.l.b16 %v5113
        %v5692 = vunpack.c.l.b16 %v5114
        %v5693 = vunpack.c.l.b16 %v5115
        %v5694 = vunpack.c.l.b16 %v5116
        %v5695 = vunpack.c.l.b16 %v5117
        %v5696 = vunpack.c.l.b16 %v5118
        %v5697 = vunpack.c.l.b16 %v5119
        %v5698 = vunpack.c.l.b16 %v5120
        %v5699 = vpack.c.b16 %v5652, %v5651
        %v5700 = vpack.c.b16 %v5654, %v5653
        %v5701 = vpack.c.b16 %v5656, %v5655
        %v5702 = vpack.c.b16 %v5658, %v5657
        %v5703 = vpack.c.b16 %v5660, %v5659
        %v5704 = vpack.c.b16 %v5662, %v5661
        %v5705 = vpack.c.b16 %v5664, %v5663
        %v5706 = vpack.c.b16 %v5666, %v5665
        %v5707 = vpack.c.b16 %v5668, %v5667
        %v5708 = vpack.c.b16 %v5670, %v5669
        %v5709 = vpack.c.b16 %v5672, %v5671
        %v5710 = vpack.c.b16 %v5674, %v5673
        %v5711 = vpack.c.b16 %v5676, %v5675
        %v5712 = vpack.c.b16 %v5678, %v5677
        %v5713 = vpack.c.b16 %v5680, %v5679
        %v5714 = vpack.c.b16 %v5682, %v5681
        %v5715 = vpack.c.b16 %v5684, %v5683
        %v5716 = vpack.c.b16 %v5686, %v5685
        %v5717 = vpack.c.b16 %v5688, %v5687
        %v5718 = vpack.c.b16 %v5690, %v5689
        %v5719 = vpack.c.b16 %v5692, %v5691
        %v5720 = vpack.c.b16 %v5694, %v5693
        %v5721 = vpack.c.b16 %v5696, %v5695
        %v5722 = vpack.c.b16 %v5698, %v5697
        %v5763 = vunpack.c.l.b16 %v5121
        %v5764 = vunpack.c.l.b16 %v5122
        %v5765 = vunpack.c.l.b16 %v5123
        %v5766 = vunpack.c.l.b16 %v5124
        %v5767 = vunpack.c.l.b16 %v5125
        %v5768 = vunpack.c.l.b16 %v5126
        %v5769 = vunpack.c.l.b16 %v5127
        %v5770 = vunpack.c.l.b16 %v5128
        %v5771 = vunpack.c.l.b16 %v5129
        %v5772 = vunpack.c.l.b16 %v5130
        %v5773 = vunpack.c.l.b16 %v5131
        %v5774 = vunpack.c.l.b16 %v5132
        %v5775 = vunpack.c.l.b16 %v5133
        %v5776 = vunpack.c.l.b16 %v5134
        %v5777 = vunpack.c.l.b16 %v5135
        %v5778 = vunpack.c.l.b16 %v5136
        %v5779 = vpack.c.b16 %v5764, %v5763
        %v5780 = vpack.c.b16 %v5766, %v5765
        %v5781 = vpack.c.b16 %v5768, %v5767
        %v5782 = vpack.c.b16 %v5770, %v5769
        %v5783 = vpack.c.b16 %v5772, %v5771
        %v5784 = vpack.c.b16 %v5774, %v5773
        %v5785 = vpack.c.b16 %v5776, %v5775
        %v5786 = vpack.c.b16 %v5778, %v5777
        %5795 = vmatprep.subr.bf16.mxu0 0
        %5796 = vmatpush1.bf16.msra.mxu0 %v5786
        %5797 = vmatprep.subr.bf16.mxu0 0
        %5798 = vmatpush1.bf16.msra.mxu0 %v5785
        %5799 = vmatprep.subr.bf16.mxu0 0
        %5800 = vmatpush1.bf16.msra.mxu0 %v5784
        %5801 = vmatprep.subr.bf16.mxu0 0
        %5802 = vmatpush1.bf16.msra.mxu0 %v5783
        %5803 = vmatprep.subr.bf16.mxu0 0
        %5804 = vmatpush1.bf16.msra.mxu0 %v5782
        %5805 = vmatprep.subr.bf16.mxu0 0
        %5806 = vmatpush1.bf16.msra.mxu0 %v5781
        %5807 = vmatprep.subr.bf16.mxu0 0
        %5808 = vmatpush1.bf16.msra.mxu0 %v5780
        %5809 = vmatprep.subr.bf16.mxu0 0
        %5810 = vmatpush1.bf16.msra.mxu0 %v5779
        %5811 = vmatprep.subr.bf16.mxu0 0
        %5812 = vmatpush2.bf16.msra.mxu0 0
        %5813 = vmatprep.subr.bf16.mxu0 0
        %5814 = vmatpush2.bf16.msra.mxu0 0
        %5815 = vmatprep.subr.bf16.mxu0 0
        %5816 = vmatpush2.bf16.msra.mxu0 0
        %5817 = vmatprep.subr.bf16.mxu0 0
        %5818 = vmatpush2.bf16.msra.mxu0 0
        %5819 = vmatprep.subr.bf16.mxu0 0
        %5820 = vmatpush2.bf16.msra.mxu0 0
        %5821 = vmatprep.subr.bf16.mxu0 0
        %5822 = vmatpush2.bf16.msra.mxu0 0
        %5823 = vmatprep.subr.bf16.mxu0 0
        %5824 = vmatpush2.bf16.msra.mxu0 0
        %5825 = vmatprep.subr.bf16.mxu0 0
        %5826 = vmatpush2.bf16.msra.mxu0 0
        %5827 = vmatprep.mubr.bf16.mxu0 0
        %5828 = vmatmul.mubr.bf16.gmra.mxu0 %v5699
        %v5829 = vpop.f32.mrf.mxu0
        %v5830 = vadd.f32 %v5429, %v5829
        %v5831 = vpop.f32.mrf.mxu0
        %v5832 = vpop.f32.mrf.mxu0
        %v5833 = vadd.f32 %v5432, %v5832
        %v5834 = vpop.f32.mrf.mxu0
        %5835 = vmatprep.mubr.bf16.mxu0 0
        %5836 = vmatmul.mubr.bf16.gmra.mxu0 %v5700
        %v5837 = vpop.f32.mrf.mxu0
        %v5838 = vpop.f32.mrf.mxu0
        %v5839 = vpop.f32.mrf.mxu0
        %v5840 = vadd.f32 %v5439, %v5839
        %v5841 = vpop.f32.mrf.mxu0
        %5842 = vmatprep.mubr.bf16.mxu0 0
        %5843 = vmatmul.mubr.bf16.gmra.mxu0 %v5701
        %v5844 = vpop.f32.mrf.mxu0
        %v5845 = vadd.f32 %v5444, %v5844
        %v5846 = vpop.f32.mrf.mxu0
        %v5847 = vpop.f32.mrf.mxu0
        %v5848 = vpop.f32.mrf.mxu0
        %5849 = vmatprep.mubr.bf16.mxu0 0
        %5850 = vmatmul.mubr.bf16.gmra.mxu0 %v5702
        %v5851 = vpop.f32.mrf.mxu0
        %v5852 = vadd.f32 %v5451, %v5851
        %v5853 = vpop.f32.mrf.mxu0
        %v5854 = vpop.f32.mrf.mxu0
        %v5855 = vadd.f32 %v5454, %v5854
        %v5856 = vpop.f32.mrf.mxu0
        %5857 = vmatprep.mubr.bf16.mxu0 0
        %5858 = vmatmul.mubr.bf16.gmra.mxu0 %v5703
        %v5859 = vpop.f32.mrf.mxu0
        %v5860 = vpop.f32.mrf.mxu0
        %v5861 = vpop.f32.mrf.mxu0
        %v5862 = vadd.f32 %v5461, %v5861
        %v5863 = vpop.f32.mrf.mxu0
        %5864 = vmatprep.mubr.bf16.mxu0 0
        %5865 = vmatmul.mubr.bf16.gmra.mxu0 %v5704
        %v5866 = vpop.f32.mrf.mxu0
        %v5867 = vadd.f32 %v5466, %v5866
        %v5868 = vpop.f32.mrf.mxu0
        %v5869 = vpop.f32.mrf.mxu0
        %v5870 = vpop.f32.mrf.mxu0
        %5871 = vmatprep.mubr.bf16.mxu0 0
        %5872 = vmatmul.mubr.bf16.gmra.mxu0 %v5705
        %v5873 = vpop.f32.mrf.mxu0
        %v5874 = vadd.f32 %v5473, %v5873
        %v5875 = vpop.f32.mrf.mxu0
        %v5876 = vpop.f32.mrf.mxu0
        %v5877 = vadd.f32 %v5476, %v5876
        %v5878 = vpop.f32.mrf.mxu0
        %5879 = vmatprep.mubr.bf16.mxu0 0
        %5880 = vmatmul.mubr.bf16.gmra.mxu0 %v5706
        %v5881 = vpop.f32.mrf.mxu0
        %v5882 = vpop.f32.mrf.mxu0
        %v5883 = vpop.f32.mrf.mxu0
        %v5884 = vadd.f32 %v5483, %v5883
        %v5885 = vpop.f32.mrf.mxu0
        %5886 = vmatprep.mubr.bf16.mxu0 0
        %5887 = vmatmul.mubr.bf16.gmra.mxu0 %v5707
        %v5888 = vpop.f32.mrf.mxu0
        %v5889 = vadd.f32 %v5488, %v5888
        %v5890 = vpop.f32.mrf.mxu0
        %v5891 = vpop.f32.mrf.mxu0
        %v5892 = vpop.f32.mrf.mxu0
        %5893 = vmatprep.mubr.bf16.mxu0 0
        %5894 = vmatmul.mubr.bf16.gmra.mxu0 %v5708
        %v5895 = vpop.f32.mrf.mxu0
        %v5896 = vadd.f32 %v5495, %v5895
        %v5897 = vpop.f32.mrf.mxu0
        %v5898 = vpop.f32.mrf.mxu0
        %v5899 = vadd.f32 %v5498, %v5898
        %v5900 = vpop.f32.mrf.mxu0
        %5901 = vmatprep.mubr.bf16.mxu0 0
        %5902 = vmatmul.mubr.bf16.gmra.mxu0 %v5709
        %v5903 = vpop.f32.mrf.mxu0
        %v5904 = vpop.f32.mrf.mxu0
        %v5905 = vpop.f32.mrf.mxu0
        %v5906 = vadd.f32 %v5505, %v5905
        %v5907 = vpop.f32.mrf.mxu0
        %5908 = vmatprep.mubr.bf16.mxu0 0
        %5909 = vmatmul.mubr.bf16.gmra.mxu0 %v5710
        %v5910 = vpop.f32.mrf.mxu0
        %v5911 = vadd.f32 %v5510, %v5910
        %v5912 = vpop.f32.mrf.mxu0
        %v5913 = vpop.f32.mrf.mxu0
        %v5914 = vpop.f32.mrf.mxu0
        %5915 = vmatprep.mubr.bf16.mxu0 0
        %5916 = vmatmul.mubr.bf16.gmra.mxu0 %v5711
        %v5917 = vpop.f32.mrf.mxu0
        %v5918 = vadd.f32 %v5517, %v5917
        %v5919 = vpop.f32.mrf.mxu0
        %v5920 = vpop.f32.mrf.mxu0
        %v5921 = vadd.f32 %v5520, %v5920
        %v5922 = vpop.f32.mrf.mxu0
        %5923 = vmatprep.mubr.bf16.mxu0 0
        %5924 = vmatmul.mubr.bf16.gmra.mxu0 %v5712
        %v5925 = vpop.f32.mrf.mxu0
        %v5926 = vpop.f32.mrf.mxu0
        %v5927 = vpop.f32.mrf.mxu0
        %v5928 = vadd.f32 %v5527, %v5927
        %v5929 = vpop.f32.mrf.mxu0
        %5930 = vmatprep.mubr.bf16.mxu0 0
        %5931 = vmatmul.mubr.bf16.gmra.mxu0 %v5713
        %v5932 = vpop.f32.mrf.mxu0
        %v5933 = vadd.f32 %v5532, %v5932
        %v5934 = vpop.f32.mrf.mxu0
        %v5935 = vpop.f32.mrf.mxu0
        %v5936 = vpop.f32.mrf.mxu0
        %5937 = vmatprep.mubr.bf16.mxu0 0
        %5938 = vmatmul.mubr.bf16.gmra.mxu0 %v5714
        %v5939 = vpop.f32.mrf.mxu0
        %v5940 = vadd.f32 %v5539, %v5939
        %v5941 = vpop.f32.mrf.mxu0
        %v5942 = vpop.f32.mrf.mxu0
        %v5943 = vadd.f32 %v5542, %v5942
        %v5944 = vpop.f32.mrf.mxu0
        %5945 = vmatprep.mubr.bf16.mxu0 0
        %5946 = vmatmul.mubr.bf16.gmra.mxu0 %v5715
        %v5947 = vpop.f32.mrf.mxu0
        %v5948 = vpop.f32.mrf.mxu0
        %v5949 = vpop.f32.mrf.mxu0
        %v5950 = vadd.f32 %v5549, %v5949
        %v5951 = vpop.f32.mrf.mxu0
        %5952 = vmatprep.mubr.bf16.mxu0 0
        %5953 = vmatmul.mubr.bf16.gmra.mxu0 %v5716
        %v5954 = vpop.f32.mrf.mxu0
        %v5955 = vadd.f32 %v5554, %v5954
        %v5956 = vpop.f32.mrf.mxu0
        %v5957 = vpop.f32.mrf.mxu0
        %v5958 = vpop.f32.mrf.mxu0
        %5959 = vmatprep.mubr.bf16.mxu0 0
        %5960 = vmatmul.mubr.bf16.gmra.mxu0 %v5717
        %v5961 = vpop.f32.mrf.mxu0
        %v5962 = vadd.f32 %v5561, %v5961
        %v5963 = vpop.f32.mrf.mxu0
        %v5964 = vpop.f32.mrf.mxu0
        %v5965 = vadd.f32 %v5564, %v5964
        %v5966 = vpop.f32.mrf.mxu0
        %5967 = vmatprep.mubr.bf16.mxu0 0
        %5968 = vmatmul.mubr.bf16.gmra.mxu0 %v5718
        %v5969 = vpop.f32.mrf.mxu0
        %v5970 = vpop.f32.mrf.mxu0
        %v5971 = vpop.f32.mrf.mxu0
        %v5972 = vadd.f32 %v5571, %v5971
        %v5973 = vpop.f32.mrf.mxu0
        %5974 = vmatprep.mubr.bf16.mxu0 0
        %5975 = vmatmul.mubr.bf16.gmra.mxu0 %v5719
        %v5976 = vpop.f32.mrf.mxu0
        %v5977 = vadd.f32 %v5576, %v5976
        %v5978 = vpop.f32.mrf.mxu0
        %v5979 = vpop.f32.mrf.mxu0
        %v5980 = vpop.f32.mrf.mxu0
        %5981 = vmatprep.mubr.bf16.mxu0 0
        %5982 = vmatmul.mubr.bf16.gmra.mxu0 %v5720
        %v5983 = vpop.f32.mrf.mxu0
        %v5984 = vadd.f32 %v5583, %v5983
        %v5985 = vpop.f32.mrf.mxu0
        %v5986 = vpop.f32.mrf.mxu0
        %v5987 = vadd.f32 %v5586, %v5986
        %v5988 = vpop.f32.mrf.mxu0
        %5989 = vmatprep.mubr.bf16.mxu0 0
        %5990 = vmatmul.mubr.bf16.gmra.mxu0 %v5721
        %v5991 = vpop.f32.mrf.mxu0
        %v5992 = vpop.f32.mrf.mxu0
        %v5993 = vpop.f32.mrf.mxu0
        %v5994 = vadd.f32 %v5593, %v5993
        %v5995 = vpop.f32.mrf.mxu0
        %5996 = vmatprep.mubr.bf16.mxu0 0
        %5997 = vmatmul.mubr.bf16.gmra.mxu0 %v5722
        %v5998 = vpop.f32.mrf.mxu0
        %v5999 = vadd.f32 %v5598, %v5998
        %v6000 = vpop.f32.mrf.mxu0
        %v6001 = vpop.f32.mrf.mxu0
        %v6002 = vpop.f32.mrf.mxu0
        %6003 = vdwg.mxu0
        %s6004 = scalar_lea.vmem [#allocation3], 24
        %v6005 = vld [vmem:[%s6004] sm:$0xf]
        %v6006 = vld [vmem:[%s6004 + $0x4] sm:$0xf]
        %v6007 = vld [vmem:[%s6004 + $0x8] sm:$0xf]
        %v6008 = vld [vmem:[%s6004 + $0xc] sm:$0xf]
        %v6009 = vld [vmem:[%s6004 + $0x10] sm:$0xf]
        %v6010 = vld [vmem:[%s6004 + $0x14] sm:$0xf]
        %v6011 = vld [vmem:[%s6004 + $0x18] sm:$0xf]
        %v6012 = vld [vmem:[%s6004 + $0x1c] sm:$0xf]
        %v6013 = vld [vmem:[%s6004 + $0x20] sm:$0xf]
        %v6014 = vld [vmem:[%s6004 + $0x24] sm:$0xf]
        %v6015 = vld [vmem:[%s6004 + $0x28] sm:$0xf]
        %v6016 = vld [vmem:[%s6004 + $0x2c] sm:$0xf]
        %v6017 = vld [vmem:[%s6004 + $0x30] sm:$0xf]
        %v6018 = vld [vmem:[%s6004 + $0x34] sm:$0xf]
        %v6019 = vld [vmem:[%s6004 + $0x38] sm:$0xf]
        %v6020 = vld [vmem:[%s6004 + $0x3c] sm:$0xf]
        %v6021 = vld [vmem:[%s6004 + $0x40] sm:$0xf]
        %v6022 = vld [vmem:[%s6004 + $0x44] sm:$0xf]
        %v6023 = vld [vmem:[%s6004 + $0x48] sm:$0xf]
        %v6024 = vld [vmem:[%s6004 + $0x4c] sm:$0xf]
        %v6025 = vld [vmem:[%s6004 + $0x50] sm:$0xf]
        %v6026 = vld [vmem:[%s6004 + $0x54] sm:$0xf]
        %v6027 = vld [vmem:[%s6004 + $0x58] sm:$0xf]
        %v6028 = vld [vmem:[%s6004 + $0x5c] sm:$0xf]
        %v6029 = vld [vmem:[%s6004 + $0x60] sm:$0xf]
        %v6030 = vld [vmem:[%s6004 + $0x64] sm:$0xf]
        %v6031 = vld [vmem:[%s6004 + $0x68] sm:$0xf]
        %v6032 = vld [vmem:[%s6004 + $0x6c] sm:$0xf]
        %v6033 = vld [vmem:[%s6004 + $0x70] sm:$0xf]
        %v6034 = vld [vmem:[%s6004 + $0x74] sm:$0xf]
        %v6035 = vld [vmem:[%s6004 + $0x78] sm:$0xf]
        %v6036 = vld [vmem:[%s6004 + $0x7c] sm:$0xf]
        %v6037 = vld [vmem:[%s6004 + $0x80] sm:$0xf]
        %v6038 = vld [vmem:[%s6004 + $0x84] sm:$0xf]
        %v6039 = vld [vmem:[%s6004 + $0x88] sm:$0xf]
        %v6040 = vld [vmem:[%s6004 + $0x8c] sm:$0xf]
        %v6041 = vld [vmem:[%s6004 + $0x90] sm:$0xf]
        %v6042 = vld [vmem:[%s6004 + $0x94] sm:$0xf]
        %v6043 = vld [vmem:[%s6004 + $0x98] sm:$0xf]
        %v6044 = vld [vmem:[%s6004 + $0x9c] sm:$0xf]
        %v6045 = vld [vmem:[%s6004 + $0xa0] sm:$0xf]
        %v6046 = vld [vmem:[%s6004 + $0xa4] sm:$0xf]
        %v6047 = vld [vmem:[%s6004 + $0xa8] sm:$0xf]
        %v6048 = vld [vmem:[%s6004 + $0xac] sm:$0xf]
        %v6049 = vld [vmem:[%s6004 + $0xb0] sm:$0xf]
        %v6050 = vld [vmem:[%s6004 + $0xb4] sm:$0xf]
        %v6051 = vld [vmem:[%s6004 + $0xb8] sm:$0xf]
        %v6052 = vld [vmem:[%s6004 + $0xbc] sm:$0xf]
        %s6053 = scalar_lea.vmem %s3, 384
        %v6054 = vld [vmem:[%s6053] sm:$0xf]
        %v6055 = vld [vmem:[%s6053 + $0x4] sm:$0xf]
        %v6056 = vld [vmem:[%s6053 + $0x8] sm:$0xf]
        %v6057 = vld [vmem:[%s6053 + $0xc] sm:$0xf]
        %v6058 = vld [vmem:[%s6053 + $0x10] sm:$0xf]
        %v6059 = vld [vmem:[%s6053 + $0x14] sm:$0xf]
        %v6060 = vld [vmem:[%s6053 + $0x18] sm:$0xf]
        %v6061 = vld [vmem:[%s6053 + $0x1c] sm:$0xf]
        %v6062 = vld [vmem:[%s6053 + $0x20] sm:$0xf]
        %v6063 = vld [vmem:[%s6053 + $0x24] sm:$0xf]
        %v6064 = vld [vmem:[%s6053 + $0x28] sm:$0xf]
        %v6065 = vld [vmem:[%s6053 + $0x2c] sm:$0xf]
        %v6066 = vld [vmem:[%s6053 + $0x30] sm:$0xf]
        %v6067 = vld [vmem:[%s6053 + $0x34] sm:$0xf]
        %v6068 = vld [vmem:[%s6053 + $0x38] sm:$0xf]
        %v6069 = vld [vmem:[%s6053 + $0x3c] sm:$0xf]
        %v6118 = vunpack.c.l.b16 %v6005
        %v6119 = vunpack.c.l.b16 %v6006
        %v6120 = vunpack.c.l.b16 %v6007
        %v6121 = vunpack.c.l.b16 %v6008
        %v6122 = vunpack.c.l.b16 %v6009
        %v6123 = vunpack.c.l.b16 %v6010
        %v6124 = vunpack.c.l.b16 %v6011
        %v6125 = vunpack.c.l.b16 %v6012
        %v6126 = vunpack.c.l.b16 %v6013
        %v6127 = vunpack.c.l.b16 %v6014
        %v6128 = vunpack.c.l.b16 %v6015
        %v6129 = vunpack.c.l.b16 %v6016
        %v6130 = vunpack.c.l.b16 %v6017
        %v6131 = vunpack.c.l.b16 %v6018
        %v6132 = vunpack.c.l.b16 %v6019
        %v6133 = vunpack.c.l.b16 %v6020
        %v6134 = vunpack.c.l.b16 %v6021
        %v6135 = vunpack.c.l.b16 %v6022
        %v6136 = vunpack.c.l.b16 %v6023
        %v6137 = vunpack.c.l.b16 %v6024
        %v6138 = vunpack.c.l.b16 %v6025
        %v6139 = vunpack.c.l.b16 %v6026
        %v6140 = vunpack.c.l.b16 %v6027
        %v6141 = vunpack.c.l.b16 %v6028
        %v6142 = vunpack.c.l.b16 %v6029
        %v6143 = vunpack.c.l.b16 %v6030
        %v6144 = vunpack.c.l.b16 %v6031
        %v6145 = vunpack.c.l.b16 %v6032
        %v6146 = vunpack.c.l.b16 %v6033
        %v6147 = vunpack.c.l.b16 %v6034
        %v6148 = vunpack.c.l.b16 %v6035
        %v6149 = vunpack.c.l.b16 %v6036
        %v6150 = vunpack.c.l.b16 %v6037
        %v6151 = vunpack.c.l.b16 %v6038
        %v6152 = vunpack.c.l.b16 %v6039
        %v6153 = vunpack.c.l.b16 %v6040
        %v6154 = vunpack.c.l.b16 %v6041
        %v6155 = vunpack.c.l.b16 %v6042
        %v6156 = vunpack.c.l.b16 %v6043
        %v6157 = vunpack.c.l.b16 %v6044
        %v6158 = vunpack.c.l.b16 %v6045
        %v6159 = vunpack.c.l.b16 %v6046
        %v6160 = vunpack.c.l.b16 %v6047
        %v6161 = vunpack.c.l.b16 %v6048
        %v6162 = vunpack.c.l.b16 %v6049
        %v6163 = vunpack.c.l.b16 %v6050
        %v6164 = vunpack.c.l.b16 %v6051
        %v6165 = vunpack.c.l.b16 %v6052
        %v6166 = vpack.c.b16 %v6119, %v6118
        %v6167 = vpack.c.b16 %v6121, %v6120
        %v6168 = vpack.c.b16 %v6123, %v6122
        %v6169 = vpack.c.b16 %v6125, %v6124
        %v6170 = vpack.c.b16 %v6127, %v6126
        %v6171 = vpack.c.b16 %v6129, %v6128
        %v6172 = vpack.c.b16 %v6131, %v6130
        %v6173 = vpack.c.b16 %v6133, %v6132
        %v6174 = vpack.c.b16 %v6135, %v6134
        %v6175 = vpack.c.b16 %v6137, %v6136
        %v6176 = vpack.c.b16 %v6139, %v6138
        %v6177 = vpack.c.b16 %v6141, %v6140
        %v6178 = vpack.c.b16 %v6143, %v6142
        %v6179 = vpack.c.b16 %v6145, %v6144
        %v6180 = vpack.c.b16 %v6147, %v6146
        %v6181 = vpack.c.b16 %v6149, %v6148
        %v6182 = vpack.c.b16 %v6151, %v6150
        %v6183 = vpack.c.b16 %v6153, %v6152
        %v6184 = vpack.c.b16 %v6155, %v6154
        %v6185 = vpack.c.b16 %v6157, %v6156
        %v6186 = vpack.c.b16 %v6159, %v6158
        %v6187 = vpack.c.b16 %v6161, %v6160
        %v6188 = vpack.c.b16 %v6163, %v6162
        %v6189 = vpack.c.b16 %v6165, %v6164
        %v6230 = vunpack.c.l.b16 %v6054
        %v6231 = vunpack.c.l.b16 %v6055
        %v6232 = vunpack.c.l.b16 %v6056
        %v6233 = vunpack.c.l.b16 %v6057
        %v6234 = vunpack.c.l.b16 %v6058
        %v6235 = vunpack.c.l.b16 %v6059
        %v6236 = vunpack.c.l.b16 %v6060
        %v6237 = vunpack.c.l.b16 %v6061
        %v6238 = vunpack.c.l.b16 %v6062
        %v6239 = vunpack.c.l.b16 %v6063
        %v6240 = vunpack.c.l.b16 %v6064
        %v6241 = vunpack.c.l.b16 %v6065
        %v6242 = vunpack.c.l.b16 %v6066
        %v6243 = vunpack.c.l.b16 %v6067
        %v6244 = vunpack.c.l.b16 %v6068
        %v6245 = vunpack.c.l.b16 %v6069
        %v6246 = vpack.c.b16 %v6231, %v6230
        %v6247 = vpack.c.b16 %v6233, %v6232
        %v6248 = vpack.c.b16 %v6235, %v6234
        %v6249 = vpack.c.b16 %v6237, %v6236
        %v6250 = vpack.c.b16 %v6239, %v6238
        %v6251 = vpack.c.b16 %v6241, %v6240
        %v6252 = vpack.c.b16 %v6243, %v6242
        %v6253 = vpack.c.b16 %v6245, %v6244
        %6262 = vmatprep.subr.bf16.mxu0 0
        %6263 = vmatpush1.bf16.msra.mxu0 %v6253
        %6264 = vmatprep.subr.bf16.mxu0 0
        %6265 = vmatpush1.bf16.msra.mxu0 %v6252
        %6266 = vmatprep.subr.bf16.mxu0 0
        %6267 = vmatpush1.bf16.msra.mxu0 %v6251
        %6268 = vmatprep.subr.bf16.mxu0 0
        %6269 = vmatpush1.bf16.msra.mxu0 %v6250
        %6270 = vmatprep.subr.bf16.mxu0 0
        %6271 = vmatpush1.bf16.msra.mxu0 %v6249
        %6272 = vmatprep.subr.bf16.mxu0 0
        %6273 = vmatpush1.bf16.msra.mxu0 %v6248
        %6274 = vmatprep.subr.bf16.mxu0 0
        %6275 = vmatpush1.bf16.msra.mxu0 %v6247
        %6276 = vmatprep.subr.bf16.mxu0 0
        %6277 = vmatpush1.bf16.msra.mxu0 %v6246
        %6278 = vmatprep.subr.bf16.mxu0 0
        %6279 = vmatpush2.bf16.msra.mxu0 0
        %6280 = vmatprep.subr.bf16.mxu0 0
        %6281 = vmatpush2.bf16.msra.mxu0 0
        %6282 = vmatprep.subr.bf16.mxu0 0
        %6283 = vmatpush2.bf16.msra.mxu0 0
        %6284 = vmatprep.subr.bf16.mxu0 0
        %6285 = vmatpush2.bf16.msra.mxu0 0
        %6286 = vmatprep.subr.bf16.mxu0 0
        %6287 = vmatpush2.bf16.msra.mxu0 0
        %6288 = vmatprep.subr.bf16.mxu0 0
        %6289 = vmatpush2.bf16.msra.mxu0 0
        %6290 = vmatprep.subr.bf16.mxu0 0
        %6291 = vmatpush2.bf16.msra.mxu0 0
        %6292 = vmatprep.subr.bf16.mxu0 0
        %6293 = vmatpush2.bf16.msra.mxu0 0
        %6294 = vmatprep.mubr.bf16.mxu0 0
        %6295 = vmatmul.mubr.bf16.gmra.mxu0 %v6166
        %v6296 = vpop.f32.mrf.mxu0
        %v6297 = vadd.f32 0.0, %v6296
        %v6298 = vpop.f32.mrf.mxu0
        %v6299 = vpop.f32.mrf.mxu0
        %v6300 = vadd.f32 0.0, %v6299
        %v6301 = vpop.f32.mrf.mxu0
        %6302 = vmatprep.mubr.bf16.mxu0 0
        %6303 = vmatmul.mubr.bf16.gmra.mxu0 %v6167
        %v6304 = vpop.f32.mrf.mxu0
        %v6305 = vpop.f32.mrf.mxu0
        %v6306 = vpop.f32.mrf.mxu0
        %v6307 = vadd.f32 0.0, %v6306
        %v6308 = vpop.f32.mrf.mxu0
        %6309 = vmatprep.mubr.bf16.mxu0 0
        %6310 = vmatmul.mubr.bf16.gmra.mxu0 %v6168
        %v6311 = vpop.f32.mrf.mxu0
        %v6312 = vadd.f32 0.0, %v6311
        %v6313 = vpop.f32.mrf.mxu0
        %v6314 = vpop.f32.mrf.mxu0
        %v6315 = vpop.f32.mrf.mxu0
        %6316 = vmatprep.mubr.bf16.mxu0 0
        %6317 = vmatmul.mubr.bf16.gmra.mxu0 %v6169
        %v6318 = vpop.f32.mrf.mxu0
        %v6319 = vadd.f32 0.0, %v6318
        %v6320 = vpop.f32.mrf.mxu0
        %v6321 = vpop.f32.mrf.mxu0
        %v6322 = vadd.f32 0.0, %v6321
        %v6323 = vpop.f32.mrf.mxu0
        %6324 = vmatprep.mubr.bf16.mxu0 0
        %6325 = vmatmul.mubr.bf16.gmra.mxu0 %v6170
        %v6326 = vpop.f32.mrf.mxu0
        %v6327 = vpop.f32.mrf.mxu0
        %v6328 = vpop.f32.mrf.mxu0
        %v6329 = vadd.f32 0.0, %v6328
        %v6330 = vpop.f32.mrf.mxu0
        %6331 = vmatprep.mubr.bf16.mxu0 0
        %6332 = vmatmul.mubr.bf16.gmra.mxu0 %v6171
        %v6333 = vpop.f32.mrf.mxu0
        %v6334 = vadd.f32 0.0, %v6333
        %v6335 = vpop.f32.mrf.mxu0
        %v6336 = vpop.f32.mrf.mxu0
        %v6337 = vpop.f32.mrf.mxu0
        %6338 = vmatprep.mubr.bf16.mxu0 0
        %6339 = vmatmul.mubr.bf16.gmra.mxu0 %v6172
        %v6340 = vpop.f32.mrf.mxu0
        %v6341 = vadd.f32 0.0, %v6340
        %v6342 = vpop.f32.mrf.mxu0
        %v6343 = vpop.f32.mrf.mxu0
        %v6344 = vadd.f32 0.0, %v6343
        %v6345 = vpop.f32.mrf.mxu0
        %6346 = vmatprep.mubr.bf16.mxu0 0
        %6347 = vmatmul.mubr.bf16.gmra.mxu0 %v6173
        %v6348 = vpop.f32.mrf.mxu0
        %v6349 = vpop.f32.mrf.mxu0
        %v6350 = vpop.f32.mrf.mxu0
        %v6351 = vadd.f32 0.0, %v6350
        %v6352 = vpop.f32.mrf.mxu0
        %6353 = vmatprep.mubr.bf16.mxu0 0
        %6354 = vmatmul.mubr.bf16.gmra.mxu0 %v6174
        %v6355 = vpop.f32.mrf.mxu0
        %v6356 = vadd.f32 0.0, %v6355
        %v6357 = vpop.f32.mrf.mxu0
        %v6358 = vpop.f32.mrf.mxu0
        %v6359 = vpop.f32.mrf.mxu0
        %6360 = vmatprep.mubr.bf16.mxu0 0
        %6361 = vmatmul.mubr.bf16.gmra.mxu0 %v6175
        %v6362 = vpop.f32.mrf.mxu0
        %v6363 = vadd.f32 0.0, %v6362
        %v6364 = vpop.f32.mrf.mxu0
        %v6365 = vpop.f32.mrf.mxu0
        %v6366 = vadd.f32 0.0, %v6365
        %v6367 = vpop.f32.mrf.mxu0
        %6368 = vmatprep.mubr.bf16.mxu0 0
        %6369 = vmatmul.mubr.bf16.gmra.mxu0 %v6176
        %v6370 = vpop.f32.mrf.mxu0
        %v6371 = vpop.f32.mrf.mxu0
        %v6372 = vpop.f32.mrf.mxu0
        %v6373 = vadd.f32 0.0, %v6372
        %v6374 = vpop.f32.mrf.mxu0
        %6375 = vmatprep.mubr.bf16.mxu0 0
        %6376 = vmatmul.mubr.bf16.gmra.mxu0 %v6177
        %v6377 = vpop.f32.mrf.mxu0
        %v6378 = vadd.f32 0.0, %v6377
        %v6379 = vpop.f32.mrf.mxu0
        %v6380 = vpop.f32.mrf.mxu0
        %v6381 = vpop.f32.mrf.mxu0
        %6382 = vmatprep.mubr.bf16.mxu0 0
        %6383 = vmatmul.mubr.bf16.gmra.mxu0 %v6178
        %v6384 = vpop.f32.mrf.mxu0
        %v6385 = vadd.f32 0.0, %v6384
        %v6386 = vpop.f32.mrf.mxu0
        %v6387 = vpop.f32.mrf.mxu0
        %v6388 = vadd.f32 0.0, %v6387
        %v6389 = vpop.f32.mrf.mxu0
        %6390 = vmatprep.mubr.bf16.mxu0 0
        %6391 = vmatmul.mubr.bf16.gmra.mxu0 %v6179
        %v6392 = vpop.f32.mrf.mxu0
        %v6393 = vpop.f32.mrf.mxu0
        %v6394 = vpop.f32.mrf.mxu0
        %v6395 = vadd.f32 0.0, %v6394
        %v6396 = vpop.f32.mrf.mxu0
        %6397 = vmatprep.mubr.bf16.mxu0 0
        %6398 = vmatmul.mubr.bf16.gmra.mxu0 %v6180
        %v6399 = vpop.f32.mrf.mxu0
        %v6400 = vadd.f32 0.0, %v6399
        %v6401 = vpop.f32.mrf.mxu0
        %v6402 = vpop.f32.mrf.mxu0
        %v6403 = vpop.f32.mrf.mxu0
        %6404 = vmatprep.mubr.bf16.mxu0 0
        %6405 = vmatmul.mubr.bf16.gmra.mxu0 %v6181
        %v6406 = vpop.f32.mrf.mxu0
        %v6407 = vadd.f32 0.0, %v6406
        %v6408 = vpop.f32.mrf.mxu0
        %v6409 = vpop.f32.mrf.mxu0
        %v6410 = vadd.f32 0.0, %v6409
        %v6411 = vpop.f32.mrf.mxu0
        %6412 = vmatprep.mubr.bf16.mxu0 0
        %6413 = vmatmul.mubr.bf16.gmra.mxu0 %v6182
        %v6414 = vpop.f32.mrf.mxu0
        %v6415 = vpop.f32.mrf.mxu0
        %v6416 = vpop.f32.mrf.mxu0
        %v6417 = vadd.f32 0.0, %v6416
        %v6418 = vpop.f32.mrf.mxu0
        %6419 = vmatprep.mubr.bf16.mxu0 0
        %6420 = vmatmul.mubr.bf16.gmra.mxu0 %v6183
        %v6421 = vpop.f32.mrf.mxu0
        %v6422 = vadd.f32 0.0, %v6421
        %v6423 = vpop.f32.mrf.mxu0
        %v6424 = vpop.f32.mrf.mxu0
        %v6425 = vpop.f32.mrf.mxu0
        %6426 = vmatprep.mubr.bf16.mxu0 0
        %6427 = vmatmul.mubr.bf16.gmra.mxu0 %v6184
        %v6428 = vpop.f32.mrf.mxu0
        %v6429 = vadd.f32 0.0, %v6428
        %v6430 = vpop.f32.mrf.mxu0
        %v6431 = vpop.f32.mrf.mxu0
        %v6432 = vadd.f32 0.0, %v6431
        %v6433 = vpop.f32.mrf.mxu0
        %6434 = vmatprep.mubr.bf16.mxu0 0
        %6435 = vmatmul.mubr.bf16.gmra.mxu0 %v6185
        %v6436 = vpop.f32.mrf.mxu0
        %v6437 = vpop.f32.mrf.mxu0
        %v6438 = vpop.f32.mrf.mxu0
        %v6439 = vadd.f32 0.0, %v6438
        %v6440 = vpop.f32.mrf.mxu0
        %6441 = vmatprep.mubr.bf16.mxu0 0
        %6442 = vmatmul.mubr.bf16.gmra.mxu0 %v6186
        %v6443 = vpop.f32.mrf.mxu0
        %v6444 = vadd.f32 0.0, %v6443
        %v6445 = vpop.f32.mrf.mxu0
        %v6446 = vpop.f32.mrf.mxu0
        %v6447 = vpop.f32.mrf.mxu0
        %6448 = vmatprep.mubr.bf16.mxu0 0
        %6449 = vmatmul.mubr.bf16.gmra.mxu0 %v6187
        %v6450 = vpop.f32.mrf.mxu0
        %v6451 = vadd.f32 0.0, %v6450
        %v6452 = vpop.f32.mrf.mxu0
        %v6453 = vpop.f32.mrf.mxu0
        %v6454 = vadd.f32 0.0, %v6453
        %v6455 = vpop.f32.mrf.mxu0
        %6456 = vmatprep.mubr.bf16.mxu0 0
        %6457 = vmatmul.mubr.bf16.gmra.mxu0 %v6188
        %v6458 = vpop.f32.mrf.mxu0
        %v6459 = vpop.f32.mrf.mxu0
        %v6460 = vpop.f32.mrf.mxu0
        %v6461 = vadd.f32 0.0, %v6460
        %v6462 = vpop.f32.mrf.mxu0
        %6463 = vmatprep.mubr.bf16.mxu0 0
        %6464 = vmatmul.mubr.bf16.gmra.mxu0 %v6189
        %v6465 = vpop.f32.mrf.mxu0
        %v6466 = vadd.f32 0.0, %v6465
        %v6467 = vpop.f32.mrf.mxu0
        %v6468 = vpop.f32.mrf.mxu0
        %v6469 = vpop.f32.mrf.mxu0
        %6470 = vdwg.mxu0
        %v6471 = vadd.f32 %v5830, %v6297
        %v6472 = vadd.f32 %v5833, %v6300
        %v6473 = vadd.f32 %v5840, %v6307
        %v6474 = vadd.f32 %v5845, %v6312
        %v6475 = vadd.f32 %v5852, %v6319
        %v6476 = vadd.f32 %v5855, %v6322
        %v6477 = vadd.f32 %v5862, %v6329
        %v6478 = vadd.f32 %v5867, %v6334
        %v6479 = vadd.f32 %v5874, %v6341
        %v6480 = vadd.f32 %v5877, %v6344
        %v6481 = vadd.f32 %v5884, %v6351
        %v6482 = vadd.f32 %v5889, %v6356
        %v6483 = vadd.f32 %v5896, %v6363
        %v6484 = vadd.f32 %v5899, %v6366
        %v6485 = vadd.f32 %v5906, %v6373
        %v6486 = vadd.f32 %v5911, %v6378
        %v6487 = vadd.f32 %v5918, %v6385
        %v6488 = vadd.f32 %v5921, %v6388
        %v6489 = vadd.f32 %v5928, %v6395
        %v6490 = vadd.f32 %v5933, %v6400
        %v6491 = vadd.f32 %v5940, %v6407
        %v6492 = vadd.f32 %v5943, %v6410
        %v6493 = vadd.f32 %v5950, %v6417
        %v6494 = vadd.f32 %v5955, %v6422
        %v6495 = vadd.f32 %v5962, %v6429
        %v6496 = vadd.f32 %v5965, %v6432
        %v6497 = vadd.f32 %v5972, %v6439
        %v6498 = vadd.f32 %v5977, %v6444
        %v6499 = vadd.f32 %v5984, %v6451
        %v6500 = vadd.f32 %v5987, %v6454
        %v6501 = vadd.f32 %v5994, %v6461
        %v6502 = vadd.f32 %v5999, %v6466
        %s6503 = scalar_lea.vmem %s3, 64
        %v6504 = vld [vmem:[%s6503] sm:$0xf]
        %v6505 = vld [vmem:[%s6503 + $0x4] sm:$0xf]
        %v6506 = vld [vmem:[%s6503 + $0x8] sm:$0xf]
        %v6507 = vld [vmem:[%s6503 + $0xc] sm:$0xf]
        %v6508 = vld [vmem:[%s6503 + $0x10] sm:$0xf]
        %v6509 = vld [vmem:[%s6503 + $0x14] sm:$0xf]
        %v6510 = vld [vmem:[%s6503 + $0x18] sm:$0xf]
        %v6511 = vld [vmem:[%s6503 + $0x1c] sm:$0xf]
        %v6512 = vld [vmem:[%s6503 + $0x20] sm:$0xf]
        %v6513 = vld [vmem:[%s6503 + $0x24] sm:$0xf]
        %v6514 = vld [vmem:[%s6503 + $0x28] sm:$0xf]
        %v6515 = vld [vmem:[%s6503 + $0x2c] sm:$0xf]
        %v6516 = vld [vmem:[%s6503 + $0x30] sm:$0xf]
        %v6517 = vld [vmem:[%s6503 + $0x34] sm:$0xf]
        %v6518 = vld [vmem:[%s6503 + $0x38] sm:$0xf]
        %v6519 = vld [vmem:[%s6503 + $0x3c] sm:$0xf]
        %s6520 = scalar_lea.vmem %s3, 256
        %v6521 = vld [vmem:[%s6520] sm:$0xf]
        %v6522 = vld [vmem:[%s6520 + $0x4] sm:$0xf]
        %v6523 = vld [vmem:[%s6520 + $0x8] sm:$0xf]
        %v6524 = vld [vmem:[%s6520 + $0xc] sm:$0xf]
        %v6525 = vld [vmem:[%s6520 + $0x10] sm:$0xf]
        %v6526 = vld [vmem:[%s6520 + $0x14] sm:$0xf]
        %v6527 = vld [vmem:[%s6520 + $0x18] sm:$0xf]
        %v6528 = vld [vmem:[%s6520 + $0x1c] sm:$0xf]
        %v6529 = vld [vmem:[%s6520 + $0x20] sm:$0xf]
        %v6530 = vld [vmem:[%s6520 + $0x24] sm:$0xf]
        %v6531 = vld [vmem:[%s6520 + $0x28] sm:$0xf]
        %v6532 = vld [vmem:[%s6520 + $0x2c] sm:$0xf]
        %v6533 = vld [vmem:[%s6520 + $0x30] sm:$0xf]
        %v6534 = vld [vmem:[%s6520 + $0x34] sm:$0xf]
        %v6535 = vld [vmem:[%s6520 + $0x38] sm:$0xf]
        %v6536 = vld [vmem:[%s6520 + $0x3c] sm:$0xf]
        %v6553 = vunpack.c.l.b16 %v6521
        %v6554 = vunpack.c.l.b16 %v6522
        %v6555 = vunpack.c.l.b16 %v6523
        %v6556 = vunpack.c.l.b16 %v6524
        %v6557 = vunpack.c.l.b16 %v6525
        %v6558 = vunpack.c.l.b16 %v6526
        %v6559 = vunpack.c.l.b16 %v6527
        %v6560 = vunpack.c.l.b16 %v6528
        %v6561 = vunpack.c.l.b16 %v6529
        %v6562 = vunpack.c.l.b16 %v6530
        %v6563 = vunpack.c.l.b16 %v6531
        %v6564 = vunpack.c.l.b16 %v6532
        %v6565 = vunpack.c.l.b16 %v6533
        %v6566 = vunpack.c.l.b16 %v6534
        %v6567 = vunpack.c.l.b16 %v6535
        %v6568 = vunpack.c.l.b16 %v6536
        %v6569 = vpack.c.b16 %v6554, %v6553
        %v6570 = vpack.c.b16 %v6556, %v6555
        %v6571 = vpack.c.b16 %v6558, %v6557
        %v6572 = vpack.c.b16 %v6560, %v6559
        %v6573 = vpack.c.b16 %v6562, %v6561
        %v6574 = vpack.c.b16 %v6564, %v6563
        %v6575 = vpack.c.b16 %v6566, %v6565
        %v6576 = vpack.c.b16 %v6568, %v6567
        %6585 = vmatprep.subr.bf16.mxu0 0
        %6586 = vmatpush1.bf16.msra.mxu0 %v6576
        %6587 = vmatprep.subr.bf16.mxu0 0
        %6588 = vmatpush1.bf16.msra.mxu0 %v6575
        %6589 = vmatprep.subr.bf16.mxu0 0
        %6590 = vmatpush1.bf16.msra.mxu0 %v6574
        %6591 = vmatprep.subr.bf16.mxu0 0
        %6592 = vmatpush1.bf16.msra.mxu0 %v6573
        %6593 = vmatprep.subr.bf16.mxu0 0
        %6594 = vmatpush1.bf16.msra.mxu0 %v6572
        %6595 = vmatprep.subr.bf16.mxu0 0
        %6596 = vmatpush1.bf16.msra.mxu0 %v6571
        %6597 = vmatprep.subr.bf16.mxu0 0
        %6598 = vmatpush1.bf16.msra.mxu0 %v6570
        %6599 = vmatprep.subr.bf16.mxu0 0
        %6600 = vmatpush1.bf16.msra.mxu0 %v6569
        %6601 = vmatprep.subr.bf16.mxu0 0
        %6602 = vmatpush2.bf16.msra.mxu0 0
        %6603 = vmatprep.subr.bf16.mxu0 0
        %6604 = vmatpush2.bf16.msra.mxu0 0
        %6605 = vmatprep.subr.bf16.mxu0 0
        %6606 = vmatpush2.bf16.msra.mxu0 0
        %6607 = vmatprep.subr.bf16.mxu0 0
        %6608 = vmatpush2.bf16.msra.mxu0 0
        %6609 = vmatprep.subr.bf16.mxu0 0
        %6610 = vmatpush2.bf16.msra.mxu0 0
        %6611 = vmatprep.subr.bf16.mxu0 0
        %6612 = vmatpush2.bf16.msra.mxu0 0
        %6613 = vmatprep.subr.bf16.mxu0 0
        %6614 = vmatpush2.bf16.msra.mxu0 0
        %6615 = vmatprep.subr.bf16.mxu0 0
        %6616 = vmatpush2.bf16.msra.mxu0 0
        %6617 = vmatprep.mubr.bf16.mxu0 0
        %6618 = vmatmul.mubr.bf16.gmra.mxu0 %v5298
        %v6619 = vpop.f32.mrf.mxu0
        %v6620 = vadd.f32 0.0, %v6619
        %v6621 = vpop.f32.mrf.mxu0
        %v6622 = vpop.f32.mrf.mxu0
        %v6623 = vadd.f32 0.0, %v6622
        %v6624 = vpop.f32.mrf.mxu0
        %6625 = vmatprep.mubr.bf16.mxu0 0
        %6626 = vmatmul.mubr.bf16.gmra.mxu0 %v5299
        %v6627 = vpop.f32.mrf.mxu0
        %v6628 = vadd.f32 0.0, %v6627
        %v6629 = vpop.f32.mrf.mxu0
        %v6630 = vpop.f32.mrf.mxu0
        %v6631 = vadd.f32 0.0, %v6630
        %v6632 = vpop.f32.mrf.mxu0
        %6633 = vmatprep.mubr.bf16.mxu0 0
        %6634 = vmatmul.mubr.bf16.gmra.mxu0 %v5300
        %v6635 = vpop.f32.mrf.mxu0
        %v6636 = vadd.f32 0.0, %v6635
        %v6637 = vpop.f32.mrf.mxu0
        %v6638 = vpop.f32.mrf.mxu0
        %v6639 = vadd.f32 0.0, %v6638
        %v6640 = vpop.f32.mrf.mxu0
        %6641 = vmatprep.mubr.bf16.mxu0 0
        %6642 = vmatmul.mubr.bf16.gmra.mxu0 %v5301
        %v6643 = vpop.f32.mrf.mxu0
        %v6644 = vadd.f32 0.0, %v6643
        %v6645 = vpop.f32.mrf.mxu0
        %v6646 = vpop.f32.mrf.mxu0
        %v6647 = vadd.f32 0.0, %v6646
        %v6648 = vpop.f32.mrf.mxu0
        %6649 = vmatprep.mubr.bf16.mxu0 0
        %6650 = vmatmul.mubr.bf16.gmra.mxu0 %v5302
        %v6651 = vpop.f32.mrf.mxu0
        %v6652 = vadd.f32 0.0, %v6651
        %v6653 = vpop.f32.mrf.mxu0
        %v6654 = vpop.f32.mrf.mxu0
        %v6655 = vadd.f32 0.0, %v6654
        %v6656 = vpop.f32.mrf.mxu0
        %6657 = vmatprep.mubr.bf16.mxu0 0
        %6658 = vmatmul.mubr.bf16.gmra.mxu0 %v5303
        %v6659 = vpop.f32.mrf.mxu0
        %v6660 = vadd.f32 0.0, %v6659
        %v6661 = vpop.f32.mrf.mxu0
        %v6662 = vpop.f32.mrf.mxu0
        %v6663 = vadd.f32 0.0, %v6662
        %v6664 = vpop.f32.mrf.mxu0
        %6665 = vmatprep.mubr.bf16.mxu0 0
        %6666 = vmatmul.mubr.bf16.gmra.mxu0 %v5304
        %v6667 = vpop.f32.mrf.mxu0
        %v6668 = vadd.f32 0.0, %v6667
        %v6669 = vpop.f32.mrf.mxu0
        %v6670 = vpop.f32.mrf.mxu0
        %v6671 = vadd.f32 0.0, %v6670
        %v6672 = vpop.f32.mrf.mxu0
        %6673 = vmatprep.mubr.bf16.mxu0 0
        %6674 = vmatmul.mubr.bf16.gmra.mxu0 %v5305
        %v6675 = vpop.f32.mrf.mxu0
        %v6676 = vadd.f32 0.0, %v6675
        %v6677 = vpop.f32.mrf.mxu0
        %v6678 = vpop.f32.mrf.mxu0
        %v6679 = vadd.f32 0.0, %v6678
        %v6680 = vpop.f32.mrf.mxu0
        %6681 = vmatprep.mubr.bf16.mxu0 0
        %6682 = vmatmul.mubr.bf16.gmra.mxu0 %v5306
        %v6683 = vpop.f32.mrf.mxu0
        %v6684 = vadd.f32 0.0, %v6683
        %v6685 = vpop.f32.mrf.mxu0
        %v6686 = vpop.f32.mrf.mxu0
        %v6687 = vadd.f32 0.0, %v6686
        %v6688 = vpop.f32.mrf.mxu0
        %6689 = vmatprep.mubr.bf16.mxu0 0
        %6690 = vmatmul.mubr.bf16.gmra.mxu0 %v5307
        %v6691 = vpop.f32.mrf.mxu0
        %v6692 = vadd.f32 0.0, %v6691
        %v6693 = vpop.f32.mrf.mxu0
        %v6694 = vpop.f32.mrf.mxu0
        %v6695 = vadd.f32 0.0, %v6694
        %v6696 = vpop.f32.mrf.mxu0
        %6697 = vmatprep.mubr.bf16.mxu0 0
        %6698 = vmatmul.mubr.bf16.gmra.mxu0 %v5308
        %v6699 = vpop.f32.mrf.mxu0
        %v6700 = vadd.f32 0.0, %v6699
        %v6701 = vpop.f32.mrf.mxu0
        %v6702 = vpop.f32.mrf.mxu0
        %v6703 = vadd.f32 0.0, %v6702
        %v6704 = vpop.f32.mrf.mxu0
        %6705 = vmatprep.mubr.bf16.mxu0 0
        %6706 = vmatmul.mubr.bf16.gmra.mxu0 %v5309
        %v6707 = vpop.f32.mrf.mxu0
        %v6708 = vadd.f32 0.0, %v6707
        %v6709 = vpop.f32.mrf.mxu0
        %v6710 = vpop.f32.mrf.mxu0
        %v6711 = vadd.f32 0.0, %v6710
        %v6712 = vpop.f32.mrf.mxu0
        %6713 = vmatprep.mubr.bf16.mxu0 0
        %6714 = vmatmul.mubr.bf16.gmra.mxu0 %v5310
        %v6715 = vpop.f32.mrf.mxu0
        %v6716 = vadd.f32 0.0, %v6715
        %v6717 = vpop.f32.mrf.mxu0
        %v6718 = vpop.f32.mrf.mxu0
        %v6719 = vadd.f32 0.0, %v6718
        %v6720 = vpop.f32.mrf.mxu0
        %6721 = vmatprep.mubr.bf16.mxu0 0
        %6722 = vmatmul.mubr.bf16.gmra.mxu0 %v5311
        %v6723 = vpop.f32.mrf.mxu0
        %v6724 = vadd.f32 0.0, %v6723
        %v6725 = vpop.f32.mrf.mxu0
        %v6726 = vpop.f32.mrf.mxu0
        %v6727 = vadd.f32 0.0, %v6726
        %v6728 = vpop.f32.mrf.mxu0
        %6729 = vmatprep.mubr.bf16.mxu0 0
        %6730 = vmatmul.mubr.bf16.gmra.mxu0 %v5312
        %v6731 = vpop.f32.mrf.mxu0
        %v6732 = vadd.f32 0.0, %v6731
        %v6733 = vpop.f32.mrf.mxu0
        %v6734 = vpop.f32.mrf.mxu0
        %v6735 = vadd.f32 0.0, %v6734
        %v6736 = vpop.f32.mrf.mxu0
        %6737 = vmatprep.mubr.bf16.mxu0 0
        %6738 = vmatmul.mubr.bf16.gmra.mxu0 %v5313
        %v6739 = vpop.f32.mrf.mxu0
        %v6740 = vadd.f32 0.0, %v6739
        %v6741 = vpop.f32.mrf.mxu0
        %v6742 = vpop.f32.mrf.mxu0
        %v6743 = vadd.f32 0.0, %v6742
        %v6744 = vpop.f32.mrf.mxu0
        %6745 = vmatprep.mubr.bf16.mxu0 0
        %6746 = vmatmul.mubr.bf16.gmra.mxu0 %v5314
        %v6747 = vpop.f32.mrf.mxu0
        %v6748 = vadd.f32 0.0, %v6747
        %v6749 = vpop.f32.mrf.mxu0
        %v6750 = vpop.f32.mrf.mxu0
        %v6751 = vadd.f32 0.0, %v6750
        %v6752 = vpop.f32.mrf.mxu0
        %6753 = vmatprep.mubr.bf16.mxu0 0
        %6754 = vmatmul.mubr.bf16.gmra.mxu0 %v5315
        %v6755 = vpop.f32.mrf.mxu0
        %v6756 = vadd.f32 0.0, %v6755
        %v6757 = vpop.f32.mrf.mxu0
        %v6758 = vpop.f32.mrf.mxu0
        %v6759 = vadd.f32 0.0, %v6758
        %v6760 = vpop.f32.mrf.mxu0
        %6761 = vmatprep.mubr.bf16.mxu0 0
        %6762 = vmatmul.mubr.bf16.gmra.mxu0 %v5316
        %v6763 = vpop.f32.mrf.mxu0
        %v6764 = vadd.f32 0.0, %v6763
        %v6765 = vpop.f32.mrf.mxu0
        %v6766 = vpop.f32.mrf.mxu0
        %v6767 = vadd.f32 0.0, %v6766
        %v6768 = vpop.f32.mrf.mxu0
        %6769 = vmatprep.mubr.bf16.mxu0 0
        %6770 = vmatmul.mubr.bf16.gmra.mxu0 %v5317
        %v6771 = vpop.f32.mrf.mxu0
        %v6772 = vadd.f32 0.0, %v6771
        %v6773 = vpop.f32.mrf.mxu0
        %v6774 = vpop.f32.mrf.mxu0
        %v6775 = vadd.f32 0.0, %v6774
        %v6776 = vpop.f32.mrf.mxu0
        %6777 = vmatprep.mubr.bf16.mxu0 0
        %6778 = vmatmul.mubr.bf16.gmra.mxu0 %v5318
        %v6779 = vpop.f32.mrf.mxu0
        %v6780 = vadd.f32 0.0, %v6779
        %v6781 = vpop.f32.mrf.mxu0
        %v6782 = vpop.f32.mrf.mxu0
        %v6783 = vadd.f32 0.0, %v6782
        %v6784 = vpop.f32.mrf.mxu0
        %6785 = vmatprep.mubr.bf16.mxu0 0
        %6786 = vmatmul.mubr.bf16.gmra.mxu0 %v5319
        %v6787 = vpop.f32.mrf.mxu0
        %v6788 = vadd.f32 0.0, %v6787
        %v6789 = vpop.f32.mrf.mxu0
        %v6790 = vpop.f32.mrf.mxu0
        %v6791 = vadd.f32 0.0, %v6790
        %v6792 = vpop.f32.mrf.mxu0
        %6793 = vmatprep.mubr.bf16.mxu0 0
        %6794 = vmatmul.mubr.bf16.gmra.mxu0 %v5320
        %v6795 = vpop.f32.mrf.mxu0
        %v6796 = vadd.f32 0.0, %v6795
        %v6797 = vpop.f32.mrf.mxu0
        %v6798 = vpop.f32.mrf.mxu0
        %v6799 = vadd.f32 0.0, %v6798
        %v6800 = vpop.f32.mrf.mxu0
        %6801 = vmatprep.mubr.bf16.mxu0 0
        %6802 = vmatmul.mubr.bf16.gmra.mxu0 %v5321
        %v6803 = vpop.f32.mrf.mxu0
        %v6804 = vadd.f32 0.0, %v6803
        %v6805 = vpop.f32.mrf.mxu0
        %v6806 = vpop.f32.mrf.mxu0
        %v6807 = vadd.f32 0.0, %v6806
        %v6808 = vpop.f32.mrf.mxu0
        %6809 = vdwg.mxu0
        %v6826 = vunpack.c.l.b16 %v6504
        %v6827 = vunpack.c.l.b16 %v6505
        %v6828 = vunpack.c.l.b16 %v6506
        %v6829 = vunpack.c.l.b16 %v6507
        %v6830 = vunpack.c.l.b16 %v6508
        %v6831 = vunpack.c.l.b16 %v6509
        %v6832 = vunpack.c.l.b16 %v6510
        %v6833 = vunpack.c.l.b16 %v6511
        %v6834 = vunpack.c.l.b16 %v6512
        %v6835 = vunpack.c.l.b16 %v6513
        %v6836 = vunpack.c.l.b16 %v6514
        %v6837 = vunpack.c.l.b16 %v6515
        %v6838 = vunpack.c.l.b16 %v6516
        %v6839 = vunpack.c.l.b16 %v6517
        %v6840 = vunpack.c.l.b16 %v6518
        %v6841 = vunpack.c.l.b16 %v6519
        %v6842 = vpack.c.b16 %v6827, %v6826
        %v6843 = vpack.c.b16 %v6829, %v6828
        %v6844 = vpack.c.b16 %v6831, %v6830
        %v6845 = vpack.c.b16 %v6833, %v6832
        %v6846 = vpack.c.b16 %v6835, %v6834
        %v6847 = vpack.c.b16 %v6837, %v6836
        %v6848 = vpack.c.b16 %v6839, %v6838
        %v6849 = vpack.c.b16 %v6841, %v6840
        %6858 = vmatprep.subr.bf16.mxu0 0
        %6859 = vmatpush1.bf16.msra.mxu0 %v6849
        %6860 = vmatprep.subr.bf16.mxu0 0
        %6861 = vmatpush1.bf16.msra.mxu0 %v6848
        %6862 = vmatprep.subr.bf16.mxu0 0
        %6863 = vmatpush1.bf16.msra.mxu0 %v6847
        %6864 = vmatprep.subr.bf16.mxu0 0
        %6865 = vmatpush1.bf16.msra.mxu0 %v6846
        %6866 = vmatprep.subr.bf16.mxu0 0
        %6867 = vmatpush1.bf16.msra.mxu0 %v6845
        %6868 = vmatprep.subr.bf16.mxu0 0
        %6869 = vmatpush1.bf16.msra.mxu0 %v6844
        %6870 = vmatprep.subr.bf16.mxu0 0
        %6871 = vmatpush1.bf16.msra.mxu0 %v6843
        %6872 = vmatprep.subr.bf16.mxu0 0
        %6873 = vmatpush1.bf16.msra.mxu0 %v6842
        %6874 = vmatprep.subr.bf16.mxu0 0
        %6875 = vmatpush2.bf16.msra.mxu0 0
        %6876 = vmatprep.subr.bf16.mxu0 0
        %6877 = vmatpush2.bf16.msra.mxu0 0
        %6878 = vmatprep.subr.bf16.mxu0 0
        %6879 = vmatpush2.bf16.msra.mxu0 0
        %6880 = vmatprep.subr.bf16.mxu0 0
        %6881 = vmatpush2.bf16.msra.mxu0 0
        %6882 = vmatprep.subr.bf16.mxu0 0
        %6883 = vmatpush2.bf16.msra.mxu0 0
        %6884 = vmatprep.subr.bf16.mxu0 0
        %6885 = vmatpush2.bf16.msra.mxu0 0
        %6886 = vmatprep.subr.bf16.mxu0 0
        %6887 = vmatpush2.bf16.msra.mxu0 0
        %6888 = vmatprep.subr.bf16.mxu0 0
        %6889 = vmatpush2.bf16.msra.mxu0 0
        %6890 = vmatprep.mubr.bf16.mxu0 0
        %6891 = vmatmul.mubr.bf16.gmra.mxu0 %v5699
        %v6892 = vpop.f32.mrf.mxu0
        %v6893 = vadd.f32 %v6620, %v6892
        %v6894 = vpop.f32.mrf.mxu0
        %v6895 = vpop.f32.mrf.mxu0
        %v6896 = vadd.f32 %v6623, %v6895
        %v6897 = vpop.f32.mrf.mxu0
        %6898 = vmatprep.mubr.bf16.mxu0 0
        %6899 = vmatmul.mubr.bf16.gmra.mxu0 %v5700
        %v6900 = vpop.f32.mrf.mxu0
        %v6901 = vadd.f32 %v6628, %v6900
        %v6902 = vpop.f32.mrf.mxu0
        %v6903 = vpop.f32.mrf.mxu0
        %v6904 = vadd.f32 %v6631, %v6903
        %v6905 = vpop.f32.mrf.mxu0
        %6906 = vmatprep.mubr.bf16.mxu0 0
        %6907 = vmatmul.mubr.bf16.gmra.mxu0 %v5701
        %v6908 = vpop.f32.mrf.mxu0
        %v6909 = vadd.f32 %v6636, %v6908
        %v6910 = vpop.f32.mrf.mxu0
        %v6911 = vpop.f32.mrf.mxu0
        %v6912 = vadd.f32 %v6639, %v6911
        %v6913 = vpop.f32.mrf.mxu0
        %6914 = vmatprep.mubr.bf16.mxu0 0
        %6915 = vmatmul.mubr.bf16.gmra.mxu0 %v5702
        %v6916 = vpop.f32.mrf.mxu0
        %v6917 = vadd.f32 %v6644, %v6916
        %v6918 = vpop.f32.mrf.mxu0
        %v6919 = vpop.f32.mrf.mxu0
        %v6920 = vadd.f32 %v6647, %v6919
        %v6921 = vpop.f32.mrf.mxu0
        %6922 = vmatprep.mubr.bf16.mxu0 0
        %6923 = vmatmul.mubr.bf16.gmra.mxu0 %v5703
        %v6924 = vpop.f32.mrf.mxu0
        %v6925 = vadd.f32 %v6652, %v6924
        %v6926 = vpop.f32.mrf.mxu0
        %v6927 = vpop.f32.mrf.mxu0
        %v6928 = vadd.f32 %v6655, %v6927
        %v6929 = vpop.f32.mrf.mxu0
        %6930 = vmatprep.mubr.bf16.mxu0 0
        %6931 = vmatmul.mubr.bf16.gmra.mxu0 %v5704
        %v6932 = vpop.f32.mrf.mxu0
        %v6933 = vadd.f32 %v6660, %v6932
        %v6934 = vpop.f32.mrf.mxu0
        %v6935 = vpop.f32.mrf.mxu0
        %v6936 = vadd.f32 %v6663, %v6935
        %v6937 = vpop.f32.mrf.mxu0
        %6938 = vmatprep.mubr.bf16.mxu0 0
        %6939 = vmatmul.mubr.bf16.gmra.mxu0 %v5705
        %v6940 = vpop.f32.mrf.mxu0
        %v6941 = vadd.f32 %v6668, %v6940
        %v6942 = vpop.f32.mrf.mxu0
        %v6943 = vpop.f32.mrf.mxu0
        %v6944 = vadd.f32 %v6671, %v6943
        %v6945 = vpop.f32.mrf.mxu0
        %6946 = vmatprep.mubr.bf16.mxu0 0
        %6947 = vmatmul.mubr.bf16.gmra.mxu0 %v5706
        %v6948 = vpop.f32.mrf.mxu0
        %v6949 = vadd.f32 %v6676, %v6948
        %v6950 = vpop.f32.mrf.mxu0
        %v6951 = vpop.f32.mrf.mxu0
        %v6952 = vadd.f32 %v6679, %v6951
        %v6953 = vpop.f32.mrf.mxu0
        %6954 = vmatprep.mubr.bf16.mxu0 0
        %6955 = vmatmul.mubr.bf16.gmra.mxu0 %v5707
        %v6956 = vpop.f32.mrf.mxu0
        %v6957 = vadd.f32 %v6684, %v6956
        %v6958 = vpop.f32.mrf.mxu0
        %v6959 = vpop.f32.mrf.mxu0
        %v6960 = vadd.f32 %v6687, %v6959
        %v6961 = vpop.f32.mrf.mxu0
        %6962 = vmatprep.mubr.bf16.mxu0 0
        %6963 = vmatmul.mubr.bf16.gmra.mxu0 %v5708
        %v6964 = vpop.f32.mrf.mxu0
        %v6965 = vadd.f32 %v6692, %v6964
        %v6966 = vpop.f32.mrf.mxu0
        %v6967 = vpop.f32.mrf.mxu0
        %v6968 = vadd.f32 %v6695, %v6967
        %v6969 = vpop.f32.mrf.mxu0
        %6970 = vmatprep.mubr.bf16.mxu0 0
        %6971 = vmatmul.mubr.bf16.gmra.mxu0 %v5709
        %v6972 = vpop.f32.mrf.mxu0
        %v6973 = vadd.f32 %v6700, %v6972
        %v6974 = vpop.f32.mrf.mxu0
        %v6975 = vpop.f32.mrf.mxu0
        %v6976 = vadd.f32 %v6703, %v6975
        %v6977 = vpop.f32.mrf.mxu0
        %6978 = vmatprep.mubr.bf16.mxu0 0
        %6979 = vmatmul.mubr.bf16.gmra.mxu0 %v5710
        %v6980 = vpop.f32.mrf.mxu0
        %v6981 = vadd.f32 %v6708, %v6980
        %v6982 = vpop.f32.mrf.mxu0
        %v6983 = vpop.f32.mrf.mxu0
        %v6984 = vadd.f32 %v6711, %v6983
        %v6985 = vpop.f32.mrf.mxu0
        %6986 = vmatprep.mubr.bf16.mxu0 0
        %6987 = vmatmul.mubr.bf16.gmra.mxu0 %v5711
        %v6988 = vpop.f32.mrf.mxu0
        %v6989 = vadd.f32 %v6716, %v6988
        %v6990 = vpop.f32.mrf.mxu0
        %v6991 = vpop.f32.mrf.mxu0
        %v6992 = vadd.f32 %v6719, %v6991
        %v6993 = vpop.f32.mrf.mxu0
        %6994 = vmatprep.mubr.bf16.mxu0 0
        %6995 = vmatmul.mubr.bf16.gmra.mxu0 %v5712
        %v6996 = vpop.f32.mrf.mxu0
        %v6997 = vadd.f32 %v6724, %v6996
        %v6998 = vpop.f32.mrf.mxu0
        %v6999 = vpop.f32.mrf.mxu0
        %v7000 = vadd.f32 %v6727, %v6999
        %v7001 = vpop.f32.mrf.mxu0
        %7002 = vmatprep.mubr.bf16.mxu0 0
        %7003 = vmatmul.mubr.bf16.gmra.mxu0 %v5713
        %v7004 = vpop.f32.mrf.mxu0
        %v7005 = vadd.f32 %v6732, %v7004
        %v7006 = vpop.f32.mrf.mxu0
        %v7007 = vpop.f32.mrf.mxu0
        %v7008 = vadd.f32 %v6735, %v7007
        %v7009 = vpop.f32.mrf.mxu0
        %7010 = vmatprep.mubr.bf16.mxu0 0
        %7011 = vmatmul.mubr.bf16.gmra.mxu0 %v5714
        %v7012 = vpop.f32.mrf.mxu0
        %v7013 = vadd.f32 %v6740, %v7012
        %v7014 = vpop.f32.mrf.mxu0
        %v7015 = vpop.f32.mrf.mxu0
        %v7016 = vadd.f32 %v6743, %v7015
        %v7017 = vpop.f32.mrf.mxu0
        %7018 = vmatprep.mubr.bf16.mxu0 0
        %7019 = vmatmul.mubr.bf16.gmra.mxu0 %v5715
        %v7020 = vpop.f32.mrf.mxu0
        %v7021 = vadd.f32 %v6748, %v7020
        %v7022 = vpop.f32.mrf.mxu0
        %v7023 = vpop.f32.mrf.mxu0
        %v7024 = vadd.f32 %v6751, %v7023
        %v7025 = vpop.f32.mrf.mxu0
        %7026 = vmatprep.mubr.bf16.mxu0 0
        %7027 = vmatmul.mubr.bf16.gmra.mxu0 %v5716
        %v7028 = vpop.f32.mrf.mxu0
        %v7029 = vadd.f32 %v6756, %v7028
        %v7030 = vpop.f32.mrf.mxu0
        %v7031 = vpop.f32.mrf.mxu0
        %v7032 = vadd.f32 %v6759, %v7031
        %v7033 = vpop.f32.mrf.mxu0
        %7034 = vmatprep.mubr.bf16.mxu0 0
        %7035 = vmatmul.mubr.bf16.gmra.mxu0 %v5717
        %v7036 = vpop.f32.mrf.mxu0
        %v7037 = vadd.f32 %v6764, %v7036
        %v7038 = vpop.f32.mrf.mxu0
        %v7039 = vpop.f32.mrf.mxu0
        %v7040 = vadd.f32 %v6767, %v7039
        %v7041 = vpop.f32.mrf.mxu0
        %7042 = vmatprep.mubr.bf16.mxu0 0
        %7043 = vmatmul.mubr.bf16.gmra.mxu0 %v5718
        %v7044 = vpop.f32.mrf.mxu0
        %v7045 = vadd.f32 %v6772, %v7044
        %v7046 = vpop.f32.mrf.mxu0
        %v7047 = vpop.f32.mrf.mxu0
        %v7048 = vadd.f32 %v6775, %v7047
        %v7049 = vpop.f32.mrf.mxu0
        %7050 = vmatprep.mubr.bf16.mxu0 0
        %7051 = vmatmul.mubr.bf16.gmra.mxu0 %v5719
        %v7052 = vpop.f32.mrf.mxu0
        %v7053 = vadd.f32 %v6780, %v7052
        %v7054 = vpop.f32.mrf.mxu0
        %v7055 = vpop.f32.mrf.mxu0
        %v7056 = vadd.f32 %v6783, %v7055
        %v7057 = vpop.f32.mrf.mxu0
        %7058 = vmatprep.mubr.bf16.mxu0 0
        %7059 = vmatmul.mubr.bf16.gmra.mxu0 %v5720
        %v7060 = vpop.f32.mrf.mxu0
        %v7061 = vadd.f32 %v6788, %v7060
        %v7062 = vpop.f32.mrf.mxu0
        %v7063 = vpop.f32.mrf.mxu0
        %v7064 = vadd.f32 %v6791, %v7063
        %v7065 = vpop.f32.mrf.mxu0
        %7066 = vmatprep.mubr.bf16.mxu0 0
        %7067 = vmatmul.mubr.bf16.gmra.mxu0 %v5721
        %v7068 = vpop.f32.mrf.mxu0
        %v7069 = vadd.f32 %v6796, %v7068
        %v7070 = vpop.f32.mrf.mxu0
        %v7071 = vpop.f32.mrf.mxu0
        %v7072 = vadd.f32 %v6799, %v7071
        %v7073 = vpop.f32.mrf.mxu0
        %7074 = vmatprep.mubr.bf16.mxu0 0
        %7075 = vmatmul.mubr.bf16.gmra.mxu0 %v5722
        %v7076 = vpop.f32.mrf.mxu0
        %v7077 = vadd.f32 %v6804, %v7076
        %v7078 = vpop.f32.mrf.mxu0
        %v7079 = vpop.f32.mrf.mxu0
        %v7080 = vadd.f32 %v6807, %v7079
        %v7081 = vpop.f32.mrf.mxu0
        %7082 = vdwg.mxu0
        %s7083 = scalar_lea.vmem %s3, 448
        %v7084 = vld [vmem:[%s7083] sm:$0xf]
        %v7085 = vld [vmem:[%s7083 + $0x4] sm:$0xf]
        %v7086 = vld [vmem:[%s7083 + $0x8] sm:$0xf]
        %v7087 = vld [vmem:[%s7083 + $0xc] sm:$0xf]
        %v7088 = vld [vmem:[%s7083 + $0x10] sm:$0xf]
        %v7089 = vld [vmem:[%s7083 + $0x14] sm:$0xf]
        %v7090 = vld [vmem:[%s7083 + $0x18] sm:$0xf]
        %v7091 = vld [vmem:[%s7083 + $0x1c] sm:$0xf]
        %v7092 = vld [vmem:[%s7083 + $0x20] sm:$0xf]
        %v7093 = vld [vmem:[%s7083 + $0x24] sm:$0xf]
        %v7094 = vld [vmem:[%s7083 + $0x28] sm:$0xf]
        %v7095 = vld [vmem:[%s7083 + $0x2c] sm:$0xf]
        %v7096 = vld [vmem:[%s7083 + $0x30] sm:$0xf]
        %v7097 = vld [vmem:[%s7083 + $0x34] sm:$0xf]
        %v7098 = vld [vmem:[%s7083 + $0x38] sm:$0xf]
        %v7099 = vld [vmem:[%s7083 + $0x3c] sm:$0xf]
        %v7116 = vunpack.c.l.b16 %v7084
        %v7117 = vunpack.c.l.b16 %v7085
        %v7118 = vunpack.c.l.b16 %v7086
        %v7119 = vunpack.c.l.b16 %v7087
        %v7120 = vunpack.c.l.b16 %v7088
        %v7121 = vunpack.c.l.b16 %v7089
        %v7122 = vunpack.c.l.b16 %v7090
        %v7123 = vunpack.c.l.b16 %v7091
        %v7124 = vunpack.c.l.b16 %v7092
        %v7125 = vunpack.c.l.b16 %v7093
        %v7126 = vunpack.c.l.b16 %v7094
        %v7127 = vunpack.c.l.b16 %v7095
        %v7128 = vunpack.c.l.b16 %v7096
        %v7129 = vunpack.c.l.b16 %v7097
        %v7130 = vunpack.c.l.b16 %v7098
        %v7131 = vunpack.c.l.b16 %v7099
        %v7132 = vpack.c.b16 %v7117, %v7116
        %v7133 = vpack.c.b16 %v7119, %v7118
        %v7134 = vpack.c.b16 %v7121, %v7120
        %v7135 = vpack.c.b16 %v7123, %v7122
        %v7136 = vpack.c.b16 %v7125, %v7124
        %v7137 = vpack.c.b16 %v7127, %v7126
        %v7138 = vpack.c.b16 %v7129, %v7128
        %v7139 = vpack.c.b16 %v7131, %v7130
        %7148 = vmatprep.subr.bf16.mxu0 0
        %7149 = vmatpush1.bf16.msra.mxu0 %v7139
        %7150 = vmatprep.subr.bf16.mxu0 0
        %7151 = vmatpush1.bf16.msra.mxu0 %v7138
        %7152 = vmatprep.subr.bf16.mxu0 0
        %7153 = vmatpush1.bf16.msra.mxu0 %v7137
        %7154 = vmatprep.subr.bf16.mxu0 0
        %7155 = vmatpush1.bf16.msra.mxu0 %v7136
        %7156 = vmatprep.subr.bf16.mxu0 0
        %7157 = vmatpush1.bf16.msra.mxu0 %v7135
        %7158 = vmatprep.subr.bf16.mxu0 0
        %7159 = vmatpush1.bf16.msra.mxu0 %v7134
        %7160 = vmatprep.subr.bf16.mxu0 0
        %7161 = vmatpush1.bf16.msra.mxu0 %v7133
        %7162 = vmatprep.subr.bf16.mxu0 0
        %7163 = vmatpush1.bf16.msra.mxu0 %v7132
        %7164 = vmatprep.subr.bf16.mxu0 0
        %7165 = vmatpush2.bf16.msra.mxu0 0
        %7166 = vmatprep.subr.bf16.mxu0 0
        %7167 = vmatpush2.bf16.msra.mxu0 0
        %7168 = vmatprep.subr.bf16.mxu0 0
        %7169 = vmatpush2.bf16.msra.mxu0 0
        %7170 = vmatprep.subr.bf16.mxu0 0
        %7171 = vmatpush2.bf16.msra.mxu0 0
        %7172 = vmatprep.subr.bf16.mxu0 0
        %7173 = vmatpush2.bf16.msra.mxu0 0
        %7174 = vmatprep.subr.bf16.mxu0 0
        %7175 = vmatpush2.bf16.msra.mxu0 0
        %7176 = vmatprep.subr.bf16.mxu0 0
        %7177 = vmatpush2.bf16.msra.mxu0 0
        %7178 = vmatprep.subr.bf16.mxu0 0
        %7179 = vmatpush2.bf16.msra.mxu0 0
        %7180 = vmatprep.mubr.bf16.mxu0 0
        %7181 = vmatmul.mubr.bf16.gmra.mxu0 %v6166
        %v7182 = vpop.f32.mrf.mxu0
        %v7183 = vadd.f32 0.0, %v7182
        %v7184 = vpop.f32.mrf.mxu0
        %v7185 = vpop.f32.mrf.mxu0
        %v7186 = vadd.f32 0.0, %v7185
        %v7187 = vpop.f32.mrf.mxu0
        %7188 = vmatprep.mubr.bf16.mxu0 0
        %7189 = vmatmul.mubr.bf16.gmra.mxu0 %v6167
        %v7190 = vpop.f32.mrf.mxu0
        %v7191 = vadd.f32 0.0, %v7190
        %v7192 = vpop.f32.mrf.mxu0
        %v7193 = vpop.f32.mrf.mxu0
        %v7194 = vadd.f32 0.0, %v7193
        %v7195 = vpop.f32.mrf.mxu0
        %7196 = vmatprep.mubr.bf16.mxu0 0
        %7197 = vmatmul.mubr.bf16.gmra.mxu0 %v6168
        %v7198 = vpop.f32.mrf.mxu0
        %v7199 = vadd.f32 0.0, %v7198
        %v7200 = vpop.f32.mrf.mxu0
        %v7201 = vpop.f32.mrf.mxu0
        %v7202 = vadd.f32 0.0, %v7201
        %v7203 = vpop.f32.mrf.mxu0
        %7204 = vmatprep.mubr.bf16.mxu0 0
        %7205 = vmatmul.mubr.bf16.gmra.mxu0 %v6169
        %v7206 = vpop.f32.mrf.mxu0
        %v7207 = vadd.f32 0.0, %v7206
        %v7208 = vpop.f32.mrf.mxu0
        %v7209 = vpop.f32.mrf.mxu0
        %v7210 = vadd.f32 0.0, %v7209
        %v7211 = vpop.f32.mrf.mxu0
        %7212 = vmatprep.mubr.bf16.mxu0 0
        %7213 = vmatmul.mubr.bf16.gmra.mxu0 %v6170
        %v7214 = vpop.f32.mrf.mxu0
        %v7215 = vadd.f32 0.0, %v7214
        %v7216 = vpop.f32.mrf.mxu0
        %v7217 = vpop.f32.mrf.mxu0
        %v7218 = vadd.f32 0.0, %v7217
        %v7219 = vpop.f32.mrf.mxu0
        %7220 = vmatprep.mubr.bf16.mxu0 0
        %7221 = vmatmul.mubr.bf16.gmra.mxu0 %v6171
        %v7222 = vpop.f32.mrf.mxu0
        %v7223 = vadd.f32 0.0, %v7222
        %v7224 = vpop.f32.mrf.mxu0
        %v7225 = vpop.f32.mrf.mxu0
        %v7226 = vadd.f32 0.0, %v7225
        %v7227 = vpop.f32.mrf.mxu0
        %7228 = vmatprep.mubr.bf16.mxu0 0
        %7229 = vmatmul.mubr.bf16.gmra.mxu0 %v6172
        %v7230 = vpop.f32.mrf.mxu0
        %v7231 = vadd.f32 0.0, %v7230
        %v7232 = vpop.f32.mrf.mxu0
        %v7233 = vpop.f32.mrf.mxu0
        %v7234 = vadd.f32 0.0, %v7233
        %v7235 = vpop.f32.mrf.mxu0
        %7236 = vmatprep.mubr.bf16.mxu0 0
        %7237 = vmatmul.mubr.bf16.gmra.mxu0 %v6173
        %v7238 = vpop.f32.mrf.mxu0
        %v7239 = vadd.f32 0.0, %v7238
        %v7240 = vpop.f32.mrf.mxu0
        %v7241 = vpop.f32.mrf.mxu0
        %v7242 = vadd.f32 0.0, %v7241
        %v7243 = vpop.f32.mrf.mxu0
        %7244 = vmatprep.mubr.bf16.mxu0 0
        %7245 = vmatmul.mubr.bf16.gmra.mxu0 %v6174
        %v7246 = vpop.f32.mrf.mxu0
        %v7247 = vadd.f32 0.0, %v7246
        %v7248 = vpop.f32.mrf.mxu0
        %v7249 = vpop.f32.mrf.mxu0
        %v7250 = vadd.f32 0.0, %v7249
        %v7251 = vpop.f32.mrf.mxu0
        %7252 = vmatprep.mubr.bf16.mxu0 0
        %7253 = vmatmul.mubr.bf16.gmra.mxu0 %v6175
        %v7254 = vpop.f32.mrf.mxu0
        %v7255 = vadd.f32 0.0, %v7254
        %v7256 = vpop.f32.mrf.mxu0
        %v7257 = vpop.f32.mrf.mxu0
        %v7258 = vadd.f32 0.0, %v7257
        %v7259 = vpop.f32.mrf.mxu0
        %7260 = vmatprep.mubr.bf16.mxu0 0
        %7261 = vmatmul.mubr.bf16.gmra.mxu0 %v6176
        %v7262 = vpop.f32.mrf.mxu0
        %v7263 = vadd.f32 0.0, %v7262
        %v7264 = vpop.f32.mrf.mxu0
        %v7265 = vpop.f32.mrf.mxu0
        %v7266 = vadd.f32 0.0, %v7265
        %v7267 = vpop.f32.mrf.mxu0
        %7268 = vmatprep.mubr.bf16.mxu0 0
        %7269 = vmatmul.mubr.bf16.gmra.mxu0 %v6177
        %v7270 = vpop.f32.mrf.mxu0
        %v7271 = vadd.f32 0.0, %v7270
        %v7272 = vpop.f32.mrf.mxu0
        %v7273 = vpop.f32.mrf.mxu0
        %v7274 = vadd.f32 0.0, %v7273
        %v7275 = vpop.f32.mrf.mxu0
        %7276 = vmatprep.mubr.bf16.mxu0 0
        %7277 = vmatmul.mubr.bf16.gmra.mxu0 %v6178
        %v7278 = vpop.f32.mrf.mxu0
        %v7279 = vadd.f32 0.0, %v7278
        %v7280 = vpop.f32.mrf.mxu0
        %v7281 = vpop.f32.mrf.mxu0
        %v7282 = vadd.f32 0.0, %v7281
        %v7283 = vpop.f32.mrf.mxu0
        %7284 = vmatprep.mubr.bf16.mxu0 0
        %7285 = vmatmul.mubr.bf16.gmra.mxu0 %v6179
        %v7286 = vpop.f32.mrf.mxu0
        %v7287 = vadd.f32 0.0, %v7286
        %v7288 = vpop.f32.mrf.mxu0
        %v7289 = vpop.f32.mrf.mxu0
        %v7290 = vadd.f32 0.0, %v7289
        %v7291 = vpop.f32.mrf.mxu0
        %7292 = vmatprep.mubr.bf16.mxu0 0
        %7293 = vmatmul.mubr.bf16.gmra.mxu0 %v6180
        %v7294 = vpop.f32.mrf.mxu0
        %v7295 = vadd.f32 0.0, %v7294
        %v7296 = vpop.f32.mrf.mxu0
        %v7297 = vpop.f32.mrf.mxu0
        %v7298 = vadd.f32 0.0, %v7297
        %v7299 = vpop.f32.mrf.mxu0
        %7300 = vmatprep.mubr.bf16.mxu0 0
        %7301 = vmatmul.mubr.bf16.gmra.mxu0 %v6181
        %v7302 = vpop.f32.mrf.mxu0
        %v7303 = vadd.f32 0.0, %v7302
        %v7304 = vpop.f32.mrf.mxu0
        %v7305 = vpop.f32.mrf.mxu0
        %v7306 = vadd.f32 0.0, %v7305
        %v7307 = vpop.f32.mrf.mxu0
        %7308 = vmatprep.mubr.bf16.mxu0 0
        %7309 = vmatmul.mubr.bf16.gmra.mxu0 %v6182
        %v7310 = vpop.f32.mrf.mxu0
        %v7311 = vadd.f32 0.0, %v7310
        %v7312 = vpop.f32.mrf.mxu0
        %v7313 = vpop.f32.mrf.mxu0
        %v7314 = vadd.f32 0.0, %v7313
        %v7315 = vpop.f32.mrf.mxu0
        %7316 = vmatprep.mubr.bf16.mxu0 0
        %7317 = vmatmul.mubr.bf16.gmra.mxu0 %v6183
        %v7318 = vpop.f32.mrf.mxu0
        %v7319 = vadd.f32 0.0, %v7318
        %v7320 = vpop.f32.mrf.mxu0
        %v7321 = vpop.f32.mrf.mxu0
        %v7322 = vadd.f32 0.0, %v7321
        %v7323 = vpop.f32.mrf.mxu0
        %7324 = vmatprep.mubr.bf16.mxu0 0
        %7325 = vmatmul.mubr.bf16.gmra.mxu0 %v6184
        %v7326 = vpop.f32.mrf.mxu0
        %v7327 = vadd.f32 0.0, %v7326
        %v7328 = vpop.f32.mrf.mxu0
        %v7329 = vpop.f32.mrf.mxu0
        %v7330 = vadd.f32 0.0, %v7329
        %v7331 = vpop.f32.mrf.mxu0
        %7332 = vmatprep.mubr.bf16.mxu0 0
        %7333 = vmatmul.mubr.bf16.gmra.mxu0 %v6185
        %v7334 = vpop.f32.mrf.mxu0
        %v7335 = vadd.f32 0.0, %v7334
        %v7336 = vpop.f32.mrf.mxu0
        %v7337 = vpop.f32.mrf.mxu0
        %v7338 = vadd.f32 0.0, %v7337
        %v7339 = vpop.f32.mrf.mxu0
        %7340 = vmatprep.mubr.bf16.mxu0 0
        %7341 = vmatmul.mubr.bf16.gmra.mxu0 %v6186
        %v7342 = vpop.f32.mrf.mxu0
        %v7343 = vadd.f32 0.0, %v7342
        %v7344 = vpop.f32.mrf.mxu0
        %v7345 = vpop.f32.mrf.mxu0
        %v7346 = vadd.f32 0.0, %v7345
        %v7347 = vpop.f32.mrf.mxu0
        %7348 = vmatprep.mubr.bf16.mxu0 0
        %7349 = vmatmul.mubr.bf16.gmra.mxu0 %v6187
        %v7350 = vpop.f32.mrf.mxu0
        %v7351 = vadd.f32 0.0, %v7350
        %v7352 = vpop.f32.mrf.mxu0
        %v7353 = vpop.f32.mrf.mxu0
        %v7354 = vadd.f32 0.0, %v7353
        %v7355 = vpop.f32.mrf.mxu0
        %7356 = vmatprep.mubr.bf16.mxu0 0
        %7357 = vmatmul.mubr.bf16.gmra.mxu0 %v6188
        %v7358 = vpop.f32.mrf.mxu0
        %v7359 = vadd.f32 0.0, %v7358
        %v7360 = vpop.f32.mrf.mxu0
        %v7361 = vpop.f32.mrf.mxu0
        %v7362 = vadd.f32 0.0, %v7361
        %v7363 = vpop.f32.mrf.mxu0
        %7364 = vmatprep.mubr.bf16.mxu0 0
        %7365 = vmatmul.mubr.bf16.gmra.mxu0 %v6189
        %v7366 = vpop.f32.mrf.mxu0
        %v7367 = vadd.f32 0.0, %v7366
        %v7368 = vpop.f32.mrf.mxu0
        %v7369 = vpop.f32.mrf.mxu0
        %v7370 = vadd.f32 0.0, %v7369
        %v7371 = vpop.f32.mrf.mxu0
        %7372 = vdwg.mxu0
        %v7373 = vadd.f32 %v6893, %v7183
        %v7374 = vadd.f32 %v6896, %v7186
        %v7375 = vadd.f32 %v6901, %v7191
        %v7376 = vadd.f32 %v6904, %v7194
        %v7377 = vadd.f32 %v6909, %v7199
        %v7378 = vadd.f32 %v6912, %v7202
        %v7379 = vadd.f32 %v6917, %v7207
        %v7380 = vadd.f32 %v6920, %v7210
        %v7381 = vadd.f32 %v6925, %v7215
        %v7382 = vadd.f32 %v6928, %v7218
        %v7383 = vadd.f32 %v6933, %v7223
        %v7384 = vadd.f32 %v6936, %v7226
        %v7385 = vadd.f32 %v6941, %v7231
        %v7386 = vadd.f32 %v6944, %v7234
        %v7387 = vadd.f32 %v6949, %v7239
        %v7388 = vadd.f32 %v6952, %v7242
        %v7389 = vadd.f32 %v6957, %v7247
        %v7390 = vadd.f32 %v6960, %v7250
        %v7391 = vadd.f32 %v6965, %v7255
        %v7392 = vadd.f32 %v6968, %v7258
        %v7393 = vadd.f32 %v6973, %v7263
        %v7394 = vadd.f32 %v6976, %v7266
        %v7395 = vadd.f32 %v6981, %v7271
        %v7396 = vadd.f32 %v6984, %v7274
        %v7397 = vadd.f32 %v6989, %v7279
        %v7398 = vadd.f32 %v6992, %v7282
        %v7399 = vadd.f32 %v6997, %v7287
        %v7400 = vadd.f32 %v7000, %v7290
        %v7401 = vadd.f32 %v7005, %v7295
        %v7402 = vadd.f32 %v7008, %v7298
        %v7403 = vadd.f32 %v7013, %v7303
        %v7404 = vadd.f32 %v7016, %v7306
        %v7405 = vadd.f32 %v7021, %v7311
        %v7406 = vadd.f32 %v7024, %v7314
        %v7407 = vadd.f32 %v7029, %v7319
        %v7408 = vadd.f32 %v7032, %v7322
        %v7409 = vadd.f32 %v7037, %v7327
        %v7410 = vadd.f32 %v7040, %v7330
        %v7411 = vadd.f32 %v7045, %v7335
        %v7412 = vadd.f32 %v7048, %v7338
        %v7413 = vadd.f32 %v7053, %v7343
        %v7414 = vadd.f32 %v7056, %v7346
        %v7415 = vadd.f32 %v7061, %v7351
        %v7416 = vadd.f32 %v7064, %v7354
        %v7417 = vadd.f32 %v7069, %v7359
        %v7418 = vadd.f32 %v7072, %v7362
        %v7419 = vadd.f32 %v7077, %v7367
        %v7420 = vadd.f32 %v7080, %v7370
        %s7421 = scalar_lea.vmem %s3, 128
        %v7422 = vld [vmem:[%s7421] sm:$0xf]
        %v7423 = vld [vmem:[%s7421 + $0x4] sm:$0xf]
        %v7424 = vld [vmem:[%s7421 + $0x8] sm:$0xf]
        %v7425 = vld [vmem:[%s7421 + $0xc] sm:$0xf]
        %v7426 = vld [vmem:[%s7421 + $0x10] sm:$0xf]
        %v7427 = vld [vmem:[%s7421 + $0x14] sm:$0xf]
        %v7428 = vld [vmem:[%s7421 + $0x18] sm:$0xf]
        %v7429 = vld [vmem:[%s7421 + $0x1c] sm:$0xf]
        %v7430 = vld [vmem:[%s7421 + $0x20] sm:$0xf]
        %v7431 = vld [vmem:[%s7421 + $0x24] sm:$0xf]
        %v7432 = vld [vmem:[%s7421 + $0x28] sm:$0xf]
        %v7433 = vld [vmem:[%s7421 + $0x2c] sm:$0xf]
        %v7434 = vld [vmem:[%s7421 + $0x30] sm:$0xf]
        %v7435 = vld [vmem:[%s7421 + $0x34] sm:$0xf]
        %v7436 = vld [vmem:[%s7421 + $0x38] sm:$0xf]
        %v7437 = vld [vmem:[%s7421 + $0x3c] sm:$0xf]
        %s7438 = scalar_lea.vmem %s3, 320
        %v7439 = vld [vmem:[%s7438] sm:$0xf]
        %v7440 = vld [vmem:[%s7438 + $0x4] sm:$0xf]
        %v7441 = vld [vmem:[%s7438 + $0x8] sm:$0xf]
        %v7442 = vld [vmem:[%s7438 + $0xc] sm:$0xf]
        %v7443 = vld [vmem:[%s7438 + $0x10] sm:$0xf]
        %v7444 = vld [vmem:[%s7438 + $0x14] sm:$0xf]
        %v7445 = vld [vmem:[%s7438 + $0x18] sm:$0xf]
        %v7446 = vld [vmem:[%s7438 + $0x1c] sm:$0xf]
        %v7447 = vld [vmem:[%s7438 + $0x20] sm:$0xf]
        %v7448 = vld [vmem:[%s7438 + $0x24] sm:$0xf]
        %v7449 = vld [vmem:[%s7438 + $0x28] sm:$0xf]
        %v7450 = vld [vmem:[%s7438 + $0x2c] sm:$0xf]
        %v7451 = vld [vmem:[%s7438 + $0x30] sm:$0xf]
        %v7452 = vld [vmem:[%s7438 + $0x34] sm:$0xf]
        %v7453 = vld [vmem:[%s7438 + $0x38] sm:$0xf]
        %v7454 = vld [vmem:[%s7438 + $0x3c] sm:$0xf]
        %v7471 = vunpack.c.l.b16 %v7439
        %v7472 = vunpack.c.l.b16 %v7440
        %v7473 = vunpack.c.l.b16 %v7441
        %v7474 = vunpack.c.l.b16 %v7442
        %v7475 = vunpack.c.l.b16 %v7443
        %v7476 = vunpack.c.l.b16 %v7444
        %v7477 = vunpack.c.l.b16 %v7445
        %v7478 = vunpack.c.l.b16 %v7446
        %v7479 = vunpack.c.l.b16 %v7447
        %v7480 = vunpack.c.l.b16 %v7448
        %v7481 = vunpack.c.l.b16 %v7449
        %v7482 = vunpack.c.l.b16 %v7450
        %v7483 = vunpack.c.l.b16 %v7451
        %v7484 = vunpack.c.l.b16 %v7452
        %v7485 = vunpack.c.l.b16 %v7453
        %v7486 = vunpack.c.l.b16 %v7454
        %v7487 = vpack.c.b16 %v7472, %v7471
        %v7488 = vpack.c.b16 %v7474, %v7473
        %v7489 = vpack.c.b16 %v7476, %v7475
        %v7490 = vpack.c.b16 %v7478, %v7477
        %v7491 = vpack.c.b16 %v7480, %v7479
        %v7492 = vpack.c.b16 %v7482, %v7481
        %v7493 = vpack.c.b16 %v7484, %v7483
        %v7494 = vpack.c.b16 %v7486, %v7485
        %7503 = vmatprep.subr.bf16.mxu0 0
        %7504 = vmatpush1.bf16.msra.mxu0 %v7494
        %7505 = vmatprep.subr.bf16.mxu0 0
        %7506 = vmatpush1.bf16.msra.mxu0 %v7493
        %7507 = vmatprep.subr.bf16.mxu0 0
        %7508 = vmatpush1.bf16.msra.mxu0 %v7492
        %7509 = vmatprep.subr.bf16.mxu0 0
        %7510 = vmatpush1.bf16.msra.mxu0 %v7491
        %7511 = vmatprep.subr.bf16.mxu0 0
        %7512 = vmatpush1.bf16.msra.mxu0 %v7490
        %7513 = vmatprep.subr.bf16.mxu0 0
        %7514 = vmatpush1.bf16.msra.mxu0 %v7489
        %7515 = vmatprep.subr.bf16.mxu0 0
        %7516 = vmatpush1.bf16.msra.mxu0 %v7488
        %7517 = vmatprep.subr.bf16.mxu0 0
        %7518 = vmatpush1.bf16.msra.mxu0 %v7487
        %7519 = vmatprep.subr.bf16.mxu0 0
        %7520 = vmatpush2.bf16.msra.mxu0 0
        %7521 = vmatprep.subr.bf16.mxu0 0
        %7522 = vmatpush2.bf16.msra.mxu0 0
        %7523 = vmatprep.subr.bf16.mxu0 0
        %7524 = vmatpush2.bf16.msra.mxu0 0
        %7525 = vmatprep.subr.bf16.mxu0 0
        %7526 = vmatpush2.bf16.msra.mxu0 0
        %7527 = vmatprep.subr.bf16.mxu0 0
        %7528 = vmatpush2.bf16.msra.mxu0 0
        %7529 = vmatprep.subr.bf16.mxu0 0
        %7530 = vmatpush2.bf16.msra.mxu0 0
        %7531 = vmatprep.subr.bf16.mxu0 0
        %7532 = vmatpush2.bf16.msra.mxu0 0
        %7533 = vmatprep.subr.bf16.mxu0 0
        %7534 = vmatpush2.bf16.msra.mxu0 0
        %7535 = vmatprep.mubr.bf16.mxu0 0
        %7536 = vmatmul.mubr.bf16.gmra.mxu0 %v5298
        %v7537 = vpop.f32.mrf.mxu0
        %v7538 = vadd.f32 0.0, %v7537
        %v7539 = vpop.f32.mrf.mxu0
        %v7540 = vpop.f32.mrf.mxu0
        %v7541 = vadd.f32 0.0, %v7540
        %v7542 = vpop.f32.mrf.mxu0
        %7543 = vmatprep.mubr.bf16.mxu0 0
        %7544 = vmatmul.mubr.bf16.gmra.mxu0 %v5299
        %v7545 = vpop.f32.mrf.mxu0
        %v7546 = vadd.f32 0.0, %v7545
        %v7547 = vpop.f32.mrf.mxu0
        %v7548 = vpop.f32.mrf.mxu0
        %v7549 = vadd.f32 0.0, %v7548
        %v7550 = vpop.f32.mrf.mxu0
        %7551 = vmatprep.mubr.bf16.mxu0 0
        %7552 = vmatmul.mubr.bf16.gmra.mxu0 %v5300
        %v7553 = vpop.f32.mrf.mxu0
        %v7554 = vadd.f32 0.0, %v7553
        %v7555 = vpop.f32.mrf.mxu0
        %v7556 = vpop.f32.mrf.mxu0
        %v7557 = vadd.f32 0.0, %v7556
        %v7558 = vpop.f32.mrf.mxu0
        %7559 = vmatprep.mubr.bf16.mxu0 0
        %7560 = vmatmul.mubr.bf16.gmra.mxu0 %v5301
        %v7561 = vpop.f32.mrf.mxu0
        %v7562 = vadd.f32 0.0, %v7561
        %v7563 = vpop.f32.mrf.mxu0
        %v7564 = vpop.f32.mrf.mxu0
        %v7565 = vadd.f32 0.0, %v7564
        %v7566 = vpop.f32.mrf.mxu0
        %7567 = vmatprep.mubr.bf16.mxu0 0
        %7568 = vmatmul.mubr.bf16.gmra.mxu0 %v5302
        %v7569 = vpop.f32.mrf.mxu0
        %v7570 = vadd.f32 0.0, %v7569
        %v7571 = vpop.f32.mrf.mxu0
        %v7572 = vpop.f32.mrf.mxu0
        %v7573 = vadd.f32 0.0, %v7572
        %v7574 = vpop.f32.mrf.mxu0
        %7575 = vmatprep.mubr.bf16.mxu0 0
        %7576 = vmatmul.mubr.bf16.gmra.mxu0 %v5303
        %v7577 = vpop.f32.mrf.mxu0
        %v7578 = vadd.f32 0.0, %v7577
        %v7579 = vpop.f32.mrf.mxu0
        %v7580 = vpop.f32.mrf.mxu0
        %v7581 = vadd.f32 0.0, %v7580
        %v7582 = vpop.f32.mrf.mxu0
        %7583 = vmatprep.mubr.bf16.mxu0 0
        %7584 = vmatmul.mubr.bf16.gmra.mxu0 %v5304
        %v7585 = vpop.f32.mrf.mxu0
        %v7586 = vadd.f32 0.0, %v7585
        %v7587 = vpop.f32.mrf.mxu0
        %v7588 = vpop.f32.mrf.mxu0
        %v7589 = vadd.f32 0.0, %v7588
        %v7590 = vpop.f32.mrf.mxu0
        %7591 = vmatprep.mubr.bf16.mxu0 0
        %7592 = vmatmul.mubr.bf16.gmra.mxu0 %v5305
        %v7593 = vpop.f32.mrf.mxu0
        %v7594 = vadd.f32 0.0, %v7593
        %v7595 = vpop.f32.mrf.mxu0
        %v7596 = vpop.f32.mrf.mxu0
        %v7597 = vadd.f32 0.0, %v7596
        %v7598 = vpop.f32.mrf.mxu0
        %7599 = vmatprep.mubr.bf16.mxu0 0
        %7600 = vmatmul.mubr.bf16.gmra.mxu0 %v5306
        %v7601 = vpop.f32.mrf.mxu0
        %v7602 = vadd.f32 0.0, %v7601
        %v7603 = vpop.f32.mrf.mxu0
        %v7604 = vpop.f32.mrf.mxu0
        %v7605 = vadd.f32 0.0, %v7604
        %v7606 = vpop.f32.mrf.mxu0
        %7607 = vmatprep.mubr.bf16.mxu0 0
        %7608 = vmatmul.mubr.bf16.gmra.mxu0 %v5307
        %v7609 = vpop.f32.mrf.mxu0
        %v7610 = vadd.f32 0.0, %v7609
        %v7611 = vpop.f32.mrf.mxu0
        %v7612 = vpop.f32.mrf.mxu0
        %v7613 = vadd.f32 0.0, %v7612
        %v7614 = vpop.f32.mrf.mxu0
        %7615 = vmatprep.mubr.bf16.mxu0 0
        %7616 = vmatmul.mubr.bf16.gmra.mxu0 %v5308
        %v7617 = vpop.f32.mrf.mxu0
        %v7618 = vadd.f32 0.0, %v7617
        %v7619 = vpop.f32.mrf.mxu0
        %v7620 = vpop.f32.mrf.mxu0
        %v7621 = vadd.f32 0.0, %v7620
        %v7622 = vpop.f32.mrf.mxu0
        %7623 = vmatprep.mubr.bf16.mxu0 0
        %7624 = vmatmul.mubr.bf16.gmra.mxu0 %v5309
        %v7625 = vpop.f32.mrf.mxu0
        %v7626 = vadd.f32 0.0, %v7625
        %v7627 = vpop.f32.mrf.mxu0
        %v7628 = vpop.f32.mrf.mxu0
        %v7629 = vadd.f32 0.0, %v7628
        %v7630 = vpop.f32.mrf.mxu0
        %7631 = vmatprep.mubr.bf16.mxu0 0
        %7632 = vmatmul.mubr.bf16.gmra.mxu0 %v5310
        %v7633 = vpop.f32.mrf.mxu0
        %v7634 = vadd.f32 0.0, %v7633
        %v7635 = vpop.f32.mrf.mxu0
        %v7636 = vpop.f32.mrf.mxu0
        %v7637 = vadd.f32 0.0, %v7636
        %v7638 = vpop.f32.mrf.mxu0
        %7639 = vmatprep.mubr.bf16.mxu0 0
        %7640 = vmatmul.mubr.bf16.gmra.mxu0 %v5311
        %v7641 = vpop.f32.mrf.mxu0
        %v7642 = vadd.f32 0.0, %v7641
        %v7643 = vpop.f32.mrf.mxu0
        %v7644 = vpop.f32.mrf.mxu0
        %v7645 = vadd.f32 0.0, %v7644
        %v7646 = vpop.f32.mrf.mxu0
        %7647 = vmatprep.mubr.bf16.mxu0 0
        %7648 = vmatmul.mubr.bf16.gmra.mxu0 %v5312
        %v7649 = vpop.f32.mrf.mxu0
        %v7650 = vadd.f32 0.0, %v7649
        %v7651 = vpop.f32.mrf.mxu0
        %v7652 = vpop.f32.mrf.mxu0
        %v7653 = vadd.f32 0.0, %v7652
        %v7654 = vpop.f32.mrf.mxu0
        %7655 = vmatprep.mubr.bf16.mxu0 0
        %7656 = vmatmul.mubr.bf16.gmra.mxu0 %v5313
        %v7657 = vpop.f32.mrf.mxu0
        %v7658 = vadd.f32 0.0, %v7657
        %v7659 = vpop.f32.mrf.mxu0
        %v7660 = vpop.f32.mrf.mxu0
        %v7661 = vadd.f32 0.0, %v7660
        %v7662 = vpop.f32.mrf.mxu0
        %7663 = vmatprep.mubr.bf16.mxu0 0
        %7664 = vmatmul.mubr.bf16.gmra.mxu0 %v5314
        %v7665 = vpop.f32.mrf.mxu0
        %v7666 = vadd.f32 0.0, %v7665
        %v7667 = vpop.f32.mrf.mxu0
        %v7668 = vpop.f32.mrf.mxu0
        %v7669 = vadd.f32 0.0, %v7668
        %v7670 = vpop.f32.mrf.mxu0
        %7671 = vmatprep.mubr.bf16.mxu0 0
        %7672 = vmatmul.mubr.bf16.gmra.mxu0 %v5315
        %v7673 = vpop.f32.mrf.mxu0
        %v7674 = vadd.f32 0.0, %v7673
        %v7675 = vpop.f32.mrf.mxu0
        %v7676 = vpop.f32.mrf.mxu0
        %v7677 = vadd.f32 0.0, %v7676
        %v7678 = vpop.f32.mrf.mxu0
        %7679 = vmatprep.mubr.bf16.mxu0 0
        %7680 = vmatmul.mubr.bf16.gmra.mxu0 %v5316
        %v7681 = vpop.f32.mrf.mxu0
        %v7682 = vadd.f32 0.0, %v7681
        %v7683 = vpop.f32.mrf.mxu0
        %v7684 = vpop.f32.mrf.mxu0
        %v7685 = vadd.f32 0.0, %v7684
        %v7686 = vpop.f32.mrf.mxu0
        %7687 = vmatprep.mubr.bf16.mxu0 0
        %7688 = vmatmul.mubr.bf16.gmra.mxu0 %v5317
        %v7689 = vpop.f32.mrf.mxu0
        %v7690 = vadd.f32 0.0, %v7689
        %v7691 = vpop.f32.mrf.mxu0
        %v7692 = vpop.f32.mrf.mxu0
        %v7693 = vadd.f32 0.0, %v7692
        %v7694 = vpop.f32.mrf.mxu0
        %7695 = vmatprep.mubr.bf16.mxu0 0
        %7696 = vmatmul.mubr.bf16.gmra.mxu0 %v5318
        %v7697 = vpop.f32.mrf.mxu0
        %v7698 = vadd.f32 0.0, %v7697
        %v7699 = vpop.f32.mrf.mxu0
        %v7700 = vpop.f32.mrf.mxu0
        %v7701 = vadd.f32 0.0, %v7700
        %v7702 = vpop.f32.mrf.mxu0
        %7703 = vmatprep.mubr.bf16.mxu0 0
        %7704 = vmatmul.mubr.bf16.gmra.mxu0 %v5319
        %v7705 = vpop.f32.mrf.mxu0
        %v7706 = vadd.f32 0.0, %v7705
        %v7707 = vpop.f32.mrf.mxu0
        %v7708 = vpop.f32.mrf.mxu0
        %v7709 = vadd.f32 0.0, %v7708
        %v7710 = vpop.f32.mrf.mxu0
        %7711 = vmatprep.mubr.bf16.mxu0 0
        %7712 = vmatmul.mubr.bf16.gmra.mxu0 %v5320
        %v7713 = vpop.f32.mrf.mxu0
        %v7714 = vadd.f32 0.0, %v7713
        %v7715 = vpop.f32.mrf.mxu0
        %v7716 = vpop.f32.mrf.mxu0
        %v7717 = vadd.f32 0.0, %v7716
        %v7718 = vpop.f32.mrf.mxu0
        %7719 = vmatprep.mubr.bf16.mxu0 0
        %7720 = vmatmul.mubr.bf16.gmra.mxu0 %v5321
        %v7721 = vpop.f32.mrf.mxu0
        %v7722 = vadd.f32 0.0, %v7721
        %v7723 = vpop.f32.mrf.mxu0
        %v7724 = vpop.f32.mrf.mxu0
        %v7725 = vadd.f32 0.0, %v7724
        %v7726 = vpop.f32.mrf.mxu0
        %7727 = vdwg.mxu0
        %v7744 = vunpack.c.l.b16 %v7422
        %v7745 = vunpack.c.l.b16 %v7423
        %v7746 = vunpack.c.l.b16 %v7424
        %v7747 = vunpack.c.l.b16 %v7425
        %v7748 = vunpack.c.l.b16 %v7426
        %v7749 = vunpack.c.l.b16 %v7427
        %v7750 = vunpack.c.l.b16 %v7428
        %v7751 = vunpack.c.l.b16 %v7429
        %v7752 = vunpack.c.l.b16 %v7430
        %v7753 = vunpack.c.l.b16 %v7431
        %v7754 = vunpack.c.l.b16 %v7432
        %v7755 = vunpack.c.l.b16 %v7433
        %v7756 = vunpack.c.l.b16 %v7434
        %v7757 = vunpack.c.l.b16 %v7435
        %v7758 = vunpack.c.l.b16 %v7436
        %v7759 = vunpack.c.l.b16 %v7437
        %v7760 = vpack.c.b16 %v7745, %v7744
        %v7761 = vpack.c.b16 %v7747, %v7746
        %v7762 = vpack.c.b16 %v7749, %v7748
        %v7763 = vpack.c.b16 %v7751, %v7750
        %v7764 = vpack.c.b16 %v7753, %v7752
        %v7765 = vpack.c.b16 %v7755, %v7754
        %v7766 = vpack.c.b16 %v7757, %v7756
        %v7767 = vpack.c.b16 %v7759, %v7758
        %7776 = vmatprep.subr.bf16.mxu0 0
        %7777 = vmatpush1.bf16.msra.mxu0 %v7767
        %7778 = vmatprep.subr.bf16.mxu0 0
        %7779 = vmatpush1.bf16.msra.mxu0 %v7766
        %7780 = vmatprep.subr.bf16.mxu0 0
        %7781 = vmatpush1.bf16.msra.mxu0 %v7765
        %7782 = vmatprep.subr.bf16.mxu0 0
        %7783 = vmatpush1.bf16.msra.mxu0 %v7764
        %7784 = vmatprep.subr.bf16.mxu0 0
        %7785 = vmatpush1.bf16.msra.mxu0 %v7763
        %7786 = vmatprep.subr.bf16.mxu0 0
        %7787 = vmatpush1.bf16.msra.mxu0 %v7762
        %7788 = vmatprep.subr.bf16.mxu0 0
        %7789 = vmatpush1.bf16.msra.mxu0 %v7761
        %7790 = vmatprep.subr.bf16.mxu0 0
        %7791 = vmatpush1.bf16.msra.mxu0 %v7760
        %7792 = vmatprep.subr.bf16.mxu0 0
        %7793 = vmatpush2.bf16.msra.mxu0 0
        %7794 = vmatprep.subr.bf16.mxu0 0
        %7795 = vmatpush2.bf16.msra.mxu0 0
        %7796 = vmatprep.subr.bf16.mxu0 0
        %7797 = vmatpush2.bf16.msra.mxu0 0
        %7798 = vmatprep.subr.bf16.mxu0 0
        %7799 = vmatpush2.bf16.msra.mxu0 0
        %7800 = vmatprep.subr.bf16.mxu0 0
        %7801 = vmatpush2.bf16.msra.mxu0 0
        %7802 = vmatprep.subr.bf16.mxu0 0
        %7803 = vmatpush2.bf16.msra.mxu0 0
        %7804 = vmatprep.subr.bf16.mxu0 0
        %7805 = vmatpush2.bf16.msra.mxu0 0
        %7806 = vmatprep.subr.bf16.mxu0 0
        %7807 = vmatpush2.bf16.msra.mxu0 0
        %7808 = vmatprep.mubr.bf16.mxu0 0
        %7809 = vmatmul.mubr.bf16.gmra.mxu0 %v5699
        %v7810 = vpop.f32.mrf.mxu0
        %v7811 = vadd.f32 %v7538, %v7810
        %v7812 = vpop.f32.mrf.mxu0
        %v7813 = vpop.f32.mrf.mxu0
        %v7814 = vadd.f32 %v7541, %v7813
        %v7815 = vpop.f32.mrf.mxu0
        %7816 = vmatprep.mubr.bf16.mxu0 0
        %7817 = vmatmul.mubr.bf16.gmra.mxu0 %v5700
        %v7818 = vpop.f32.mrf.mxu0
        %v7819 = vadd.f32 %v7546, %v7818
        %v7820 = vpop.f32.mrf.mxu0
        %v7821 = vpop.f32.mrf.mxu0
        %v7822 = vadd.f32 %v7549, %v7821
        %v7823 = vpop.f32.mrf.mxu0
        %7824 = vmatprep.mubr.bf16.mxu0 0
        %7825 = vmatmul.mubr.bf16.gmra.mxu0 %v5701
        %v7826 = vpop.f32.mrf.mxu0
        %v7827 = vadd.f32 %v7554, %v7826
        %v7828 = vpop.f32.mrf.mxu0
        %v7829 = vpop.f32.mrf.mxu0
        %v7830 = vadd.f32 %v7557, %v7829
        %v7831 = vpop.f32.mrf.mxu0
        %7832 = vmatprep.mubr.bf16.mxu0 0
        %7833 = vmatmul.mubr.bf16.gmra.mxu0 %v5702
        %v7834 = vpop.f32.mrf.mxu0
        %v7835 = vadd.f32 %v7562, %v7834
        %v7836 = vpop.f32.mrf.mxu0
        %v7837 = vpop.f32.mrf.mxu0
        %v7838 = vadd.f32 %v7565, %v7837
        %v7839 = vpop.f32.mrf.mxu0
        %7840 = vmatprep.mubr.bf16.mxu0 0
        %7841 = vmatmul.mubr.bf16.gmra.mxu0 %v5703
        %v7842 = vpop.f32.mrf.mxu0
        %v7843 = vadd.f32 %v7570, %v7842
        %v7844 = vpop.f32.mrf.mxu0
        %v7845 = vpop.f32.mrf.mxu0
        %v7846 = vadd.f32 %v7573, %v7845
        %v7847 = vpop.f32.mrf.mxu0
        %7848 = vmatprep.mubr.bf16.mxu0 0
        %7849 = vmatmul.mubr.bf16.gmra.mxu0 %v5704
        %v7850 = vpop.f32.mrf.mxu0
        %v7851 = vadd.f32 %v7578, %v7850
        %v7852 = vpop.f32.mrf.mxu0
        %v7853 = vpop.f32.mrf.mxu0
        %v7854 = vadd.f32 %v7581, %v7853
        %v7855 = vpop.f32.mrf.mxu0
        %7856 = vmatprep.mubr.bf16.mxu0 0
        %7857 = vmatmul.mubr.bf16.gmra.mxu0 %v5705
        %v7858 = vpop.f32.mrf.mxu0
        %v7859 = vadd.f32 %v7586, %v7858
        %v7860 = vpop.f32.mrf.mxu0
        %v7861 = vpop.f32.mrf.mxu0
        %v7862 = vadd.f32 %v7589, %v7861
        %v7863 = vpop.f32.mrf.mxu0
        %7864 = vmatprep.mubr.bf16.mxu0 0
        %7865 = vmatmul.mubr.bf16.gmra.mxu0 %v5706
        %v7866 = vpop.f32.mrf.mxu0
        %v7867 = vadd.f32 %v7594, %v7866
        %v7868 = vpop.f32.mrf.mxu0
        %v7869 = vpop.f32.mrf.mxu0
        %v7870 = vadd.f32 %v7597, %v7869
        %v7871 = vpop.f32.mrf.mxu0
        %7872 = vmatprep.mubr.bf16.mxu0 0
        %7873 = vmatmul.mubr.bf16.gmra.mxu0 %v5707
        %v7874 = vpop.f32.mrf.mxu0
        %v7875 = vadd.f32 %v7602, %v7874
        %v7876 = vpop.f32.mrf.mxu0
        %v7877 = vpop.f32.mrf.mxu0
        %v7878 = vadd.f32 %v7605, %v7877
        %v7879 = vpop.f32.mrf.mxu0
        %7880 = vmatprep.mubr.bf16.mxu0 0
        %7881 = vmatmul.mubr.bf16.gmra.mxu0 %v5708
        %v7882 = vpop.f32.mrf.mxu0
        %v7883 = vadd.f32 %v7610, %v7882
        %v7884 = vpop.f32.mrf.mxu0
        %v7885 = vpop.f32.mrf.mxu0
        %v7886 = vadd.f32 %v7613, %v7885
        %v7887 = vpop.f32.mrf.mxu0
        %7888 = vmatprep.mubr.bf16.mxu0 0
        %7889 = vmatmul.mubr.bf16.gmra.mxu0 %v5709
        %v7890 = vpop.f32.mrf.mxu0
        %v7891 = vadd.f32 %v7618, %v7890
        %v7892 = vpop.f32.mrf.mxu0
        %v7893 = vpop.f32.mrf.mxu0
        %v7894 = vadd.f32 %v7621, %v7893
        %v7895 = vpop.f32.mrf.mxu0
        %7896 = vmatprep.mubr.bf16.mxu0 0
        %7897 = vmatmul.mubr.bf16.gmra.mxu0 %v5710
        %v7898 = vpop.f32.mrf.mxu0
        %v7899 = vadd.f32 %v7626, %v7898
        %v7900 = vpop.f32.mrf.mxu0
        %v7901 = vpop.f32.mrf.mxu0
        %v7902 = vadd.f32 %v7629, %v7901
        %v7903 = vpop.f32.mrf.mxu0
        %7904 = vmatprep.mubr.bf16.mxu0 0
        %7905 = vmatmul.mubr.bf16.gmra.mxu0 %v5711
        %v7906 = vpop.f32.mrf.mxu0
        %v7907 = vadd.f32 %v7634, %v7906
        %v7908 = vpop.f32.mrf.mxu0
        %v7909 = vpop.f32.mrf.mxu0
        %v7910 = vadd.f32 %v7637, %v7909
        %v7911 = vpop.f32.mrf.mxu0
        %7912 = vmatprep.mubr.bf16.mxu0 0
        %7913 = vmatmul.mubr.bf16.gmra.mxu0 %v5712
        %v7914 = vpop.f32.mrf.mxu0
        %v7915 = vadd.f32 %v7642, %v7914
        %v7916 = vpop.f32.mrf.mxu0
        %v7917 = vpop.f32.mrf.mxu0
        %v7918 = vadd.f32 %v7645, %v7917
        %v7919 = vpop.f32.mrf.mxu0
        %7920 = vmatprep.mubr.bf16.mxu0 0
        %7921 = vmatmul.mubr.bf16.gmra.mxu0 %v5713
        %v7922 = vpop.f32.mrf.mxu0
        %v7923 = vadd.f32 %v7650, %v7922
        %v7924 = vpop.f32.mrf.mxu0
        %v7925 = vpop.f32.mrf.mxu0
        %v7926 = vadd.f32 %v7653, %v7925
        %v7927 = vpop.f32.mrf.mxu0
        %7928 = vmatprep.mubr.bf16.mxu0 0
        %7929 = vmatmul.mubr.bf16.gmra.mxu0 %v5714
        %v7930 = vpop.f32.mrf.mxu0
        %v7931 = vadd.f32 %v7658, %v7930
        %v7932 = vpop.f32.mrf.mxu0
        %v7933 = vpop.f32.mrf.mxu0
        %v7934 = vadd.f32 %v7661, %v7933
        %v7935 = vpop.f32.mrf.mxu0
        %7936 = vmatprep.mubr.bf16.mxu0 0
        %7937 = vmatmul.mubr.bf16.gmra.mxu0 %v5715
        %v7938 = vpop.f32.mrf.mxu0
        %v7939 = vadd.f32 %v7666, %v7938
        %v7940 = vpop.f32.mrf.mxu0
        %v7941 = vpop.f32.mrf.mxu0
        %v7942 = vadd.f32 %v7669, %v7941
        %v7943 = vpop.f32.mrf.mxu0
        %7944 = vmatprep.mubr.bf16.mxu0 0
        %7945 = vmatmul.mubr.bf16.gmra.mxu0 %v5716
        %v7946 = vpop.f32.mrf.mxu0
        %v7947 = vadd.f32 %v7674, %v7946
        %v7948 = vpop.f32.mrf.mxu0
        %v7949 = vpop.f32.mrf.mxu0
        %v7950 = vadd.f32 %v7677, %v7949
        %v7951 = vpop.f32.mrf.mxu0
        %7952 = vmatprep.mubr.bf16.mxu0 0
        %7953 = vmatmul.mubr.bf16.gmra.mxu0 %v5717
        %v7954 = vpop.f32.mrf.mxu0
        %v7955 = vadd.f32 %v7682, %v7954
        %v7956 = vpop.f32.mrf.mxu0
        %v7957 = vpop.f32.mrf.mxu0
        %v7958 = vadd.f32 %v7685, %v7957
        %v7959 = vpop.f32.mrf.mxu0
        %7960 = vmatprep.mubr.bf16.mxu0 0
        %7961 = vmatmul.mubr.bf16.gmra.mxu0 %v5718
        %v7962 = vpop.f32.mrf.mxu0
        %v7963 = vadd.f32 %v7690, %v7962
        %v7964 = vpop.f32.mrf.mxu0
        %v7965 = vpop.f32.mrf.mxu0
        %v7966 = vadd.f32 %v7693, %v7965
        %v7967 = vpop.f32.mrf.mxu0
        %7968 = vmatprep.mubr.bf16.mxu0 0
        %7969 = vmatmul.mubr.bf16.gmra.mxu0 %v5719
        %v7970 = vpop.f32.mrf.mxu0
        %v7971 = vadd.f32 %v7698, %v7970
        %v7972 = vpop.f32.mrf.mxu0
        %v7973 = vpop.f32.mrf.mxu0
        %v7974 = vadd.f32 %v7701, %v7973
        %v7975 = vpop.f32.mrf.mxu0
        %7976 = vmatprep.mubr.bf16.mxu0 0
        %7977 = vmatmul.mubr.bf16.gmra.mxu0 %v5720
        %v7978 = vpop.f32.mrf.mxu0
        %v7979 = vadd.f32 %v7706, %v7978
        %v7980 = vpop.f32.mrf.mxu0
        %v7981 = vpop.f32.mrf.mxu0
        %v7982 = vadd.f32 %v7709, %v7981
        %v7983 = vpop.f32.mrf.mxu0
        %7984 = vmatprep.mubr.bf16.mxu0 0
        %7985 = vmatmul.mubr.bf16.gmra.mxu0 %v5721
        %v7986 = vpop.f32.mrf.mxu0
        %v7987 = vadd.f32 %v7714, %v7986
        %v7988 = vpop.f32.mrf.mxu0
        %v7989 = vpop.f32.mrf.mxu0
        %v7990 = vadd.f32 %v7717, %v7989
        %v7991 = vpop.f32.mrf.mxu0
        %7992 = vmatprep.mubr.bf16.mxu0 0
        %7993 = vmatmul.mubr.bf16.gmra.mxu0 %v5722
        %v7994 = vpop.f32.mrf.mxu0
        %v7995 = vadd.f32 %v7722, %v7994
        %v7996 = vpop.f32.mrf.mxu0
        %v7997 = vpop.f32.mrf.mxu0
        %v7998 = vadd.f32 %v7725, %v7997
        %v7999 = vpop.f32.mrf.mxu0
        %8000 = vdwg.mxu0
        %s8001 = scalar_lea.vmem %s3, 512
        %v8002 = vld [vmem:[%s8001] sm:$0xf]
        %v8003 = vld [vmem:[%s8001 + $0x4] sm:$0xf]
        %v8004 = vld [vmem:[%s8001 + $0x8] sm:$0xf]
        %v8005 = vld [vmem:[%s8001 + $0xc] sm:$0xf]
        %v8006 = vld [vmem:[%s8001 + $0x10] sm:$0xf]
        %v8007 = vld [vmem:[%s8001 + $0x14] sm:$0xf]
        %v8008 = vld [vmem:[%s8001 + $0x18] sm:$0xf]
        %v8009 = vld [vmem:[%s8001 + $0x1c] sm:$0xf]
        %v8010 = vld [vmem:[%s8001 + $0x20] sm:$0xf]
        %v8011 = vld [vmem:[%s8001 + $0x24] sm:$0xf]
        %v8012 = vld [vmem:[%s8001 + $0x28] sm:$0xf]
        %v8013 = vld [vmem:[%s8001 + $0x2c] sm:$0xf]
        %v8014 = vld [vmem:[%s8001 + $0x30] sm:$0xf]
        %v8015 = vld [vmem:[%s8001 + $0x34] sm:$0xf]
        %v8016 = vld [vmem:[%s8001 + $0x38] sm:$0xf]
        %v8017 = vld [vmem:[%s8001 + $0x3c] sm:$0xf]
        %v8034 = vunpack.c.l.b16 %v8002
        %v8035 = vunpack.c.l.b16 %v8003
        %v8036 = vunpack.c.l.b16 %v8004
        %v8037 = vunpack.c.l.b16 %v8005
        %v8038 = vunpack.c.l.b16 %v8006
        %v8039 = vunpack.c.l.b16 %v8007
        %v8040 = vunpack.c.l.b16 %v8008
        %v8041 = vunpack.c.l.b16 %v8009
        %v8042 = vunpack.c.l.b16 %v8010
        %v8043 = vunpack.c.l.b16 %v8011
        %v8044 = vunpack.c.l.b16 %v8012
        %v8045 = vunpack.c.l.b16 %v8013
        %v8046 = vunpack.c.l.b16 %v8014
        %v8047 = vunpack.c.l.b16 %v8015
        %v8048 = vunpack.c.l.b16 %v8016
        %v8049 = vunpack.c.l.b16 %v8017
        %v8050 = vpack.c.b16 %v8035, %v8034
        %v8051 = vpack.c.b16 %v8037, %v8036
        %v8052 = vpack.c.b16 %v8039, %v8038
        %v8053 = vpack.c.b16 %v8041, %v8040
        %v8054 = vpack.c.b16 %v8043, %v8042
        %v8055 = vpack.c.b16 %v8045, %v8044
        %v8056 = vpack.c.b16 %v8047, %v8046
        %v8057 = vpack.c.b16 %v8049, %v8048
        %8066 = vmatprep.subr.bf16.mxu0 0
        %8067 = vmatpush1.bf16.msra.mxu0 %v8057
        %8068 = vmatprep.subr.bf16.mxu0 0
        %8069 = vmatpush1.bf16.msra.mxu0 %v8056
        %8070 = vmatprep.subr.bf16.mxu0 0
        %8071 = vmatpush1.bf16.msra.mxu0 %v8055
        %8072 = vmatprep.subr.bf16.mxu0 0
        %8073 = vmatpush1.bf16.msra.mxu0 %v8054
        %8074 = vmatprep.subr.bf16.mxu0 0
        %8075 = vmatpush1.bf16.msra.mxu0 %v8053
        %8076 = vmatprep.subr.bf16.mxu0 0
        %8077 = vmatpush1.bf16.msra.mxu0 %v8052
        %8078 = vmatprep.subr.bf16.mxu0 0
        %8079 = vmatpush1.bf16.msra.mxu0 %v8051
        %8080 = vmatprep.subr.bf16.mxu0 0
        %8081 = vmatpush1.bf16.msra.mxu0 %v8050
        %8082 = vmatprep.subr.bf16.mxu0 0
        %8083 = vmatpush2.bf16.msra.mxu0 0
        %8084 = vmatprep.subr.bf16.mxu0 0
        %8085 = vmatpush2.bf16.msra.mxu0 0
        %8086 = vmatprep.subr.bf16.mxu0 0
        %8087 = vmatpush2.bf16.msra.mxu0 0
        %8088 = vmatprep.subr.bf16.mxu0 0
        %8089 = vmatpush2.bf16.msra.mxu0 0
        %8090 = vmatprep.subr.bf16.mxu0 0
        %8091 = vmatpush2.bf16.msra.mxu0 0
        %8092 = vmatprep.subr.bf16.mxu0 0
        %8093 = vmatpush2.bf16.msra.mxu0 0
        %8094 = vmatprep.subr.bf16.mxu0 0
        %8095 = vmatpush2.bf16.msra.mxu0 0
        %8096 = vmatprep.subr.bf16.mxu0 0
        %8097 = vmatpush2.bf16.msra.mxu0 0
        %8098 = vmatprep.mubr.bf16.mxu0 0
        %8099 = vmatmul.mubr.bf16.gmra.mxu0 %v6166
        %v8100 = vpop.f32.mrf.mxu0
        %v8101 = vadd.f32 0.0, %v8100
        %v8102 = vpop.f32.mrf.mxu0
        %v8103 = vpop.f32.mrf.mxu0
        %v8104 = vadd.f32 0.0, %v8103
        %v8105 = vpop.f32.mrf.mxu0
        %8106 = vmatprep.mubr.bf16.mxu0 0
        %8107 = vmatmul.mubr.bf16.gmra.mxu0 %v6167
        %v8108 = vpop.f32.mrf.mxu0
        %v8109 = vadd.f32 0.0, %v8108
        %v8110 = vpop.f32.mrf.mxu0
        %v8111 = vpop.f32.mrf.mxu0
        %v8112 = vadd.f32 0.0, %v8111
        %v8113 = vpop.f32.mrf.mxu0
        %8114 = vmatprep.mubr.bf16.mxu0 0
        %8115 = vmatmul.mubr.bf16.gmra.mxu0 %v6168
        %v8116 = vpop.f32.mrf.mxu0
        %v8117 = vadd.f32 0.0, %v8116
        %v8118 = vpop.f32.mrf.mxu0
        %v8119 = vpop.f32.mrf.mxu0
        %v8120 = vadd.f32 0.0, %v8119
        %v8121 = vpop.f32.mrf.mxu0
        %8122 = vmatprep.mubr.bf16.mxu0 0
        %8123 = vmatmul.mubr.bf16.gmra.mxu0 %v6169
        %v8124 = vpop.f32.mrf.mxu0
        %v8125 = vadd.f32 0.0, %v8124
        %v8126 = vpop.f32.mrf.mxu0
        %v8127 = vpop.f32.mrf.mxu0
        %v8128 = vadd.f32 0.0, %v8127
        %v8129 = vpop.f32.mrf.mxu0
        %8130 = vmatprep.mubr.bf16.mxu0 0
        %8131 = vmatmul.mubr.bf16.gmra.mxu0 %v6170
        %v8132 = vpop.f32.mrf.mxu0
        %v8133 = vadd.f32 0.0, %v8132
        %v8134 = vpop.f32.mrf.mxu0
        %v8135 = vpop.f32.mrf.mxu0
        %v8136 = vadd.f32 0.0, %v8135
        %v8137 = vpop.f32.mrf.mxu0
        %8138 = vmatprep.mubr.bf16.mxu0 0
        %8139 = vmatmul.mubr.bf16.gmra.mxu0 %v6171
        %v8140 = vpop.f32.mrf.mxu0
        %v8141 = vadd.f32 0.0, %v8140
        %v8142 = vpop.f32.mrf.mxu0
        %v8143 = vpop.f32.mrf.mxu0
        %v8144 = vadd.f32 0.0, %v8143
        %v8145 = vpop.f32.mrf.mxu0
        %8146 = vmatprep.mubr.bf16.mxu0 0
        %8147 = vmatmul.mubr.bf16.gmra.mxu0 %v6172
        %v8148 = vpop.f32.mrf.mxu0
        %v8149 = vadd.f32 0.0, %v8148
        %v8150 = vpop.f32.mrf.mxu0
        %v8151 = vpop.f32.mrf.mxu0
        %v8152 = vadd.f32 0.0, %v8151
        %v8153 = vpop.f32.mrf.mxu0
        %8154 = vmatprep.mubr.bf16.mxu0 0
        %8155 = vmatmul.mubr.bf16.gmra.mxu0 %v6173
        %v8156 = vpop.f32.mrf.mxu0
        %v8157 = vadd.f32 0.0, %v8156
        %v8158 = vpop.f32.mrf.mxu0
        %v8159 = vpop.f32.mrf.mxu0
        %v8160 = vadd.f32 0.0, %v8159
        %v8161 = vpop.f32.mrf.mxu0
        %8162 = vmatprep.mubr.bf16.mxu0 0
        %8163 = vmatmul.mubr.bf16.gmra.mxu0 %v6174
        %v8164 = vpop.f32.mrf.mxu0
        %v8165 = vadd.f32 0.0, %v8164
        %v8166 = vpop.f32.mrf.mxu0
        %v8167 = vpop.f32.mrf.mxu0
        %v8168 = vadd.f32 0.0, %v8167
        %v8169 = vpop.f32.mrf.mxu0
        %8170 = vmatprep.mubr.bf16.mxu0 0
        %8171 = vmatmul.mubr.bf16.gmra.mxu0 %v6175
        %v8172 = vpop.f32.mrf.mxu0
        %v8173 = vadd.f32 0.0, %v8172
        %v8174 = vpop.f32.mrf.mxu0
        %v8175 = vpop.f32.mrf.mxu0
        %v8176 = vadd.f32 0.0, %v8175
        %v8177 = vpop.f32.mrf.mxu0
        %8178 = vmatprep.mubr.bf16.mxu0 0
        %8179 = vmatmul.mubr.bf16.gmra.mxu0 %v6176
        %v8180 = vpop.f32.mrf.mxu0
        %v8181 = vadd.f32 0.0, %v8180
        %v8182 = vpop.f32.mrf.mxu0
        %v8183 = vpop.f32.mrf.mxu0
        %v8184 = vadd.f32 0.0, %v8183
        %v8185 = vpop.f32.mrf.mxu0
        %8186 = vmatprep.mubr.bf16.mxu0 0
        %8187 = vmatmul.mubr.bf16.gmra.mxu0 %v6177
        %v8188 = vpop.f32.mrf.mxu0
        %v8189 = vadd.f32 0.0, %v8188
        %v8190 = vpop.f32.mrf.mxu0
        %v8191 = vpop.f32.mrf.mxu0
        %v8192 = vadd.f32 0.0, %v8191
        %v8193 = vpop.f32.mrf.mxu0
        %8194 = vmatprep.mubr.bf16.mxu0 0
        %8195 = vmatmul.mubr.bf16.gmra.mxu0 %v6178
        %v8196 = vpop.f32.mrf.mxu0
        %v8197 = vadd.f32 0.0, %v8196
        %v8198 = vpop.f32.mrf.mxu0
        %v8199 = vpop.f32.mrf.mxu0
        %v8200 = vadd.f32 0.0, %v8199
        %v8201 = vpop.f32.mrf.mxu0
        %8202 = vmatprep.mubr.bf16.mxu0 0
        %8203 = vmatmul.mubr.bf16.gmra.mxu0 %v6179
        %v8204 = vpop.f32.mrf.mxu0
        %v8205 = vadd.f32 0.0, %v8204
        %v8206 = vpop.f32.mrf.mxu0
        %v8207 = vpop.f32.mrf.mxu0
        %v8208 = vadd.f32 0.0, %v8207
        %v8209 = vpop.f32.mrf.mxu0
        %8210 = vmatprep.mubr.bf16.mxu0 0
        %8211 = vmatmul.mubr.bf16.gmra.mxu0 %v6180
        %v8212 = vpop.f32.mrf.mxu0
        %v8213 = vadd.f32 0.0, %v8212
        %v8214 = vpop.f32.mrf.mxu0
        %v8215 = vpop.f32.mrf.mxu0
        %v8216 = vadd.f32 0.0, %v8215
        %v8217 = vpop.f32.mrf.mxu0
        %8218 = vmatprep.mubr.bf16.mxu0 0
        %8219 = vmatmul.mubr.bf16.gmra.mxu0 %v6181
        %v8220 = vpop.f32.mrf.mxu0
        %v8221 = vadd.f32 0.0, %v8220
        %v8222 = vpop.f32.mrf.mxu0
        %v8223 = vpop.f32.mrf.mxu0
        %v8224 = vadd.f32 0.0, %v8223
        %v8225 = vpop.f32.mrf.mxu0
        %8226 = vmatprep.mubr.bf16.mxu0 0
        %8227 = vmatmul.mubr.bf16.gmra.mxu0 %v6182
        %v8228 = vpop.f32.mrf.mxu0
        %v8229 = vadd.f32 0.0, %v8228
        %v8230 = vpop.f32.mrf.mxu0
        %v8231 = vpop.f32.mrf.mxu0
        %v8232 = vadd.f32 0.0, %v8231
        %v8233 = vpop.f32.mrf.mxu0
        %8234 = vmatprep.mubr.bf16.mxu0 0
        %8235 = vmatmul.mubr.bf16.gmra.mxu0 %v6183
        %v8236 = vpop.f32.mrf.mxu0
        %v8237 = vadd.f32 0.0, %v8236
        %v8238 = vpop.f32.mrf.mxu0
        %v8239 = vpop.f32.mrf.mxu0
        %v8240 = vadd.f32 0.0, %v8239
        %v8241 = vpop.f32.mrf.mxu0
        %8242 = vmatprep.mubr.bf16.mxu0 0
        %8243 = vmatmul.mubr.bf16.gmra.mxu0 %v6184
        %v8244 = vpop.f32.mrf.mxu0
        %v8245 = vadd.f32 0.0, %v8244
        %v8246 = vpop.f32.mrf.mxu0
        %v8247 = vpop.f32.mrf.mxu0
        %v8248 = vadd.f32 0.0, %v8247
        %v8249 = vpop.f32.mrf.mxu0
        %8250 = vmatprep.mubr.bf16.mxu0 0
        %8251 = vmatmul.mubr.bf16.gmra.mxu0 %v6185
        %v8252 = vpop.f32.mrf.mxu0
        %v8253 = vadd.f32 0.0, %v8252
        %v8254 = vpop.f32.mrf.mxu0
        %v8255 = vpop.f32.mrf.mxu0
        %v8256 = vadd.f32 0.0, %v8255
        %v8257 = vpop.f32.mrf.mxu0
        %8258 = vmatprep.mubr.bf16.mxu0 0
        %8259 = vmatmul.mubr.bf16.gmra.mxu0 %v6186
        %v8260 = vpop.f32.mrf.mxu0
        %v8261 = vadd.f32 0.0, %v8260
        %v8262 = vpop.f32.mrf.mxu0
        %v8263 = vpop.f32.mrf.mxu0
        %v8264 = vadd.f32 0.0, %v8263
        %v8265 = vpop.f32.mrf.mxu0
        %8266 = vmatprep.mubr.bf16.mxu0 0
        %8267 = vmatmul.mubr.bf16.gmra.mxu0 %v6187
        %v8268 = vpop.f32.mrf.mxu0
        %v8269 = vadd.f32 0.0, %v8268
        %v8270 = vpop.f32.mrf.mxu0
        %v8271 = vpop.f32.mrf.mxu0
        %v8272 = vadd.f32 0.0, %v8271
        %v8273 = vpop.f32.mrf.mxu0
        %8274 = vmatprep.mubr.bf16.mxu0 0
        %8275 = vmatmul.mubr.bf16.gmra.mxu0 %v6188
        %v8276 = vpop.f32.mrf.mxu0
        %v8277 = vadd.f32 0.0, %v8276
        %v8278 = vpop.f32.mrf.mxu0
        %v8279 = vpop.f32.mrf.mxu0
        %v8280 = vadd.f32 0.0, %v8279
        %v8281 = vpop.f32.mrf.mxu0
        %8282 = vmatprep.mubr.bf16.mxu0 0
        %8283 = vmatmul.mubr.bf16.gmra.mxu0 %v6189
        %v8284 = vpop.f32.mrf.mxu0
        %v8285 = vadd.f32 0.0, %v8284
        %v8286 = vpop.f32.mrf.mxu0
        %v8287 = vpop.f32.mrf.mxu0
        %v8288 = vadd.f32 0.0, %v8287
        %v8289 = vpop.f32.mrf.mxu0
        %8290 = vdwg.mxu0
        %v8291 = vadd.f32 %v7811, %v8101
        %v8292 = vadd.f32 %v7814, %v8104
        %v8293 = vadd.f32 %v7819, %v8109
        %v8294 = vadd.f32 %v7822, %v8112
        %v8295 = vadd.f32 %v7827, %v8117
        %v8296 = vadd.f32 %v7830, %v8120
        %v8297 = vadd.f32 %v7835, %v8125
        %v8298 = vadd.f32 %v7838, %v8128
        %v8299 = vadd.f32 %v7843, %v8133
        %v8300 = vadd.f32 %v7846, %v8136
        %v8301 = vadd.f32 %v7851, %v8141
        %v8302 = vadd.f32 %v7854, %v8144
        %v8303 = vadd.f32 %v7859, %v8149
        %v8304 = vadd.f32 %v7862, %v8152
        %v8305 = vadd.f32 %v7867, %v8157
        %v8306 = vadd.f32 %v7870, %v8160
        %v8307 = vadd.f32 %v7875, %v8165
        %v8308 = vadd.f32 %v7878, %v8168
        %v8309 = vadd.f32 %v7883, %v8173
        %v8310 = vadd.f32 %v7886, %v8176
        %v8311 = vadd.f32 %v7891, %v8181
        %v8312 = vadd.f32 %v7894, %v8184
        %v8313 = vadd.f32 %v7899, %v8189
        %v8314 = vadd.f32 %v7902, %v8192
        %v8315 = vadd.f32 %v7907, %v8197
        %v8316 = vadd.f32 %v7910, %v8200
        %v8317 = vadd.f32 %v7915, %v8205
        %v8318 = vadd.f32 %v7918, %v8208
        %v8319 = vadd.f32 %v7923, %v8213
        %v8320 = vadd.f32 %v7926, %v8216
        %v8321 = vadd.f32 %v7931, %v8221
        %v8322 = vadd.f32 %v7934, %v8224
        %v8323 = vadd.f32 %v7939, %v8229
        %v8324 = vadd.f32 %v7942, %v8232
        %v8325 = vadd.f32 %v7947, %v8237
        %v8326 = vadd.f32 %v7950, %v8240
        %v8327 = vadd.f32 %v7955, %v8245
        %v8328 = vadd.f32 %v7958, %v8248
        %v8329 = vadd.f32 %v7963, %v8253
        %v8330 = vadd.f32 %v7966, %v8256
        %v8331 = vadd.f32 %v7971, %v8261
        %v8332 = vadd.f32 %v7974, %v8264
        %v8333 = vadd.f32 %v7979, %v8269
        %v8334 = vadd.f32 %v7982, %v8272
        %v8335 = vadd.f32 %v7987, %v8277
        %v8336 = vadd.f32 %v7990, %v8280
        %v8337 = vadd.f32 %v7995, %v8285
        %v8338 = vadd.f32 %v7998, %v8288
        %v8387 = vrot.slane %v7373, 1
        %v8388 = vrot.slane %v7374, 1
        %v8389 = vsel %vm4135, %v8387, %v8388
        %v8390 = vrot.slane %v7375, 1
        %v8391 = vsel %vm4135, %v8388, %v8390
        %v8392 = vrot.slane %v7376, 1
        %v8393 = vrot.slane %v7377, 1
        %v8394 = vsel %vm4135, %v8392, %v8393
        %v8395 = vrot.slane %v7378, 1
        %v8396 = vsel %vm4135, %v8393, %v8395
        %v8397 = vrot.slane %v7379, 1
        %v8398 = vrot.slane %v7380, 1
        %v8399 = vsel %vm4135, %v8397, %v8398
        %v8400 = vrot.slane %v7381, 1
        %v8401 = vsel %vm4135, %v8398, %v8400
        %v8402 = vrot.slane %v7382, 1
        %v8403 = vrot.slane %v7383, 1
        %v8404 = vsel %vm4135, %v8402, %v8403
        %v8405 = vrot.slane %v7384, 1
        %v8406 = vsel %vm4135, %v8403, %v8405
        %v8407 = vrot.slane %v7385, 1
        %v8408 = vrot.slane %v7386, 1
        %v8409 = vsel %vm4135, %v8407, %v8408
        %v8410 = vrot.slane %v7387, 1
        %v8411 = vsel %vm4135, %v8408, %v8410
        %v8412 = vrot.slane %v7388, 1
        %v8413 = vrot.slane %v7389, 1
        %v8414 = vsel %vm4135, %v8412, %v8413
        %v8415 = vrot.slane %v7390, 1
        %v8416 = vsel %vm4135, %v8413, %v8415
        %v8417 = vrot.slane %v7391, 1
        %v8418 = vrot.slane %v7392, 1
        %v8419 = vsel %vm4135, %v8417, %v8418
        %v8420 = vrot.slane %v7393, 1
        %v8421 = vsel %vm4135, %v8418, %v8420
        %v8422 = vrot.slane %v7394, 1
        %v8423 = vrot.slane %v7395, 1
        %v8424 = vsel %vm4135, %v8422, %v8423
        %v8425 = vrot.slane %v7396, 1
        %v8426 = vsel %vm4135, %v8423, %v8425
        %v8427 = vrot.slane %v7397, 1
        %v8428 = vrot.slane %v7398, 1
        %v8429 = vsel %vm4135, %v8427, %v8428
        %v8430 = vrot.slane %v7399, 1
        %v8431 = vsel %vm4135, %v8428, %v8430
        %v8432 = vrot.slane %v7400, 1
        %v8433 = vrot.slane %v7401, 1
        %v8434 = vsel %vm4135, %v8432, %v8433
        %v8435 = vrot.slane %v7402, 1
        %v8436 = vsel %vm4135, %v8433, %v8435
        %v8437 = vrot.slane %v7403, 1
        %v8438 = vrot.slane %v7404, 1
        %v8439 = vsel %vm4135, %v8437, %v8438
        %v8440 = vrot.slane %v7405, 1
        %v8441 = vsel %vm4135, %v8438, %v8440
        %v8442 = vrot.slane %v7406, 1
        %v8443 = vrot.slane %v7407, 1
        %v8444 = vsel %vm4135, %v8442, %v8443
        %v8445 = vrot.slane %v7408, 1
        %v8446 = vsel %vm4135, %v8443, %v8445
        %v8447 = vrot.slane %v7409, 1
        %v8448 = vrot.slane %v7410, 1
        %v8449 = vsel %vm4135, %v8447, %v8448
        %v8450 = vrot.slane %v7411, 1
        %v8451 = vsel %vm4135, %v8448, %v8450
        %v8452 = vrot.slane %v7412, 1
        %v8453 = vrot.slane %v7413, 1
        %v8454 = vsel %vm4135, %v8452, %v8453
        %v8455 = vrot.slane %v7414, 1
        %v8456 = vsel %vm4135, %v8453, %v8455
        %v8457 = vrot.slane %v7415, 1
        %v8458 = vrot.slane %v7416, 1
        %v8459 = vsel %vm4135, %v8457, %v8458
        %v8460 = vrot.slane %v7417, 1
        %v8461 = vsel %vm4135, %v8458, %v8460
        %v8462 = vrot.slane %v7418, 1
        %v8463 = vrot.slane %v7419, 1
        %v8464 = vsel %vm4135, %v8462, %v8463
        %v8465 = vrot.slane %v7420, 1
        %v8466 = vsel %vm4135, %v8463, %v8465
        %v8499 = vadd.f32 %v6471, %v8389
        %v8500 = vadd.f32 %v6472, %v8391
        %v8501 = vadd.f32 %v6473, %v8394
        %v8502 = vadd.f32 %v6474, %v8396
        %v8503 = vadd.f32 %v6475, %v8399
        %v8504 = vadd.f32 %v6476, %v8401
        %v8505 = vadd.f32 %v6477, %v8404
        %v8506 = vadd.f32 %v6478, %v8406
        %v8507 = vadd.f32 %v6479, %v8409
        %v8508 = vadd.f32 %v6480, %v8411
        %v8509 = vadd.f32 %v6481, %v8414
        %v8510 = vadd.f32 %v6482, %v8416
        %v8511 = vadd.f32 %v6483, %v8419
        %v8512 = vadd.f32 %v6484, %v8421
        %v8513 = vadd.f32 %v6485, %v8424
        %v8514 = vadd.f32 %v6486, %v8426
        %v8515 = vadd.f32 %v6487, %v8429
        %v8516 = vadd.f32 %v6488, %v8431
        %v8517 = vadd.f32 %v6489, %v8434
        %v8518 = vadd.f32 %v6490, %v8436
        %v8519 = vadd.f32 %v6491, %v8439
        %v8520 = vadd.f32 %v6492, %v8441
        %v8521 = vadd.f32 %v6493, %v8444
        %v8522 = vadd.f32 %v6494, %v8446
        %v8523 = vadd.f32 %v6495, %v8449
        %v8524 = vadd.f32 %v6496, %v8451
        %v8525 = vadd.f32 %v6497, %v8454
        %v8526 = vadd.f32 %v6498, %v8456
        %v8527 = vadd.f32 %v6499, %v8459
        %v8528 = vadd.f32 %v6500, %v8461
        %v8529 = vadd.f32 %v6501, %v8464
        %v8530 = vadd.f32 %v6502, %v8466
        %v8579 = vrot.slane %v8291, 2
        %v8580 = vrot.slane %v8292, 2
        %v8581 = vsel %vm4328, %v8579, %v8580
        %v8582 = vrot.slane %v8293, 2
        %v8583 = vsel %vm4328, %v8580, %v8582
        %v8584 = vrot.slane %v8294, 2
        %v8585 = vrot.slane %v8295, 2
        %v8586 = vsel %vm4328, %v8584, %v8585
        %v8587 = vrot.slane %v8296, 2
        %v8588 = vsel %vm4328, %v8585, %v8587
        %v8589 = vrot.slane %v8297, 2
        %v8590 = vrot.slane %v8298, 2
        %v8591 = vsel %vm4328, %v8589, %v8590
        %v8592 = vrot.slane %v8299, 2
        %v8593 = vsel %vm4328, %v8590, %v8592
        %v8594 = vrot.slane %v8300, 2
        %v8595 = vrot.slane %v8301, 2
        %v8596 = vsel %vm4328, %v8594, %v8595
        %v8597 = vrot.slane %v8302, 2
        %v8598 = vsel %vm4328, %v8595, %v8597
        %v8599 = vrot.slane %v8303, 2
        %v8600 = vrot.slane %v8304, 2
        %v8601 = vsel %vm4328, %v8599, %v8600
        %v8602 = vrot.slane %v8305, 2
        %v8603 = vsel %vm4328, %v8600, %v8602
        %v8604 = vrot.slane %v8306, 2
        %v8605 = vrot.slane %v8307, 2
        %v8606 = vsel %vm4328, %v8604, %v8605
        %v8607 = vrot.slane %v8308, 2
        %v8608 = vsel %vm4328, %v8605, %v8607
        %v8609 = vrot.slane %v8309, 2
        %v8610 = vrot.slane %v8310, 2
        %v8611 = vsel %vm4328, %v8609, %v8610
        %v8612 = vrot.slane %v8311, 2
        %v8613 = vsel %vm4328, %v8610, %v8612
        %v8614 = vrot.slane %v8312, 2
        %v8615 = vrot.slane %v8313, 2
        %v8616 = vsel %vm4328, %v8614, %v8615
        %v8617 = vrot.slane %v8314, 2
        %v8618 = vsel %vm4328, %v8615, %v8617
        %v8619 = vrot.slane %v8315, 2
        %v8620 = vrot.slane %v8316, 2
        %v8621 = vsel %vm4328, %v8619, %v8620
        %v8622 = vrot.slane %v8317, 2
        %v8623 = vsel %vm4328, %v8620, %v8622
        %v8624 = vrot.slane %v8318, 2
        %v8625 = vrot.slane %v8319, 2
        %v8626 = vsel %vm4328, %v8624, %v8625
        %v8627 = vrot.slane %v8320, 2
        %v8628 = vsel %vm4328, %v8625, %v8627
        %v8629 = vrot.slane %v8321, 2
        %v8630 = vrot.slane %v8322, 2
        %v8631 = vsel %vm4328, %v8629, %v8630
        %v8632 = vrot.slane %v8323, 2
        %v8633 = vsel %vm4328, %v8630, %v8632
        %v8634 = vrot.slane %v8324, 2
        %v8635 = vrot.slane %v8325, 2
        %v8636 = vsel %vm4328, %v8634, %v8635
        %v8637 = vrot.slane %v8326, 2
        %v8638 = vsel %vm4328, %v8635, %v8637
        %v8639 = vrot.slane %v8327, 2
        %v8640 = vrot.slane %v8328, 2
        %v8641 = vsel %vm4328, %v8639, %v8640
        %v8642 = vrot.slane %v8329, 2
        %v8643 = vsel %vm4328, %v8640, %v8642
        %v8644 = vrot.slane %v8330, 2
        %v8645 = vrot.slane %v8331, 2
        %v8646 = vsel %vm4328, %v8644, %v8645
        %v8647 = vrot.slane %v8332, 2
        %v8648 = vsel %vm4328, %v8645, %v8647
        %v8649 = vrot.slane %v8333, 2
        %v8650 = vrot.slane %v8334, 2
        %v8651 = vsel %vm4328, %v8649, %v8650
        %v8652 = vrot.slane %v8335, 2
        %v8653 = vsel %vm4328, %v8650, %v8652
        %v8654 = vrot.slane %v8336, 2
        %v8655 = vrot.slane %v8337, 2
        %v8656 = vsel %vm4328, %v8654, %v8655
        %v8657 = vrot.slane %v8338, 2
        %v8658 = vsel %vm4328, %v8655, %v8657
        %v8691 = vadd.f32 %v8499, %v8581
        %v8692 = vadd.f32 %v8500, %v8583
        %v8693 = vadd.f32 %v8501, %v8586
        %v8694 = vadd.f32 %v8502, %v8588
        %v8695 = vadd.f32 %v8503, %v8591
        %v8696 = vadd.f32 %v8504, %v8593
        %v8697 = vadd.f32 %v8505, %v8596
        %v8698 = vadd.f32 %v8506, %v8598
        %v8699 = vadd.f32 %v8507, %v8601
        %v8700 = vadd.f32 %v8508, %v8603
        %v8701 = vadd.f32 %v8509, %v8606
        %v8702 = vadd.f32 %v8510, %v8608
        %v8703 = vadd.f32 %v8511, %v8611
        %v8704 = vadd.f32 %v8512, %v8613
        %v8705 = vadd.f32 %v8513, %v8616
        %v8706 = vadd.f32 %v8514, %v8618
        %v8707 = vadd.f32 %v8515, %v8621
        %v8708 = vadd.f32 %v8516, %v8623
        %v8709 = vadd.f32 %v8517, %v8626
        %v8710 = vadd.f32 %v8518, %v8628
        %v8711 = vadd.f32 %v8519, %v8631
        %v8712 = vadd.f32 %v8520, %v8633
        %v8713 = vadd.f32 %v8521, %v8636
        %v8714 = vadd.f32 %v8522, %v8638
        %v8715 = vadd.f32 %v8523, %v8641
        %v8716 = vadd.f32 %v8524, %v8643
        %v8717 = vadd.f32 %v8525, %v8646
        %v8718 = vadd.f32 %v8526, %v8648
        %v8719 = vadd.f32 %v8527, %v8651
        %v8720 = vadd.f32 %v8528, %v8653
        %v8721 = vadd.f32 %v8529, %v8656
        %v8722 = vadd.f32 %v8530, %v8658
        %v8724 = vlaneseq
        %v8725 = vshrl.u32 %v8724, 7
        %v8726 = vsub.s32 0, %v8725
        %v8727 = vrot.slane %v5072, %v8726
        %v8729 = vadd.f32 %v8691, %v8727
        %v8730 = vadd.f32 %v8692, %v8727
        %v8731 = vadd.f32 %v8693, %v8727
        %v8732 = vadd.f32 %v8694, %v8727
        %v8733 = vadd.f32 %v8695, %v8727
        %v8734 = vadd.f32 %v8696, %v8727
        %v8735 = vadd.f32 %v8697, %v8727
        %v8736 = vadd.f32 %v8698, %v8727
        %v8737 = vadd.f32 %v8699, %v8727
        %v8738 = vadd.f32 %v8700, %v8727
        %v8739 = vadd.f32 %v8701, %v8727
        %v8740 = vadd.f32 %v8702, %v8727
        %v8741 = vadd.f32 %v8703, %v8727
        %v8742 = vadd.f32 %v8704, %v8727
        %v8743 = vadd.f32 %v8705, %v8727
        %v8744 = vadd.f32 %v8706, %v8727
        %v8745 = vadd.f32 %v8707, %v8727
        %v8746 = vadd.f32 %v8708, %v8727
        %v8747 = vadd.f32 %v8709, %v8727
        %v8748 = vadd.f32 %v8710, %v8727
        %v8749 = vadd.f32 %v8711, %v8727
        %v8750 = vadd.f32 %v8712, %v8727
        %v8751 = vadd.f32 %v8713, %v8727
        %v8752 = vadd.f32 %v8714, %v8727
        %v8753 = vadd.f32 %v8715, %v8727
        %v8754 = vadd.f32 %v8716, %v8727
        %v8755 = vadd.f32 %v8717, %v8727
        %v8756 = vadd.f32 %v8718, %v8727
        %v8757 = vadd.f32 %v8719, %v8727
        %v8758 = vadd.f32 %v8720, %v8727
        %v8759 = vadd.f32 %v8721, %v8727
        %v8760 = vadd.f32 %v8722, %v8727
        %v8761 = vld [vmem:[%s237] sm:$0xf]
        %v8762 = vld [vmem:[%s237 + $0x4] sm:$0xf]
        %v8763 = vld [vmem:[%s237 + $0x8] sm:$0xf]
        %v8764 = vld [vmem:[%s237 + $0xc] sm:$0xf]
        %v8765 = vld [vmem:[%s237 + $0x10] sm:$0xf]
        %v8766 = vld [vmem:[%s237 + $0x14] sm:$0xf]
        %v8767 = vld [vmem:[%s237 + $0x18] sm:$0xf]
        %v8768 = vld [vmem:[%s237 + $0x1c] sm:$0xf]
        %v8769 = vld [vmem:[%s237 + $0x20] sm:$0xf]
        %v8770 = vld [vmem:[%s237 + $0x24] sm:$0xf]
        %v8771 = vld [vmem:[%s237 + $0x28] sm:$0xf]
        %v8772 = vld [vmem:[%s237 + $0x2c] sm:$0xf]
        %v8773 = vld [vmem:[%s237 + $0x30] sm:$0xf]
        %v8774 = vld [vmem:[%s237 + $0x34] sm:$0xf]
        %v8775 = vld [vmem:[%s237 + $0x38] sm:$0xf]
        %v8776 = vld [vmem:[%s237 + $0x3c] sm:$0xf]
        %v8777 = vld [vmem:[%s237 + $0x40] sm:$0xf]
        %v8778 = vld [vmem:[%s237 + $0x44] sm:$0xf]
        %v8779 = vld [vmem:[%s237 + $0x48] sm:$0xf]
        %v8780 = vld [vmem:[%s237 + $0x4c] sm:$0xf]
        %v8781 = vld [vmem:[%s237 + $0x50] sm:$0xf]
        %v8782 = vld [vmem:[%s237 + $0x54] sm:$0xf]
        %v8783 = vld [vmem:[%s237 + $0x58] sm:$0xf]
        %v8784 = vld [vmem:[%s237 + $0x5c] sm:$0xf]
        %v8785 = vld [vmem:[%s237 + $0x60] sm:$0xf]
        %v8786 = vld [vmem:[%s237 + $0x64] sm:$0xf]
        %v8787 = vld [vmem:[%s237 + $0x68] sm:$0xf]
        %v8788 = vld [vmem:[%s237 + $0x6c] sm:$0xf]
        %v8789 = vld [vmem:[%s237 + $0x70] sm:$0xf]
        %v8790 = vld [vmem:[%s237 + $0x74] sm:$0xf]
        %v8791 = vld [vmem:[%s237 + $0x78] sm:$0xf]
        %v8792 = vld [vmem:[%s237 + $0x7c] sm:$0xf]
        %v8793 = vunpack.c.l.bf16 %v8761
        %v8794 = vunpack.c.l.bf16 %v8762
        %v8795 = vunpack.c.l.bf16 %v8763
        %v8796 = vunpack.c.l.bf16 %v8764
        %v8797 = vunpack.c.l.bf16 %v8765
        %v8798 = vunpack.c.l.bf16 %v8766
        %v8799 = vunpack.c.l.bf16 %v8767
        %v8800 = vunpack.c.l.bf16 %v8768
        %v8801 = vunpack.c.l.bf16 %v8769
        %v8802 = vunpack.c.l.bf16 %v8770
        %v8803 = vunpack.c.l.bf16 %v8771
        %v8804 = vunpack.c.l.bf16 %v8772
        %v8805 = vunpack.c.l.bf16 %v8773
        %v8806 = vunpack.c.l.bf16 %v8774
        %v8807 = vunpack.c.l.bf16 %v8775
        %v8808 = vunpack.c.l.bf16 %v8776
        %v8809 = vunpack.c.l.bf16 %v8777
        %v8810 = vunpack.c.l.bf16 %v8778
        %v8811 = vunpack.c.l.bf16 %v8779
        %v8812 = vunpack.c.l.bf16 %v8780
        %v8813 = vunpack.c.l.bf16 %v8781
        %v8814 = vunpack.c.l.bf16 %v8782
        %v8815 = vunpack.c.l.bf16 %v8783
        %v8816 = vunpack.c.l.bf16 %v8784
        %v8817 = vunpack.c.l.bf16 %v8785
        %v8818 = vunpack.c.l.bf16 %v8786
        %v8819 = vunpack.c.l.bf16 %v8787
        %v8820 = vunpack.c.l.bf16 %v8788
        %v8821 = vunpack.c.l.bf16 %v8789
        %v8822 = vunpack.c.l.bf16 %v8790
        %v8823 = vunpack.c.l.bf16 %v8791
        %v8824 = vunpack.c.l.bf16 %v8792
        %v8825 = vadd.f32 %v8729, %v8793
        %v8826 = vadd.f32 %v8730, %v8794
        %v8827 = vadd.f32 %v8731, %v8795
        %v8828 = vadd.f32 %v8732, %v8796
        %v8829 = vadd.f32 %v8733, %v8797
        %v8830 = vadd.f32 %v8734, %v8798
        %v8831 = vadd.f32 %v8735, %v8799
        %v8832 = vadd.f32 %v8736, %v8800
        %v8833 = vadd.f32 %v8737, %v8801
        %v8834 = vadd.f32 %v8738, %v8802
        %v8835 = vadd.f32 %v8739, %v8803
        %v8836 = vadd.f32 %v8740, %v8804
        %v8837 = vadd.f32 %v8741, %v8805
        %v8838 = vadd.f32 %v8742, %v8806
        %v8839 = vadd.f32 %v8743, %v8807
        %v8840 = vadd.f32 %v8744, %v8808
        %v8841 = vadd.f32 %v8745, %v8809
        %v8842 = vadd.f32 %v8746, %v8810
        %v8843 = vadd.f32 %v8747, %v8811
        %v8844 = vadd.f32 %v8748, %v8812
        %v8845 = vadd.f32 %v8749, %v8813
        %v8846 = vadd.f32 %v8750, %v8814
        %v8847 = vadd.f32 %v8751, %v8815
        %v8848 = vadd.f32 %v8752, %v8816
        %v8849 = vadd.f32 %v8753, %v8817
        %v8850 = vadd.f32 %v8754, %v8818
        %v8851 = vadd.f32 %v8755, %v8819
        %v8852 = vadd.f32 %v8756, %v8820
        %v8853 = vadd.f32 %v8757, %v8821
        %v8854 = vadd.f32 %v8758, %v8822
        %v8855 = vadd.f32 %v8759, %v8823
        %v8856 = vadd.f32 %v8760, %v8824
        %v8857 = vmax.f32 %v8825, 0.0
        %v8858 = vmax.f32 %v8826, 0.0
        %v8859 = vmax.f32 %v8827, 0.0
        %v8860 = vmax.f32 %v8828, 0.0
        %v8861 = vmax.f32 %v8829, 0.0
        %v8862 = vmax.f32 %v8830, 0.0
        %v8863 = vmax.f32 %v8831, 0.0
        %v8864 = vmax.f32 %v8832, 0.0
        %v8865 = vmax.f32 %v8833, 0.0
        %v8866 = vmax.f32 %v8834, 0.0
        %v8867 = vmax.f32 %v8835, 0.0
        %v8868 = vmax.f32 %v8836, 0.0
        %v8869 = vmax.f32 %v8837, 0.0
        %v8870 = vmax.f32 %v8838, 0.0
        %v8871 = vmax.f32 %v8839, 0.0
        %v8872 = vmax.f32 %v8840, 0.0
        %v8873 = vmax.f32 %v8841, 0.0
        %v8874 = vmax.f32 %v8842, 0.0
        %v8875 = vmax.f32 %v8843, 0.0
        %v8876 = vmax.f32 %v8844, 0.0
        %v8877 = vmax.f32 %v8845, 0.0
        %v8878 = vmax.f32 %v8846, 0.0
        %v8879 = vmax.f32 %v8847, 0.0
        %v8880 = vmax.f32 %v8848, 0.0
        %v8881 = vmax.f32 %v8849, 0.0
        %v8882 = vmax.f32 %v8850, 0.0
        %v8883 = vmax.f32 %v8851, 0.0
        %v8884 = vmax.f32 %v8852, 0.0
        %v8885 = vmax.f32 %v8853, 0.0
        %v8886 = vmax.f32 %v8854, 0.0
        %v8887 = vmax.f32 %v8855, 0.0
        %v8888 = vmax.f32 %v8856, 0.0
        %8889 = vst [vmem:[%s232] sm:$0xff] %v8857
        %8890 = vst [vmem:[%s232 + $0x8] sm:$0xff] %v8858
        %8891 = vst [vmem:[%s232 + $0x10] sm:$0xff] %v8859
        %8892 = vst [vmem:[%s232 + $0x18] sm:$0xff] %v8860
        %8893 = vst [vmem:[%s232 + $0x20] sm:$0xff] %v8861
        %8894 = vst [vmem:[%s232 + $0x28] sm:$0xff] %v8862
        %8895 = vst [vmem:[%s232 + $0x30] sm:$0xff] %v8863
        %8896 = vst [vmem:[%s232 + $0x38] sm:$0xff] %v8864
        %8897 = vst [vmem:[%s232 + $0x40] sm:$0xff] %v8865
        %8898 = vst [vmem:[%s232 + $0x48] sm:$0xff] %v8866
        %8899 = vst [vmem:[%s232 + $0x50] sm:$0xff] %v8867
        %8900 = vst [vmem:[%s232 + $0x58] sm:$0xff] %v8868
        %8901 = vst [vmem:[%s232 + $0x60] sm:$0xff] %v8869
        %8902 = vst [vmem:[%s232 + $0x68] sm:$0xff] %v8870
        %8903 = vst [vmem:[%s232 + $0x70] sm:$0xff] %v8871
        %8904 = vst [vmem:[%s232 + $0x78] sm:$0xff] %v8872
        %8905 = vst [vmem:[%s232 + $0x80] sm:$0xff] %v8873
        %8906 = vst [vmem:[%s232 + $0x88] sm:$0xff] %v8874
        %8907 = vst [vmem:[%s232 + $0x90] sm:$0xff] %v8875
        %8908 = vst [vmem:[%s232 + $0x98] sm:$0xff] %v8876
        %8909 = vst [vmem:[%s232 + $0xa0] sm:$0xff] %v8877
        %8910 = vst [vmem:[%s232 + $0xa8] sm:$0xff] %v8878
        %8911 = vst [vmem:[%s232 + $0xb0] sm:$0xff] %v8879
        %8912 = vst [vmem:[%s232 + $0xb8] sm:$0xff] %v8880
        %8913 = vst [vmem:[%s232 + $0xc0] sm:$0xff] %v8881
        %8914 = vst [vmem:[%s232 + $0xc8] sm:$0xff] %v8882
        %8915 = vst [vmem:[%s232 + $0xd0] sm:$0xff] %v8883
        %8916 = vst [vmem:[%s232 + $0xd8] sm:$0xff] %v8884
        %8917 = vst [vmem:[%s232 + $0xe0] sm:$0xff] %v8885
        %8918 = vst [vmem:[%s232 + $0xe8] sm:$0xff] %v8886
        %8919 = vst [vmem:[%s232 + $0xf0] sm:$0xff] %v8887
        %8920 = vst [vmem:[%s232 + $0xf8] sm:$0xff] %v8888
        %s8921 = sand.u32 %s138, 1
        %s8922 = scalar_lea.sflag [#allocation6], %s8921
        %s8923 = sand.u32 %s138, 1
        %s8924 = smul.addr %s8923, 256
        %s8925 = scalar_lea.vmem [#allocation7], %s8924
        // Predicated region
        $region45: #{_lambda_.1} parent=39 // pred_check
          %p8926 = pneg %p148
        $region46: #{_lambda_.1} parent=39 // pred_check_branch
          %8928 = sbr.rel (%p8926) target = $region48
        $region47: #{_lambda_.1} parent=39 // pred_region
          %s8930 = ssub.s32 4096, 4096
          %8931 = vsyncadd %s8922, %s8930
          %s8932 = smul.addr %s20, 32
          %s8933 = smul.addr %s8932, 128
          %s8934 = scalar_lea.hbm %s5, %s8933
          %s8935 = sshll.u32 %s8925, 4
          %s8936 = int_to_ptr.vmem [resolvable:$true] %s8935
          %8941 = dma.vmem_to_hbm [thread:$0]  %s8936, 4096, %s8934, %s8922, 128, 128, 8
        $region48: #{_lambda_.1} parent=39 // pred_fallthru
          _
      $region40: #{_lambda_.1} parent=5 // pred_fallthru
        _
      %p8942 = scmp.le.s32.totalorder 2, %s15
      // Predicated region
      $region49: #{_lambda_.1} parent=5 // pred_check
        %p8943 = pneg %p8942
      $region50: #{_lambda_.1} parent=5 // pred_check_branch
        %8945 = sbr.rel (%p8943) target = $region52
      $region51: #{_lambda_.1} parent=5 // pred_region
        %s8946 = ssub.s32 %s15, 2
        // Predicated region
        $region53: #{_lambda_.1} parent=51 // pred_check
          %p8947 = pneg %p154
        $region54: #{_lambda_.1} parent=51 // pred_check_branch
          %8949 = sbr.rel (%p8947) target = $region56
        $region55: #{_lambda_.1} parent=51 // pred_region
          %s8950 = sand.u32 %s139, 1
          %s8951 = scalar_lea.sflag [#allocation6], %s8950
          %s8952 = sand.u32 %s139, 1
          %s8953 = smul.addr %s8952, 256
          %s8954 = scalar_lea.vmem [#allocation7], %s8953
          %8955 = dma.done %s8951, 4096
        $region56: #{_lambda_.1} parent=51 // pred_fallthru
          _
      $region52: #{_lambda_.1} parent=5 // pred_fallthru
        _
    $region6: #{_lambda_.1} parent=1 // loop_footer
      %s19 = sadd.s32 1, %s15
    $region7: #{_lambda_.1} parent=1 // loop_footer_branch
      %14 = sbr.rel target = $region3
    $region8: #{_lambda_.1} parent=1 // loop_exit
      _
    %8956 = vsyncpa [#allocation5], 1
    %s8957 = scalar_lea.sflag [#allocation5], 1
    %8958 = vsyncpa %s8957, 1
    %8959 = vsyncpa [#allocation6], 1
    %s8960 = scalar_lea.sflag [#allocation6], 1
    %8961 = vsyncpa %s8960, 1

</llo_original>
